<compile_context>
chip_gen: v5e
topology: v5e:2x2
jax: 0.10.0
libtpu: 0.0.40
codegen_flags: <defaults>
</compile_context>

<pallas_src>
import functools

import jax
import jax.numpy as jnp
from jax.experimental import pallas as pl
from jax.experimental.pallas import tpu as pltpu

# ---- static geometry (3x32x32 input, LeNet-style ConvNet) -------------------------
W1 = 28            # conv1 output width == row stride of every internal slab
K = 5              # conv kernel size
C1_IN = 3
C1_OUT = 32
C2_OUT = 64
FC1_OUT, FC2_OUT = 120, 84
LANES = 128

# Row extents (all multiples of 8), derived so every read stays in-bounds:
N_P2 = 128         # pooled2 rows   (fc1 taps read rows <= 116 + 7   = 123)
N_C2 = 288         # conv2 rows     (pool2 reads rows   <= 2*127 + 29 = 283)
N_P1P = 408        # packed pooled1 (conv2 reads rows   <= 116 + 287  = 403)
N_P1 = 416         # pooled1 rows   (packing reads rows <= 407 + 3    = 410)
N_C1 = 864         # conv1 rows     (pool1 reads rows   <= 2*415 + 29 = 859)
IM_ROWS = N_C1     # im2col input rows per image (784 real, tail zero-padded)

C2_CHUNK = 144     # conv2 register-accumulation chunk (2 chunks cover 288 rows)
# conv2 dot order: d=0..4 -> tap group (i=d, j=0..3), d=5..9 -> tap (i=d-5, j=4)
C2_SHIFTS = tuple([i * W1 for i in range(K)] + [i * W1 + 4 for i in range(K)])
# fc1 tap order: p = hp*5 + wp, reading pooled2 slab row hp*28 + wp
FC1_SHIFTS = tuple(hp * W1 + wp for hp in range(K) for wp in range(K))

VMEM_LIMIT = 32 * 1024 * 1024


# ------------------------------------------------------------------------------------
# fused per-image kernel
# ------------------------------------------------------------------------------------
def _convnet_kernel(x_ref, w1_ref, b1_ref, w2_ref, b2_ref,
                    wf1_ref, bf1_ref, wf2_ref, bf2_ref, wf3_ref, bf3_ref,
                    o_ref,
                    c1_ref, p1_ref, p1p_ref, c2_ref, p2_ref):
    # ---- conv1: single dense im2col dot, one store pass (no tap RMW) ---------------
    c1_ref[...] = jnp.dot(x_ref[0], w1_ref[...],
                          preferred_element_type=jnp.float32)

    # ---- pool1 (2x2/2) with bias+ReLU fused into the epilogue ----------------------
    q00 = c1_ref[pl.ds(0, N_P1, 2), :]
    q01 = c1_ref[pl.ds(1, N_P1, 2), :]
    q10 = c1_ref[pl.ds(W1, N_P1, 2), :]
    q11 = c1_ref[pl.ds(W1 + 1, N_P1, 2), :]
    m1 = jnp.maximum(jnp.maximum(q00, q01), jnp.maximum(q10, q11))
    p1_ref[...] = jnp.maximum(m1 + b1_ref[...], 0.0)          # f32, channels 4x-replicated

    # ---- pack 4 column(w)-shifted 32-channel copies into the 4 lane groups ---------
    lane = jax.lax.broadcasted_iota(jnp.int32, (N_P1P, LANES), 1)
    s0 = p1_ref[pl.ds(0, N_P1P), :]
    s1 = p1_ref[pl.ds(1, N_P1P), :]
    s2 = p1_ref[pl.ds(2, N_P1P), :]
    s3 = p1_ref[pl.ds(3, N_P1P), :]
    packed = jnp.where(lane < 32, s0,
                       jnp.where(lane < 64, s1,
                                 jnp.where(lane < 96, s2, s3)))
    p1p_ref[...] = packed.astype(p1p_ref.dtype)

    # ---- conv2: 10 dense K=128 dots, register accumulation per row chunk -----------
    for base in range(0, N_C2, C2_CHUNK):
        acc = jnp.dot(p1p_ref[pl.ds(C2_SHIFTS[0] + base, C2_CHUNK), :], w2_ref[0],
                      preferred_element_type=jnp.float32)
        for d in range(1, len(C2_SHIFTS)):
            acc = acc + jnp.dot(p1p_ref[pl.ds(C2_SHIFTS[d] + base, C2_CHUNK), :],
                                w2_ref[d], preferred_element_type=jnp.float32)
        c2_ref[pl.ds(base, C2_CHUNK), :] = acc

    # ---- pool2 (2x2/2) with bias+ReLU fused into the epilogue ----------------------
    r00 = c2_ref[pl.ds(0, N_P2, 2), :]
    r01 = c2_ref[pl.ds(1, N_P2, 2), :]
    r10 = c2_ref[pl.ds(W1, N_P2, 2), :]
    r11 = c2_ref[pl.ds(W1 + 1, N_P2, 2), :]
    m2 = jnp.maximum(jnp.maximum(r00, r01), jnp.maximum(r10, r11))
    p2_ref[...] = jnp.maximum(m2 + b2_ref[...], 0.0).astype(p2_ref.dtype)

    # ---- fc1 (25 spatial taps over the pooled2 slab) + ReLU + fc2 + ReLU + fc3 -----
    # Row 0 of each 8-row block is the real image; rows 1..7 are finite junk (sliced
    # off on the host), so no feature gather / relayout is ever needed.
    h = jnp.dot(p2_ref[pl.ds(FC1_SHIFTS[0], 8), :], wf1_ref[0],
                preferred_element_type=jnp.float32)
    for p in range(1, len(FC1_SHIFTS)):
        h = h + jnp.dot(p2_ref[pl.ds(FC1_SHIFTS[p], 8), :], wf1_ref[p],
                        preferred_element_type=jnp.float32)
    h = jnp.maximum(h + bf1_ref[...], 0.0)
    h = jnp.dot(h.astype(jnp.bfloat16), wf2_ref[...], preferred_element_type=jnp.float32)
    h = jnp.maximum(h + bf2_ref[...], 0.0)
    h = jnp.dot(h.astype(jnp.bfloat16), wf3_ref[...], preferred_element_type=jnp.float32)
    o_ref[0] = h + bf3_ref[...]


# ------------------------------------------------------------------------------------
# forward pass: one pallas_call, grid = (batch,)
# ------------------------------------------------------------------------------------
def convnet_forward(params, x, *, num_classes):
    b, c, h, w = x.shape
    assert (c, h, w) == (C1_IN, 32, 32)

    # Host-side im2col packing for conv1 (the only host glue): lane = (i*5+j)*3 + c.
    xn = jnp.transpose(x, (0, 2, 3, 1))                                    # NHWC
    pats = [xn[:, i:i + W1, j:j + W1, :] for i in range(K) for j in range(K)]
    x1p = jnp.concatenate(pats, axis=-1).reshape(b, W1 * W1, K * K * C1_IN)
    x1p = jnp.pad(x1p, ((0, 0), (0, IM_ROWS - W1 * W1),
                        (0, LANES - K * K * C1_IN))).astype(jnp.bfloat16)  # (B, 864, 128)

    operands = (x1p, params["w1"], params["b1"], params["w2"], params["b2"],
                params["wf1"], params["bf1"], params["wf2"], params["bf2"],
                params["wf3"], params["bf3"])
    flops_per_img = 2 * (N_C1 * LANES * LANES
                         + len(C2_SHIFTS) * N_C2 * LANES * LANES
                         + (len(FC1_SHIFTS) + 2) * 8 * LANES * LANES)
    bytes_accessed = (sum(int(a.size) * a.dtype.itemsize for a in operands)
                      + b * 8 * LANES * 4)

    out = pl.pallas_call(
        _convnet_kernel,
        out_shape=jax.ShapeDtypeStruct((b, 8, LANES), jnp.float32),
        grid=(b,),
        in_specs=[
            pl.BlockSpec((1, IM_ROWS, LANES), lambda i: (i, 0, 0)),   # im2col image
            pl.BlockSpec((LANES, LANES), lambda i: (0, 0)),           # conv1 weight
            pl.BlockSpec((1, LANES), lambda i: (0, 0)),               # conv1 bias
            pl.BlockSpec((10, LANES, LANES), lambda i: (0, 0, 0)),    # conv2 packed taps
            pl.BlockSpec((1, LANES), lambda i: (0, 0)),               # conv2 bias
            pl.BlockSpec((25, LANES, LANES), lambda i: (0, 0, 0)),    # fc1 per-tap weights
            pl.BlockSpec((1, LANES), lambda i: (0, 0)),               # fc1 bias
            pl.BlockSpec((LANES, LANES), lambda i: (0, 0)),           # fc2 weight
            pl.BlockSpec((1, LANES), lambda i: (0, 0)),               # fc2 bias
            pl.BlockSpec((LANES, LANES), lambda i: (0, 0)),           # fc3 weight
            pl.BlockSpec((1, LANES), lambda i: (0, 0)),               # fc3 bias
        ],
        out_specs=pl.BlockSpec((1, 8, LANES), lambda i: (i, 0, 0)),
        scratch_shapes=[
            pltpu.VMEM((N_C1, LANES), jnp.float32),    # conv1 accumulator slab
            pltpu.VMEM((N_P1, LANES), jnp.float32),    # pooled1 (channels replicated 4x)
            pltpu.VMEM((N_P1P, LANES), jnp.bfloat16),  # pooled1, lane-group packed
            pltpu.VMEM((N_C2, LANES), jnp.float32),    # conv2 accumulator slab
            pltpu.VMEM((N_P2, LANES), jnp.bfloat16),   # pooled2 slab
        ],
        compiler_params=pltpu.CompilerParams(
            dimension_semantics=("parallel",),
            vmem_limit_bytes=VMEM_LIMIT),
        cost_estimate=pl.CostEstimate(flops=b * flops_per_img, transcendentals=0,
                                      bytes_accessed=int(bytes_accessed)),
    )(*operands)
    return out[:, 0, :num_classes]


# ------------------------------------------------------------------------------------
# parameters (PyTorch layouts) + one-time conversion to kernel layouts
# ------------------------------------------------------------------------------------
def init_params(key, num_classes):
    ks = jax.random.split(key, 10)
    p = {}
    p["conv1_w"] = jax.random.normal(ks[0], (32, 3, 5, 5), jnp.float32) * 0.05
    p["conv1_b"] = jax.random.normal(ks[1], (32,), jnp.float32) * 0.05
    p["conv2_w"] = jax.random.normal(ks[2], (64, 32, 5, 5), jnp.float32) * 0.02
    p["conv2_b"] = jax.random.normal(ks[3], (64,), jnp.float32) * 0.02
    p["fc1_w"] = jax.random.normal(ks[4], (64 * 5 * 5, 120), jnp.float32) * 0.02
    p["fc1_b"] = jax.random.normal(ks[5], (120,), jnp.float32) * 0.02
    p["fc2_w"] = jax.random.normal(ks[6], (120, 84), jnp.float32) * 0.05
    p["fc2_b"] = jax.random.normal(ks[7], (84,), jnp.float32) * 0.05
    p["fc3_w"] = jax.random.normal(ks[8], (84, num_classes), jnp.float32) * 0.05
    p["fc3_b"] = jax.random.normal(ks[9], (num_classes,), jnp.float32) * 0.05
    return p


def prepare_params(p, num_classes):
    assert num_classes <= LANES
    q = {}
    # conv1: im2col weight, K-row = (i*5+j)*3 + cin; output channels replicated 4x.
    w1 = jnp.transpose(p["conv1_w"], (2, 3, 1, 0)).reshape(K * K * C1_IN, C1_OUT)
    w1 = jnp.pad(w1, ((0, LANES - K * K * C1_IN), (0, 0)))
    q["w1"] = jnp.tile(w1, (1, 4)).astype(jnp.bfloat16)                    # (128,128)
    q["b1"] = jnp.tile(p["conv1_b"], 4).reshape(1, LANES).astype(jnp.float32)
    # conv2: 10 lane-group packed tap weights, K-row = g*32 + cin (g = kw offset).
    w2 = jnp.transpose(p["conv2_w"], (2, 3, 1, 0))                         # (kh,kw,ci,co)
    grp = w2[:, 0:4].reshape(K, 4 * C1_OUT, C2_OUT)                        # (5,128,64)
    j4 = jnp.pad(w2[:, 4], ((0, 0), (0, LANES - C1_OUT), (0, 0)))          # (5,128,64)
    w2p = jnp.concatenate([grp, j4], axis=0)                               # (10,128,64)
    q["w2"] = jnp.pad(w2p, ((0, 0), (0, 0), (0, LANES - C2_OUT))).astype(jnp.bfloat16)
    q["b2"] = jnp.pad(p["conv2_b"], (0, LANES - C2_OUT)).reshape(1, LANES).astype(jnp.float32)
    # fc1: PyTorch flatten order is (c, h, w); split into 25 per-(h,w)-tap weights.
    f1 = p["fc1_w"].reshape(C2_OUT, K, K, FC1_OUT).transpose(1, 2, 0, 3).reshape(
        K * K, C2_OUT, FC1_OUT)
    q["wf1"] = jnp.pad(f1, ((0, 0), (0, LANES - C2_OUT),
                            (0, LANES - FC1_OUT))).astype(jnp.bfloat16)    # (25,128,128)
    q["bf1"] = jnp.pad(p["fc1_b"], (0, LANES - FC1_OUT)).reshape(1, LANES).astype(jnp.float32)
    q["wf2"] = jnp.pad(p["fc2_w"], ((0, LANES - FC1_OUT),
                                    (0, LANES - FC2_OUT))).astype(jnp.bfloat16)
    q["bf2"] = jnp.pad(p["fc2_b"], (0, LANES - FC2_OUT)).reshape(1, LANES).astype(jnp.float32)
    q["wf3"] = jnp.pad(p["fc3_w"], ((0, LANES - FC2_OUT),
                                    (0, LANES - num_classes))).astype(jnp.bfloat16)
    q["bf3"] = jnp.pad(p["fc3_b"], (0, LANES - num_classes)).reshape(1, LANES).astype(jnp.float32)
    return q


# ------------------------------------------------------------------------------------
# pure-JAX reference (PyTorch semantics) for validation
# ------------------------------------------------------------------------------------
def convnet_reference(p, x):
    dn = ("NCHW", "OIHW", "NCHW")
    y = jax.lax.conv_general_dilated(x, p["conv1_w"], (1, 1), "VALID", dimension_numbers=dn)
    y = jax.nn.relu(y + p["conv1_b"][None, :, None, None])
    y = jax.lax.reduce_window(y, -jnp.inf, jax.lax.max, (1, 1, 2, 2), (1, 1, 2, 2), "VALID")
    y = jax.lax.conv_general_dilated(y, p["conv2_w"], (1, 1), "VALID", dimension_numbers=dn)
    y = jax.nn.relu(y + p["conv2_b"][None, :, None, None])
    y = jax.lax.reduce_window(y, -jnp.inf, jax.lax.max, (1, 1, 2, 2), (1, 1, 2, 2), "VALID")
    y = y.reshape(y.shape[0], -1)
    y = jax.nn.relu(y @ p["fc1_w"] + p["fc1_b"])
    y = jax.nn.relu(y @ p["fc2_w"] + p["fc2_b"])
    return y @ p["fc3_w"] + p["fc3_b"]


if __name__ == "__main__":
    num_classes = 10
    key = jax.random.PRNGKey(0)
    k_param, k_x = jax.random.split(key)
    raw_params = init_params(k_param, num_classes)
    params = prepare_params(raw_params, num_classes)
    x = jax.random.normal(k_x, (2, 3, 32, 32), jnp.float32)   # batch=2, NCHW (CIFAR size)

    fwd = jax.jit(functools.partial(convnet_forward, num_classes=num_classes))
    out = jax.block_until_ready(fwd(params, x))

    assert out.shape == (2, num_classes), out.shape
    assert out.dtype == jnp.float32
    assert bool(jnp.all(jnp.isfinite(out)))
    ref = convnet_reference(raw_params, x)
    assert bool(jnp.allclose(out, ref, rtol=0.05, atol=0.02)), (out, ref)
    print("KERNEL_OK")
</pallas_src>

<mosaic_0001>
module attributes {stable_mosaic.version = 11 : i64} {
  func.func @_convnet_kernel(%arg0: i32, %arg1: memref<1x864x128xbf16, #tpu.memory_space<vmem>>, %arg2: memref<128x128xbf16, #tpu.memory_space<vmem>>, %arg3: memref<1x128xf32, #tpu.memory_space<vmem>>, %arg4: memref<10x128x128xbf16, #tpu.memory_space<vmem>>, %arg5: memref<1x128xf32, #tpu.memory_space<vmem>>, %arg6: memref<25x128x128xbf16, #tpu.memory_space<vmem>>, %arg7: memref<1x128xf32, #tpu.memory_space<vmem>>, %arg8: memref<128x128xbf16, #tpu.memory_space<vmem>>, %arg9: memref<1x128xf32, #tpu.memory_space<vmem>>, %arg10: memref<128x128xbf16, #tpu.memory_space<vmem>>, %arg11: memref<1x128xf32, #tpu.memory_space<vmem>>, %arg12: memref<1x8x128xf32, #tpu.memory_space<vmem>>, %arg13: memref<864x128xf32, #tpu.memory_space<vmem>>, %arg14: memref<416x128xf32, #tpu.memory_space<vmem>>, %arg15: memref<408x128xbf16, #tpu.memory_space<vmem>>, %arg16: memref<288x128xf32, #tpu.memory_space<vmem>>, %arg17: memref<128x128xbf16, #tpu.memory_space<vmem>>) attributes {dimension_semantics = [#tpu.dimension_semantics<parallel>], iteration_bounds = array<i64: 2>, scalar_prefetch = 0 : i64, scratch_operands = 5 : i64, tpu.core_type = #tpu.core_type<tc>, window_params = [{transform_indices = @transform_0, window_bounds = array<i64: 1, 864, 128>}, {pipeline_mode = #tpu.pipeline_mode<synchronous>, transform_indices = @transform_1, window_bounds = array<i64: 128, 128>}, {pipeline_mode = #tpu.pipeline_mode<synchronous>, transform_indices = @transform_2, window_bounds = array<i64: 1, 128>}, {pipeline_mode = #tpu.pipeline_mode<synchronous>, transform_indices = @transform_3, window_bounds = array<i64: 10, 128, 128>}, {pipeline_mode = #tpu.pipeline_mode<synchronous>, transform_indices = @transform_4, window_bounds = array<i64: 1, 128>}, {pipeline_mode = #tpu.pipeline_mode<synchronous>, transform_indices = @transform_5, window_bounds = array<i64: 25, 128, 128>}, {pipeline_mode = #tpu.pipeline_mode<synchronous>, transform_indices = @transform_6, window_bounds = array<i64: 1, 128>}, {pipeline_mode = #tpu.pipeline_mode<synchronous>, transform_indices = @transform_7, window_bounds = array<i64: 128, 128>}, {pipeline_mode = #tpu.pipeline_mode<synchronous>, transform_indices = @transform_8, window_bounds = array<i64: 1, 128>}, {pipeline_mode = #tpu.pipeline_mode<synchronous>, transform_indices = @transform_9, window_bounds = array<i64: 128, 128>}, {pipeline_mode = #tpu.pipeline_mode<synchronous>, transform_indices = @transform_10, window_bounds = array<i64: 1, 128>}, {transform_indices = @transform_11, window_bounds = array<i64: 1, 8, 128>}]} {
    %c0 = arith.constant 0 : index
    %c0_0 = arith.constant 0 : index
    %c0_1 = arith.constant 0 : index
    %0 = vector.load %arg1[%c0, %c0_0, %c0_1] : memref<1x864x128xbf16, #tpu.memory_space<vmem>>, vector<1x864x128xbf16>
    %1 = vector.shape_cast %0 : vector<1x864x128xbf16> to vector<864x128xbf16>
    %c0_2 = arith.constant 0 : index
    %c0_3 = arith.constant 0 : index
    %2 = vector.load %arg2[%c0_2, %c0_3] : memref<128x128xbf16, #tpu.memory_space<vmem>>, vector<128x128xbf16>
    %cst = arith.constant dense<0.000000e+00> : vector<864x128xf32>
    %3 = tpu.matmul %1, %2, %cst {dimension_numbers = #tpu.dot_dimension_numbers<[1], [0], [0], [1], [0, 0, 1, 1], [], []>} : vector<864x128xbf16>, vector<128x128xbf16>, vector<864x128xf32> -> vector<864x128xf32>
    %c0_4 = arith.constant 0 : index
    %c0_5 = arith.constant 0 : index
    %4 = vector.load %arg13[%c0_4, %c0_5] : memref<864x128xf32, #tpu.memory_space<vmem>>, vector<864x128xf32>
    tpu.vector_store %arg13[%c0_4, %c0_5], %3 {strides = array<i32>} : memref<864x128xf32, #tpu.memory_space<vmem>>, vector<864x128xf32>,
    %c0_6 = arith.constant 0 : index
    %c0_7 = arith.constant 0 : index
    %5 = tpu.strided_load %arg13[%c0_6, %c0_7] {strides = array<i32: 2, 1>} : memref<864x128xf32, #tpu.memory_space<vmem>>, vector<416x128xf32>
    %c1 = arith.constant 1 : index
    %c0_8 = arith.constant 0 : index
    %6 = tpu.strided_load %arg13[%c1, %c0_8] {strides = array<i32: 2, 1>} : memref<864x128xf32, #tpu.memory_space<vmem>>, vector<416x128xf32>
    %c28 = arith.constant 28 : index
    %c0_9 = arith.constant 0 : index
    %7 = tpu.strided_load %arg13[%c28, %c0_9] {strides = array<i32: 2, 1>} : memref<864x128xf32, #tpu.memory_space<vmem>>, vector<416x128xf32>
    %c29 = arith.constant 29 : index
    %c0_10 = arith.constant 0 : index
    %8 = tpu.strided_load %arg13[%c29, %c0_10] {strides = array<i32: 2, 1>} : memref<864x128xf32, #tpu.memory_space<vmem>>, vector<416x128xf32>
    %9 = arith.maximumf %5, %6 : vector<416x128xf32>
    %10 = arith.maximumf %7, %8 : vector<416x128xf32>
    %11 = arith.maximumf %9, %10 : vector<416x128xf32>
    %c0_11 = arith.constant 0 : index
    %c0_12 = arith.constant 0 : index
    %12 = vector.load %arg3[%c0_11, %c0_12] : memref<1x128xf32, #tpu.memory_space<vmem>>, vector<1x128xf32>
    %13 = vector.broadcast %12 : vector<1x128xf32> to vector<416x128xf32>
    %14 = arith.addf %11, %13 : vector<416x128xf32>
    %cst_13 = arith.constant 0.000000e+00 : f32
    %15 = vector.broadcast %cst_13 : f32 to vector<416x128xf32>
    %16 = arith.maximumf %14, %15 : vector<416x128xf32>
    %c0_14 = arith.constant 0 : index
    %c0_15 = arith.constant 0 : index
    %17 = vector.load %arg14[%c0_14, %c0_15] : memref<416x128xf32, #tpu.memory_space<vmem>>, vector<416x128xf32>
    tpu.vector_store %arg14[%c0_14, %c0_15], %16 {strides = array<i32>} : memref<416x128xf32, #tpu.memory_space<vmem>>, vector<416x128xf32>,
    %18 = tpu.iota {dimensions = array<i32: 1>} : vector<408x128xi32>
    %c0_16 = arith.constant 0 : index
    %c0_17 = arith.constant 0 : index
    %19 = vector.load %arg14[%c0_16, %c0_17] : memref<416x128xf32, #tpu.memory_space<vmem>>, vector<408x128xf32>
    %c1_18 = arith.constant 1 : index
    %c0_19 = arith.constant 0 : index
    %20 = vector.load %arg14[%c1_18, %c0_19] : memref<416x128xf32, #tpu.memory_space<vmem>>, vector<408x128xf32>
    %c2 = arith.constant 2 : index
    %c0_20 = arith.constant 0 : index
    %21 = vector.load %arg14[%c2, %c0_20] : memref<416x128xf32, #tpu.memory_space<vmem>>, vector<408x128xf32>
    %c3 = arith.constant 3 : index
    %c0_21 = arith.constant 0 : index
    %22 = vector.load %arg14[%c3, %c0_21] : memref<416x128xf32, #tpu.memory_space<vmem>>, vector<408x128xf32>
    %c32_i32 = arith.constant 32 : i32
    %23 = vector.broadcast %c32_i32 : i32 to vector<408x128xi32>
    %24 = arith.cmpi slt, %18, %23 : vector<408x128xi32>
    %c64_i32 = arith.constant 64 : i32
    %25 = vector.broadcast %c64_i32 : i32 to vector<408x128xi32>
    %26 = arith.cmpi slt, %18, %25 : vector<408x128xi32>
    %c96_i32 = arith.constant 96 : i32
    %27 = vector.broadcast %c96_i32 : i32 to vector<408x128xi32>
    %28 = arith.cmpi slt, %18, %27 : vector<408x128xi32>
    %29 = arith.select %28, %21, %22 : vector<408x128xi1>, vector<408x128xf32>
    %30 = arith.select %26, %20, %29 : vector<408x128xi1>, vector<408x128xf32>
    %31 = arith.select %24, %19, %30 : vector<408x128xi1>, vector<408x128xf32>
    %32 = arith.truncf %31 : vector<408x128xf32> to vector<408x128xbf16>
    %c0_22 = arith.constant 0 : index
    %c0_23 = arith.constant 0 : index
    %33 = vector.load %arg15[%c0_22, %c0_23] : memref<408x128xbf16, #tpu.memory_space<vmem>>, vector<408x128xbf16>
    tpu.vector_store %arg15[%c0_22, %c0_23], %32 {strides = array<i32>} : memref<408x128xbf16, #tpu.memory_space<vmem>>, vector<408x128xbf16>,
    %c0_24 = arith.constant 0 : index
    %c0_25 = arith.constant 0 : index
    %34 = vector.load %arg15[%c0_24, %c0_25] : memref<408x128xbf16, #tpu.memory_space<vmem>>, vector<144x128xbf16>
    %c0_26 = arith.constant 0 : index
    %c0_27 = arith.constant 0 : index
    %c0_28 = arith.constant 0 : index
    %35 = vector.load %arg4[%c0_26, %c0_27, %c0_28] : memref<10x128x128xbf16, #tpu.memory_space<vmem>>, vector<1x128x128xbf16>
    %36 = vector.shape_cast %35 : vector<1x128x128xbf16> to vector<128x128xbf16>
    %cst_29 = arith.constant dense<0.000000e+00> : vector<144x128xf32>
    %37 = tpu.matmul %34, %36, %cst_29 {dimension_numbers = #tpu.dot_dimension_numbers<[1], [0], [0], [1], [0, 0, 1, 1], [], []>} : vector<144x128xbf16>, vector<128x128xbf16>, vector<144x128xf32> -> vector<144x128xf32>
    %c28_30 = arith.constant 28 : index
    %c0_31 = arith.constant 0 : index
    %38 = vector.load %arg15[%c28_30, %c0_31] : memref<408x128xbf16, #tpu.memory_space<vmem>>, vector<144x128xbf16>
    %c1_32 = arith.constant 1 : index
    %c0_33 = arith.constant 0 : index
    %c0_34 = arith.constant 0 : index
    %39 = vector.load %arg4[%c1_32, %c0_33, %c0_34] : memref<10x128x128xbf16, #tpu.memory_space<vmem>>, vector<1x128x128xbf16>
    %40 = vector.shape_cast %39 : vector<1x128x128xbf16> to vector<128x128xbf16>
    %cst_35 = arith.constant dense<0.000000e+00> : vector<144x128xf32>
    %41 = tpu.matmul %38, %40, %cst_35 {dimension_numbers = #tpu.dot_dimension_numbers<[1], [0], [0], [1], [0, 0, 1, 1], [], []>} : vector<144x128xbf16>, vector<128x128xbf16>, vector<144x128xf32> -> vector<144x128xf32>
    %42 = arith.addf %37, %41 : vector<144x128xf32>
    %c56 = arith.constant 56 : index
    %c0_36 = arith.constant 0 : index
    %43 = vector.load %arg15[%c56, %c0_36] : memref<408x128xbf16, #tpu.memory_space<vmem>>, vector<144x128xbf16>
    %c2_37 = arith.constant 2 : index
    %c0_38 = arith.constant 0 : index
    %c0_39 = arith.constant 0 : index
    %44 = vector.load %arg4[%c2_37, %c0_38, %c0_39] : memref<10x128x128xbf16, #tpu.memory_space<vmem>>, vector<1x128x128xbf16>
    %45 = vector.shape_cast %44 : vector<1x128x128xbf16> to vector<128x128xbf16>
    %cst_40 = arith.constant dense<0.000000e+00> : vector<144x128xf32>
    %46 = tpu.matmul %43, %45, %cst_40 {dimension_numbers = #tpu.dot_dimension_numbers<[1], [0], [0], [1], [0, 0, 1, 1], [], []>} : vector<144x128xbf16>, vector<128x128xbf16>, vector<144x128xf32> -> vector<144x128xf32>
    %47 = arith.addf %42, %46 : vector<144x128xf32>
    %c84 = arith.constant 84 : index
    %c0_41 = arith.constant 0 : index
    %48 = vector.load %arg15[%c84, %c0_41] : memref<408x128xbf16, #tpu.memory_space<vmem>>, vector<144x128xbf16>
    %c3_42 = arith.constant 3 : index
    %c0_43 = arith.constant 0 : index
    %c0_44 = arith.constant 0 : index
    %49 = vector.load %arg4[%c3_42, %c0_43, %c0_44] : memref<10x128x128xbf16, #tpu.memory_space<vmem>>, vector<1x128x128xbf16>
    %50 = vector.shape_cast %49 : vector<1x128x128xbf16> to vector<128x128xbf16>
    %cst_45 = arith.constant dense<0.000000e+00> : vector<144x128xf32>
    %51 = tpu.matmul %48, %50, %cst_45 {dimension_numbers = #tpu.dot_dimension_numbers<[1], [0], [0], [1], [0, 0, 1, 1], [], []>} : vector<144x128xbf16>, vector<128x128xbf16>, vector<144x128xf32> -> vector<144x128xf32>
    %52 = arith.addf %47, %51 : vector<144x128xf32>
    %c112 = arith.constant 112 : index
    %c0_46 = arith.constant 0 : index
    %53 = vector.load %arg15[%c112, %c0_46] : memref<408x128xbf16, #tpu.memory_space<vmem>>, vector<144x128xbf16>
    %c4 = arith.constant 4 : index
    %c0_47 = arith.constant 0 : index
    %c0_48 = arith.constant 0 : index
    %54 = vector.load %arg4[%c4, %c0_47, %c0_48] : memref<10x128x128xbf16, #tpu.memory_space<vmem>>, vector<1x128x128xbf16>
    %55 = vector.shape_cast %54 : vector<1x128x128xbf16> to vector<128x128xbf16>
    %cst_49 = arith.constant dense<0.000000e+00> : vector<144x128xf32>
    %56 = tpu.matmul %53, %55, %cst_49 {dimension_numbers = #tpu.dot_dimension_numbers<[1], [0], [0], [1], [0, 0, 1, 1], [], []>} : vector<144x128xbf16>, vector<128x128xbf16>, vector<144x128xf32> -> vector<144x128xf32>
    %57 = arith.addf %52, %56 : vector<144x128xf32>
    %c4_50 = arith.constant 4 : index
    %c0_51 = arith.constant 0 : index
    %58 = vector.load %arg15[%c4_50, %c0_51] : memref<408x128xbf16, #tpu.memory_space<vmem>>, vector<144x128xbf16>
    %c5 = arith.constant 5 : index
    %c0_52 = arith.constant 0 : index
    %c0_53 = arith.constant 0 : index
    %59 = vector.load %arg4[%c5, %c0_52, %c0_53] : memref<10x128x128xbf16, #tpu.memory_space<vmem>>, vector<1x128x128xbf16>
    %60 = vector.shape_cast %59 : vector<1x128x128xbf16> to vector<128x128xbf16>
    %cst_54 = arith.constant dense<0.000000e+00> : vector<144x128xf32>
    %61 = tpu.matmul %58, %60, %cst_54 {dimension_numbers = #tpu.dot_dimension_numbers<[1], [0], [0], [1], [0, 0, 1, 1], [], []>} : vector<144x128xbf16>, vector<128x128xbf16>, vector<144x128xf32> -> vector<144x128xf32>
    %62 = arith.addf %57, %61 : vector<144x128xf32>
    %c32 = arith.constant 32 : index
    %c0_55 = arith.constant 0 : index
    %63 = vector.load %arg15[%c32, %c0_55] : memref<408x128xbf16, #tpu.memory_space<vmem>>, vector<144x128xbf16>
    %c6 = arith.constant 6 : index
    %c0_56 = arith.constant 0 : index
    %c0_57 = arith.constant 0 : index
    %64 = vector.load %arg4[%c6, %c0_56, %c0_57] : memref<10x128x128xbf16, #tpu.memory_space<vmem>>, vector<1x128x128xbf16>
    %65 = vector.shape_cast %64 : vector<1x128x128xbf16> to vector<128x128xbf16>
    %cst_58 = arith.constant dense<0.000000e+00> : vector<144x128xf32>
    %66 = tpu.matmul %63, %65, %cst_58 {dimension_numbers = #tpu.dot_dimension_numbers<[1], [0], [0], [1], [0, 0, 1, 1], [], []>} : vector<144x128xbf16>, vector<128x128xbf16>, vector<144x128xf32> -> vector<144x128xf32>
    %67 = arith.addf %62, %66 : vector<144x128xf32>
    %c60 = arith.constant 60 : index
    %c0_59 = arith.constant 0 : index
    %68 = vector.load %arg15[%c60, %c0_59] : memref<408x128xbf16, #tpu.memory_space<vmem>>, vector<144x128xbf16>
    %c7 = arith.constant 7 : index
    %c0_60 = arith.constant 0 : index
    %c0_61 = arith.constant 0 : index
    %69 = vector.load %arg4[%c7, %c0_60, %c0_61] : memref<10x128x128xbf16, #tpu.memory_space<vmem>>, vector<1x128x128xbf16>
    %70 = vector.shape_cast %69 : vector<1x128x128xbf16> to vector<128x128xbf16>
    %cst_62 = arith.constant dense<0.000000e+00> : vector<144x128xf32>
    %71 = tpu.matmul %68, %70, %cst_62 {dimension_numbers = #tpu.dot_dimension_numbers<[1], [0], [0], [1], [0, 0, 1, 1], [], []>} : vector<144x128xbf16>, vector<128x128xbf16>, vector<144x128xf32> -> vector<144x128xf32>
    %72 = arith.addf %67, %71 : vector<144x128xf32>
    %c88 = arith.constant 88 : index
    %c0_63 = arith.constant 0 : index
    %73 = vector.load %arg15[%c88, %c0_63] : memref<408x128xbf16, #tpu.memory_space<vmem>>, vector<144x128xbf16>
    %c8 = arith.constant 8 : index
    %c0_64 = arith.constant 0 : index
    %c0_65 = arith.constant 0 : index
    %74 = vector.load %arg4[%c8, %c0_64, %c0_65] : memref<10x128x128xbf16, #tpu.memory_space<vmem>>, vector<1x128x128xbf16>
    %75 = vector.shape_cast %74 : vector<1x128x128xbf16> to vector<128x128xbf16>
    %cst_66 = arith.constant dense<0.000000e+00> : vector<144x128xf32>
    %76 = tpu.matmul %73, %75, %cst_66 {dimension_numbers = #tpu.dot_dimension_numbers<[1], [0], [0], [1], [0, 0, 1, 1], [], []>} : vector<144x128xbf16>, vector<128x128xbf16>, vector<144x128xf32> -> vector<144x128xf32>
    %77 = arith.addf %72, %76 : vector<144x128xf32>
    %c116 = arith.constant 116 : index
    %c0_67 = arith.constant 0 : index
    %78 = vector.load %arg15[%c116, %c0_67] : memref<408x128xbf16, #tpu.memory_space<vmem>>, vector<144x128xbf16>
    %c9 = arith.constant 9 : index
    %c0_68 = arith.constant 0 : index
    %c0_69 = arith.constant 0 : index
    %79 = vector.load %arg4[%c9, %c0_68, %c0_69] : memref<10x128x128xbf16, #tpu.memory_space<vmem>>, vector<1x128x128xbf16>
    %80 = vector.shape_cast %79 : vector<1x128x128xbf16> to vector<128x128xbf16>
    %cst_70 = arith.constant dense<0.000000e+00> : vector<144x128xf32>
    %81 = tpu.matmul %78, %80, %cst_70 {dimension_numbers = #tpu.dot_dimension_numbers<[1], [0], [0], [1], [0, 0, 1, 1], [], []>} : vector<144x128xbf16>, vector<128x128xbf16>, vector<144x128xf32> -> vector<144x128xf32>
    %82 = arith.addf %77, %81 : vector<144x128xf32>
    %c0_71 = arith.constant 0 : index
    %c0_72 = arith.constant 0 : index
    %83 = vector.load %arg16[%c0_71, %c0_72] : memref<288x128xf32, #tpu.memory_space<vmem>>, vector<144x128xf32>
    tpu.vector_store %arg16[%c0_71, %c0_72], %82 {strides = array<i32>} : memref<288x128xf32, #tpu.memory_space<vmem>>, vector<144x128xf32>,
    %c144 = arith.constant 144 : index
    %c0_73 = arith.constant 0 : index
    %84 = vector.load %arg15[%c144, %c0_73] : memref<408x128xbf16, #tpu.memory_space<vmem>>, vector<144x128xbf16>
    %c0_74 = arith.constant 0 : index
    %c0_75 = arith.constant 0 : index
    %c0_76 = arith.constant 0 : index
    %85 = vector.load %arg4[%c0_74, %c0_75, %c0_76] : memref<10x128x128xbf16, #tpu.memory_space<vmem>>, vector<1x128x128xbf16>
    %86 = vector.shape_cast %85 : vector<1x128x128xbf16> to vector<128x128xbf16>
    %cst_77 = arith.constant dense<0.000000e+00> : vector<144x128xf32>
    %87 = tpu.matmul %84, %86, %cst_77 {dimension_numbers = #tpu.dot_dimension_numbers<[1], [0], [0], [1], [0, 0, 1, 1], [], []>} : vector<144x128xbf16>, vector<128x128xbf16>, vector<144x128xf32> -> vector<144x128xf32>
    %c172 = arith.constant 172 : index
    %c0_78 = arith.constant 0 : index
    %88 = vector.load %arg15[%c172, %c0_78] : memref<408x128xbf16, #tpu.memory_space<vmem>>, vector<144x128xbf16>
    %c1_79 = arith.constant 1 : index
    %c0_80 = arith.constant 0 : index
    %c0_81 = arith.constant 0 : index
    %89 = vector.load %arg4[%c1_79, %c0_80, %c0_81] : memref<10x128x128xbf16, #tpu.memory_space<vmem>>, vector<1x128x128xbf16>
    %90 = vector.shape_cast %89 : vector<1x128x128xbf16> to vector<128x128xbf16>
    %cst_82 = arith.constant dense<0.000000e+00> : vector<144x128xf32>
    %91 = tpu.matmul %88, %90, %cst_82 {dimension_numbers = #tpu.dot_dimension_numbers<[1], [0], [0], [1], [0, 0, 1, 1], [], []>} : vector<144x128xbf16>, vector<128x128xbf16>, vector<144x128xf32> -> vector<144x128xf32>
    %92 = arith.addf %87, %91 : vector<144x128xf32>
    %c200 = arith.constant 200 : index
    %c0_83 = arith.constant 0 : index
    %93 = vector.load %arg15[%c200, %c0_83] : memref<408x128xbf16, #tpu.memory_space<vmem>>, vector<144x128xbf16>
    %c2_84 = arith.constant 2 : index
    %c0_85 = arith.constant 0 : index
    %c0_86 = arith.constant 0 : index
    %94 = vector.load %arg4[%c2_84, %c0_85, %c0_86] : memref<10x128x128xbf16, #tpu.memory_space<vmem>>, vector<1x128x128xbf16>
    %95 = vector.shape_cast %94 : vector<1x128x128xbf16> to vector<128x128xbf16>
    %cst_87 = arith.constant dense<0.000000e+00> : vector<144x128xf32>
    %96 = tpu.matmul %93, %95, %cst_87 {dimension_numbers = #tpu.dot_dimension_numbers<[1], [0], [0], [1], [0, 0, 1, 1], [], []>} : vector<144x128xbf16>, vector<128x128xbf16>, vector<144x128xf32> -> vector<144x128xf32>
    %97 = arith.addf %92, %96 : vector<144x128xf32>
    %c228 = arith.constant 228 : index
    %c0_88 = arith.constant 0 : index
    %98 = vector.load %arg15[%c228, %c0_88] : memref<408x128xbf16, #tpu.memory_space<vmem>>, vector<144x128xbf16>
    %c3_89 = arith.constant 3 : index
    %c0_90 = arith.constant 0 : index
    %c0_91 = arith.constant 0 : index
    %99 = vector.load %arg4[%c3_89, %c0_90, %c0_91] : memref<10x128x128xbf16, #tpu.memory_space<vmem>>, vector<1x128x128xbf16>
    %100 = vector.shape_cast %99 : vector<1x128x128xbf16> to vector<128x128xbf16>
    %cst_92 = arith.constant dense<0.000000e+00> : vector<144x128xf32>
    %101 = tpu.matmul %98, %100, %cst_92 {dimension_numbers = #tpu.dot_dimension_numbers<[1], [0], [0], [1], [0, 0, 1, 1], [], []>} : vector<144x128xbf16>, vector<128x128xbf16>, vector<144x128xf32> -> vector<144x128xf32>
    %102 = arith.addf %97, %101 : vector<144x128xf32>
    %c256 = arith.constant 256 : index
    %c0_93 = arith.constant 0 : index
    %103 = vector.load %arg15[%c256, %c0_93] : memref<408x128xbf16, #tpu.memory_space<vmem>>, vector<144x128xbf16>
    %c4_94 = arith.constant 4 : index
    %c0_95 = arith.constant 0 : index
    %c0_96 = arith.constant 0 : index
    %104 = vector.load %arg4[%c4_94, %c0_95, %c0_96] : memref<10x128x128xbf16, #tpu.memory_space<vmem>>, vector<1x128x128xbf16>
    %105 = vector.shape_cast %104 : vector<1x128x128xbf16> to vector<128x128xbf16>
    %cst_97 = arith.constant dense<0.000000e+00> : vector<144x128xf32>
    %106 = tpu.matmul %103, %105, %cst_97 {dimension_numbers = #tpu.dot_dimension_numbers<[1], [0], [0], [1], [0, 0, 1, 1], [], []>} : vector<144x128xbf16>, vector<128x128xbf16>, vector<144x128xf32> -> vector<144x128xf32>
    %107 = arith.addf %102, %106 : vector<144x128xf32>
    %c148 = arith.constant 148 : index
    %c0_98 = arith.constant 0 : index
    %108 = vector.load %arg15[%c148, %c0_98] : memref<408x128xbf16, #tpu.memory_space<vmem>>, vector<144x128xbf16>
    %c5_99 = arith.constant 5 : index
    %c0_100 = arith.constant 0 : index
    %c0_101 = arith.constant 0 : index
    %109 = vector.load %arg4[%c5_99, %c0_100, %c0_101] : memref<10x128x128xbf16, #tpu.memory_space<vmem>>, vector<1x128x128xbf16>
    %110 = vector.shape_cast %109 : vector<1x128x128xbf16> to vector<128x128xbf16>
    %cst_102 = arith.constant dense<0.000000e+00> : vector<144x128xf32>
    %111 = tpu.matmul %108, %110, %cst_102 {dimension_numbers = #tpu.dot_dimension_numbers<[1], [0], [0], [1], [0, 0, 1, 1], [], []>} : vector<144x128xbf16>, vector<128x128xbf16>, vector<144x128xf32> -> vector<144x128xf32>
    %112 = arith.addf %107, %111 : vector<144x128xf32>
    %c176 = arith.constant 176 : index
    %c0_103 = arith.constant 0 : index
    %113 = vector.load %arg15[%c176, %c0_103] : memref<408x128xbf16, #tpu.memory_space<vmem>>, vector<144x128xbf16>
    %c6_104 = arith.constant 6 : index
    %c0_105 = arith.constant 0 : index
    %c0_106 = arith.constant 0 : index
    %114 = vector.load %arg4[%c6_104, %c0_105, %c0_106] : memref<10x128x128xbf16, #tpu.memory_space<vmem>>, vector<1x128x128xbf16>
    %115 = vector.shape_cast %114 : vector<1x128x128xbf16> to vector<128x128xbf16>
    %cst_107 = arith.constant dense<0.000000e+00> : vector<144x128xf32>
    %116 = tpu.matmul %113, %115, %cst_107 {dimension_numbers = #tpu.dot_dimension_numbers<[1], [0], [0], [1], [0, 0, 1, 1], [], []>} : vector<144x128xbf16>, vector<128x128xbf16>, vector<144x128xf32> -> vector<144x128xf32>
    %117 = arith.addf %112, %116 : vector<144x128xf32>
    %c204 = arith.constant 204 : index
    %c0_108 = arith.constant 0 : index
    %118 = vector.load %arg15[%c204, %c0_108] : memref<408x128xbf16, #tpu.memory_space<vmem>>, vector<144x128xbf16>
    %c7_109 = arith.constant 7 : index
    %c0_110 = arith.constant 0 : index
    %c0_111 = arith.constant 0 : index
    %119 = vector.load %arg4[%c7_109, %c0_110, %c0_111] : memref<10x128x128xbf16, #tpu.memory_space<vmem>>, vector<1x128x128xbf16>
    %120 = vector.shape_cast %119 : vector<1x128x128xbf16> to vector<128x128xbf16>
    %cst_112 = arith.constant dense<0.000000e+00> : vector<144x128xf32>
    %121 = tpu.matmul %118, %120, %cst_112 {dimension_numbers = #tpu.dot_dimension_numbers<[1], [0], [0], [1], [0, 0, 1, 1], [], []>} : vector<144x128xbf16>, vector<128x128xbf16>, vector<144x128xf32> -> vector<144x128xf32>
    %122 = arith.addf %117, %121 : vector<144x128xf32>
    %c232 = arith.constant 232 : index
    %c0_113 = arith.constant 0 : index
    %123 = vector.load %arg15[%c232, %c0_113] : memref<408x128xbf16, #tpu.memory_space<vmem>>, vector<144x128xbf16>
    %c8_114 = arith.constant 8 : index
    %c0_115 = arith.constant 0 : index
    %c0_116 = arith.constant 0 : index
    %124 = vector.load %arg4[%c8_114, %c0_115, %c0_116] : memref<10x128x128xbf16, #tpu.memory_space<vmem>>, vector<1x128x128xbf16>
    %125 = vector.shape_cast %124 : vector<1x128x128xbf16> to vector<128x128xbf16>
    %cst_117 = arith.constant dense<0.000000e+00> : vector<144x128xf32>
    %126 = tpu.matmul %123, %125, %cst_117 {dimension_numbers = #tpu.dot_dimension_numbers<[1], [0], [0], [1], [0, 0, 1, 1], [], []>} : vector<144x128xbf16>, vector<128x128xbf16>, vector<144x128xf32> -> vector<144x128xf32>
    %127 = arith.addf %122, %126 : vector<144x128xf32>
    %c260 = arith.constant 260 : index
    %c0_118 = arith.constant 0 : index
    %128 = vector.load %arg15[%c260, %c0_118] : memref<408x128xbf16, #tpu.memory_space<vmem>>, vector<144x128xbf16>
    %c9_119 = arith.constant 9 : index
    %c0_120 = arith.constant 0 : index
    %c0_121 = arith.constant 0 : index
    %129 = vector.load %arg4[%c9_119, %c0_120, %c0_121] : memref<10x128x128xbf16, #tpu.memory_space<vmem>>, vector<1x128x128xbf16>
    %130 = vector.shape_cast %129 : vector<1x128x128xbf16> to vector<128x128xbf16>
    %cst_122 = arith.constant dense<0.000000e+00> : vector<144x128xf32>
    %131 = tpu.matmul %128, %130, %cst_122 {dimension_numbers = #tpu.dot_dimension_numbers<[1], [0], [0], [1], [0, 0, 1, 1], [], []>} : vector<144x128xbf16>, vector<128x128xbf16>, vector<144x128xf32> -> vector<144x128xf32>
    %132 = arith.addf %127, %131 : vector<144x128xf32>
    %c144_123 = arith.constant 144 : index
    %c0_124 = arith.constant 0 : index
    %133 = vector.load %arg16[%c144_123, %c0_124] : memref<288x128xf32, #tpu.memory_space<vmem>>, vector<144x128xf32>
    tpu.vector_store %arg16[%c144_123, %c0_124], %132 {strides = array<i32>} : memref<288x128xf32, #tpu.memory_space<vmem>>, vector<144x128xf32>,
    %c0_125 = arith.constant 0 : index
    %c0_126 = arith.constant 0 : index
    %134 = tpu.strided_load %arg16[%c0_125, %c0_126] {strides = array<i32: 2, 1>} : memref<288x128xf32, #tpu.memory_space<vmem>>, vector<128x128xf32>
    %c1_127 = arith.constant 1 : index
    %c0_128 = arith.constant 0 : index
    %135 = tpu.strided_load %arg16[%c1_127, %c0_128] {strides = array<i32: 2, 1>} : memref<288x128xf32, #tpu.memory_space<vmem>>, vector<128x128xf32>
    %c28_129 = arith.constant 28 : index
    %c0_130 = arith.constant 0 : index
    %136 = tpu.strided_load %arg16[%c28_129, %c0_130] {strides = array<i32: 2, 1>} : memref<288x128xf32, #tpu.memory_space<vmem>>, vector<128x128xf32>
    %c29_131 = arith.constant 29 : index
    %c0_132 = arith.constant 0 : index
    %137 = tpu.strided_load %arg16[%c29_131, %c0_132] {strides = array<i32: 2, 1>} : memref<288x128xf32, #tpu.memory_space<vmem>>, vector<128x128xf32>
    %138 = arith.maximumf %134, %135 : vector<128x128xf32>
    %139 = arith.maximumf %136, %137 : vector<128x128xf32>
    %140 = arith.maximumf %138, %139 : vector<128x128xf32>
    %c0_133 = arith.constant 0 : index
    %c0_134 = arith.constant 0 : index
    %141 = vector.load %arg5[%c0_133, %c0_134] : memref<1x128xf32, #tpu.memory_space<vmem>>, vector<1x128xf32>
    %142 = vector.broadcast %141 : vector<1x128xf32> to vector<128x128xf32>
    %143 = arith.addf %140, %142 : vector<128x128xf32>
    %cst_135 = arith.constant 0.000000e+00 : f32
    %144 = vector.broadcast %cst_135 : f32 to vector<128x128xf32>
    %145 = arith.maximumf %143, %144 : vector<128x128xf32>
    %146 = arith.truncf %145 : vector<128x128xf32> to vector<128x128xbf16>
    %c0_136 = arith.constant 0 : index
    %c0_137 = arith.constant 0 : index
    %147 = vector.load %arg17[%c0_136, %c0_137] : memref<128x128xbf16, #tpu.memory_space<vmem>>, vector<128x128xbf16>
    tpu.vector_store %arg17[%c0_136, %c0_137], %146 {strides = array<i32>} : memref<128x128xbf16, #tpu.memory_space<vmem>>, vector<128x128xbf16>,
    %c0_138 = arith.constant 0 : index
    %c0_139 = arith.constant 0 : index
    %148 = vector.load %arg17[%c0_138, %c0_139] : memref<128x128xbf16, #tpu.memory_space<vmem>>, vector<8x128xbf16>
    %c0_140 = arith.constant 0 : index
    %c0_141 = arith.constant 0 : index
    %c0_142 = arith.constant 0 : index
    %149 = vector.load %arg6[%c0_140, %c0_141, %c0_142] : memref<25x128x128xbf16, #tpu.memory_space<vmem>>, vector<1x128x128xbf16>
    %150 = vector.shape_cast %149 : vector<1x128x128xbf16> to vector<128x128xbf16>
    %cst_143 = arith.constant dense<0.000000e+00> : vector<8x128xf32>
    %151 = tpu.matmul %148, %150, %cst_143 {dimension_numbers = #tpu.dot_dimension_numbers<[1], [0], [0], [1], [0, 0, 1, 1], [], []>} : vector<8x128xbf16>, vector<128x128xbf16>, vector<8x128xf32> -> vector<8x128xf32>
    %c1_144 = arith.constant 1 : index
    %c0_145 = arith.constant 0 : index
    %152 = vector.load %arg17[%c1_144, %c0_145] : memref<128x128xbf16, #tpu.memory_space<vmem>>, vector<8x128xbf16>
    %c1_146 = arith.constant 1 : index
    %c0_147 = arith.constant 0 : index
    %c0_148 = arith.constant 0 : index
    %153 = vector.load %arg6[%c1_146, %c0_147, %c0_148] : memref<25x128x128xbf16, #tpu.memory_space<vmem>>, vector<1x128x128xbf16>
    %154 = vector.shape_cast %153 : vector<1x128x128xbf16> to vector<128x128xbf16>
    %cst_149 = arith.constant dense<0.000000e+00> : vector<8x128xf32>
    %155 = tpu.matmul %152, %154, %cst_149 {dimension_numbers = #tpu.dot_dimension_numbers<[1], [0], [0], [1], [0, 0, 1, 1], [], []>} : vector<8x128xbf16>, vector<128x128xbf16>, vector<8x128xf32> -> vector<8x128xf32>
    %156 = arith.addf %151, %155 : vector<8x128xf32>
    %c2_150 = arith.constant 2 : index
    %c0_151 = arith.constant 0 : index
    %157 = vector.load %arg17[%c2_150, %c0_151] : memref<128x128xbf16, #tpu.memory_space<vmem>>, vector<8x128xbf16>
    %c2_152 = arith.constant 2 : index
    %c0_153 = arith.constant 0 : index
    %c0_154 = arith.constant 0 : index
    %158 = vector.load %arg6[%c2_152, %c0_153, %c0_154] : memref<25x128x128xbf16, #tpu.memory_space<vmem>>, vector<1x128x128xbf16>
    %159 = vector.shape_cast %158 : vector<1x128x128xbf16> to vector<128x128xbf16>
    %cst_155 = arith.constant dense<0.000000e+00> : vector<8x128xf32>
    %160 = tpu.matmul %157, %159, %cst_155 {dimension_numbers = #tpu.dot_dimension_numbers<[1], [0], [0], [1], [0, 0, 1, 1], [], []>} : vector<8x128xbf16>, vector<128x128xbf16>, vector<8x128xf32> -> vector<8x128xf32>
    %161 = arith.addf %156, %160 : vector<8x128xf32>
    %c3_156 = arith.constant 3 : index
    %c0_157 = arith.constant 0 : index
    %162 = vector.load %arg17[%c3_156, %c0_157] : memref<128x128xbf16, #tpu.memory_space<vmem>>, vector<8x128xbf16>
    %c3_158 = arith.constant 3 : index
    %c0_159 = arith.constant 0 : index
    %c0_160 = arith.constant 0 : index
    %163 = vector.load %arg6[%c3_158, %c0_159, %c0_160] : memref<25x128x128xbf16, #tpu.memory_space<vmem>>, vector<1x128x128xbf16>
    %164 = vector.shape_cast %163 : vector<1x128x128xbf16> to vector<128x128xbf16>
    %cst_161 = arith.constant dense<0.000000e+00> : vector<8x128xf32>
    %165 = tpu.matmul %162, %164, %cst_161 {dimension_numbers = #tpu.dot_dimension_numbers<[1], [0], [0], [1], [0, 0, 1, 1], [], []>} : vector<8x128xbf16>, vector<128x128xbf16>, vector<8x128xf32> -> vector<8x128xf32>
    %166 = arith.addf %161, %165 : vector<8x128xf32>
    %c4_162 = arith.constant 4 : index
    %c0_163 = arith.constant 0 : index
    %167 = vector.load %arg17[%c4_162, %c0_163] : memref<128x128xbf16, #tpu.memory_space<vmem>>, vector<8x128xbf16>
    %c4_164 = arith.constant 4 : index
    %c0_165 = arith.constant 0 : index
    %c0_166 = arith.constant 0 : index
    %168 = vector.load %arg6[%c4_164, %c0_165, %c0_166] : memref<25x128x128xbf16, #tpu.memory_space<vmem>>, vector<1x128x128xbf16>
    %169 = vector.shape_cast %168 : vector<1x128x128xbf16> to vector<128x128xbf16>
    %cst_167 = arith.constant dense<0.000000e+00> : vector<8x128xf32>
    %170 = tpu.matmul %167, %169, %cst_167 {dimension_numbers = #tpu.dot_dimension_numbers<[1], [0], [0], [1], [0, 0, 1, 1], [], []>} : vector<8x128xbf16>, vector<128x128xbf16>, vector<8x128xf32> -> vector<8x128xf32>
    %171 = arith.addf %166, %170 : vector<8x128xf32>
    %c28_168 = arith.constant 28 : index
    %c0_169 = arith.constant 0 : index
    %172 = vector.load %arg17[%c28_168, %c0_169] : memref<128x128xbf16, #tpu.memory_space<vmem>>, vector<8x128xbf16>
    %c5_170 = arith.constant 5 : index
    %c0_171 = arith.constant 0 : index
    %c0_172 = arith.constant 0 : index
    %173 = vector.load %arg6[%c5_170, %c0_171, %c0_172] : memref<25x128x128xbf16, #tpu.memory_space<vmem>>, vector<1x128x128xbf16>
    %174 = vector.shape_cast %173 : vector<1x128x128xbf16> to vector<128x128xbf16>
    %cst_173 = arith.constant dense<0.000000e+00> : vector<8x128xf32>
    %175 = tpu.matmul %172, %174, %cst_173 {dimension_numbers = #tpu.dot_dimension_numbers<[1], [0], [0], [1], [0, 0, 1, 1], [], []>} : vector<8x128xbf16>, vector<128x128xbf16>, vector<8x128xf32> -> vector<8x128xf32>
    %176 = arith.addf %171, %175 : vector<8x128xf32>
    %c29_174 = arith.constant 29 : index
    %c0_175 = arith.constant 0 : index
    %177 = vector.load %arg17[%c29_174, %c0_175] : memref<128x128xbf16, #tpu.memory_space<vmem>>, vector<8x128xbf16>
    %c6_176 = arith.constant 6 : index
    %c0_177 = arith.constant 0 : index
    %c0_178 = arith.constant 0 : index
    %178 = vector.load %arg6[%c6_176, %c0_177, %c0_178] : memref<25x128x128xbf16, #tpu.memory_space<vmem>>, vector<1x128x128xbf16>
    %179 = vector.shape_cast %178 : vector<1x128x128xbf16> to vector<128x128xbf16>
    %cst_179 = arith.constant dense<0.000000e+00> : vector<8x128xf32>
    %180 = tpu.matmul %177, %179, %cst_179 {dimension_numbers = #tpu.dot_dimension_numbers<[1], [0], [0], [1], [0, 0, 1, 1], [], []>} : vector<8x128xbf16>, vector<128x128xbf16>, vector<8x128xf32> -> vector<8x128xf32>
    %181 = arith.addf %176, %180 : vector<8x128xf32>
    %c30 = arith.constant 30 : index
    %c0_180 = arith.constant 0 : index
    %182 = vector.load %arg17[%c30, %c0_180] : memref<128x128xbf16, #tpu.memory_space<vmem>>, vector<8x128xbf16>
    %c7_181 = arith.constant 7 : index
    %c0_182 = arith.constant 0 : index
    %c0_183 = arith.constant 0 : index
    %183 = vector.load %arg6[%c7_181, %c0_182, %c0_183] : memref<25x128x128xbf16, #tpu.memory_space<vmem>>, vector<1x128x128xbf16>
    %184 = vector.shape_cast %183 : vector<1x128x128xbf16> to vector<128x128xbf16>
    %cst_184 = arith.constant dense<0.000000e+00> : vector<8x128xf32>
    %185 = tpu.matmul %182, %184, %cst_184 {dimension_numbers = #tpu.dot_dimension_numbers<[1], [0], [0], [1], [0, 0, 1, 1], [], []>} : vector<8x128xbf16>, vector<128x128xbf16>, vector<8x128xf32> -> vector<8x128xf32>
    %186 = arith.addf %181, %185 : vector<8x128xf32>
    %c31 = arith.constant 31 : index
    %c0_185 = arith.constant 0 : index
    %187 = vector.load %arg17[%c31, %c0_185] : memref<128x128xbf16, #tpu.memory_space<vmem>>, vector<8x128xbf16>
    %c8_186 = arith.constant 8 : index
    %c0_187 = arith.constant 0 : index
    %c0_188 = arith.constant 0 : index
    %188 = vector.load %arg6[%c8_186, %c0_187, %c0_188] : memref<25x128x128xbf16, #tpu.memory_space<vmem>>, vector<1x128x128xbf16>
    %189 = vector.shape_cast %188 : vector<1x128x128xbf16> to vector<128x128xbf16>
    %cst_189 = arith.constant dense<0.000000e+00> : vector<8x128xf32>
    %190 = tpu.matmul %187, %189, %cst_189 {dimension_numbers = #tpu.dot_dimension_numbers<[1], [0], [0], [1], [0, 0, 1, 1], [], []>} : vector<8x128xbf16>, vector<128x128xbf16>, vector<8x128xf32> -> vector<8x128xf32>
    %191 = arith.addf %186, %190 : vector<8x128xf32>
    %c32_190 = arith.constant 32 : index
    %c0_191 = arith.constant 0 : index
    %192 = vector.load %arg17[%c32_190, %c0_191] : memref<128x128xbf16, #tpu.memory_space<vmem>>, vector<8x128xbf16>
    %c9_192 = arith.constant 9 : index
    %c0_193 = arith.constant 0 : index
    %c0_194 = arith.constant 0 : index
    %193 = vector.load %arg6[%c9_192, %c0_193, %c0_194] : memref<25x128x128xbf16, #tpu.memory_space<vmem>>, vector<1x128x128xbf16>
    %194 = vector.shape_cast %193 : vector<1x128x128xbf16> to vector<128x128xbf16>
    %cst_195 = arith.constant dense<0.000000e+00> : vector<8x128xf32>
    %195 = tpu.matmul %192, %194, %cst_195 {dimension_numbers = #tpu.dot_dimension_numbers<[1], [0], [0], [1], [0, 0, 1, 1], [], []>} : vector<8x128xbf16>, vector<128x128xbf16>, vector<8x128xf32> -> vector<8x128xf32>
    %196 = arith.addf %191, %195 : vector<8x128xf32>
    %c56_196 = arith.constant 56 : index
    %c0_197 = arith.constant 0 : index
    %197 = vector.load %arg17[%c56_196, %c0_197] : memref<128x128xbf16, #tpu.memory_space<vmem>>, vector<8x128xbf16>
    %c10 = arith.constant 10 : index
    %c0_198 = arith.constant 0 : index
    %c0_199 = arith.constant 0 : index
    %198 = vector.load %arg6[%c10, %c0_198, %c0_199] : memref<25x128x128xbf16, #tpu.memory_space<vmem>>, vector<1x128x128xbf16>
    %199 = vector.shape_cast %198 : vector<1x128x128xbf16> to vector<128x128xbf16>
    %cst_200 = arith.constant dense<0.000000e+00> : vector<8x128xf32>
    %200 = tpu.matmul %197, %199, %cst_200 {dimension_numbers = #tpu.dot_dimension_numbers<[1], [0], [0], [1], [0, 0, 1, 1], [], []>} : vector<8x128xbf16>, vector<128x128xbf16>, vector<8x128xf32> -> vector<8x128xf32>
    %201 = arith.addf %196, %200 : vector<8x128xf32>
    %c57 = arith.constant 57 : index
    %c0_201 = arith.constant 0 : index
    %202 = vector.load %arg17[%c57, %c0_201] : memref<128x128xbf16, #tpu.memory_space<vmem>>, vector<8x128xbf16>
    %c11 = arith.constant 11 : index
    %c0_202 = arith.constant 0 : index
    %c0_203 = arith.constant 0 : index
    %203 = vector.load %arg6[%c11, %c0_202, %c0_203] : memref<25x128x128xbf16, #tpu.memory_space<vmem>>, vector<1x128x128xbf16>
    %204 = vector.shape_cast %203 : vector<1x128x128xbf16> to vector<128x128xbf16>
    %cst_204 = arith.constant dense<0.000000e+00> : vector<8x128xf32>
    %205 = tpu.matmul %202, %204, %cst_204 {dimension_numbers = #tpu.dot_dimension_numbers<[1], [0], [0], [1], [0, 0, 1, 1], [], []>} : vector<8x128xbf16>, vector<128x128xbf16>, vector<8x128xf32> -> vector<8x128xf32>
    %206 = arith.addf %201, %205 : vector<8x128xf32>
    %c58 = arith.constant 58 : index
    %c0_205 = arith.constant 0 : index
    %207 = vector.load %arg17[%c58, %c0_205] : memref<128x128xbf16, #tpu.memory_space<vmem>>, vector<8x128xbf16>
    %c12 = arith.constant 12 : index
    %c0_206 = arith.constant 0 : index
    %c0_207 = arith.constant 0 : index
    %208 = vector.load %arg6[%c12, %c0_206, %c0_207] : memref<25x128x128xbf16, #tpu.memory_space<vmem>>, vector<1x128x128xbf16>
    %209 = vector.shape_cast %208 : vector<1x128x128xbf16> to vector<128x128xbf16>
    %cst_208 = arith.constant dense<0.000000e+00> : vector<8x128xf32>
    %210 = tpu.matmul %207, %209, %cst_208 {dimension_numbers = #tpu.dot_dimension_numbers<[1], [0], [0], [1], [0, 0, 1, 1], [], []>} : vector<8x128xbf16>, vector<128x128xbf16>, vector<8x128xf32> -> vector<8x128xf32>
    %211 = arith.addf %206, %210 : vector<8x128xf32>
    %c59 = arith.constant 59 : index
    %c0_209 = arith.constant 0 : index
    %212 = vector.load %arg17[%c59, %c0_209] : memref<128x128xbf16, #tpu.memory_space<vmem>>, vector<8x128xbf16>
    %c13 = arith.constant 13 : index
    %c0_210 = arith.constant 0 : index
    %c0_211 = arith.constant 0 : index
    %213 = vector.load %arg6[%c13, %c0_210, %c0_211] : memref<25x128x128xbf16, #tpu.memory_space<vmem>>, vector<1x128x128xbf16>
    %214 = vector.shape_cast %213 : vector<1x128x128xbf16> to vector<128x128xbf16>
    %cst_212 = arith.constant dense<0.000000e+00> : vector<8x128xf32>
    %215 = tpu.matmul %212, %214, %cst_212 {dimension_numbers = #tpu.dot_dimension_numbers<[1], [0], [0], [1], [0, 0, 1, 1], [], []>} : vector<8x128xbf16>, vector<128x128xbf16>, vector<8x128xf32> -> vector<8x128xf32>
    %216 = arith.addf %211, %215 : vector<8x128xf32>
    %c60_213 = arith.constant 60 : index
    %c0_214 = arith.constant 0 : index
    %217 = vector.load %arg17[%c60_213, %c0_214] : memref<128x128xbf16, #tpu.memory_space<vmem>>, vector<8x128xbf16>
    %c14 = arith.constant 14 : index
    %c0_215 = arith.constant 0 : index
    %c0_216 = arith.constant 0 : index
    %218 = vector.load %arg6[%c14, %c0_215, %c0_216] : memref<25x128x128xbf16, #tpu.memory_space<vmem>>, vector<1x128x128xbf16>
    %219 = vector.shape_cast %218 : vector<1x128x128xbf16> to vector<128x128xbf16>
    %cst_217 = arith.constant dense<0.000000e+00> : vector<8x128xf32>
    %220 = tpu.matmul %217, %219, %cst_217 {dimension_numbers = #tpu.dot_dimension_numbers<[1], [0], [0], [1], [0, 0, 1, 1], [], []>} : vector<8x128xbf16>, vector<128x128xbf16>, vector<8x128xf32> -> vector<8x128xf32>
    %221 = arith.addf %216, %220 : vector<8x128xf32>
    %c84_218 = arith.constant 84 : index
    %c0_219 = arith.constant 0 : index
    %222 = vector.load %arg17[%c84_218, %c0_219] : memref<128x128xbf16, #tpu.memory_space<vmem>>, vector<8x128xbf16>
    %c15 = arith.constant 15 : index
    %c0_220 = arith.constant 0 : index
    %c0_221 = arith.constant 0 : index
    %223 = vector.load %arg6[%c15, %c0_220, %c0_221] : memref<25x128x128xbf16, #tpu.memory_space<vmem>>, vector<1x128x128xbf16>
    %224 = vector.shape_cast %223 : vector<1x128x128xbf16> to vector<128x128xbf16>
    %cst_222 = arith.constant dense<0.000000e+00> : vector<8x128xf32>
    %225 = tpu.matmul %222, %224, %cst_222 {dimension_numbers = #tpu.dot_dimension_numbers<[1], [0], [0], [1], [0, 0, 1, 1], [], []>} : vector<8x128xbf16>, vector<128x128xbf16>, vector<8x128xf32> -> vector<8x128xf32>
    %226 = arith.addf %221, %225 : vector<8x128xf32>
    %c85 = arith.constant 85 : index
    %c0_223 = arith.constant 0 : index
    %227 = vector.load %arg17[%c85, %c0_223] : memref<128x128xbf16, #tpu.memory_space<vmem>>, vector<8x128xbf16>
    %c16 = arith.constant 16 : index
    %c0_224 = arith.constant 0 : index
    %c0_225 = arith.constant 0 : index
    %228 = vector.load %arg6[%c16, %c0_224, %c0_225] : memref<25x128x128xbf16, #tpu.memory_space<vmem>>, vector<1x128x128xbf16>
    %229 = vector.shape_cast %228 : vector<1x128x128xbf16> to vector<128x128xbf16>
    %cst_226 = arith.constant dense<0.000000e+00> : vector<8x128xf32>
    %230 = tpu.matmul %227, %229, %cst_226 {dimension_numbers = #tpu.dot_dimension_numbers<[1], [0], [0], [1], [0, 0, 1, 1], [], []>} : vector<8x128xbf16>, vector<128x128xbf16>, vector<8x128xf32> -> vector<8x128xf32>
    %231 = arith.addf %226, %230 : vector<8x128xf32>
    %c86 = arith.constant 86 : index
    %c0_227 = arith.constant 0 : index
    %232 = vector.load %arg17[%c86, %c0_227] : memref<128x128xbf16, #tpu.memory_space<vmem>>, vector<8x128xbf16>
    %c17 = arith.constant 17 : index
    %c0_228 = arith.constant 0 : index
    %c0_229 = arith.constant 0 : index
    %233 = vector.load %arg6[%c17, %c0_228, %c0_229] : memref<25x128x128xbf16, #tpu.memory_space<vmem>>, vector<1x128x128xbf16>
    %234 = vector.shape_cast %233 : vector<1x128x128xbf16> to vector<128x128xbf16>
    %cst_230 = arith.constant dense<0.000000e+00> : vector<8x128xf32>
    %235 = tpu.matmul %232, %234, %cst_230 {dimension_numbers = #tpu.dot_dimension_numbers<[1], [0], [0], [1], [0, 0, 1, 1], [], []>} : vector<8x128xbf16>, vector<128x128xbf16>, vector<8x128xf32> -> vector<8x128xf32>
    %236 = arith.addf %231, %235 : vector<8x128xf32>
    %c87 = arith.constant 87 : index
    %c0_231 = arith.constant 0 : index
    %237 = vector.load %arg17[%c87, %c0_231] : memref<128x128xbf16, #tpu.memory_space<vmem>>, vector<8x128xbf16>
    %c18 = arith.constant 18 : index
    %c0_232 = arith.constant 0 : index
    %c0_233 = arith.constant 0 : index
    %238 = vector.load %arg6[%c18, %c0_232, %c0_233] : memref<25x128x128xbf16, #tpu.memory_space<vmem>>, vector<1x128x128xbf16>
    %239 = vector.shape_cast %238 : vector<1x128x128xbf16> to vector<128x128xbf16>
    %cst_234 = arith.constant dense<0.000000e+00> : vector<8x128xf32>
    %240 = tpu.matmul %237, %239, %cst_234 {dimension_numbers = #tpu.dot_dimension_numbers<[1], [0], [0], [1], [0, 0, 1, 1], [], []>} : vector<8x128xbf16>, vector<128x128xbf16>, vector<8x128xf32> -> vector<8x128xf32>
    %241 = arith.addf %236, %240 : vector<8x128xf32>
    %c88_235 = arith.constant 88 : index
    %c0_236 = arith.constant 0 : index
    %242 = vector.load %arg17[%c88_235, %c0_236] : memref<128x128xbf16, #tpu.memory_space<vmem>>, vector<8x128xbf16>
    %c19 = arith.constant 19 : index
    %c0_237 = arith.constant 0 : index
    %c0_238 = arith.constant 0 : index
    %243 = vector.load %arg6[%c19, %c0_237, %c0_238] : memref<25x128x128xbf16, #tpu.memory_space<vmem>>, vector<1x128x128xbf16>
    %244 = vector.shape_cast %243 : vector<1x128x128xbf16> to vector<128x128xbf16>
    %cst_239 = arith.constant dense<0.000000e+00> : vector<8x128xf32>
    %245 = tpu.matmul %242, %244, %cst_239 {dimension_numbers = #tpu.dot_dimension_numbers<[1], [0], [0], [1], [0, 0, 1, 1], [], []>} : vector<8x128xbf16>, vector<128x128xbf16>, vector<8x128xf32> -> vector<8x128xf32>
    %246 = arith.addf %241, %245 : vector<8x128xf32>
    %c112_240 = arith.constant 112 : index
    %c0_241 = arith.constant 0 : index
    %247 = vector.load %arg17[%c112_240, %c0_241] : memref<128x128xbf16, #tpu.memory_space<vmem>>, vector<8x128xbf16>
    %c20 = arith.constant 20 : index
    %c0_242 = arith.constant 0 : index
    %c0_243 = arith.constant 0 : index
    %248 = vector.load %arg6[%c20, %c0_242, %c0_243] : memref<25x128x128xbf16, #tpu.memory_space<vmem>>, vector<1x128x128xbf16>
    %249 = vector.shape_cast %248 : vector<1x128x128xbf16> to vector<128x128xbf16>
    %cst_244 = arith.constant dense<0.000000e+00> : vector<8x128xf32>
    %250 = tpu.matmul %247, %249, %cst_244 {dimension_numbers = #tpu.dot_dimension_numbers<[1], [0], [0], [1], [0, 0, 1, 1], [], []>} : vector<8x128xbf16>, vector<128x128xbf16>, vector<8x128xf32> -> vector<8x128xf32>
    %251 = arith.addf %246, %250 : vector<8x128xf32>
    %c113 = arith.constant 113 : index
    %c0_245 = arith.constant 0 : index
    %252 = vector.load %arg17[%c113, %c0_245] : memref<128x128xbf16, #tpu.memory_space<vmem>>, vector<8x128xbf16>
    %c21 = arith.constant 21 : index
    %c0_246 = arith.constant 0 : index
    %c0_247 = arith.constant 0 : index
    %253 = vector.load %arg6[%c21, %c0_246, %c0_247] : memref<25x128x128xbf16, #tpu.memory_space<vmem>>, vector<1x128x128xbf16>
    %254 = vector.shape_cast %253 : vector<1x128x128xbf16> to vector<128x128xbf16>
    %cst_248 = arith.constant dense<0.000000e+00> : vector<8x128xf32>
    %255 = tpu.matmul %252, %254, %cst_248 {dimension_numbers = #tpu.dot_dimension_numbers<[1], [0], [0], [1], [0, 0, 1, 1], [], []>} : vector<8x128xbf16>, vector<128x128xbf16>, vector<8x128xf32> -> vector<8x128xf32>
    %256 = arith.addf %251, %255 : vector<8x128xf32>
    %c114 = arith.constant 114 : index
    %c0_249 = arith.constant 0 : index
    %257 = vector.load %arg17[%c114, %c0_249] : memref<128x128xbf16, #tpu.memory_space<vmem>>, vector<8x128xbf16>
    %c22 = arith.constant 22 : index
    %c0_250 = arith.constant 0 : index
    %c0_251 = arith.constant 0 : index
    %258 = vector.load %arg6[%c22, %c0_250, %c0_251] : memref<25x128x128xbf16, #tpu.memory_space<vmem>>, vector<1x128x128xbf16>
    %259 = vector.shape_cast %258 : vector<1x128x128xbf16> to vector<128x128xbf16>
    %cst_252 = arith.constant dense<0.000000e+00> : vector<8x128xf32>
    %260 = tpu.matmul %257, %259, %cst_252 {dimension_numbers = #tpu.dot_dimension_numbers<[1], [0], [0], [1], [0, 0, 1, 1], [], []>} : vector<8x128xbf16>, vector<128x128xbf16>, vector<8x128xf32> -> vector<8x128xf32>
    %261 = arith.addf %256, %260 : vector<8x128xf32>
    %c115 = arith.constant 115 : index
    %c0_253 = arith.constant 0 : index
    %262 = vector.load %arg17[%c115, %c0_253] : memref<128x128xbf16, #tpu.memory_space<vmem>>, vector<8x128xbf16>
    %c23 = arith.constant 23 : index
    %c0_254 = arith.constant 0 : index
    %c0_255 = arith.constant 0 : index
    %263 = vector.load %arg6[%c23, %c0_254, %c0_255] : memref<25x128x128xbf16, #tpu.memory_space<vmem>>, vector<1x128x128xbf16>
    %264 = vector.shape_cast %263 : vector<1x128x128xbf16> to vector<128x128xbf16>
    %cst_256 = arith.constant dense<0.000000e+00> : vector<8x128xf32>
    %265 = tpu.matmul %262, %264, %cst_256 {dimension_numbers = #tpu.dot_dimension_numbers<[1], [0], [0], [1], [0, 0, 1, 1], [], []>} : vector<8x128xbf16>, vector<128x128xbf16>, vector<8x128xf32> -> vector<8x128xf32>
    %266 = arith.addf %261, %265 : vector<8x128xf32>
    %c116_257 = arith.constant 116 : index
    %c0_258 = arith.constant 0 : index
    %267 = vector.load %arg17[%c116_257, %c0_258] : memref<128x128xbf16, #tpu.memory_space<vmem>>, vector<8x128xbf16>
    %c24 = arith.constant 24 : index
    %c0_259 = arith.constant 0 : index
    %c0_260 = arith.constant 0 : index
    %268 = vector.load %arg6[%c24, %c0_259, %c0_260] : memref<25x128x128xbf16, #tpu.memory_space<vmem>>, vector<1x128x128xbf16>
    %269 = vector.shape_cast %268 : vector<1x128x128xbf16> to vector<128x128xbf16>
    %cst_261 = arith.constant dense<0.000000e+00> : vector<8x128xf32>
    %270 = tpu.matmul %267, %269, %cst_261 {dimension_numbers = #tpu.dot_dimension_numbers<[1], [0], [0], [1], [0, 0, 1, 1], [], []>} : vector<8x128xbf16>, vector<128x128xbf16>, vector<8x128xf32> -> vector<8x128xf32>
    %271 = arith.addf %266, %270 : vector<8x128xf32>
    %c0_262 = arith.constant 0 : index
    %c0_263 = arith.constant 0 : index
    %272 = vector.load %arg7[%c0_262, %c0_263] : memref<1x128xf32, #tpu.memory_space<vmem>>, vector<1x128xf32>
    %273 = vector.broadcast %272 : vector<1x128xf32> to vector<8x128xf32>
    %274 = arith.addf %271, %273 : vector<8x128xf32>
    %cst_264 = arith.constant 0.000000e+00 : f32
    %275 = vector.broadcast %cst_264 : f32 to vector<8x128xf32>
    %276 = arith.maximumf %274, %275 : vector<8x128xf32>
    %277 = arith.truncf %276 : vector<8x128xf32> to vector<8x128xbf16>
    %c0_265 = arith.constant 0 : index
    %c0_266 = arith.constant 0 : index
    %278 = vector.load %arg8[%c0_265, %c0_266] : memref<128x128xbf16, #tpu.memory_space<vmem>>, vector<128x128xbf16>
    %cst_267 = arith.constant dense<0.000000e+00> : vector<8x128xf32>
    %279 = tpu.matmul %277, %278, %cst_267 {dimension_numbers = #tpu.dot_dimension_numbers<[1], [0], [0], [1], [0, 0, 1, 1], [], []>} : vector<8x128xbf16>, vector<128x128xbf16>, vector<8x128xf32> -> vector<8x128xf32>
    %c0_268 = arith.constant 0 : index
    %c0_269 = arith.constant 0 : index
    %280 = vector.load %arg9[%c0_268, %c0_269] : memref<1x128xf32, #tpu.memory_space<vmem>>, vector<1x128xf32>
    %281 = vector.broadcast %280 : vector<1x128xf32> to vector<8x128xf32>
    %282 = arith.addf %279, %281 : vector<8x128xf32>
    %cst_270 = arith.constant 0.000000e+00 : f32
    %283 = vector.broadcast %cst_270 : f32 to vector<8x128xf32>
    %284 = arith.maximumf %282, %283 : vector<8x128xf32>
    %285 = arith.truncf %284 : vector<8x128xf32> to vector<8x128xbf16>
    %c0_271 = arith.constant 0 : index
    %c0_272 = arith.constant 0 : index
    %286 = vector.load %arg10[%c0_271, %c0_272] : memref<128x128xbf16, #tpu.memory_space<vmem>>, vector<128x128xbf16>
    %cst_273 = arith.constant dense<0.000000e+00> : vector<8x128xf32>
    %287 = tpu.matmul %285, %286, %cst_273 {dimension_numbers = #tpu.dot_dimension_numbers<[1], [0], [0], [1], [0, 0, 1, 1], [], []>} : vector<8x128xbf16>, vector<128x128xbf16>, vector<8x128xf32> -> vector<8x128xf32>
    %c0_274 = arith.constant 0 : index
    %c0_275 = arith.constant 0 : index
    %288 = vector.load %arg11[%c0_274, %c0_275] : memref<1x128xf32, #tpu.memory_space<vmem>>, vector<1x128xf32>
    %289 = vector.broadcast %288 : vector<1x128xf32> to vector<8x128xf32>
    %290 = arith.addf %287, %289 : vector<8x128xf32>
    %c0_276 = arith.constant 0 : index
    %c0_277 = arith.constant 0 : index
    %c0_278 = arith.constant 0 : index
    %291 = vector.load %arg12[%c0_276, %c0_277, %c0_278] : memref<1x8x128xf32, #tpu.memory_space<vmem>>, vector<1x8x128xf32>
    %292 = vector.shape_cast %291 : vector<1x8x128xf32> to vector<8x128xf32>
    %293 = vector.shape_cast %290 : vector<8x128xf32> to vector<1x8x128xf32>
    tpu.vector_store %arg12[%c0_276, %c0_277, %c0_278], %293 {strides = array<i32>} : memref<1x8x128xf32, #tpu.memory_space<vmem>>, vector<1x8x128xf32>,
    return
  }
  func.func @transform_0(%arg0: i32) -> (i32, i32, i32) {
    %c0_i32 = arith.constant 0 : i32
    %c0_i32_0 = arith.constant 0 : i32
    %c0_i32_1 = arith.constant 0 : i32
    return %arg0, %c0_i32, %c0_i32_0 : i32, i32, i32
  }
  func.func @transform_1(%arg0: i32) -> (i32, i32) {
    %c0_i32 = arith.constant 0 : i32
    %c0_i32_0 = arith.constant 0 : i32
    %c0_i32_1 = arith.constant 0 : i32
    return %c0_i32, %c0_i32_0 : i32, i32
  }
  func.func @transform_2(%arg0: i32) -> (i32, i32) {
    %c0_i32 = arith.constant 0 : i32
    %c0_i32_0 = arith.constant 0 : i32
    %c0_i32_1 = arith.constant 0 : i32
    return %c0_i32, %c0_i32_0 : i32, i32
  }
  func.func @transform_3(%arg0: i32) -> (i32, i32, i32) {
    %c0_i32 = arith.constant 0 : i32
    %c0_i32_0 = arith.constant 0 : i32
    %c0_i32_1 = arith.constant 0 : i32
    %c0_i32_2 = arith.constant 0 : i32
    return %c0_i32, %c0_i32_0, %c0_i32_1 : i32, i32, i32
  }
  func.func @transform_4(%arg0: i32) -> (i32, i32) {
    %c0_i32 = arith.constant 0 : i32
    %c0_i32_0 = arith.constant 0 : i32
    %c0_i32_1 = arith.constant 0 : i32
    return %c0_i32, %c0_i32_0 : i32, i32
  }
  func.func @transform_5(%arg0: i32) -> (i32, i32, i32) {
    %c0_i32 = arith.constant 0 : i32
    %c0_i32_0 = arith.constant 0 : i32
    %c0_i32_1 = arith.constant 0 : i32
    %c0_i32_2 = arith.constant 0 : i32
    return %c0_i32, %c0_i32_0, %c0_i32_1 : i32, i32, i32
  }
  func.func @transform_6(%arg0: i32) -> (i32, i32) {
    %c0_i32 = arith.constant 0 : i32
    %c0_i32_0 = arith.constant 0 : i32
    %c0_i32_1 = arith.constant 0 : i32
    return %c0_i32, %c0_i32_0 : i32, i32
  }
  func.func @transform_7(%arg0: i32) -> (i32, i32) {
    %c0_i32 = arith.constant 0 : i32
    %c0_i32_0 = arith.constant 0 : i32
    %c0_i32_1 = arith.constant 0 : i32
    return %c0_i32, %c0_i32_0 : i32, i32
  }
  func.func @transform_8(%arg0: i32) -> (i32, i32) {
    %c0_i32 = arith.constant 0 : i32
    %c0_i32_0 = arith.constant 0 : i32
    %c0_i32_1 = arith.constant 0 : i32
    return %c0_i32, %c0_i32_0 : i32, i32
  }
  func.func @transform_9(%arg0: i32) -> (i32, i32) {
    %c0_i32 = arith.constant 0 : i32
    %c0_i32_0 = arith.constant 0 : i32
    %c0_i32_1 = arith.constant 0 : i32
    return %c0_i32, %c0_i32_0 : i32, i32
  }
  func.func @transform_10(%arg0: i32) -> (i32, i32) {
    %c0_i32 = arith.constant 0 : i32
    %c0_i32_0 = arith.constant 0 : i32
    %c0_i32_1 = arith.constant 0 : i32
    return %c0_i32, %c0_i32_0 : i32, i32
  }
  func.func @transform_11(%arg0: i32) -> (i32, i32, i32) {
    %c0_i32 = arith.constant 0 : i32
    %c0_i32_0 = arith.constant 0 : i32
    %c0_i32_1 = arith.constant 0 : i32
    return %arg0, %c0_i32, %c0_i32_0 : i32, i32, i32
  }
}

</mosaic_0001>

<llo_original>
// kernel: convnet_forward.1
$region0: #{convnet_forward.1}
  #allocation0 [shape = 'u32[]', space=smem, size = 0x4, offset = 0x4, fixed_abs, tag = 'smem constant byte address 0x4 - core index']
  #allocation1 [shape = 'u32[72,128]{1,0:T(1,128)}', space=vmem, size = 0x9000, scoped, tag = 'internal scratch']
  #allocation2 [shape = 'f32[864,128]{1,0:T(8,128)}', space=vmem, size = 0x6c000, scoped, tag = 'scratch operand']
  #allocation3 [shape = 'f32[416,128]{1,0:T(8,128)}', space=vmem, size = 0x34000, scoped, tag = 'scratch operand']
  #allocation4 [shape = 'bf16[408,128]{1,0:T(8,128)(2,1)}', space=vmem, size = 0x19800, scoped, tag = 'scratch operand']
  #allocation5 [shape = 'f32[288,128]{1,0:T(8,128)}', space=vmem, size = 0x24000, scoped, tag = 'scratch operand']
  #allocation6 [shape = 'bf16[128,128]{1,0:T(8,128)(2,1)}', space=vmem, size = 0x8000, scoped, tag = 'scratch operand']
  %s0 = inlined_call_operand.vmem [shape: bf16[2,864,128], index: 0, kind: input, shape index: {}]
  %s1 = inlined_call_operand.vmem [shape: bf16[128,128], index: 1, kind: input, shape index: {}]
  %s2 = inlined_call_operand.vmem [shape: f32[1,128], index: 2, kind: input, shape index: {}]
  %s3 = inlined_call_operand.vmem [shape: bf16[10,128,128], index: 3, kind: input, shape index: {}]
  %s4 = inlined_call_operand.vmem [shape: f32[1,128], index: 4, kind: input, shape index: {}]
  %s5 = inlined_call_operand.vmem [shape: bf16[25,128,128], index: 5, kind: input, shape index: {}]
  %s6 = inlined_call_operand.vmem [shape: f32[1,128], index: 6, kind: input, shape index: {}]
  %s7 = inlined_call_operand.vmem [shape: bf16[128,128], index: 7, kind: input, shape index: {}]
  %s8 = inlined_call_operand.vmem [shape: f32[1,128], index: 8, kind: input, shape index: {}]
  %s9 = inlined_call_operand.vmem [shape: bf16[128,128], index: 9, kind: input, shape index: {}]
  %s10 = inlined_call_operand.vmem [shape: f32[1,128], index: 10, kind: input, shape index: {}]
  %s11 = inlined_call_operand.vmem [shape: f32[2,8,128], index: 11, kind: output, shape index: {}]
  %s12 = sld [smem:[#allocation0]]
  $region77: #{convnet_forward.1} parent=0
    _
  %s14 = ssub.s32 1, %s12
  %s15 = scalar_select 0, %s14, %s12
  loop: start=0, step=1, limit=4
  $region2: #{convnet_forward.1} parent=0 // loop_pre_header
    _
  $region3: #{convnet_forward.1} parent=0 // loop_header
    %s17 = sphi 0, %s21
    %p18 = scmp.ge.s32.totalorder %s17, 4
    %s27 = sphi 0, %s29
    %s30 = sphi 0, %s27
    %s31 = sphi 0, %s30
    %s47 = sphi 0, %s31
    %s51 = sphi 0, %s51
    %s53 = sphi 0, %s51
    %s54 = sphi 0, %s53
    %s68 = sphi 0, %s54
    %s72 = sphi 0, %s72
    %s74 = sphi 0, %s72
    %s75 = sphi 0, %s74
    %s89 = sphi 0, %s75
    %s93 = sphi 0, %s93
    %s95 = sphi 0, %s93
    %s96 = sphi 0, %s95
    %s110 = sphi 0, %s96
    %s114 = sphi 0, %s114
    %s116 = sphi 0, %s114
    %s117 = sphi 0, %s116
    %s131 = sphi 0, %s117
    %s135 = sphi 0, %s135
    %s137 = sphi 0, %s135
    %s138 = sphi 0, %s137
    %s152 = sphi 0, %s138
    %s156 = sphi 0, %s156
    %s158 = sphi 0, %s156
    %s159 = sphi 0, %s158
    %s173 = sphi 0, %s159
    %s177 = sphi 0, %s177
    %s179 = sphi 0, %s177
    %s180 = sphi 0, %s179
    %s194 = sphi 0, %s180
    %s198 = sphi 0, %s198
    %s200 = sphi 0, %s198
    %s201 = sphi 0, %s200
    %s215 = sphi 0, %s201
    %s219 = sphi 0, %s219
    %s221 = sphi 0, %s219
    %s222 = sphi 0, %s221
    %s236 = sphi 0, %s222
    %s240 = sphi 0, %s240
    %s242 = sphi 0, %s240
    %s243 = sphi 0, %s242
    %s257 = sphi 0, %s243
    %s263 = sphi 0, %s265
    %s266 = sphi 0, %s263
    %s267 = sphi 0, %s266
    %s283 = sphi 0, %s267
  $region4: #{convnet_forward.1} parent=0 // loop_header_branch
    %20 = sbr.rel (%p18) target = $region8
  $region5: #{convnet_forward.1} parent=0 // loop_body
    %s22 = ssub.s32 %s17, 1
    %s23 = ssub.s32 %s17, 2
    %s24 = sadd.s32 %s17, 1
    %s25 = ssub.s32 %s17, %s24
    %p26 = scmp.eq.s32.totalorder %s25, 0
    %s28 = sadd.s32 %s27, 1
    %s29 = scalar_select %p26, %s27, %s28
    %p32 = pneg %p26
    %p33 = scmp.eq.s32.totalorder %s17, 1
    %p34 = por %p32, %p33
    %p35 = scmp.ne.s32.totalorder %s27, %s30
    %p36 = scmp.eq.s32.totalorder %s17, 0
    %p37 = por %p35, %p36
    %p38 = scmp.ne.s32.totalorder %s27, %s30
    %p39 = scmp.eq.s32.totalorder %s22, 1
    %p40 = por %p38, %p39
    %p41 = scmp.ne.s32.totalorder %s30, %s31
    %p42 = scmp.eq.s32.totalorder %s22, 0
    %p43 = por %p41, %p42
    %p44 = scmp.ne.s32.totalorder %s30, %s31
    %p45 = scmp.eq.s32.totalorder %s23, 1
    %p46 = por %p44, %p45
    %p48 = scmp.ne.s32.totalorder %s31, %s47
    %p49 = scmp.eq.s32.totalorder %s23, 0
    %p50 = por %p48, %p49
    %s52 = sadd.s32 %s51, 1
    %p55 = scmp.eq.s32.totalorder %s17, 1
    %p56 = scmp.ne.s32.totalorder %s51, %s53
    %p57 = scmp.eq.s32.totalorder %s17, 0
    %p58 = por %p56, %p57
    %p59 = scmp.ne.s32.totalorder %s51, %s53
    %p60 = scmp.eq.s32.totalorder %s22, 1
    %p61 = por %p59, %p60
    %p62 = scmp.ne.s32.totalorder %s53, %s54
    %p63 = scmp.eq.s32.totalorder %s22, 0
    %p64 = por %p62, %p63
    %p65 = scmp.ne.s32.totalorder %s53, %s54
    %p66 = scmp.eq.s32.totalorder %s23, 1
    %p67 = por %p65, %p66
    %p69 = scmp.ne.s32.totalorder %s54, %s68
    %p70 = scmp.eq.s32.totalorder %s23, 0
    %p71 = por %p69, %p70
    %s73 = sadd.s32 %s72, 1
    %p76 = scmp.eq.s32.totalorder %s17, 1
    %p77 = scmp.ne.s32.totalorder %s72, %s74
    %p78 = scmp.eq.s32.totalorder %s17, 0
    %p79 = por %p77, %p78
    %p80 = scmp.ne.s32.totalorder %s72, %s74
    %p81 = scmp.eq.s32.totalorder %s22, 1
    %p82 = por %p80, %p81
    %p83 = scmp.ne.s32.totalorder %s74, %s75
    %p84 = scmp.eq.s32.totalorder %s22, 0
    %p85 = por %p83, %p84
    %p86 = scmp.ne.s32.totalorder %s74, %s75
    %p87 = scmp.eq.s32.totalorder %s23, 1
    %p88 = por %p86, %p87
    %p90 = scmp.ne.s32.totalorder %s75, %s89
    %p91 = scmp.eq.s32.totalorder %s23, 0
    %p92 = por %p90, %p91
    %s94 = sadd.s32 %s93, 1
    %p97 = scmp.eq.s32.totalorder %s17, 1
    %p98 = scmp.ne.s32.totalorder %s93, %s95
    %p99 = scmp.eq.s32.totalorder %s17, 0
    %p100 = por %p98, %p99
    %p101 = scmp.ne.s32.totalorder %s93, %s95
    %p102 = scmp.eq.s32.totalorder %s22, 1
    %p103 = por %p101, %p102
    %p104 = scmp.ne.s32.totalorder %s95, %s96
    %p105 = scmp.eq.s32.totalorder %s22, 0
    %p106 = por %p104, %p105
    %p107 = scmp.ne.s32.totalorder %s95, %s96
    %p108 = scmp.eq.s32.totalorder %s23, 1
    %p109 = por %p107, %p108
    %p111 = scmp.ne.s32.totalorder %s96, %s110
    %p112 = scmp.eq.s32.totalorder %s23, 0
    %p113 = por %p111, %p112
    %s115 = sadd.s32 %s114, 1
    %p118 = scmp.eq.s32.totalorder %s17, 1
    %p119 = scmp.ne.s32.totalorder %s114, %s116
    %p120 = scmp.eq.s32.totalorder %s17, 0
    %p121 = por %p119, %p120
    %p122 = scmp.ne.s32.totalorder %s114, %s116
    %p123 = scmp.eq.s32.totalorder %s22, 1
    %p124 = por %p122, %p123
    %p125 = scmp.ne.s32.totalorder %s116, %s117
    %p126 = scmp.eq.s32.totalorder %s22, 0
    %p127 = por %p125, %p126
    %p128 = scmp.ne.s32.totalorder %s116, %s117
    %p129 = scmp.eq.s32.totalorder %s23, 1
    %p130 = por %p128, %p129
    %p132 = scmp.ne.s32.totalorder %s117, %s131
    %p133 = scmp.eq.s32.totalorder %s23, 0
    %p134 = por %p132, %p133
    %s136 = sadd.s32 %s135, 1
    %p139 = scmp.eq.s32.totalorder %s17, 1
    %p140 = scmp.ne.s32.totalorder %s135, %s137
    %p141 = scmp.eq.s32.totalorder %s17, 0
    %p142 = por %p140, %p141
    %p143 = scmp.ne.s32.totalorder %s135, %s137
    %p144 = scmp.eq.s32.totalorder %s22, 1
    %p145 = por %p143, %p144
    %p146 = scmp.ne.s32.totalorder %s137, %s138
    %p147 = scmp.eq.s32.totalorder %s22, 0
    %p148 = por %p146, %p147
    %p149 = scmp.ne.s32.totalorder %s137, %s138
    %p150 = scmp.eq.s32.totalorder %s23, 1
    %p151 = por %p149, %p150
    %p153 = scmp.ne.s32.totalorder %s138, %s152
    %p154 = scmp.eq.s32.totalorder %s23, 0
    %p155 = por %p153, %p154
    %s157 = sadd.s32 %s156, 1
    %p160 = scmp.eq.s32.totalorder %s17, 1
    %p161 = scmp.ne.s32.totalorder %s156, %s158
    %p162 = scmp.eq.s32.totalorder %s17, 0
    %p163 = por %p161, %p162
    %p164 = scmp.ne.s32.totalorder %s156, %s158
    %p165 = scmp.eq.s32.totalorder %s22, 1
    %p166 = por %p164, %p165
    %p167 = scmp.ne.s32.totalorder %s158, %s159
    %p168 = scmp.eq.s32.totalorder %s22, 0
    %p169 = por %p167, %p168
    %p170 = scmp.ne.s32.totalorder %s158, %s159
    %p171 = scmp.eq.s32.totalorder %s23, 1
    %p172 = por %p170, %p171
    %p174 = scmp.ne.s32.totalorder %s159, %s173
    %p175 = scmp.eq.s32.totalorder %s23, 0
    %p176 = por %p174, %p175
    %s178 = sadd.s32 %s177, 1
    %p181 = scmp.eq.s32.totalorder %s17, 1
    %p182 = scmp.ne.s32.totalorder %s177, %s179
    %p183 = scmp.eq.s32.totalorder %s17, 0
    %p184 = por %p182, %p183
    %p185 = scmp.ne.s32.totalorder %s177, %s179
    %p186 = scmp.eq.s32.totalorder %s22, 1
    %p187 = por %p185, %p186
    %p188 = scmp.ne.s32.totalorder %s179, %s180
    %p189 = scmp.eq.s32.totalorder %s22, 0
    %p190 = por %p188, %p189
    %p191 = scmp.ne.s32.totalorder %s179, %s180
    %p192 = scmp.eq.s32.totalorder %s23, 1
    %p193 = por %p191, %p192
    %p195 = scmp.ne.s32.totalorder %s180, %s194
    %p196 = scmp.eq.s32.totalorder %s23, 0
    %p197 = por %p195, %p196
    %s199 = sadd.s32 %s198, 1
    %p202 = scmp.eq.s32.totalorder %s17, 1
    %p203 = scmp.ne.s32.totalorder %s198, %s200
    %p204 = scmp.eq.s32.totalorder %s17, 0
    %p205 = por %p203, %p204
    %p206 = scmp.ne.s32.totalorder %s198, %s200
    %p207 = scmp.eq.s32.totalorder %s22, 1
    %p208 = por %p206, %p207
    %p209 = scmp.ne.s32.totalorder %s200, %s201
    %p210 = scmp.eq.s32.totalorder %s22, 0
    %p211 = por %p209, %p210
    %p212 = scmp.ne.s32.totalorder %s200, %s201
    %p213 = scmp.eq.s32.totalorder %s23, 1
    %p214 = por %p212, %p213
    %p216 = scmp.ne.s32.totalorder %s201, %s215
    %p217 = scmp.eq.s32.totalorder %s23, 0
    %p218 = por %p216, %p217
    %s220 = sadd.s32 %s219, 1
    %p223 = scmp.eq.s32.totalorder %s17, 1
    %p224 = scmp.ne.s32.totalorder %s219, %s221
    %p225 = scmp.eq.s32.totalorder %s17, 0
    %p226 = por %p224, %p225
    %p227 = scmp.ne.s32.totalorder %s219, %s221
    %p228 = scmp.eq.s32.totalorder %s22, 1
    %p229 = por %p227, %p228
    %p230 = scmp.ne.s32.totalorder %s221, %s222
    %p231 = scmp.eq.s32.totalorder %s22, 0
    %p232 = por %p230, %p231
    %p233 = scmp.ne.s32.totalorder %s221, %s222
    %p234 = scmp.eq.s32.totalorder %s23, 1
    %p235 = por %p233, %p234
    %p237 = scmp.ne.s32.totalorder %s222, %s236
    %p238 = scmp.eq.s32.totalorder %s23, 0
    %p239 = por %p237, %p238
    %s241 = sadd.s32 %s240, 1
    %p244 = scmp.eq.s32.totalorder %s17, 1
    %p245 = scmp.ne.s32.totalorder %s240, %s242
    %p246 = scmp.eq.s32.totalorder %s17, 0
    %p247 = por %p245, %p246
    %p248 = scmp.ne.s32.totalorder %s240, %s242
    %p249 = scmp.eq.s32.totalorder %s22, 1
    %p250 = por %p248, %p249
    %p251 = scmp.ne.s32.totalorder %s242, %s243
    %p252 = scmp.eq.s32.totalorder %s22, 0
    %p253 = por %p251, %p252
    %p254 = scmp.ne.s32.totalorder %s242, %s243
    %p255 = scmp.eq.s32.totalorder %s23, 1
    %p256 = por %p254, %p255
    %p258 = scmp.ne.s32.totalorder %s243, %s257
    %p259 = scmp.eq.s32.totalorder %s23, 0
    %p260 = por %p258, %p259
    %s261 = ssub.s32 %s17, %s24
    %p262 = scmp.eq.s32.totalorder %s261, 0
    %s264 = sadd.s32 %s263, 1
    %s265 = scalar_select %p262, %s263, %s264
    %p268 = pneg %p262
    %p269 = scmp.eq.s32.totalorder %s17, 1
    %p270 = por %p268, %p269
    %p271 = scmp.ne.s32.totalorder %s263, %s266
    %p272 = scmp.eq.s32.totalorder %s17, 0
    %p273 = por %p271, %p272
    %p274 = scmp.ne.s32.totalorder %s263, %s266
    %p275 = scmp.eq.s32.totalorder %s22, 1
    %p276 = por %p274, %p275
    %p277 = scmp.ne.s32.totalorder %s266, %s267
    %p278 = scmp.eq.s32.totalorder %s22, 0
    %p279 = por %p277, %p278
    %p280 = scmp.ne.s32.totalorder %s266, %s267
    %p281 = scmp.eq.s32.totalorder %s23, 1
    %p282 = por %p280, %p281
    %p284 = scmp.ne.s32.totalorder %s267, %s283
    %p285 = scmp.eq.s32.totalorder %s23, 0
    %p286 = por %p284, %p285
    %p287 = scmp.le.s32.totalorder 1, %s17
    %p288 = scmp.lt.s32.totalorder %s17, 3
    %p289 = pnand %p287, %p288
    %p290 = pneg %p289
    // Predicated region
    $region9: #{convnet_forward.1} parent=5 // pred_check
      _
    $region10: #{convnet_forward.1} parent=5 // pred_check_branch
      %292 = sbr.rel (%p289) target = $region12
    $region11: #{convnet_forward.1} parent=5 // pred_region
      %s293 = ssub.s32 %s17, 1
      // Predicated region
      $region13: #{convnet_forward.1} parent=11 // pred_check
        %p294 = pneg %p64
      $region14: #{convnet_forward.1} parent=11 // pred_check_branch
        %296 = sbr.rel (%p294) target = $region16
      $region15: #{convnet_forward.1} parent=11 // pred_region
        _
      $region16: #{convnet_forward.1} parent=11 // pred_fallthru
        _
      // Predicated region
      $region17: #{convnet_forward.1} parent=11 // pred_check
        %p297 = pneg %p85
      $region18: #{convnet_forward.1} parent=11 // pred_check_branch
        %299 = sbr.rel (%p297) target = $region20
      $region19: #{convnet_forward.1} parent=11 // pred_region
        _
      $region20: #{convnet_forward.1} parent=11 // pred_fallthru
        _
      // Predicated region
      $region21: #{convnet_forward.1} parent=11 // pred_check
        %p300 = pneg %p106
      $region22: #{convnet_forward.1} parent=11 // pred_check_branch
        %302 = sbr.rel (%p300) target = $region24
      $region23: #{convnet_forward.1} parent=11 // pred_region
        _
      $region24: #{convnet_forward.1} parent=11 // pred_fallthru
        _
      // Predicated region
      $region25: #{convnet_forward.1} parent=11 // pred_check
        %p303 = pneg %p127
      $region26: #{convnet_forward.1} parent=11 // pred_check_branch
        %305 = sbr.rel (%p303) target = $region28
      $region27: #{convnet_forward.1} parent=11 // pred_region
        _
      $region28: #{convnet_forward.1} parent=11 // pred_fallthru
        _
      // Predicated region
      $region29: #{convnet_forward.1} parent=11 // pred_check
        %p306 = pneg %p148
      $region30: #{convnet_forward.1} parent=11 // pred_check_branch
        %308 = sbr.rel (%p306) target = $region32
      $region31: #{convnet_forward.1} parent=11 // pred_region
        _
      $region32: #{convnet_forward.1} parent=11 // pred_fallthru
        _
      // Predicated region
      $region33: #{convnet_forward.1} parent=11 // pred_check
        %p309 = pneg %p169
      $region34: #{convnet_forward.1} parent=11 // pred_check_branch
        %311 = sbr.rel (%p309) target = $region36
      $region35: #{convnet_forward.1} parent=11 // pred_region
        _
      $region36: #{convnet_forward.1} parent=11 // pred_fallthru
        _
      // Predicated region
      $region37: #{convnet_forward.1} parent=11 // pred_check
        %p312 = pneg %p190
      $region38: #{convnet_forward.1} parent=11 // pred_check_branch
        %314 = sbr.rel (%p312) target = $region40
      $region39: #{convnet_forward.1} parent=11 // pred_region
        _
      $region40: #{convnet_forward.1} parent=11 // pred_fallthru
        _
      // Predicated region
      $region41: #{convnet_forward.1} parent=11 // pred_check
        %p315 = pneg %p211
      $region42: #{convnet_forward.1} parent=11 // pred_check_branch
        %317 = sbr.rel (%p315) target = $region44
      $region43: #{convnet_forward.1} parent=11 // pred_region
        _
      $region44: #{convnet_forward.1} parent=11 // pred_fallthru
        _
      // Predicated region
      $region45: #{convnet_forward.1} parent=11 // pred_check
        %p318 = pneg %p232
      $region46: #{convnet_forward.1} parent=11 // pred_check_branch
        %320 = sbr.rel (%p318) target = $region48
      $region47: #{convnet_forward.1} parent=11 // pred_region
        _
      $region48: #{convnet_forward.1} parent=11 // pred_fallthru
        _
      // Predicated region
      $region49: #{convnet_forward.1} parent=11 // pred_check
        %p321 = pneg %p253
      $region50: #{convnet_forward.1} parent=11 // pred_check_branch
        %323 = sbr.rel (%p321) target = $region52
      $region51: #{convnet_forward.1} parent=11 // pred_region
        _
      $region52: #{convnet_forward.1} parent=11 // pred_fallthru
        _
    $region12: #{convnet_forward.1} parent=5 // pred_fallthru
      _
    %p324 = scmp.lt.s32.totalorder %s17, 2
    // Predicated region
    $region53: #{convnet_forward.1} parent=5 // pred_check
      %p325 = pneg %p324
    $region54: #{convnet_forward.1} parent=5 // pred_check_branch
      %327 = sbr.rel (%p325) target = $region56
    $region55: #{convnet_forward.1} parent=5 // pred_region
      // Predicated region
      $region57: #{convnet_forward.1} parent=55 // pred_check
        %p328 = pneg %p37
      $region58: #{convnet_forward.1} parent=55 // pred_check_branch
        %330 = sbr.rel (%p328) target = $region60
      $region59: #{convnet_forward.1} parent=55 // pred_region
        %p331 = scmp.lt.s32.totalorder %s17, 1
        %s332 = scalar_select %p331, %s17, 1
        %s333 = smul.addr %s332, 108
        %s334 = smul.addr %s333, 4
        %s335 = scalar_lea.vmem %s0, %s334
      $region60: #{convnet_forward.1} parent=55 // pred_fallthru
        _
    $region56: #{convnet_forward.1} parent=5 // pred_fallthru
      _
    %p336 = scmp.le.s32.totalorder 1, %s17
    %p337 = scmp.lt.s32.totalorder %s17, 3
    %p338 = pnand %p336, %p337
    %p339 = pneg %p338
    // Predicated region
    $region61: #{convnet_forward.1} parent=5 // pred_check
      _
    $region62: #{convnet_forward.1} parent=5 // pred_check_branch
      %341 = sbr.rel (%p338) target = $region64
    $region63: #{convnet_forward.1} parent=5 // pred_region
      %s342 = ssub.s32 %s17, 1
      %p343 = scmp.lt.s32.totalorder %s22, 1
      %s344 = scalar_select %p343, %s22, 1
      %s345 = smul.addr %s344, 108
      %s346 = smul.addr %s345, 4
      %s347 = scalar_lea.vmem %s0, %s346
      %p348 = pneg %p43
      %p349 = pneg %p40
      %p350 = pneg %p64
      %p351 = pneg %p61
      %p352 = pneg %p85
      %p353 = pneg %p82
      %p354 = pneg %p106
      %p355 = pneg %p103
      %p356 = pneg %p127
      %p357 = pneg %p124
      %p358 = pneg %p148
      %p359 = pneg %p145
      %p360 = pneg %p169
      %p361 = pneg %p166
      %p362 = pneg %p190
      %p363 = pneg %p187
      %p364 = pneg %p211
      %p365 = pneg %p208
      %p366 = pneg %p232
      %p367 = pneg %p229
      %p368 = pneg %p253
      %p369 = pneg %p250
      %p370 = pneg %p279
      %p371 = pneg %p276
      %p372 = scmp.lt.s32.totalorder %s22, 1
      %s373 = scalar_select %p372, %s22, 1
      %s374 = smul.addr %s373, 8
      %s375 = scalar_lea.vmem %s11, %s374
      %p376 = scmp.lt.s32.totalorder %s22, 1
      %s377 = scalar_select %p376, %s22, 1
      %s378 = smul.addr %s377, 108
      %s379 = smul.addr %s378, 4
      %s380 = scalar_lea.vmem %s0, %s379
      %p381 = scmp.lt.s32.totalorder %s22, 1
      %s382 = scalar_select %p381, %s22, 1
      %s383 = smul.addr %s382, 8
      %s384 = scalar_lea.vmem %s11, %s383
      %v385 = vld [vmem:[%s380] sm:$0xf]
      %v386 = vld [vmem:[%s380 + $0x4] sm:$0xf]
      %v387 = vld [vmem:[%s380 + $0x8] sm:$0xf]
      %v388 = vld [vmem:[%s380 + $0xc] sm:$0xf]
      %v389 = vld [vmem:[%s380 + $0x10] sm:$0xf]
      %v390 = vld [vmem:[%s380 + $0x14] sm:$0xf]
      %v391 = vld [vmem:[%s380 + $0x18] sm:$0xf]
      %v392 = vld [vmem:[%s380 + $0x1c] sm:$0xf]
      %v393 = vld [vmem:[%s380 + $0x20] sm:$0xf]
      %v394 = vld [vmem:[%s380 + $0x24] sm:$0xf]
      %v395 = vld [vmem:[%s380 + $0x28] sm:$0xf]
      %v396 = vld [vmem:[%s380 + $0x2c] sm:$0xf]
      %v397 = vld [vmem:[%s380 + $0x30] sm:$0xf]
      %v398 = vld [vmem:[%s380 + $0x34] sm:$0xf]
      %v399 = vld [vmem:[%s380 + $0x38] sm:$0xf]
      %v400 = vld [vmem:[%s380 + $0x3c] sm:$0xf]
      %v401 = vld [vmem:[%s380 + $0x40] sm:$0xf]
      %v402 = vld [vmem:[%s380 + $0x44] sm:$0xf]
      %v403 = vld [vmem:[%s380 + $0x48] sm:$0xf]
      %v404 = vld [vmem:[%s380 + $0x4c] sm:$0xf]
      %v405 = vld [vmem:[%s380 + $0x50] sm:$0xf]
      %v406 = vld [vmem:[%s380 + $0x54] sm:$0xf]
      %v407 = vld [vmem:[%s380 + $0x58] sm:$0xf]
      %v408 = vld [vmem:[%s380 + $0x5c] sm:$0xf]
      %v409 = vld [vmem:[%s380 + $0x60] sm:$0xf]
      %v410 = vld [vmem:[%s380 + $0x64] sm:$0xf]
      %v411 = vld [vmem:[%s380 + $0x68] sm:$0xf]
      %v412 = vld [vmem:[%s380 + $0x6c] sm:$0xf]
      %v413 = vld [vmem:[%s380 + $0x70] sm:$0xf]
      %v414 = vld [vmem:[%s380 + $0x74] sm:$0xf]
      %v415 = vld [vmem:[%s380 + $0x78] sm:$0xf]
      %v416 = vld [vmem:[%s380 + $0x7c] sm:$0xf]
      %v417 = vld [vmem:[%s380 + $0x80] sm:$0xf]
      %v418 = vld [vmem:[%s380 + $0x84] sm:$0xf]
      %v419 = vld [vmem:[%s380 + $0x88] sm:$0xf]
      %v420 = vld [vmem:[%s380 + $0x8c] sm:$0xf]
      %v421 = vld [vmem:[%s380 + $0x90] sm:$0xf]
      %v422 = vld [vmem:[%s380 + $0x94] sm:$0xf]
      %v423 = vld [vmem:[%s380 + $0x98] sm:$0xf]
      %v424 = vld [vmem:[%s380 + $0x9c] sm:$0xf]
      %v425 = vld [vmem:[%s380 + $0xa0] sm:$0xf]
      %v426 = vld [vmem:[%s380 + $0xa4] sm:$0xf]
      %v427 = vld [vmem:[%s380 + $0xa8] sm:$0xf]
      %v428 = vld [vmem:[%s380 + $0xac] sm:$0xf]
      %v429 = vld [vmem:[%s380 + $0xb0] sm:$0xf]
      %v430 = vld [vmem:[%s380 + $0xb4] sm:$0xf]
      %v431 = vld [vmem:[%s380 + $0xb8] sm:$0xf]
      %v432 = vld [vmem:[%s380 + $0xbc] sm:$0xf]
      %v433 = vld [vmem:[%s380 + $0xc0] sm:$0xf]
      %v434 = vld [vmem:[%s380 + $0xc4] sm:$0xf]
      %v435 = vld [vmem:[%s380 + $0xc8] sm:$0xf]
      %v436 = vld [vmem:[%s380 + $0xcc] sm:$0xf]
      %v437 = vld [vmem:[%s380 + $0xd0] sm:$0xf]
      %v438 = vld [vmem:[%s380 + $0xd4] sm:$0xf]
      %v439 = vld [vmem:[%s380 + $0xd8] sm:$0xf]
      %v440 = vld [vmem:[%s380 + $0xdc] sm:$0xf]
      %v441 = vld [vmem:[%s380 + $0xe0] sm:$0xf]
      %v442 = vld [vmem:[%s380 + $0xe4] sm:$0xf]
      %v443 = vld [vmem:[%s380 + $0xe8] sm:$0xf]
      %v444 = vld [vmem:[%s380 + $0xec] sm:$0xf]
      %v445 = vld [vmem:[%s380 + $0xf0] sm:$0xf]
      %v446 = vld [vmem:[%s380 + $0xf4] sm:$0xf]
      %v447 = vld [vmem:[%s380 + $0xf8] sm:$0xf]
      %v448 = vld [vmem:[%s380 + $0xfc] sm:$0xf]
      %v449 = vld [vmem:[%s380 + $0x100] sm:$0xf]
      %v450 = vld [vmem:[%s380 + $0x104] sm:$0xf]
      %v451 = vld [vmem:[%s380 + $0x108] sm:$0xf]
      %v452 = vld [vmem:[%s380 + $0x10c] sm:$0xf]
      %v453 = vld [vmem:[%s380 + $0x110] sm:$0xf]
      %v454 = vld [vmem:[%s380 + $0x114] sm:$0xf]
      %v455 = vld [vmem:[%s380 + $0x118] sm:$0xf]
      %v456 = vld [vmem:[%s380 + $0x11c] sm:$0xf]
      %v457 = vld [vmem:[%s380 + $0x120] sm:$0xf]
      %v458 = vld [vmem:[%s380 + $0x124] sm:$0xf]
      %v459 = vld [vmem:[%s380 + $0x128] sm:$0xf]
      %v460 = vld [vmem:[%s380 + $0x12c] sm:$0xf]
      %v461 = vld [vmem:[%s380 + $0x130] sm:$0xf]
      %v462 = vld [vmem:[%s380 + $0x134] sm:$0xf]
      %v463 = vld [vmem:[%s380 + $0x138] sm:$0xf]
      %v464 = vld [vmem:[%s380 + $0x13c] sm:$0xf]
      %v465 = vld [vmem:[%s380 + $0x140] sm:$0xf]
      %v466 = vld [vmem:[%s380 + $0x144] sm:$0xf]
      %v467 = vld [vmem:[%s380 + $0x148] sm:$0xf]
      %v468 = vld [vmem:[%s380 + $0x14c] sm:$0xf]
      %v469 = vld [vmem:[%s380 + $0x150] sm:$0xf]
      %v470 = vld [vmem:[%s380 + $0x154] sm:$0xf]
      %v471 = vld [vmem:[%s380 + $0x158] sm:$0xf]
      %v472 = vld [vmem:[%s380 + $0x15c] sm:$0xf]
      %v473 = vld [vmem:[%s380 + $0x160] sm:$0xf]
      %v474 = vld [vmem:[%s380 + $0x164] sm:$0xf]
      %v475 = vld [vmem:[%s380 + $0x168] sm:$0xf]
      %v476 = vld [vmem:[%s380 + $0x16c] sm:$0xf]
      %v477 = vld [vmem:[%s380 + $0x170] sm:$0xf]
      %v478 = vld [vmem:[%s380 + $0x174] sm:$0xf]
      %v479 = vld [vmem:[%s380 + $0x178] sm:$0xf]
      %v480 = vld [vmem:[%s380 + $0x17c] sm:$0xf]
      %v481 = vld [vmem:[%s380 + $0x180] sm:$0xf]
      %v482 = vld [vmem:[%s380 + $0x184] sm:$0xf]
      %v483 = vld [vmem:[%s380 + $0x188] sm:$0xf]
      %v484 = vld [vmem:[%s380 + $0x18c] sm:$0xf]
      %v485 = vld [vmem:[%s380 + $0x190] sm:$0xf]
      %v486 = vld [vmem:[%s380 + $0x194] sm:$0xf]
      %v487 = vld [vmem:[%s380 + $0x198] sm:$0xf]
      %v488 = vld [vmem:[%s380 + $0x19c] sm:$0xf]
      %v489 = vld [vmem:[%s380 + $0x1a0] sm:$0xf]
      %v490 = vld [vmem:[%s380 + $0x1a4] sm:$0xf]
      %v491 = vld [vmem:[%s380 + $0x1a8] sm:$0xf]
      %v492 = vld [vmem:[%s380 + $0x1ac] sm:$0xf]
      %v493 = vld [vmem:[%s1] sm:$0xf]
      %v494 = vld [vmem:[%s1 + $0x4] sm:$0xf]
      %v495 = vld [vmem:[%s1 + $0x8] sm:$0xf]
      %v496 = vld [vmem:[%s1 + $0xc] sm:$0xf]
      %v497 = vld [vmem:[%s1 + $0x10] sm:$0xf]
      %v498 = vld [vmem:[%s1 + $0x14] sm:$0xf]
      %v499 = vld [vmem:[%s1 + $0x18] sm:$0xf]
      %v500 = vld [vmem:[%s1 + $0x1c] sm:$0xf]
      %v501 = vld [vmem:[%s1 + $0x20] sm:$0xf]
      %v502 = vld [vmem:[%s1 + $0x24] sm:$0xf]
      %v503 = vld [vmem:[%s1 + $0x28] sm:$0xf]
      %v504 = vld [vmem:[%s1 + $0x2c] sm:$0xf]
      %v505 = vld [vmem:[%s1 + $0x30] sm:$0xf]
      %v506 = vld [vmem:[%s1 + $0x34] sm:$0xf]
      %v507 = vld [vmem:[%s1 + $0x38] sm:$0xf]
      %v508 = vld [vmem:[%s1 + $0x3c] sm:$0xf]
      %v617 = vunpack.c.l.b16 %v385
      %v618 = vunpack.c.l.b16 %v386
      %v619 = vunpack.c.l.b16 %v387
      %v620 = vunpack.c.l.b16 %v388
      %v621 = vunpack.c.l.b16 %v389
      %v622 = vunpack.c.l.b16 %v390
      %v623 = vunpack.c.l.b16 %v391
      %v624 = vunpack.c.l.b16 %v392
      %v625 = vunpack.c.l.b16 %v393
      %v626 = vunpack.c.l.b16 %v394
      %v627 = vunpack.c.l.b16 %v395
      %v628 = vunpack.c.l.b16 %v396
      %v629 = vunpack.c.l.b16 %v397
      %v630 = vunpack.c.l.b16 %v398
      %v631 = vunpack.c.l.b16 %v399
      %v632 = vunpack.c.l.b16 %v400
      %v633 = vunpack.c.l.b16 %v401
      %v634 = vunpack.c.l.b16 %v402
      %v635 = vunpack.c.l.b16 %v403
      %v636 = vunpack.c.l.b16 %v404
      %v637 = vunpack.c.l.b16 %v405
      %v638 = vunpack.c.l.b16 %v406
      %v639 = vunpack.c.l.b16 %v407
      %v640 = vunpack.c.l.b16 %v408
      %v641 = vunpack.c.l.b16 %v409
      %v642 = vunpack.c.l.b16 %v410
      %v643 = vunpack.c.l.b16 %v411
      %v644 = vunpack.c.l.b16 %v412
      %v645 = vunpack.c.l.b16 %v413
      %v646 = vunpack.c.l.b16 %v414
      %v647 = vunpack.c.l.b16 %v415
      %v648 = vunpack.c.l.b16 %v416
      %v649 = vunpack.c.l.b16 %v417
      %v650 = vunpack.c.l.b16 %v418
      %v651 = vunpack.c.l.b16 %v419
      %v652 = vunpack.c.l.b16 %v420
      %v653 = vunpack.c.l.b16 %v421
      %v654 = vunpack.c.l.b16 %v422
      %v655 = vunpack.c.l.b16 %v423
      %v656 = vunpack.c.l.b16 %v424
      %v657 = vunpack.c.l.b16 %v425
      %v658 = vunpack.c.l.b16 %v426
      %v659 = vunpack.c.l.b16 %v427
      %v660 = vunpack.c.l.b16 %v428
      %v661 = vunpack.c.l.b16 %v429
      %v662 = vunpack.c.l.b16 %v430
      %v663 = vunpack.c.l.b16 %v431
      %v664 = vunpack.c.l.b16 %v432
      %v665 = vunpack.c.l.b16 %v433
      %v666 = vunpack.c.l.b16 %v434
      %v667 = vunpack.c.l.b16 %v435
      %v668 = vunpack.c.l.b16 %v436
      %v669 = vunpack.c.l.b16 %v437
      %v670 = vunpack.c.l.b16 %v438
      %v671 = vunpack.c.l.b16 %v439
      %v672 = vunpack.c.l.b16 %v440
      %v673 = vunpack.c.l.b16 %v441
      %v674 = vunpack.c.l.b16 %v442
      %v675 = vunpack.c.l.b16 %v443
      %v676 = vunpack.c.l.b16 %v444
      %v677 = vunpack.c.l.b16 %v445
      %v678 = vunpack.c.l.b16 %v446
      %v679 = vunpack.c.l.b16 %v447
      %v680 = vunpack.c.l.b16 %v448
      %v681 = vunpack.c.l.b16 %v449
      %v682 = vunpack.c.l.b16 %v450
      %v683 = vunpack.c.l.b16 %v451
      %v684 = vunpack.c.l.b16 %v452
      %v685 = vunpack.c.l.b16 %v453
      %v686 = vunpack.c.l.b16 %v454
      %v687 = vunpack.c.l.b16 %v455
      %v688 = vunpack.c.l.b16 %v456
      %v689 = vunpack.c.l.b16 %v457
      %v690 = vunpack.c.l.b16 %v458
      %v691 = vunpack.c.l.b16 %v459
      %v692 = vunpack.c.l.b16 %v460
      %v693 = vunpack.c.l.b16 %v461
      %v694 = vunpack.c.l.b16 %v462
      %v695 = vunpack.c.l.b16 %v463
      %v696 = vunpack.c.l.b16 %v464
      %v697 = vunpack.c.l.b16 %v465
      %v698 = vunpack.c.l.b16 %v466
      %v699 = vunpack.c.l.b16 %v467
      %v700 = vunpack.c.l.b16 %v468
      %v701 = vunpack.c.l.b16 %v469
      %v702 = vunpack.c.l.b16 %v470
      %v703 = vunpack.c.l.b16 %v471
      %v704 = vunpack.c.l.b16 %v472
      %v705 = vunpack.c.l.b16 %v473
      %v706 = vunpack.c.l.b16 %v474
      %v707 = vunpack.c.l.b16 %v475
      %v708 = vunpack.c.l.b16 %v476
      %v709 = vunpack.c.l.b16 %v477
      %v710 = vunpack.c.l.b16 %v478
      %v711 = vunpack.c.l.b16 %v479
      %v712 = vunpack.c.l.b16 %v480
      %v713 = vunpack.c.l.b16 %v481
      %v714 = vunpack.c.l.b16 %v482
      %v715 = vunpack.c.l.b16 %v483
      %v716 = vunpack.c.l.b16 %v484
      %v717 = vunpack.c.l.b16 %v485
      %v718 = vunpack.c.l.b16 %v486
      %v719 = vunpack.c.l.b16 %v487
      %v720 = vunpack.c.l.b16 %v488
      %v721 = vunpack.c.l.b16 %v489
      %v722 = vunpack.c.l.b16 %v490
      %v723 = vunpack.c.l.b16 %v491
      %v724 = vunpack.c.l.b16 %v492
      %v725 = vpack.c.b16 %v618, %v617
      %v726 = vpack.c.b16 %v620, %v619
      %v727 = vpack.c.b16 %v622, %v621
      %v728 = vpack.c.b16 %v624, %v623
      %v729 = vpack.c.b16 %v626, %v625
      %v730 = vpack.c.b16 %v628, %v627
      %v731 = vpack.c.b16 %v630, %v629
      %v732 = vpack.c.b16 %v632, %v631
      %v733 = vpack.c.b16 %v634, %v633
      %v734 = vpack.c.b16 %v636, %v635
      %v735 = vpack.c.b16 %v638, %v637
      %v736 = vpack.c.b16 %v640, %v639
      %v737 = vpack.c.b16 %v642, %v641
      %v738 = vpack.c.b16 %v644, %v643
      %v739 = vpack.c.b16 %v646, %v645
      %v740 = vpack.c.b16 %v648, %v647
      %v741 = vpack.c.b16 %v650, %v649
      %v742 = vpack.c.b16 %v652, %v651
      %v743 = vpack.c.b16 %v654, %v653
      %v744 = vpack.c.b16 %v656, %v655
      %v745 = vpack.c.b16 %v658, %v657
      %v746 = vpack.c.b16 %v660, %v659
      %v747 = vpack.c.b16 %v662, %v661
      %v748 = vpack.c.b16 %v664, %v663
      %v749 = vpack.c.b16 %v666, %v665
      %v750 = vpack.c.b16 %v668, %v667
      %v751 = vpack.c.b16 %v670, %v669
      %v752 = vpack.c.b16 %v672, %v671
      %v753 = vpack.c.b16 %v674, %v673
      %v754 = vpack.c.b16 %v676, %v675
      %v755 = vpack.c.b16 %v678, %v677
      %v756 = vpack.c.b16 %v680, %v679
      %v757 = vpack.c.b16 %v682, %v681
      %v758 = vpack.c.b16 %v684, %v683
      %v759 = vpack.c.b16 %v686, %v685
      %v760 = vpack.c.b16 %v688, %v687
      %v761 = vpack.c.b16 %v690, %v689
      %v762 = vpack.c.b16 %v692, %v691
      %v763 = vpack.c.b16 %v694, %v693
      %v764 = vpack.c.b16 %v696, %v695
      %v765 = vpack.c.b16 %v698, %v697
      %v766 = vpack.c.b16 %v700, %v699
      %v767 = vpack.c.b16 %v702, %v701
      %v768 = vpack.c.b16 %v704, %v703
      %v769 = vpack.c.b16 %v706, %v705
      %v770 = vpack.c.b16 %v708, %v707
      %v771 = vpack.c.b16 %v710, %v709
      %v772 = vpack.c.b16 %v712, %v711
      %v773 = vpack.c.b16 %v714, %v713
      %v774 = vpack.c.b16 %v716, %v715
      %v775 = vpack.c.b16 %v718, %v717
      %v776 = vpack.c.b16 %v720, %v719
      %v777 = vpack.c.b16 %v722, %v721
      %v778 = vpack.c.b16 %v724, %v723
      %v849 = vunpack.c.l.b16 %v493
      %v850 = vunpack.c.l.b16 %v494
      %v851 = vunpack.c.l.b16 %v495
      %v852 = vunpack.c.l.b16 %v496
      %v853 = vunpack.c.l.b16 %v497
      %v854 = vunpack.c.l.b16 %v498
      %v855 = vunpack.c.l.b16 %v499
      %v856 = vunpack.c.l.b16 %v500
      %v857 = vunpack.c.l.b16 %v501
      %v858 = vunpack.c.l.b16 %v502
      %v859 = vunpack.c.l.b16 %v503
      %v860 = vunpack.c.l.b16 %v504
      %v861 = vunpack.c.l.b16 %v505
      %v862 = vunpack.c.l.b16 %v506
      %v863 = vunpack.c.l.b16 %v507
      %v864 = vunpack.c.l.b16 %v508
      %v865 = vpack.c.b16 %v850, %v849
      %v866 = vpack.c.b16 %v852, %v851
      %v867 = vpack.c.b16 %v854, %v853
      %v868 = vpack.c.b16 %v856, %v855
      %v869 = vpack.c.b16 %v858, %v857
      %v870 = vpack.c.b16 %v860, %v859
      %v871 = vpack.c.b16 %v862, %v861
      %v872 = vpack.c.b16 %v864, %v863
      %881 = vmatpush.bf16.msra.mxu0 %v872
      %882 = vmatpush.bf16.msra.mxu0 %v871
      %883 = vmatpush.bf16.msra.mxu0 %v870
      %884 = vmatpush.bf16.msra.mxu0 %v869
      %885 = vmatpush.bf16.msra.mxu0 %v868
      %886 = vmatpush.bf16.msra.mxu0 %v867
      %887 = vmatpush.bf16.msra.mxu0 %v866
      %888 = vmatpush.bf16.msra.mxu0 %v865
      %889 = vmatmul.bf16.gmra.mxu0 %v725
      %v890 = vpop.f32.mrf.mxu0
      %v891 = vadd.f32 0.0, %v890
      %v892 = vpop.f32.mrf.mxu0
      %v893 = vadd.f32 0.0, %v892
      %894 = vmatmul.bf16.gmra.mxu0 %v726
      %v895 = vpop.f32.mrf.mxu0
      %v896 = vadd.f32 0.0, %v895
      %v897 = vpop.f32.mrf.mxu0
      %v898 = vadd.f32 0.0, %v897
      %899 = vmatmul.bf16.gmra.mxu0 %v727
      %v900 = vpop.f32.mrf.mxu0
      %v901 = vadd.f32 0.0, %v900
      %v902 = vpop.f32.mrf.mxu0
      %v903 = vadd.f32 0.0, %v902
      %904 = vmatmul.bf16.gmra.mxu0 %v728
      %v905 = vpop.f32.mrf.mxu0
      %v906 = vadd.f32 0.0, %v905
      %v907 = vpop.f32.mrf.mxu0
      %v908 = vadd.f32 0.0, %v907
      %909 = vmatmul.bf16.gmra.mxu0 %v729
      %v910 = vpop.f32.mrf.mxu0
      %v911 = vadd.f32 0.0, %v910
      %v912 = vpop.f32.mrf.mxu0
      %v913 = vadd.f32 0.0, %v912
      %914 = vmatmul.bf16.gmra.mxu0 %v730
      %v915 = vpop.f32.mrf.mxu0
      %v916 = vadd.f32 0.0, %v915
      %v917 = vpop.f32.mrf.mxu0
      %v918 = vadd.f32 0.0, %v917
      %919 = vmatmul.bf16.gmra.mxu0 %v731
      %v920 = vpop.f32.mrf.mxu0
      %v921 = vadd.f32 0.0, %v920
      %v922 = vpop.f32.mrf.mxu0
      %v923 = vadd.f32 0.0, %v922
      %924 = vmatmul.bf16.gmra.mxu0 %v732
      %v925 = vpop.f32.mrf.mxu0
      %v926 = vadd.f32 0.0, %v925
      %v927 = vpop.f32.mrf.mxu0
      %v928 = vadd.f32 0.0, %v927
      %929 = vmatmul.bf16.gmra.mxu0 %v733
      %v930 = vpop.f32.mrf.mxu0
      %v931 = vadd.f32 0.0, %v930
      %v932 = vpop.f32.mrf.mxu0
      %v933 = vadd.f32 0.0, %v932
      %934 = vmatmul.bf16.gmra.mxu0 %v734
      %v935 = vpop.f32.mrf.mxu0
      %v936 = vadd.f32 0.0, %v935
      %v937 = vpop.f32.mrf.mxu0
      %v938 = vadd.f32 0.0, %v937
      %939 = vmatmul.bf16.gmra.mxu0 %v735
      %v940 = vpop.f32.mrf.mxu0
      %v941 = vadd.f32 0.0, %v940
      %v942 = vpop.f32.mrf.mxu0
      %v943 = vadd.f32 0.0, %v942
      %944 = vmatmul.bf16.gmra.mxu0 %v736
      %v945 = vpop.f32.mrf.mxu0
      %v946 = vadd.f32 0.0, %v945
      %v947 = vpop.f32.mrf.mxu0
      %v948 = vadd.f32 0.0, %v947
      %949 = vmatmul.bf16.gmra.mxu0 %v737
      %v950 = vpop.f32.mrf.mxu0
      %v951 = vadd.f32 0.0, %v950
      %v952 = vpop.f32.mrf.mxu0
      %v953 = vadd.f32 0.0, %v952
      %954 = vmatmul.bf16.gmra.mxu0 %v738
      %v955 = vpop.f32.mrf.mxu0
      %v956 = vadd.f32 0.0, %v955
      %v957 = vpop.f32.mrf.mxu0
      %v958 = vadd.f32 0.0, %v957
      %959 = vmatmul.bf16.gmra.mxu0 %v739
      %v960 = vpop.f32.mrf.mxu0
      %v961 = vadd.f32 0.0, %v960
      %v962 = vpop.f32.mrf.mxu0
      %v963 = vadd.f32 0.0, %v962
      %964 = vmatmul.bf16.gmra.mxu0 %v740
      %v965 = vpop.f32.mrf.mxu0
      %v966 = vadd.f32 0.0, %v965
      %v967 = vpop.f32.mrf.mxu0
      %v968 = vadd.f32 0.0, %v967
      %969 = vmatmul.bf16.gmra.mxu0 %v741
      %v970 = vpop.f32.mrf.mxu0
      %v971 = vadd.f32 0.0, %v970
      %v972 = vpop.f32.mrf.mxu0
      %v973 = vadd.f32 0.0, %v972
      %974 = vmatmul.bf16.gmra.mxu0 %v742
      %v975 = vpop.f32.mrf.mxu0
      %v976 = vadd.f32 0.0, %v975
      %v977 = vpop.f32.mrf.mxu0
      %v978 = vadd.f32 0.0, %v977
      %979 = vmatmul.bf16.gmra.mxu0 %v743
      %v980 = vpop.f32.mrf.mxu0
      %v981 = vadd.f32 0.0, %v980
      %v982 = vpop.f32.mrf.mxu0
      %v983 = vadd.f32 0.0, %v982
      %984 = vmatmul.bf16.gmra.mxu0 %v744
      %v985 = vpop.f32.mrf.mxu0
      %v986 = vadd.f32 0.0, %v985
      %v987 = vpop.f32.mrf.mxu0
      %v988 = vadd.f32 0.0, %v987
      %989 = vmatmul.bf16.gmra.mxu0 %v745
      %v990 = vpop.f32.mrf.mxu0
      %v991 = vadd.f32 0.0, %v990
      %v992 = vpop.f32.mrf.mxu0
      %v993 = vadd.f32 0.0, %v992
      %994 = vmatmul.bf16.gmra.mxu0 %v746
      %v995 = vpop.f32.mrf.mxu0
      %v996 = vadd.f32 0.0, %v995
      %v997 = vpop.f32.mrf.mxu0
      %v998 = vadd.f32 0.0, %v997
      %999 = vmatmul.bf16.gmra.mxu0 %v747
      %v1000 = vpop.f32.mrf.mxu0
      %v1001 = vadd.f32 0.0, %v1000
      %v1002 = vpop.f32.mrf.mxu0
      %v1003 = vadd.f32 0.0, %v1002
      %1004 = vmatmul.bf16.gmra.mxu0 %v748
      %v1005 = vpop.f32.mrf.mxu0
      %v1006 = vadd.f32 0.0, %v1005
      %v1007 = vpop.f32.mrf.mxu0
      %v1008 = vadd.f32 0.0, %v1007
      %1009 = vmatmul.bf16.gmra.mxu0 %v749
      %v1010 = vpop.f32.mrf.mxu0
      %v1011 = vadd.f32 0.0, %v1010
      %v1012 = vpop.f32.mrf.mxu0
      %v1013 = vadd.f32 0.0, %v1012
      %1014 = vmatmul.bf16.gmra.mxu0 %v750
      %v1015 = vpop.f32.mrf.mxu0
      %v1016 = vadd.f32 0.0, %v1015
      %v1017 = vpop.f32.mrf.mxu0
      %v1018 = vadd.f32 0.0, %v1017
      %1019 = vmatmul.bf16.gmra.mxu0 %v751
      %v1020 = vpop.f32.mrf.mxu0
      %v1021 = vadd.f32 0.0, %v1020
      %v1022 = vpop.f32.mrf.mxu0
      %v1023 = vadd.f32 0.0, %v1022
      %1024 = vmatmul.bf16.gmra.mxu0 %v752
      %v1025 = vpop.f32.mrf.mxu0
      %v1026 = vadd.f32 0.0, %v1025
      %v1027 = vpop.f32.mrf.mxu0
      %v1028 = vadd.f32 0.0, %v1027
      %1029 = vmatmul.bf16.gmra.mxu0 %v753
      %v1030 = vpop.f32.mrf.mxu0
      %v1031 = vadd.f32 0.0, %v1030
      %v1032 = vpop.f32.mrf.mxu0
      %v1033 = vadd.f32 0.0, %v1032
      %1034 = vmatmul.bf16.gmra.mxu0 %v754
      %v1035 = vpop.f32.mrf.mxu0
      %v1036 = vadd.f32 0.0, %v1035
      %v1037 = vpop.f32.mrf.mxu0
      %v1038 = vadd.f32 0.0, %v1037
      %1039 = vmatmul.bf16.gmra.mxu0 %v755
      %v1040 = vpop.f32.mrf.mxu0
      %v1041 = vadd.f32 0.0, %v1040
      %v1042 = vpop.f32.mrf.mxu0
      %v1043 = vadd.f32 0.0, %v1042
      %1044 = vmatmul.bf16.gmra.mxu0 %v756
      %v1045 = vpop.f32.mrf.mxu0
      %v1046 = vadd.f32 0.0, %v1045
      %v1047 = vpop.f32.mrf.mxu0
      %v1048 = vadd.f32 0.0, %v1047
      %1049 = vmatmul.bf16.gmra.mxu0 %v757
      %v1050 = vpop.f32.mrf.mxu0
      %v1051 = vadd.f32 0.0, %v1050
      %v1052 = vpop.f32.mrf.mxu0
      %v1053 = vadd.f32 0.0, %v1052
      %1054 = vmatmul.bf16.gmra.mxu0 %v758
      %v1055 = vpop.f32.mrf.mxu0
      %v1056 = vadd.f32 0.0, %v1055
      %v1057 = vpop.f32.mrf.mxu0
      %v1058 = vadd.f32 0.0, %v1057
      %1059 = vmatmul.bf16.gmra.mxu0 %v759
      %v1060 = vpop.f32.mrf.mxu0
      %v1061 = vadd.f32 0.0, %v1060
      %v1062 = vpop.f32.mrf.mxu0
      %v1063 = vadd.f32 0.0, %v1062
      %1064 = vmatmul.bf16.gmra.mxu0 %v760
      %v1065 = vpop.f32.mrf.mxu0
      %v1066 = vadd.f32 0.0, %v1065
      %v1067 = vpop.f32.mrf.mxu0
      %v1068 = vadd.f32 0.0, %v1067
      %1069 = vmatmul.bf16.gmra.mxu0 %v761
      %v1070 = vpop.f32.mrf.mxu0
      %v1071 = vadd.f32 0.0, %v1070
      %v1072 = vpop.f32.mrf.mxu0
      %v1073 = vadd.f32 0.0, %v1072
      %1074 = vmatmul.bf16.gmra.mxu0 %v762
      %v1075 = vpop.f32.mrf.mxu0
      %v1076 = vadd.f32 0.0, %v1075
      %v1077 = vpop.f32.mrf.mxu0
      %v1078 = vadd.f32 0.0, %v1077
      %1079 = vmatmul.bf16.gmra.mxu0 %v763
      %v1080 = vpop.f32.mrf.mxu0
      %v1081 = vadd.f32 0.0, %v1080
      %v1082 = vpop.f32.mrf.mxu0
      %v1083 = vadd.f32 0.0, %v1082
      %1084 = vmatmul.bf16.gmra.mxu0 %v764
      %v1085 = vpop.f32.mrf.mxu0
      %v1086 = vadd.f32 0.0, %v1085
      %v1087 = vpop.f32.mrf.mxu0
      %v1088 = vadd.f32 0.0, %v1087
      %1089 = vmatmul.bf16.gmra.mxu0 %v765
      %v1090 = vpop.f32.mrf.mxu0
      %v1091 = vadd.f32 0.0, %v1090
      %v1092 = vpop.f32.mrf.mxu0
      %v1093 = vadd.f32 0.0, %v1092
      %1094 = vmatmul.bf16.gmra.mxu0 %v766
      %v1095 = vpop.f32.mrf.mxu0
      %v1096 = vadd.f32 0.0, %v1095
      %v1097 = vpop.f32.mrf.mxu0
      %v1098 = vadd.f32 0.0, %v1097
      %1099 = vmatmul.bf16.gmra.mxu0 %v767
      %v1100 = vpop.f32.mrf.mxu0
      %v1101 = vadd.f32 0.0, %v1100
      %v1102 = vpop.f32.mrf.mxu0
      %v1103 = vadd.f32 0.0, %v1102
      %1104 = vmatmul.bf16.gmra.mxu0 %v768
      %v1105 = vpop.f32.mrf.mxu0
      %v1106 = vadd.f32 0.0, %v1105
      %v1107 = vpop.f32.mrf.mxu0
      %v1108 = vadd.f32 0.0, %v1107
      %1109 = vmatmul.bf16.gmra.mxu0 %v769
      %v1110 = vpop.f32.mrf.mxu0
      %v1111 = vadd.f32 0.0, %v1110
      %v1112 = vpop.f32.mrf.mxu0
      %v1113 = vadd.f32 0.0, %v1112
      %1114 = vmatmul.bf16.gmra.mxu0 %v770
      %v1115 = vpop.f32.mrf.mxu0
      %v1116 = vadd.f32 0.0, %v1115
      %v1117 = vpop.f32.mrf.mxu0
      %v1118 = vadd.f32 0.0, %v1117
      %1119 = vmatmul.bf16.gmra.mxu0 %v771
      %v1120 = vpop.f32.mrf.mxu0
      %v1121 = vadd.f32 0.0, %v1120
      %v1122 = vpop.f32.mrf.mxu0
      %v1123 = vadd.f32 0.0, %v1122
      %1124 = vmatmul.bf16.gmra.mxu0 %v772
      %v1125 = vpop.f32.mrf.mxu0
      %v1126 = vadd.f32 0.0, %v1125
      %v1127 = vpop.f32.mrf.mxu0
      %v1128 = vadd.f32 0.0, %v1127
      %1129 = vmatmul.bf16.gmra.mxu0 %v773
      %v1130 = vpop.f32.mrf.mxu0
      %v1131 = vadd.f32 0.0, %v1130
      %v1132 = vpop.f32.mrf.mxu0
      %v1133 = vadd.f32 0.0, %v1132
      %1134 = vmatmul.bf16.gmra.mxu0 %v774
      %v1135 = vpop.f32.mrf.mxu0
      %v1136 = vadd.f32 0.0, %v1135
      %v1137 = vpop.f32.mrf.mxu0
      %v1138 = vadd.f32 0.0, %v1137
      %1139 = vmatmul.bf16.gmra.mxu0 %v775
      %v1140 = vpop.f32.mrf.mxu0
      %v1141 = vadd.f32 0.0, %v1140
      %v1142 = vpop.f32.mrf.mxu0
      %v1143 = vadd.f32 0.0, %v1142
      %1144 = vmatmul.bf16.gmra.mxu0 %v776
      %v1145 = vpop.f32.mrf.mxu0
      %v1146 = vadd.f32 0.0, %v1145
      %v1147 = vpop.f32.mrf.mxu0
      %v1148 = vadd.f32 0.0, %v1147
      %1149 = vmatmul.bf16.gmra.mxu0 %v777
      %v1150 = vpop.f32.mrf.mxu0
      %v1151 = vadd.f32 0.0, %v1150
      %v1152 = vpop.f32.mrf.mxu0
      %v1153 = vadd.f32 0.0, %v1152
      %1154 = vmatmul.bf16.gmra.mxu0 %v778
      %v1155 = vpop.f32.mrf.mxu0
      %v1156 = vadd.f32 0.0, %v1155
      %v1157 = vpop.f32.mrf.mxu0
      %v1158 = vadd.f32 0.0, %v1157
      %1159 = vdwg.mxu0
      %1160 = vst [vmem:[#allocation2] sm:$0xff] %v891
      %1161 = vst [vmem:[#allocation2 + $0x8] sm:$0xff] %v893
      %1162 = vst [vmem:[#allocation2 + $0x10] sm:$0xff] %v896
      %1163 = vst [vmem:[#allocation2 + $0x18] sm:$0xff] %v898
      %1164 = vst [vmem:[#allocation2 + $0x20] sm:$0xff] %v901
      %1165 = vst [vmem:[#allocation2 + $0x28] sm:$0xff] %v903
      %1166 = vst [vmem:[#allocation2 + $0x30] sm:$0xff] %v906
      %1167 = vst [vmem:[#allocation2 + $0x38] sm:$0xff] %v908
      %1168 = vst [vmem:[#allocation2 + $0x40] sm:$0xff] %v911
      %1169 = vst [vmem:[#allocation2 + $0x48] sm:$0xff] %v913
      %1170 = vst [vmem:[#allocation2 + $0x50] sm:$0xff] %v916
      %1171 = vst [vmem:[#allocation2 + $0x58] sm:$0xff] %v918
      %1172 = vst [vmem:[#allocation2 + $0x60] sm:$0xff] %v921
      %1173 = vst [vmem:[#allocation2 + $0x68] sm:$0xff] %v923
      %1174 = vst [vmem:[#allocation2 + $0x70] sm:$0xff] %v926
      %1175 = vst [vmem:[#allocation2 + $0x78] sm:$0xff] %v928
      %1176 = vst [vmem:[#allocation2 + $0x80] sm:$0xff] %v931
      %1177 = vst [vmem:[#allocation2 + $0x88] sm:$0xff] %v933
      %1178 = vst [vmem:[#allocation2 + $0x90] sm:$0xff] %v936
      %1179 = vst [vmem:[#allocation2 + $0x98] sm:$0xff] %v938
      %1180 = vst [vmem:[#allocation2 + $0xa0] sm:$0xff] %v941
      %1181 = vst [vmem:[#allocation2 + $0xa8] sm:$0xff] %v943
      %1182 = vst [vmem:[#allocation2 + $0xb0] sm:$0xff] %v946
      %1183 = vst [vmem:[#allocation2 + $0xb8] sm:$0xff] %v948
      %1184 = vst [vmem:[#allocation2 + $0xc0] sm:$0xff] %v951
      %1185 = vst [vmem:[#allocation2 + $0xc8] sm:$0xff] %v953
      %1186 = vst [vmem:[#allocation2 + $0xd0] sm:$0xff] %v956
      %1187 = vst [vmem:[#allocation2 + $0xd8] sm:$0xff] %v958
      %1188 = vst [vmem:[#allocation2 + $0xe0] sm:$0xff] %v961
      %1189 = vst [vmem:[#allocation2 + $0xe8] sm:$0xff] %v963
      %1190 = vst [vmem:[#allocation2 + $0xf0] sm:$0xff] %v966
      %1191 = vst [vmem:[#allocation2 + $0xf8] sm:$0xff] %v968
      %1192 = vst [vmem:[#allocation2 + $0x100] sm:$0xff] %v971
      %1193 = vst [vmem:[#allocation2 + $0x108] sm:$0xff] %v973
      %1194 = vst [vmem:[#allocation2 + $0x110] sm:$0xff] %v976
      %1195 = vst [vmem:[#allocation2 + $0x118] sm:$0xff] %v978
      %1196 = vst [vmem:[#allocation2 + $0x120] sm:$0xff] %v981
      %1197 = vst [vmem:[#allocation2 + $0x128] sm:$0xff] %v983
      %1198 = vst [vmem:[#allocation2 + $0x130] sm:$0xff] %v986
      %1199 = vst [vmem:[#allocation2 + $0x138] sm:$0xff] %v988
      %1200 = vst [vmem:[#allocation2 + $0x140] sm:$0xff] %v991
      %1201 = vst [vmem:[#allocation2 + $0x148] sm:$0xff] %v993
      %1202 = vst [vmem:[#allocation2 + $0x150] sm:$0xff] %v996
      %1203 = vst [vmem:[#allocation2 + $0x158] sm:$0xff] %v998
      %1204 = vst [vmem:[#allocation2 + $0x160] sm:$0xff] %v1001
      %1205 = vst [vmem:[#allocation2 + $0x168] sm:$0xff] %v1003
      %1206 = vst [vmem:[#allocation2 + $0x170] sm:$0xff] %v1006
      %1207 = vst [vmem:[#allocation2 + $0x178] sm:$0xff] %v1008
      %1208 = vst [vmem:[#allocation2 + $0x180] sm:$0xff] %v1011
      %1209 = vst [vmem:[#allocation2 + $0x188] sm:$0xff] %v1013
      %1210 = vst [vmem:[#allocation2 + $0x190] sm:$0xff] %v1016
      %1211 = vst [vmem:[#allocation2 + $0x198] sm:$0xff] %v1018
      %1212 = vst [vmem:[#allocation2 + $0x1a0] sm:$0xff] %v1021
      %1213 = vst [vmem:[#allocation2 + $0x1a8] sm:$0xff] %v1023
      %1214 = vst [vmem:[#allocation2 + $0x1b0] sm:$0xff] %v1026
      %1215 = vst [vmem:[#allocation2 + $0x1b8] sm:$0xff] %v1028
      %1216 = vst [vmem:[#allocation2 + $0x1c0] sm:$0xff] %v1031
      %1217 = vst [vmem:[#allocation2 + $0x1c8] sm:$0xff] %v1033
      %1218 = vst [vmem:[#allocation2 + $0x1d0] sm:$0xff] %v1036
      %1219 = vst [vmem:[#allocation2 + $0x1d8] sm:$0xff] %v1038
      %1220 = vst [vmem:[#allocation2 + $0x1e0] sm:$0xff] %v1041
      %1221 = vst [vmem:[#allocation2 + $0x1e8] sm:$0xff] %v1043
      %1222 = vst [vmem:[#allocation2 + $0x1f0] sm:$0xff] %v1046
      %1223 = vst [vmem:[#allocation2 + $0x1f8] sm:$0xff] %v1048
      %1224 = vst [vmem:[#allocation2 + $0x200] sm:$0xff] %v1051
      %1225 = vst [vmem:[#allocation2 + $0x208] sm:$0xff] %v1053
      %1226 = vst [vmem:[#allocation2 + $0x210] sm:$0xff] %v1056
      %1227 = vst [vmem:[#allocation2 + $0x218] sm:$0xff] %v1058
      %1228 = vst [vmem:[#allocation2 + $0x220] sm:$0xff] %v1061
      %1229 = vst [vmem:[#allocation2 + $0x228] sm:$0xff] %v1063
      %1230 = vst [vmem:[#allocation2 + $0x230] sm:$0xff] %v1066
      %1231 = vst [vmem:[#allocation2 + $0x238] sm:$0xff] %v1068
      %1232 = vst [vmem:[#allocation2 + $0x240] sm:$0xff] %v1071
      %1233 = vst [vmem:[#allocation2 + $0x248] sm:$0xff] %v1073
      %1234 = vst [vmem:[#allocation2 + $0x250] sm:$0xff] %v1076
      %1235 = vst [vmem:[#allocation2 + $0x258] sm:$0xff] %v1078
      %1236 = vst [vmem:[#allocation2 + $0x260] sm:$0xff] %v1081
      %1237 = vst [vmem:[#allocation2 + $0x268] sm:$0xff] %v1083
      %1238 = vst [vmem:[#allocation2 + $0x270] sm:$0xff] %v1086
      %1239 = vst [vmem:[#allocation2 + $0x278] sm:$0xff] %v1088
      %1240 = vst [vmem:[#allocation2 + $0x280] sm:$0xff] %v1091
      %1241 = vst [vmem:[#allocation2 + $0x288] sm:$0xff] %v1093
      %1242 = vst [vmem:[#allocation2 + $0x290] sm:$0xff] %v1096
      %1243 = vst [vmem:[#allocation2 + $0x298] sm:$0xff] %v1098
      %1244 = vst [vmem:[#allocation2 + $0x2a0] sm:$0xff] %v1101
      %1245 = vst [vmem:[#allocation2 + $0x2a8] sm:$0xff] %v1103
      %1246 = vst [vmem:[#allocation2 + $0x2b0] sm:$0xff] %v1106
      %1247 = vst [vmem:[#allocation2 + $0x2b8] sm:$0xff] %v1108
      %1248 = vst [vmem:[#allocation2 + $0x2c0] sm:$0xff] %v1111
      %1249 = vst [vmem:[#allocation2 + $0x2c8] sm:$0xff] %v1113
      %1250 = vst [vmem:[#allocation2 + $0x2d0] sm:$0xff] %v1116
      %1251 = vst [vmem:[#allocation2 + $0x2d8] sm:$0xff] %v1118
      %1252 = vst [vmem:[#allocation2 + $0x2e0] sm:$0xff] %v1121
      %1253 = vst [vmem:[#allocation2 + $0x2e8] sm:$0xff] %v1123
      %1254 = vst [vmem:[#allocation2 + $0x2f0] sm:$0xff] %v1126
      %1255 = vst [vmem:[#allocation2 + $0x2f8] sm:$0xff] %v1128
      %1256 = vst [vmem:[#allocation2 + $0x300] sm:$0xff] %v1131
      %1257 = vst [vmem:[#allocation2 + $0x308] sm:$0xff] %v1133
      %1258 = vst [vmem:[#allocation2 + $0x310] sm:$0xff] %v1136
      %1259 = vst [vmem:[#allocation2 + $0x318] sm:$0xff] %v1138
      %1260 = vst [vmem:[#allocation2 + $0x320] sm:$0xff] %v1141
      %1261 = vst [vmem:[#allocation2 + $0x328] sm:$0xff] %v1143
      %1262 = vst [vmem:[#allocation2 + $0x330] sm:$0xff] %v1146
      %1263 = vst [vmem:[#allocation2 + $0x338] sm:$0xff] %v1148
      %1264 = vst [vmem:[#allocation2 + $0x340] sm:$0xff] %v1151
      %1265 = vst [vmem:[#allocation2 + $0x348] sm:$0xff] %v1153
      %1266 = vst [vmem:[#allocation2 + $0x350] sm:$0xff] %v1156
      %1267 = vst [vmem:[#allocation2 + $0x358] sm:$0xff] %v1158
      %v1268 = vld [vmem:[#allocation2] ss:$2 sm:$0xff]
      %s1269 = scalar_lea.vmem [#allocation2], 16
      %v1270 = vld [vmem:[%s1269] ss:$2 sm:$0xff]
      %s1271 = scalar_lea.vmem [#allocation2], 32
      %v1272 = vld [vmem:[%s1271] ss:$2 sm:$0xff]
      %s1273 = scalar_lea.vmem [#allocation2], 48
      %v1274 = vld [vmem:[%s1273] ss:$2 sm:$0xff]
      %s1275 = scalar_lea.vmem [#allocation2], 64
      %v1276 = vld [vmem:[%s1275] ss:$2 sm:$0xff]
      %s1277 = scalar_lea.vmem [#allocation2], 80
      %v1278 = vld [vmem:[%s1277] ss:$2 sm:$0xff]
      %s1279 = scalar_lea.vmem [#allocation2], 96
      %v1280 = vld [vmem:[%s1279] ss:$2 sm:$0xff]
      %s1281 = scalar_lea.vmem [#allocation2], 112
      %v1282 = vld [vmem:[%s1281] ss:$2 sm:$0xff]
      %s1283 = scalar_lea.vmem [#allocation2], 128
      %v1284 = vld [vmem:[%s1283] ss:$2 sm:$0xff]
      %s1285 = scalar_lea.vmem [#allocation2], 144
      %v1286 = vld [vmem:[%s1285] ss:$2 sm:$0xff]
      %s1287 = scalar_lea.vmem [#allocation2], 160
      %v1288 = vld [vmem:[%s1287] ss:$2 sm:$0xff]
      %s1289 = scalar_lea.vmem [#allocation2], 176
      %v1290 = vld [vmem:[%s1289] ss:$2 sm:$0xff]
      %s1291 = scalar_lea.vmem [#allocation2], 192
      %v1292 = vld [vmem:[%s1291] ss:$2 sm:$0xff]
      %s1293 = scalar_lea.vmem [#allocation2], 208
      %v1294 = vld [vmem:[%s1293] ss:$2 sm:$0xff]
      %s1295 = scalar_lea.vmem [#allocation2], 224
      %v1296 = vld [vmem:[%s1295] ss:$2 sm:$0xff]
      %s1297 = scalar_lea.vmem [#allocation2], 240
      %v1298 = vld [vmem:[%s1297] ss:$2 sm:$0xff]
      %s1299 = scalar_lea.vmem [#allocation2], 256
      %v1300 = vld [vmem:[%s1299] ss:$2 sm:$0xff]
      %s1301 = scalar_lea.vmem [#allocation2], 272
      %v1302 = vld [vmem:[%s1301] ss:$2 sm:$0xff]
      %s1303 = scalar_lea.vmem [#allocation2], 288
      %v1304 = vld [vmem:[%s1303] ss:$2 sm:$0xff]
      %s1305 = scalar_lea.vmem [#allocation2], 304
      %v1306 = vld [vmem:[%s1305] ss:$2 sm:$0xff]
      %s1307 = scalar_lea.vmem [#allocation2], 320
      %v1308 = vld [vmem:[%s1307] ss:$2 sm:$0xff]
      %s1309 = scalar_lea.vmem [#allocation2], 336
      %v1310 = vld [vmem:[%s1309] ss:$2 sm:$0xff]
      %s1311 = scalar_lea.vmem [#allocation2], 352
      %v1312 = vld [vmem:[%s1311] ss:$2 sm:$0xff]
      %s1313 = scalar_lea.vmem [#allocation2], 368
      %v1314 = vld [vmem:[%s1313] ss:$2 sm:$0xff]
      %s1315 = scalar_lea.vmem [#allocation2], 384
      %v1316 = vld [vmem:[%s1315] ss:$2 sm:$0xff]
      %s1317 = scalar_lea.vmem [#allocation2], 400
      %v1318 = vld [vmem:[%s1317] ss:$2 sm:$0xff]
      %s1319 = scalar_lea.vmem [#allocation2], 416
      %v1320 = vld [vmem:[%s1319] ss:$2 sm:$0xff]
      %s1321 = scalar_lea.vmem [#allocation2], 432
      %v1322 = vld [vmem:[%s1321] ss:$2 sm:$0xff]
      %s1323 = scalar_lea.vmem [#allocation2], 448
      %v1324 = vld [vmem:[%s1323] ss:$2 sm:$0xff]
      %s1325 = scalar_lea.vmem [#allocation2], 464
      %v1326 = vld [vmem:[%s1325] ss:$2 sm:$0xff]
      %s1327 = scalar_lea.vmem [#allocation2], 480
      %v1328 = vld [vmem:[%s1327] ss:$2 sm:$0xff]
      %s1329 = scalar_lea.vmem [#allocation2], 496
      %v1330 = vld [vmem:[%s1329] ss:$2 sm:$0xff]
      %s1331 = scalar_lea.vmem [#allocation2], 512
      %v1332 = vld [vmem:[%s1331] ss:$2 sm:$0xff]
      %s1333 = scalar_lea.vmem [#allocation2], 528
      %v1334 = vld [vmem:[%s1333] ss:$2 sm:$0xff]
      %s1335 = scalar_lea.vmem [#allocation2], 544
      %v1336 = vld [vmem:[%s1335] ss:$2 sm:$0xff]
      %s1337 = scalar_lea.vmem [#allocation2], 560
      %v1338 = vld [vmem:[%s1337] ss:$2 sm:$0xff]
      %s1339 = scalar_lea.vmem [#allocation2], 576
      %v1340 = vld [vmem:[%s1339] ss:$2 sm:$0xff]
      %s1341 = scalar_lea.vmem [#allocation2], 592
      %v1342 = vld [vmem:[%s1341] ss:$2 sm:$0xff]
      %s1343 = scalar_lea.vmem [#allocation2], 608
      %v1344 = vld [vmem:[%s1343] ss:$2 sm:$0xff]
      %s1345 = scalar_lea.vmem [#allocation2], 624
      %v1346 = vld [vmem:[%s1345] ss:$2 sm:$0xff]
      %s1347 = scalar_lea.vmem [#allocation2], 640
      %v1348 = vld [vmem:[%s1347] ss:$2 sm:$0xff]
      %s1349 = scalar_lea.vmem [#allocation2], 656
      %v1350 = vld [vmem:[%s1349] ss:$2 sm:$0xff]
      %s1351 = scalar_lea.vmem [#allocation2], 672
      %v1352 = vld [vmem:[%s1351] ss:$2 sm:$0xff]
      %s1353 = scalar_lea.vmem [#allocation2], 688
      %v1354 = vld [vmem:[%s1353] ss:$2 sm:$0xff]
      %s1355 = scalar_lea.vmem [#allocation2], 704
      %v1356 = vld [vmem:[%s1355] ss:$2 sm:$0xff]
      %s1357 = scalar_lea.vmem [#allocation2], 720
      %v1358 = vld [vmem:[%s1357] ss:$2 sm:$0xff]
      %s1359 = scalar_lea.vmem [#allocation2], 736
      %v1360 = vld [vmem:[%s1359] ss:$2 sm:$0xff]
      %s1361 = scalar_lea.vmem [#allocation2], 752
      %v1362 = vld [vmem:[%s1361] ss:$2 sm:$0xff]
      %s1363 = scalar_lea.vmem [#allocation2], 768
      %v1364 = vld [vmem:[%s1363] ss:$2 sm:$0xff]
      %s1365 = scalar_lea.vmem [#allocation2], 784
      %v1366 = vld [vmem:[%s1365] ss:$2 sm:$0xff]
      %s1367 = scalar_lea.vmem [#allocation2], 800
      %v1368 = vld [vmem:[%s1367] ss:$2 sm:$0xff]
      %s1369 = scalar_lea.vmem [#allocation2], 816
      %v1370 = vld [vmem:[%s1369] ss:$2 sm:$0xff]
      %s1371 = scalar_lea.vmem [#allocation2], 1
      %v1372 = vld [vmem:[%s1371] ss:$2 sm:$0xff]
      %s1373 = scalar_lea.vmem [#allocation2], 17
      %v1374 = vld [vmem:[%s1373] ss:$2 sm:$0xff]
      %s1375 = scalar_lea.vmem [#allocation2], 33
      %v1376 = vld [vmem:[%s1375] ss:$2 sm:$0xff]
      %s1377 = scalar_lea.vmem [#allocation2], 49
      %v1378 = vld [vmem:[%s1377] ss:$2 sm:$0xff]
      %s1379 = scalar_lea.vmem [#allocation2], 65
      %v1380 = vld [vmem:[%s1379] ss:$2 sm:$0xff]
      %s1381 = scalar_lea.vmem [#allocation2], 81
      %v1382 = vld [vmem:[%s1381] ss:$2 sm:$0xff]
      %s1383 = scalar_lea.vmem [#allocation2], 97
      %v1384 = vld [vmem:[%s1383] ss:$2 sm:$0xff]
      %s1385 = scalar_lea.vmem [#allocation2], 113
      %v1386 = vld [vmem:[%s1385] ss:$2 sm:$0xff]
      %s1387 = scalar_lea.vmem [#allocation2], 129
      %v1388 = vld [vmem:[%s1387] ss:$2 sm:$0xff]
      %s1389 = scalar_lea.vmem [#allocation2], 145
      %v1390 = vld [vmem:[%s1389] ss:$2 sm:$0xff]
      %s1391 = scalar_lea.vmem [#allocation2], 161
      %v1392 = vld [vmem:[%s1391] ss:$2 sm:$0xff]
      %s1393 = scalar_lea.vmem [#allocation2], 177
      %v1394 = vld [vmem:[%s1393] ss:$2 sm:$0xff]
      %s1395 = scalar_lea.vmem [#allocation2], 193
      %v1396 = vld [vmem:[%s1395] ss:$2 sm:$0xff]
      %s1397 = scalar_lea.vmem [#allocation2], 209
      %v1398 = vld [vmem:[%s1397] ss:$2 sm:$0xff]
      %s1399 = scalar_lea.vmem [#allocation2], 225
      %v1400 = vld [vmem:[%s1399] ss:$2 sm:$0xff]
      %s1401 = scalar_lea.vmem [#allocation2], 241
      %v1402 = vld [vmem:[%s1401] ss:$2 sm:$0xff]
      %s1403 = scalar_lea.vmem [#allocation2], 257
      %v1404 = vld [vmem:[%s1403] ss:$2 sm:$0xff]
      %s1405 = scalar_lea.vmem [#allocation2], 273
      %v1406 = vld [vmem:[%s1405] ss:$2 sm:$0xff]
      %s1407 = scalar_lea.vmem [#allocation2], 289
      %v1408 = vld [vmem:[%s1407] ss:$2 sm:$0xff]
      %s1409 = scalar_lea.vmem [#allocation2], 305
      %v1410 = vld [vmem:[%s1409] ss:$2 sm:$0xff]
      %s1411 = scalar_lea.vmem [#allocation2], 321
      %v1412 = vld [vmem:[%s1411] ss:$2 sm:$0xff]
      %s1413 = scalar_lea.vmem [#allocation2], 337
      %v1414 = vld [vmem:[%s1413] ss:$2 sm:$0xff]
      %s1415 = scalar_lea.vmem [#allocation2], 353
      %v1416 = vld [vmem:[%s1415] ss:$2 sm:$0xff]
      %s1417 = scalar_lea.vmem [#allocation2], 369
      %v1418 = vld [vmem:[%s1417] ss:$2 sm:$0xff]
      %s1419 = scalar_lea.vmem [#allocation2], 385
      %v1420 = vld [vmem:[%s1419] ss:$2 sm:$0xff]
      %s1421 = scalar_lea.vmem [#allocation2], 401
      %v1422 = vld [vmem:[%s1421] ss:$2 sm:$0xff]
      %s1423 = scalar_lea.vmem [#allocation2], 417
      %v1424 = vld [vmem:[%s1423] ss:$2 sm:$0xff]
      %s1425 = scalar_lea.vmem [#allocation2], 433
      %v1426 = vld [vmem:[%s1425] ss:$2 sm:$0xff]
      %s1427 = scalar_lea.vmem [#allocation2], 449
      %v1428 = vld [vmem:[%s1427] ss:$2 sm:$0xff]
      %s1429 = scalar_lea.vmem [#allocation2], 465
      %v1430 = vld [vmem:[%s1429] ss:$2 sm:$0xff]
      %s1431 = scalar_lea.vmem [#allocation2], 481
      %v1432 = vld [vmem:[%s1431] ss:$2 sm:$0xff]
      %s1433 = scalar_lea.vmem [#allocation2], 497
      %v1434 = vld [vmem:[%s1433] ss:$2 sm:$0xff]
      %s1435 = scalar_lea.vmem [#allocation2], 513
      %v1436 = vld [vmem:[%s1435] ss:$2 sm:$0xff]
      %s1437 = scalar_lea.vmem [#allocation2], 529
      %v1438 = vld [vmem:[%s1437] ss:$2 sm:$0xff]
      %s1439 = scalar_lea.vmem [#allocation2], 545
      %v1440 = vld [vmem:[%s1439] ss:$2 sm:$0xff]
      %s1441 = scalar_lea.vmem [#allocation2], 561
      %v1442 = vld [vmem:[%s1441] ss:$2 sm:$0xff]
      %s1443 = scalar_lea.vmem [#allocation2], 577
      %v1444 = vld [vmem:[%s1443] ss:$2 sm:$0xff]
      %s1445 = scalar_lea.vmem [#allocation2], 593
      %v1446 = vld [vmem:[%s1445] ss:$2 sm:$0xff]
      %s1447 = scalar_lea.vmem [#allocation2], 609
      %v1448 = vld [vmem:[%s1447] ss:$2 sm:$0xff]
      %s1449 = scalar_lea.vmem [#allocation2], 625
      %v1450 = vld [vmem:[%s1449] ss:$2 sm:$0xff]
      %s1451 = scalar_lea.vmem [#allocation2], 641
      %v1452 = vld [vmem:[%s1451] ss:$2 sm:$0xff]
      %s1453 = scalar_lea.vmem [#allocation2], 657
      %v1454 = vld [vmem:[%s1453] ss:$2 sm:$0xff]
      %s1455 = scalar_lea.vmem [#allocation2], 673
      %v1456 = vld [vmem:[%s1455] ss:$2 sm:$0xff]
      %s1457 = scalar_lea.vmem [#allocation2], 689
      %v1458 = vld [vmem:[%s1457] ss:$2 sm:$0xff]
      %s1459 = scalar_lea.vmem [#allocation2], 705
      %v1460 = vld [vmem:[%s1459] ss:$2 sm:$0xff]
      %s1461 = scalar_lea.vmem [#allocation2], 721
      %v1462 = vld [vmem:[%s1461] ss:$2 sm:$0xff]
      %s1463 = scalar_lea.vmem [#allocation2], 737
      %v1464 = vld [vmem:[%s1463] ss:$2 sm:$0xff]
      %s1465 = scalar_lea.vmem [#allocation2], 753
      %v1466 = vld [vmem:[%s1465] ss:$2 sm:$0xff]
      %s1467 = scalar_lea.vmem [#allocation2], 769
      %v1468 = vld [vmem:[%s1467] ss:$2 sm:$0xff]
      %s1469 = scalar_lea.vmem [#allocation2], 785
      %v1470 = vld [vmem:[%s1469] ss:$2 sm:$0xff]
      %s1471 = scalar_lea.vmem [#allocation2], 801
      %v1472 = vld [vmem:[%s1471] ss:$2 sm:$0xff]
      %s1473 = scalar_lea.vmem [#allocation2], 817
      %v1474 = vld [vmem:[%s1473] ss:$2 sm:$0xff]
      %s1475 = scalar_lea.vmem [#allocation2], 28
      %v1476 = vld [vmem:[%s1475] ss:$2 sm:$0xff]
      %s1477 = scalar_lea.vmem [#allocation2], 44
      %v1478 = vld [vmem:[%s1477] ss:$2 sm:$0xff]
      %s1479 = scalar_lea.vmem [#allocation2], 60
      %v1480 = vld [vmem:[%s1479] ss:$2 sm:$0xff]
      %s1481 = scalar_lea.vmem [#allocation2], 76
      %v1482 = vld [vmem:[%s1481] ss:$2 sm:$0xff]
      %s1483 = scalar_lea.vmem [#allocation2], 92
      %v1484 = vld [vmem:[%s1483] ss:$2 sm:$0xff]
      %s1485 = scalar_lea.vmem [#allocation2], 108
      %v1486 = vld [vmem:[%s1485] ss:$2 sm:$0xff]
      %s1487 = scalar_lea.vmem [#allocation2], 124
      %v1488 = vld [vmem:[%s1487] ss:$2 sm:$0xff]
      %s1489 = scalar_lea.vmem [#allocation2], 140
      %v1490 = vld [vmem:[%s1489] ss:$2 sm:$0xff]
      %s1491 = scalar_lea.vmem [#allocation2], 156
      %v1492 = vld [vmem:[%s1491] ss:$2 sm:$0xff]
      %s1493 = scalar_lea.vmem [#allocation2], 172
      %v1494 = vld [vmem:[%s1493] ss:$2 sm:$0xff]
      %s1495 = scalar_lea.vmem [#allocation2], 188
      %v1496 = vld [vmem:[%s1495] ss:$2 sm:$0xff]
      %s1497 = scalar_lea.vmem [#allocation2], 204
      %v1498 = vld [vmem:[%s1497] ss:$2 sm:$0xff]
      %s1499 = scalar_lea.vmem [#allocation2], 220
      %v1500 = vld [vmem:[%s1499] ss:$2 sm:$0xff]
      %s1501 = scalar_lea.vmem [#allocation2], 236
      %v1502 = vld [vmem:[%s1501] ss:$2 sm:$0xff]
      %s1503 = scalar_lea.vmem [#allocation2], 252
      %v1504 = vld [vmem:[%s1503] ss:$2 sm:$0xff]
      %s1505 = scalar_lea.vmem [#allocation2], 268
      %v1506 = vld [vmem:[%s1505] ss:$2 sm:$0xff]
      %s1507 = scalar_lea.vmem [#allocation2], 284
      %v1508 = vld [vmem:[%s1507] ss:$2 sm:$0xff]
      %s1509 = scalar_lea.vmem [#allocation2], 300
      %v1510 = vld [vmem:[%s1509] ss:$2 sm:$0xff]
      %s1511 = scalar_lea.vmem [#allocation2], 316
      %v1512 = vld [vmem:[%s1511] ss:$2 sm:$0xff]
      %s1513 = scalar_lea.vmem [#allocation2], 332
      %v1514 = vld [vmem:[%s1513] ss:$2 sm:$0xff]
      %s1515 = scalar_lea.vmem [#allocation2], 348
      %v1516 = vld [vmem:[%s1515] ss:$2 sm:$0xff]
      %s1517 = scalar_lea.vmem [#allocation2], 364
      %v1518 = vld [vmem:[%s1517] ss:$2 sm:$0xff]
      %s1519 = scalar_lea.vmem [#allocation2], 380
      %v1520 = vld [vmem:[%s1519] ss:$2 sm:$0xff]
      %s1521 = scalar_lea.vmem [#allocation2], 396
      %v1522 = vld [vmem:[%s1521] ss:$2 sm:$0xff]
      %s1523 = scalar_lea.vmem [#allocation2], 412
      %v1524 = vld [vmem:[%s1523] ss:$2 sm:$0xff]
      %s1525 = scalar_lea.vmem [#allocation2], 428
      %v1526 = vld [vmem:[%s1525] ss:$2 sm:$0xff]
      %s1527 = scalar_lea.vmem [#allocation2], 444
      %v1528 = vld [vmem:[%s1527] ss:$2 sm:$0xff]
      %s1529 = scalar_lea.vmem [#allocation2], 460
      %v1530 = vld [vmem:[%s1529] ss:$2 sm:$0xff]
      %s1531 = scalar_lea.vmem [#allocation2], 476
      %v1532 = vld [vmem:[%s1531] ss:$2 sm:$0xff]
      %s1533 = scalar_lea.vmem [#allocation2], 492
      %v1534 = vld [vmem:[%s1533] ss:$2 sm:$0xff]
      %s1535 = scalar_lea.vmem [#allocation2], 508
      %v1536 = vld [vmem:[%s1535] ss:$2 sm:$0xff]
      %s1537 = scalar_lea.vmem [#allocation2], 524
      %v1538 = vld [vmem:[%s1537] ss:$2 sm:$0xff]
      %s1539 = scalar_lea.vmem [#allocation2], 540
      %v1540 = vld [vmem:[%s1539] ss:$2 sm:$0xff]
      %s1541 = scalar_lea.vmem [#allocation2], 556
      %v1542 = vld [vmem:[%s1541] ss:$2 sm:$0xff]
      %s1543 = scalar_lea.vmem [#allocation2], 572
      %v1544 = vld [vmem:[%s1543] ss:$2 sm:$0xff]
      %s1545 = scalar_lea.vmem [#allocation2], 588
      %v1546 = vld [vmem:[%s1545] ss:$2 sm:$0xff]
      %s1547 = scalar_lea.vmem [#allocation2], 604
      %v1548 = vld [vmem:[%s1547] ss:$2 sm:$0xff]
      %s1549 = scalar_lea.vmem [#allocation2], 620
      %v1550 = vld [vmem:[%s1549] ss:$2 sm:$0xff]
      %s1551 = scalar_lea.vmem [#allocation2], 636
      %v1552 = vld [vmem:[%s1551] ss:$2 sm:$0xff]
      %s1553 = scalar_lea.vmem [#allocation2], 652
      %v1554 = vld [vmem:[%s1553] ss:$2 sm:$0xff]
      %s1555 = scalar_lea.vmem [#allocation2], 668
      %v1556 = vld [vmem:[%s1555] ss:$2 sm:$0xff]
      %s1557 = scalar_lea.vmem [#allocation2], 684
      %v1558 = vld [vmem:[%s1557] ss:$2 sm:$0xff]
      %s1559 = scalar_lea.vmem [#allocation2], 700
      %v1560 = vld [vmem:[%s1559] ss:$2 sm:$0xff]
      %s1561 = scalar_lea.vmem [#allocation2], 716
      %v1562 = vld [vmem:[%s1561] ss:$2 sm:$0xff]
      %s1563 = scalar_lea.vmem [#allocation2], 732
      %v1564 = vld [vmem:[%s1563] ss:$2 sm:$0xff]
      %s1565 = scalar_lea.vmem [#allocation2], 748
      %v1566 = vld [vmem:[%s1565] ss:$2 sm:$0xff]
      %s1567 = scalar_lea.vmem [#allocation2], 764
      %v1568 = vld [vmem:[%s1567] ss:$2 sm:$0xff]
      %s1569 = scalar_lea.vmem [#allocation2], 780
      %v1570 = vld [vmem:[%s1569] ss:$2 sm:$0xff]
      %s1571 = scalar_lea.vmem [#allocation2], 796
      %v1572 = vld [vmem:[%s1571] ss:$2 sm:$0xff]
      %s1573 = scalar_lea.vmem [#allocation2], 812
      %v1574 = vld [vmem:[%s1573] ss:$2 sm:$0xff]
      %s1575 = scalar_lea.vmem [#allocation2], 828
      %v1576 = vld [vmem:[%s1575] ss:$2 sm:$0xff]
      %s1577 = scalar_lea.vmem [#allocation2], 844
      %v1578 = vld [vmem:[%s1577] ss:$2 sm:$0xff]
      %s1579 = scalar_lea.vmem [#allocation2], 29
      %v1580 = vld [vmem:[%s1579] ss:$2 sm:$0xff]
      %s1581 = scalar_lea.vmem [#allocation2], 45
      %v1582 = vld [vmem:[%s1581] ss:$2 sm:$0xff]
      %s1583 = scalar_lea.vmem [#allocation2], 61
      %v1584 = vld [vmem:[%s1583] ss:$2 sm:$0xff]
      %s1585 = scalar_lea.vmem [#allocation2], 77
      %v1586 = vld [vmem:[%s1585] ss:$2 sm:$0xff]
      %s1587 = scalar_lea.vmem [#allocation2], 93
      %v1588 = vld [vmem:[%s1587] ss:$2 sm:$0xff]
      %s1589 = scalar_lea.vmem [#allocation2], 109
      %v1590 = vld [vmem:[%s1589] ss:$2 sm:$0xff]
      %s1591 = scalar_lea.vmem [#allocation2], 125
      %v1592 = vld [vmem:[%s1591] ss:$2 sm:$0xff]
      %s1593 = scalar_lea.vmem [#allocation2], 141
      %v1594 = vld [vmem:[%s1593] ss:$2 sm:$0xff]
      %s1595 = scalar_lea.vmem [#allocation2], 157
      %v1596 = vld [vmem:[%s1595] ss:$2 sm:$0xff]
      %s1597 = scalar_lea.vmem [#allocation2], 173
      %v1598 = vld [vmem:[%s1597] ss:$2 sm:$0xff]
      %s1599 = scalar_lea.vmem [#allocation2], 189
      %v1600 = vld [vmem:[%s1599] ss:$2 sm:$0xff]
      %s1601 = scalar_lea.vmem [#allocation2], 205
      %v1602 = vld [vmem:[%s1601] ss:$2 sm:$0xff]
      %s1603 = scalar_lea.vmem [#allocation2], 221
      %v1604 = vld [vmem:[%s1603] ss:$2 sm:$0xff]
      %s1605 = scalar_lea.vmem [#allocation2], 237
      %v1606 = vld [vmem:[%s1605] ss:$2 sm:$0xff]
      %s1607 = scalar_lea.vmem [#allocation2], 253
      %v1608 = vld [vmem:[%s1607] ss:$2 sm:$0xff]
      %s1609 = scalar_lea.vmem [#allocation2], 269
      %v1610 = vld [vmem:[%s1609] ss:$2 sm:$0xff]
      %s1611 = scalar_lea.vmem [#allocation2], 285
      %v1612 = vld [vmem:[%s1611] ss:$2 sm:$0xff]
      %s1613 = scalar_lea.vmem [#allocation2], 301
      %v1614 = vld [vmem:[%s1613] ss:$2 sm:$0xff]
      %s1615 = scalar_lea.vmem [#allocation2], 317
      %v1616 = vld [vmem:[%s1615] ss:$2 sm:$0xff]
      %s1617 = scalar_lea.vmem [#allocation2], 333
      %v1618 = vld [vmem:[%s1617] ss:$2 sm:$0xff]
      %s1619 = scalar_lea.vmem [#allocation2], 349
      %v1620 = vld [vmem:[%s1619] ss:$2 sm:$0xff]
      %s1621 = scalar_lea.vmem [#allocation2], 365
      %v1622 = vld [vmem:[%s1621] ss:$2 sm:$0xff]
      %s1623 = scalar_lea.vmem [#allocation2], 381
      %v1624 = vld [vmem:[%s1623] ss:$2 sm:$0xff]
      %s1625 = scalar_lea.vmem [#allocation2], 397
      %v1626 = vld [vmem:[%s1625] ss:$2 sm:$0xff]
      %s1627 = scalar_lea.vmem [#allocation2], 413
      %v1628 = vld [vmem:[%s1627] ss:$2 sm:$0xff]
      %s1629 = scalar_lea.vmem [#allocation2], 429
      %v1630 = vld [vmem:[%s1629] ss:$2 sm:$0xff]
      %s1631 = scalar_lea.vmem [#allocation2], 445
      %v1632 = vld [vmem:[%s1631] ss:$2 sm:$0xff]
      %s1633 = scalar_lea.vmem [#allocation2], 461
      %v1634 = vld [vmem:[%s1633] ss:$2 sm:$0xff]
      %s1635 = scalar_lea.vmem [#allocation2], 477
      %v1636 = vld [vmem:[%s1635] ss:$2 sm:$0xff]
      %s1637 = scalar_lea.vmem [#allocation2], 493
      %v1638 = vld [vmem:[%s1637] ss:$2 sm:$0xff]
      %s1639 = scalar_lea.vmem [#allocation2], 509
      %v1640 = vld [vmem:[%s1639] ss:$2 sm:$0xff]
      %s1641 = scalar_lea.vmem [#allocation2], 525
      %v1642 = vld [vmem:[%s1641] ss:$2 sm:$0xff]
      %s1643 = scalar_lea.vmem [#allocation2], 541
      %v1644 = vld [vmem:[%s1643] ss:$2 sm:$0xff]
      %s1645 = scalar_lea.vmem [#allocation2], 557
      %v1646 = vld [vmem:[%s1645] ss:$2 sm:$0xff]
      %s1647 = scalar_lea.vmem [#allocation2], 573
      %v1648 = vld [vmem:[%s1647] ss:$2 sm:$0xff]
      %s1649 = scalar_lea.vmem [#allocation2], 589
      %v1650 = vld [vmem:[%s1649] ss:$2 sm:$0xff]
      %s1651 = scalar_lea.vmem [#allocation2], 605
      %v1652 = vld [vmem:[%s1651] ss:$2 sm:$0xff]
      %s1653 = scalar_lea.vmem [#allocation2], 621
      %v1654 = vld [vmem:[%s1653] ss:$2 sm:$0xff]
      %s1655 = scalar_lea.vmem [#allocation2], 637
      %v1656 = vld [vmem:[%s1655] ss:$2 sm:$0xff]
      %s1657 = scalar_lea.vmem [#allocation2], 653
      %v1658 = vld [vmem:[%s1657] ss:$2 sm:$0xff]
      %s1659 = scalar_lea.vmem [#allocation2], 669
      %v1660 = vld [vmem:[%s1659] ss:$2 sm:$0xff]
      %s1661 = scalar_lea.vmem [#allocation2], 685
      %v1662 = vld [vmem:[%s1661] ss:$2 sm:$0xff]
      %s1663 = scalar_lea.vmem [#allocation2], 701
      %v1664 = vld [vmem:[%s1663] ss:$2 sm:$0xff]
      %s1665 = scalar_lea.vmem [#allocation2], 717
      %v1666 = vld [vmem:[%s1665] ss:$2 sm:$0xff]
      %s1667 = scalar_lea.vmem [#allocation2], 733
      %v1668 = vld [vmem:[%s1667] ss:$2 sm:$0xff]
      %s1669 = scalar_lea.vmem [#allocation2], 749
      %v1670 = vld [vmem:[%s1669] ss:$2 sm:$0xff]
      %s1671 = scalar_lea.vmem [#allocation2], 765
      %v1672 = vld [vmem:[%s1671] ss:$2 sm:$0xff]
      %s1673 = scalar_lea.vmem [#allocation2], 781
      %v1674 = vld [vmem:[%s1673] ss:$2 sm:$0xff]
      %s1675 = scalar_lea.vmem [#allocation2], 797
      %v1676 = vld [vmem:[%s1675] ss:$2 sm:$0xff]
      %s1677 = scalar_lea.vmem [#allocation2], 813
      %v1678 = vld [vmem:[%s1677] ss:$2 sm:$0xff]
      %s1679 = scalar_lea.vmem [#allocation2], 829
      %v1680 = vld [vmem:[%s1679] ss:$2 sm:$0xff]
      %s1681 = scalar_lea.vmem [#allocation2], 845
      %v1682 = vld [vmem:[%s1681] ss:$2 sm:$0xff]
      %v1683 = vmax.f32 %v1268, %v1372
      %v1684 = vmax.f32 %v1270, %v1374
      %v1685 = vmax.f32 %v1272, %v1376
      %v1686 = vmax.f32 %v1274, %v1378
      %v1687 = vmax.f32 %v1276, %v1380
      %v1688 = vmax.f32 %v1278, %v1382
      %v1689 = vmax.f32 %v1280, %v1384
      %v1690 = vmax.f32 %v1282, %v1386
      %v1691 = vmax.f32 %v1284, %v1388
      %v1692 = vmax.f32 %v1286, %v1390
      %v1693 = vmax.f32 %v1288, %v1392
      %v1694 = vmax.f32 %v1290, %v1394
      %v1695 = vmax.f32 %v1292, %v1396
      %v1696 = vmax.f32 %v1294, %v1398
      %v1697 = vmax.f32 %v1296, %v1400
      %v1698 = vmax.f32 %v1298, %v1402
      %v1699 = vmax.f32 %v1300, %v1404
      %v1700 = vmax.f32 %v1302, %v1406
      %v1701 = vmax.f32 %v1304, %v1408
      %v1702 = vmax.f32 %v1306, %v1410
      %v1703 = vmax.f32 %v1308, %v1412
      %v1704 = vmax.f32 %v1310, %v1414
      %v1705 = vmax.f32 %v1312, %v1416
      %v1706 = vmax.f32 %v1314, %v1418
      %v1707 = vmax.f32 %v1316, %v1420
      %v1708 = vmax.f32 %v1318, %v1422
      %v1709 = vmax.f32 %v1320, %v1424
      %v1710 = vmax.f32 %v1322, %v1426
      %v1711 = vmax.f32 %v1324, %v1428
      %v1712 = vmax.f32 %v1326, %v1430
      %v1713 = vmax.f32 %v1328, %v1432
      %v1714 = vmax.f32 %v1330, %v1434
      %v1715 = vmax.f32 %v1332, %v1436
      %v1716 = vmax.f32 %v1334, %v1438
      %v1717 = vmax.f32 %v1336, %v1440
      %v1718 = vmax.f32 %v1338, %v1442
      %v1719 = vmax.f32 %v1340, %v1444
      %v1720 = vmax.f32 %v1342, %v1446
      %v1721 = vmax.f32 %v1344, %v1448
      %v1722 = vmax.f32 %v1346, %v1450
      %v1723 = vmax.f32 %v1348, %v1452
      %v1724 = vmax.f32 %v1350, %v1454
      %v1725 = vmax.f32 %v1352, %v1456
      %v1726 = vmax.f32 %v1354, %v1458
      %v1727 = vmax.f32 %v1356, %v1460
      %v1728 = vmax.f32 %v1358, %v1462
      %v1729 = vmax.f32 %v1360, %v1464
      %v1730 = vmax.f32 %v1362, %v1466
      %v1731 = vmax.f32 %v1364, %v1468
      %v1732 = vmax.f32 %v1366, %v1470
      %v1733 = vmax.f32 %v1368, %v1472
      %v1734 = vmax.f32 %v1370, %v1474
      %v1735 = vmax.f32 %v1476, %v1580
      %v1736 = vmax.f32 %v1478, %v1582
      %v1737 = vmax.f32 %v1480, %v1584
      %v1738 = vmax.f32 %v1482, %v1586
      %v1739 = vmax.f32 %v1484, %v1588
      %v1740 = vmax.f32 %v1486, %v1590
      %v1741 = vmax.f32 %v1488, %v1592
      %v1742 = vmax.f32 %v1490, %v1594
      %v1743 = vmax.f32 %v1492, %v1596
      %v1744 = vmax.f32 %v1494, %v1598
      %v1745 = vmax.f32 %v1496, %v1600
      %v1746 = vmax.f32 %v1498, %v1602
      %v1747 = vmax.f32 %v1500, %v1604
      %v1748 = vmax.f32 %v1502, %v1606
      %v1749 = vmax.f32 %v1504, %v1608
      %v1750 = vmax.f32 %v1506, %v1610
      %v1751 = vmax.f32 %v1508, %v1612
      %v1752 = vmax.f32 %v1510, %v1614
      %v1753 = vmax.f32 %v1512, %v1616
      %v1754 = vmax.f32 %v1514, %v1618
      %v1755 = vmax.f32 %v1516, %v1620
      %v1756 = vmax.f32 %v1518, %v1622
      %v1757 = vmax.f32 %v1520, %v1624
      %v1758 = vmax.f32 %v1522, %v1626
      %v1759 = vmax.f32 %v1524, %v1628
      %v1760 = vmax.f32 %v1526, %v1630
      %v1761 = vmax.f32 %v1528, %v1632
      %v1762 = vmax.f32 %v1530, %v1634
      %v1763 = vmax.f32 %v1532, %v1636
      %v1764 = vmax.f32 %v1534, %v1638
      %v1765 = vmax.f32 %v1536, %v1640
      %v1766 = vmax.f32 %v1538, %v1642
      %v1767 = vmax.f32 %v1540, %v1644
      %v1768 = vmax.f32 %v1542, %v1646
      %v1769 = vmax.f32 %v1544, %v1648
      %v1770 = vmax.f32 %v1546, %v1650
      %v1771 = vmax.f32 %v1548, %v1652
      %v1772 = vmax.f32 %v1550, %v1654
      %v1773 = vmax.f32 %v1552, %v1656
      %v1774 = vmax.f32 %v1554, %v1658
      %v1775 = vmax.f32 %v1556, %v1660
      %v1776 = vmax.f32 %v1558, %v1662
      %v1777 = vmax.f32 %v1560, %v1664
      %v1778 = vmax.f32 %v1562, %v1666
      %v1779 = vmax.f32 %v1564, %v1668
      %v1780 = vmax.f32 %v1566, %v1670
      %v1781 = vmax.f32 %v1568, %v1672
      %v1782 = vmax.f32 %v1570, %v1674
      %v1783 = vmax.f32 %v1572, %v1676
      %v1784 = vmax.f32 %v1574, %v1678
      %v1785 = vmax.f32 %v1576, %v1680
      %v1786 = vmax.f32 %v1578, %v1682
      %v1787 = vmax.f32 %v1683, %v1735
      %v1788 = vmax.f32 %v1684, %v1736
      %v1789 = vmax.f32 %v1685, %v1737
      %v1790 = vmax.f32 %v1686, %v1738
      %v1791 = vmax.f32 %v1687, %v1739
      %v1792 = vmax.f32 %v1688, %v1740
      %v1793 = vmax.f32 %v1689, %v1741
      %v1794 = vmax.f32 %v1690, %v1742
      %v1795 = vmax.f32 %v1691, %v1743
      %v1796 = vmax.f32 %v1692, %v1744
      %v1797 = vmax.f32 %v1693, %v1745
      %v1798 = vmax.f32 %v1694, %v1746
      %v1799 = vmax.f32 %v1695, %v1747
      %v1800 = vmax.f32 %v1696, %v1748
      %v1801 = vmax.f32 %v1697, %v1749
      %v1802 = vmax.f32 %v1698, %v1750
      %v1803 = vmax.f32 %v1699, %v1751
      %v1804 = vmax.f32 %v1700, %v1752
      %v1805 = vmax.f32 %v1701, %v1753
      %v1806 = vmax.f32 %v1702, %v1754
      %v1807 = vmax.f32 %v1703, %v1755
      %v1808 = vmax.f32 %v1704, %v1756
      %v1809 = vmax.f32 %v1705, %v1757
      %v1810 = vmax.f32 %v1706, %v1758
      %v1811 = vmax.f32 %v1707, %v1759
      %v1812 = vmax.f32 %v1708, %v1760
      %v1813 = vmax.f32 %v1709, %v1761
      %v1814 = vmax.f32 %v1710, %v1762
      %v1815 = vmax.f32 %v1711, %v1763
      %v1816 = vmax.f32 %v1712, %v1764
      %v1817 = vmax.f32 %v1713, %v1765
      %v1818 = vmax.f32 %v1714, %v1766
      %v1819 = vmax.f32 %v1715, %v1767
      %v1820 = vmax.f32 %v1716, %v1768
      %v1821 = vmax.f32 %v1717, %v1769
      %v1822 = vmax.f32 %v1718, %v1770
      %v1823 = vmax.f32 %v1719, %v1771
      %v1824 = vmax.f32 %v1720, %v1772
      %v1825 = vmax.f32 %v1721, %v1773
      %v1826 = vmax.f32 %v1722, %v1774
      %v1827 = vmax.f32 %v1723, %v1775
      %v1828 = vmax.f32 %v1724, %v1776
      %v1829 = vmax.f32 %v1725, %v1777
      %v1830 = vmax.f32 %v1726, %v1778
      %v1831 = vmax.f32 %v1727, %v1779
      %v1832 = vmax.f32 %v1728, %v1780
      %v1833 = vmax.f32 %v1729, %v1781
      %v1834 = vmax.f32 %v1730, %v1782
      %v1835 = vmax.f32 %v1731, %v1783
      %v1836 = vmax.f32 %v1732, %v1784
      %v1837 = vmax.f32 %v1733, %v1785
      %v1838 = vmax.f32 %v1734, %v1786
      %v1839 = vld [vmem:[%s2] sm:$0x1]
      %v1841 = vperm.slane %v1839, 0
      %v1843 = vadd.f32 %v1787, %v1841
      %v1844 = vadd.f32 %v1788, %v1841
      %v1845 = vadd.f32 %v1789, %v1841
      %v1846 = vadd.f32 %v1790, %v1841
      %v1847 = vadd.f32 %v1791, %v1841
      %v1848 = vadd.f32 %v1792, %v1841
      %v1849 = vadd.f32 %v1793, %v1841
      %v1850 = vadd.f32 %v1794, %v1841
      %v1851 = vadd.f32 %v1795, %v1841
      %v1852 = vadd.f32 %v1796, %v1841
      %v1853 = vadd.f32 %v1797, %v1841
      %v1854 = vadd.f32 %v1798, %v1841
      %v1855 = vadd.f32 %v1799, %v1841
      %v1856 = vadd.f32 %v1800, %v1841
      %v1857 = vadd.f32 %v1801, %v1841
      %v1858 = vadd.f32 %v1802, %v1841
      %v1859 = vadd.f32 %v1803, %v1841
      %v1860 = vadd.f32 %v1804, %v1841
      %v1861 = vadd.f32 %v1805, %v1841
      %v1862 = vadd.f32 %v1806, %v1841
      %v1863 = vadd.f32 %v1807, %v1841
      %v1864 = vadd.f32 %v1808, %v1841
      %v1865 = vadd.f32 %v1809, %v1841
      %v1866 = vadd.f32 %v1810, %v1841
      %v1867 = vadd.f32 %v1811, %v1841
      %v1868 = vadd.f32 %v1812, %v1841
      %v1869 = vadd.f32 %v1813, %v1841
      %v1870 = vadd.f32 %v1814, %v1841
      %v1871 = vadd.f32 %v1815, %v1841
      %v1872 = vadd.f32 %v1816, %v1841
      %v1873 = vadd.f32 %v1817, %v1841
      %v1874 = vadd.f32 %v1818, %v1841
      %v1875 = vadd.f32 %v1819, %v1841
      %v1876 = vadd.f32 %v1820, %v1841
      %v1877 = vadd.f32 %v1821, %v1841
      %v1878 = vadd.f32 %v1822, %v1841
      %v1879 = vadd.f32 %v1823, %v1841
      %v1880 = vadd.f32 %v1824, %v1841
      %v1881 = vadd.f32 %v1825, %v1841
      %v1882 = vadd.f32 %v1826, %v1841
      %v1883 = vadd.f32 %v1827, %v1841
      %v1884 = vadd.f32 %v1828, %v1841
      %v1885 = vadd.f32 %v1829, %v1841
      %v1886 = vadd.f32 %v1830, %v1841
      %v1887 = vadd.f32 %v1831, %v1841
      %v1888 = vadd.f32 %v1832, %v1841
      %v1889 = vadd.f32 %v1833, %v1841
      %v1890 = vadd.f32 %v1834, %v1841
      %v1891 = vadd.f32 %v1835, %v1841
      %v1892 = vadd.f32 %v1836, %v1841
      %v1893 = vadd.f32 %v1837, %v1841
      %v1894 = vadd.f32 %v1838, %v1841
      %v1895 = vmax.f32 %v1843, 0.0
      %v1896 = vmax.f32 %v1844, 0.0
      %v1897 = vmax.f32 %v1845, 0.0
      %v1898 = vmax.f32 %v1846, 0.0
      %v1899 = vmax.f32 %v1847, 0.0
      %v1900 = vmax.f32 %v1848, 0.0
      %v1901 = vmax.f32 %v1849, 0.0
      %v1902 = vmax.f32 %v1850, 0.0
      %v1903 = vmax.f32 %v1851, 0.0
      %v1904 = vmax.f32 %v1852, 0.0
      %v1905 = vmax.f32 %v1853, 0.0
      %v1906 = vmax.f32 %v1854, 0.0
      %v1907 = vmax.f32 %v1855, 0.0
      %v1908 = vmax.f32 %v1856, 0.0
      %v1909 = vmax.f32 %v1857, 0.0
      %v1910 = vmax.f32 %v1858, 0.0
      %v1911 = vmax.f32 %v1859, 0.0
      %v1912 = vmax.f32 %v1860, 0.0
      %v1913 = vmax.f32 %v1861, 0.0
      %v1914 = vmax.f32 %v1862, 0.0
      %v1915 = vmax.f32 %v1863, 0.0
      %v1916 = vmax.f32 %v1864, 0.0
      %v1917 = vmax.f32 %v1865, 0.0
      %v1918 = vmax.f32 %v1866, 0.0
      %v1919 = vmax.f32 %v1867, 0.0
      %v1920 = vmax.f32 %v1868, 0.0
      %v1921 = vmax.f32 %v1869, 0.0
      %v1922 = vmax.f32 %v1870, 0.0
      %v1923 = vmax.f32 %v1871, 0.0
      %v1924 = vmax.f32 %v1872, 0.0
      %v1925 = vmax.f32 %v1873, 0.0
      %v1926 = vmax.f32 %v1874, 0.0
      %v1927 = vmax.f32 %v1875, 0.0
      %v1928 = vmax.f32 %v1876, 0.0
      %v1929 = vmax.f32 %v1877, 0.0
      %v1930 = vmax.f32 %v1878, 0.0
      %v1931 = vmax.f32 %v1879, 0.0
      %v1932 = vmax.f32 %v1880, 0.0
      %v1933 = vmax.f32 %v1881, 0.0
      %v1934 = vmax.f32 %v1882, 0.0
      %v1935 = vmax.f32 %v1883, 0.0
      %v1936 = vmax.f32 %v1884, 0.0
      %v1937 = vmax.f32 %v1885, 0.0
      %v1938 = vmax.f32 %v1886, 0.0
      %v1939 = vmax.f32 %v1887, 0.0
      %v1940 = vmax.f32 %v1888, 0.0
      %v1941 = vmax.f32 %v1889, 0.0
      %v1942 = vmax.f32 %v1890, 0.0
      %v1943 = vmax.f32 %v1891, 0.0
      %v1944 = vmax.f32 %v1892, 0.0
      %v1945 = vmax.f32 %v1893, 0.0
      %v1946 = vmax.f32 %v1894, 0.0
      %1947 = vst [vmem:[#allocation3] sm:$0xff] %v1895
      %1948 = vst [vmem:[#allocation3 + $0x8] sm:$0xff] %v1896
      %1949 = vst [vmem:[#allocation3 + $0x10] sm:$0xff] %v1897
      %1950 = vst [vmem:[#allocation3 + $0x18] sm:$0xff] %v1898
      %1951 = vst [vmem:[#allocation3 + $0x20] sm:$0xff] %v1899
      %1952 = vst [vmem:[#allocation3 + $0x28] sm:$0xff] %v1900
      %1953 = vst [vmem:[#allocation3 + $0x30] sm:$0xff] %v1901
      %1954 = vst [vmem:[#allocation3 + $0x38] sm:$0xff] %v1902
      %1955 = vst [vmem:[#allocation3 + $0x40] sm:$0xff] %v1903
      %1956 = vst [vmem:[#allocation3 + $0x48] sm:$0xff] %v1904
      %1957 = vst [vmem:[#allocation3 + $0x50] sm:$0xff] %v1905
      %1958 = vst [vmem:[#allocation3 + $0x58] sm:$0xff] %v1906
      %1959 = vst [vmem:[#allocation3 + $0x60] sm:$0xff] %v1907
      %1960 = vst [vmem:[#allocation3 + $0x68] sm:$0xff] %v1908
      %1961 = vst [vmem:[#allocation3 + $0x70] sm:$0xff] %v1909
      %1962 = vst [vmem:[#allocation3 + $0x78] sm:$0xff] %v1910
      %1963 = vst [vmem:[#allocation3 + $0x80] sm:$0xff] %v1911
      %1964 = vst [vmem:[#allocation3 + $0x88] sm:$0xff] %v1912
      %1965 = vst [vmem:[#allocation3 + $0x90] sm:$0xff] %v1913
      %1966 = vst [vmem:[#allocation3 + $0x98] sm:$0xff] %v1914
      %1967 = vst [vmem:[#allocation3 + $0xa0] sm:$0xff] %v1915
      %1968 = vst [vmem:[#allocation3 + $0xa8] sm:$0xff] %v1916
      %1969 = vst [vmem:[#allocation3 + $0xb0] sm:$0xff] %v1917
      %1970 = vst [vmem:[#allocation3 + $0xb8] sm:$0xff] %v1918
      %1971 = vst [vmem:[#allocation3 + $0xc0] sm:$0xff] %v1919
      %1972 = vst [vmem:[#allocation3 + $0xc8] sm:$0xff] %v1920
      %1973 = vst [vmem:[#allocation3 + $0xd0] sm:$0xff] %v1921
      %1974 = vst [vmem:[#allocation3 + $0xd8] sm:$0xff] %v1922
      %1975 = vst [vmem:[#allocation3 + $0xe0] sm:$0xff] %v1923
      %1976 = vst [vmem:[#allocation3 + $0xe8] sm:$0xff] %v1924
      %1977 = vst [vmem:[#allocation3 + $0xf0] sm:$0xff] %v1925
      %1978 = vst [vmem:[#allocation3 + $0xf8] sm:$0xff] %v1926
      %1979 = vst [vmem:[#allocation3 + $0x100] sm:$0xff] %v1927
      %1980 = vst [vmem:[#allocation3 + $0x108] sm:$0xff] %v1928
      %1981 = vst [vmem:[#allocation3 + $0x110] sm:$0xff] %v1929
      %1982 = vst [vmem:[#allocation3 + $0x118] sm:$0xff] %v1930
      %1983 = vst [vmem:[#allocation3 + $0x120] sm:$0xff] %v1931
      %1984 = vst [vmem:[#allocation3 + $0x128] sm:$0xff] %v1932
      %1985 = vst [vmem:[#allocation3 + $0x130] sm:$0xff] %v1933
      %1986 = vst [vmem:[#allocation3 + $0x138] sm:$0xff] %v1934
      %1987 = vst [vmem:[#allocation3 + $0x140] sm:$0xff] %v1935
      %1988 = vst [vmem:[#allocation3 + $0x148] sm:$0xff] %v1936
      %1989 = vst [vmem:[#allocation3 + $0x150] sm:$0xff] %v1937
      %1990 = vst [vmem:[#allocation3 + $0x158] sm:$0xff] %v1938
      %1991 = vst [vmem:[#allocation3 + $0x160] sm:$0xff] %v1939
      %1992 = vst [vmem:[#allocation3 + $0x168] sm:$0xff] %v1940
      %1993 = vst [vmem:[#allocation3 + $0x170] sm:$0xff] %v1941
      %1994 = vst [vmem:[#allocation3 + $0x178] sm:$0xff] %v1942
      %1995 = vst [vmem:[#allocation3 + $0x180] sm:$0xff] %v1943
      %1996 = vst [vmem:[#allocation3 + $0x188] sm:$0xff] %v1944
      %1997 = vst [vmem:[#allocation3 + $0x190] sm:$0xff] %v1945
      %1998 = vst [vmem:[#allocation3 + $0x198] sm:$0xff] %v1946
      %v1999 = vlaneseq
      %v2000 = vand.u32 %v1999, 127
      %v2001 = vld [vmem:[#allocation3] sm:$0xff]
      %v2002 = vld [vmem:[#allocation3 + $0x8] sm:$0xff]
      %v2003 = vld [vmem:[#allocation3 + $0x10] sm:$0xff]
      %v2004 = vld [vmem:[#allocation3 + $0x18] sm:$0xff]
      %v2005 = vld [vmem:[#allocation3 + $0x20] sm:$0xff]
      %v2006 = vld [vmem:[#allocation3 + $0x28] sm:$0xff]
      %v2007 = vld [vmem:[#allocation3 + $0x30] sm:$0xff]
      %v2008 = vld [vmem:[#allocation3 + $0x38] sm:$0xff]
      %v2009 = vld [vmem:[#allocation3 + $0x40] sm:$0xff]
      %v2010 = vld [vmem:[#allocation3 + $0x48] sm:$0xff]
      %v2011 = vld [vmem:[#allocation3 + $0x50] sm:$0xff]
      %v2012 = vld [vmem:[#allocation3 + $0x58] sm:$0xff]
      %v2013 = vld [vmem:[#allocation3 + $0x60] sm:$0xff]
      %v2014 = vld [vmem:[#allocation3 + $0x68] sm:$0xff]
      %v2015 = vld [vmem:[#allocation3 + $0x70] sm:$0xff]
      %v2016 = vld [vmem:[#allocation3 + $0x78] sm:$0xff]
      %v2017 = vld [vmem:[#allocation3 + $0x80] sm:$0xff]
      %v2018 = vld [vmem:[#allocation3 + $0x88] sm:$0xff]
      %v2019 = vld [vmem:[#allocation3 + $0x90] sm:$0xff]
      %v2020 = vld [vmem:[#allocation3 + $0x98] sm:$0xff]
      %v2021 = vld [vmem:[#allocation3 + $0xa0] sm:$0xff]
      %v2022 = vld [vmem:[#allocation3 + $0xa8] sm:$0xff]
      %v2023 = vld [vmem:[#allocation3 + $0xb0] sm:$0xff]
      %v2024 = vld [vmem:[#allocation3 + $0xb8] sm:$0xff]
      %v2025 = vld [vmem:[#allocation3 + $0xc0] sm:$0xff]
      %v2026 = vld [vmem:[#allocation3 + $0xc8] sm:$0xff]
      %v2027 = vld [vmem:[#allocation3 + $0xd0] sm:$0xff]
      %v2028 = vld [vmem:[#allocation3 + $0xd8] sm:$0xff]
      %v2029 = vld [vmem:[#allocation3 + $0xe0] sm:$0xff]
      %v2030 = vld [vmem:[#allocation3 + $0xe8] sm:$0xff]
      %v2031 = vld [vmem:[#allocation3 + $0xf0] sm:$0xff]
      %v2032 = vld [vmem:[#allocation3 + $0xf8] sm:$0xff]
      %v2033 = vld [vmem:[#allocation3 + $0x100] sm:$0xff]
      %v2034 = vld [vmem:[#allocation3 + $0x108] sm:$0xff]
      %v2035 = vld [vmem:[#allocation3 + $0x110] sm:$0xff]
      %v2036 = vld [vmem:[#allocation3 + $0x118] sm:$0xff]
      %v2037 = vld [vmem:[#allocation3 + $0x120] sm:$0xff]
      %v2038 = vld [vmem:[#allocation3 + $0x128] sm:$0xff]
      %v2039 = vld [vmem:[#allocation3 + $0x130] sm:$0xff]
      %v2040 = vld [vmem:[#allocation3 + $0x138] sm:$0xff]
      %v2041 = vld [vmem:[#allocation3 + $0x140] sm:$0xff]
      %v2042 = vld [vmem:[#allocation3 + $0x148] sm:$0xff]
      %v2043 = vld [vmem:[#allocation3 + $0x150] sm:$0xff]
      %v2044 = vld [vmem:[#allocation3 + $0x158] sm:$0xff]
      %v2045 = vld [vmem:[#allocation3 + $0x160] sm:$0xff]
      %v2046 = vld [vmem:[#allocation3 + $0x168] sm:$0xff]
      %v2047 = vld [vmem:[#allocation3 + $0x170] sm:$0xff]
      %v2048 = vld [vmem:[#allocation3 + $0x178] sm:$0xff]
      %v2049 = vld [vmem:[#allocation3 + $0x180] sm:$0xff]
      %v2050 = vld [vmem:[#allocation3 + $0x188] sm:$0xff]
      %v2051 = vld [vmem:[#allocation3 + $0x190] sm:$0xff]
      %v2052 = vld [vmem:[#allocation3 + $0x1] sm:$0xff]
      %v2053 = vld [vmem:[#allocation3 + $0x9] sm:$0xff]
      %v2054 = vld [vmem:[#allocation3 + $0x11] sm:$0xff]
      %v2055 = vld [vmem:[#allocation3 + $0x19] sm:$0xff]
      %v2056 = vld [vmem:[#allocation3 + $0x21] sm:$0xff]
      %v2057 = vld [vmem:[#allocation3 + $0x29] sm:$0xff]
      %v2058 = vld [vmem:[#allocation3 + $0x31] sm:$0xff]
      %v2059 = vld [vmem:[#allocation3 + $0x39] sm:$0xff]
      %v2060 = vld [vmem:[#allocation3 + $0x41] sm:$0xff]
      %v2061 = vld [vmem:[#allocation3 + $0x49] sm:$0xff]
      %v2062 = vld [vmem:[#allocation3 + $0x51] sm:$0xff]
      %v2063 = vld [vmem:[#allocation3 + $0x59] sm:$0xff]
      %v2064 = vld [vmem:[#allocation3 + $0x61] sm:$0xff]
      %v2065 = vld [vmem:[#allocation3 + $0x69] sm:$0xff]
      %v2066 = vld [vmem:[#allocation3 + $0x71] sm:$0xff]
      %v2067 = vld [vmem:[#allocation3 + $0x79] sm:$0xff]
      %v2068 = vld [vmem:[#allocation3 + $0x81] sm:$0xff]
      %v2069 = vld [vmem:[#allocation3 + $0x89] sm:$0xff]
      %v2070 = vld [vmem:[#allocation3 + $0x91] sm:$0xff]
      %v2071 = vld [vmem:[#allocation3 + $0x99] sm:$0xff]
      %v2072 = vld [vmem:[#allocation3 + $0xa1] sm:$0xff]
      %v2073 = vld [vmem:[#allocation3 + $0xa9] sm:$0xff]
      %v2074 = vld [vmem:[#allocation3 + $0xb1] sm:$0xff]
      %v2075 = vld [vmem:[#allocation3 + $0xb9] sm:$0xff]
      %v2076 = vld [vmem:[#allocation3 + $0xc1] sm:$0xff]
      %v2077 = vld [vmem:[#allocation3 + $0xc9] sm:$0xff]
      %v2078 = vld [vmem:[#allocation3 + $0xd1] sm:$0xff]
      %v2079 = vld [vmem:[#allocation3 + $0xd9] sm:$0xff]
      %v2080 = vld [vmem:[#allocation3 + $0xe1] sm:$0xff]
      %v2081 = vld [vmem:[#allocation3 + $0xe9] sm:$0xff]
      %v2082 = vld [vmem:[#allocation3 + $0xf1] sm:$0xff]
      %v2083 = vld [vmem:[#allocation3 + $0xf9] sm:$0xff]
      %v2084 = vld [vmem:[#allocation3 + $0x101] sm:$0xff]
      %v2085 = vld [vmem:[#allocation3 + $0x109] sm:$0xff]
      %v2086 = vld [vmem:[#allocation3 + $0x111] sm:$0xff]
      %v2087 = vld [vmem:[#allocation3 + $0x119] sm:$0xff]
      %v2088 = vld [vmem:[#allocation3 + $0x121] sm:$0xff]
      %v2089 = vld [vmem:[#allocation3 + $0x129] sm:$0xff]
      %v2090 = vld [vmem:[#allocation3 + $0x131] sm:$0xff]
      %v2091 = vld [vmem:[#allocation3 + $0x139] sm:$0xff]
      %v2092 = vld [vmem:[#allocation3 + $0x141] sm:$0xff]
      %v2093 = vld [vmem:[#allocation3 + $0x149] sm:$0xff]
      %v2094 = vld [vmem:[#allocation3 + $0x151] sm:$0xff]
      %v2095 = vld [vmem:[#allocation3 + $0x159] sm:$0xff]
      %v2096 = vld [vmem:[#allocation3 + $0x161] sm:$0xff]
      %v2097 = vld [vmem:[#allocation3 + $0x169] sm:$0xff]
      %v2098 = vld [vmem:[#allocation3 + $0x171] sm:$0xff]
      %v2099 = vld [vmem:[#allocation3 + $0x179] sm:$0xff]
      %v2100 = vld [vmem:[#allocation3 + $0x181] sm:$0xff]
      %v2101 = vld [vmem:[#allocation3 + $0x189] sm:$0xff]
      %v2102 = vld [vmem:[#allocation3 + $0x191] sm:$0xff]
      %v2103 = vld [vmem:[#allocation3 + $0x2] sm:$0xff]
      %v2104 = vld [vmem:[#allocation3 + $0xa] sm:$0xff]
      %v2105 = vld [vmem:[#allocation3 + $0x12] sm:$0xff]
      %v2106 = vld [vmem:[#allocation3 + $0x1a] sm:$0xff]
      %v2107 = vld [vmem:[#allocation3 + $0x22] sm:$0xff]
      %v2108 = vld [vmem:[#allocation3 + $0x2a] sm:$0xff]
      %v2109 = vld [vmem:[#allocation3 + $0x32] sm:$0xff]
      %v2110 = vld [vmem:[#allocation3 + $0x3a] sm:$0xff]
      %v2111 = vld [vmem:[#allocation3 + $0x42] sm:$0xff]
      %v2112 = vld [vmem:[#allocation3 + $0x4a] sm:$0xff]
      %v2113 = vld [vmem:[#allocation3 + $0x52] sm:$0xff]
      %v2114 = vld [vmem:[#allocation3 + $0x5a] sm:$0xff]
      %v2115 = vld [vmem:[#allocation3 + $0x62] sm:$0xff]
      %v2116 = vld [vmem:[#allocation3 + $0x6a] sm:$0xff]
      %v2117 = vld [vmem:[#allocation3 + $0x72] sm:$0xff]
      %v2118 = vld [vmem:[#allocation3 + $0x7a] sm:$0xff]
      %v2119 = vld [vmem:[#allocation3 + $0x82] sm:$0xff]
      %v2120 = vld [vmem:[#allocation3 + $0x8a] sm:$0xff]
      %v2121 = vld [vmem:[#allocation3 + $0x92] sm:$0xff]
      %v2122 = vld [vmem:[#allocation3 + $0x9a] sm:$0xff]
      %v2123 = vld [vmem:[#allocation3 + $0xa2] sm:$0xff]
      %v2124 = vld [vmem:[#allocation3 + $0xaa] sm:$0xff]
      %v2125 = vld [vmem:[#allocation3 + $0xb2] sm:$0xff]
      %v2126 = vld [vmem:[#allocation3 + $0xba] sm:$0xff]
      %v2127 = vld [vmem:[#allocation3 + $0xc2] sm:$0xff]
      %v2128 = vld [vmem:[#allocation3 + $0xca] sm:$0xff]
      %v2129 = vld [vmem:[#allocation3 + $0xd2] sm:$0xff]
      %v2130 = vld [vmem:[#allocation3 + $0xda] sm:$0xff]
      %v2131 = vld [vmem:[#allocation3 + $0xe2] sm:$0xff]
      %v2132 = vld [vmem:[#allocation3 + $0xea] sm:$0xff]
      %v2133 = vld [vmem:[#allocation3 + $0xf2] sm:$0xff]
      %v2134 = vld [vmem:[#allocation3 + $0xfa] sm:$0xff]
      %v2135 = vld [vmem:[#allocation3 + $0x102] sm:$0xff]
      %v2136 = vld [vmem:[#allocation3 + $0x10a] sm:$0xff]
      %v2137 = vld [vmem:[#allocation3 + $0x112] sm:$0xff]
      %v2138 = vld [vmem:[#allocation3 + $0x11a] sm:$0xff]
      %v2139 = vld [vmem:[#allocation3 + $0x122] sm:$0xff]
      %v2140 = vld [vmem:[#allocation3 + $0x12a] sm:$0xff]
      %v2141 = vld [vmem:[#allocation3 + $0x132] sm:$0xff]
      %v2142 = vld [vmem:[#allocation3 + $0x13a] sm:$0xff]
      %v2143 = vld [vmem:[#allocation3 + $0x142] sm:$0xff]
      %v2144 = vld [vmem:[#allocation3 + $0x14a] sm:$0xff]
      %v2145 = vld [vmem:[#allocation3 + $0x152] sm:$0xff]
      %v2146 = vld [vmem:[#allocation3 + $0x15a] sm:$0xff]
      %v2147 = vld [vmem:[#allocation3 + $0x162] sm:$0xff]
      %v2148 = vld [vmem:[#allocation3 + $0x16a] sm:$0xff]
      %v2149 = vld [vmem:[#allocation3 + $0x172] sm:$0xff]
      %v2150 = vld [vmem:[#allocation3 + $0x17a] sm:$0xff]
      %v2151 = vld [vmem:[#allocation3 + $0x182] sm:$0xff]
      %v2152 = vld [vmem:[#allocation3 + $0x18a] sm:$0xff]
      %v2153 = vld [vmem:[#allocation3 + $0x192] sm:$0xff]
      %v2154 = vld [vmem:[#allocation3 + $0x3] sm:$0xff]
      %v2155 = vld [vmem:[#allocation3 + $0xb] sm:$0xff]
      %v2156 = vld [vmem:[#allocation3 + $0x13] sm:$0xff]
      %v2157 = vld [vmem:[#allocation3 + $0x1b] sm:$0xff]
      %v2158 = vld [vmem:[#allocation3 + $0x23] sm:$0xff]
      %v2159 = vld [vmem:[#allocation3 + $0x2b] sm:$0xff]
      %v2160 = vld [vmem:[#allocation3 + $0x33] sm:$0xff]
      %v2161 = vld [vmem:[#allocation3 + $0x3b] sm:$0xff]
      %v2162 = vld [vmem:[#allocation3 + $0x43] sm:$0xff]
      %v2163 = vld [vmem:[#allocation3 + $0x4b] sm:$0xff]
      %v2164 = vld [vmem:[#allocation3 + $0x53] sm:$0xff]
      %v2165 = vld [vmem:[#allocation3 + $0x5b] sm:$0xff]
      %v2166 = vld [vmem:[#allocation3 + $0x63] sm:$0xff]
      %v2167 = vld [vmem:[#allocation3 + $0x6b] sm:$0xff]
      %v2168 = vld [vmem:[#allocation3 + $0x73] sm:$0xff]
      %v2169 = vld [vmem:[#allocation3 + $0x7b] sm:$0xff]
      %v2170 = vld [vmem:[#allocation3 + $0x83] sm:$0xff]
      %v2171 = vld [vmem:[#allocation3 + $0x8b] sm:$0xff]
      %v2172 = vld [vmem:[#allocation3 + $0x93] sm:$0xff]
      %v2173 = vld [vmem:[#allocation3 + $0x9b] sm:$0xff]
      %v2174 = vld [vmem:[#allocation3 + $0xa3] sm:$0xff]
      %v2175 = vld [vmem:[#allocation3 + $0xab] sm:$0xff]
      %v2176 = vld [vmem:[#allocation3 + $0xb3] sm:$0xff]
      %v2177 = vld [vmem:[#allocation3 + $0xbb] sm:$0xff]
      %v2178 = vld [vmem:[#allocation3 + $0xc3] sm:$0xff]
      %v2179 = vld [vmem:[#allocation3 + $0xcb] sm:$0xff]
      %v2180 = vld [vmem:[#allocation3 + $0xd3] sm:$0xff]
      %v2181 = vld [vmem:[#allocation3 + $0xdb] sm:$0xff]
      %v2182 = vld [vmem:[#allocation3 + $0xe3] sm:$0xff]
      %v2183 = vld [vmem:[#allocation3 + $0xeb] sm:$0xff]
      %v2184 = vld [vmem:[#allocation3 + $0xf3] sm:$0xff]
      %v2185 = vld [vmem:[#allocation3 + $0xfb] sm:$0xff]
      %v2186 = vld [vmem:[#allocation3 + $0x103] sm:$0xff]
      %v2187 = vld [vmem:[#allocation3 + $0x10b] sm:$0xff]
      %v2188 = vld [vmem:[#allocation3 + $0x113] sm:$0xff]
      %v2189 = vld [vmem:[#allocation3 + $0x11b] sm:$0xff]
      %v2190 = vld [vmem:[#allocation3 + $0x123] sm:$0xff]
      %v2191 = vld [vmem:[#allocation3 + $0x12b] sm:$0xff]
      %v2192 = vld [vmem:[#allocation3 + $0x133] sm:$0xff]
      %v2193 = vld [vmem:[#allocation3 + $0x13b] sm:$0xff]
      %v2194 = vld [vmem:[#allocation3 + $0x143] sm:$0xff]
      %v2195 = vld [vmem:[#allocation3 + $0x14b] sm:$0xff]
      %v2196 = vld [vmem:[#allocation3 + $0x153] sm:$0xff]
      %v2197 = vld [vmem:[#allocation3 + $0x15b] sm:$0xff]
      %v2198 = vld [vmem:[#allocation3 + $0x163] sm:$0xff]
      %v2199 = vld [vmem:[#allocation3 + $0x16b] sm:$0xff]
      %v2200 = vld [vmem:[#allocation3 + $0x173] sm:$0xff]
      %v2201 = vld [vmem:[#allocation3 + $0x17b] sm:$0xff]
      %v2202 = vld [vmem:[#allocation3 + $0x183] sm:$0xff]
      %v2203 = vld [vmem:[#allocation3 + $0x18b] sm:$0xff]
      %v2204 = vld [vmem:[#allocation3 + $0x193] sm:$0xff]
      %vm2205 = vcmp.lt.s32.totalorder %v2000, 32
      %vm2206 = vcmp.lt.s32.totalorder %v2000, 64
      %vm2207 = vcmp.lt.s32.totalorder %v2000, 96
      %v2208 = vsel %vm2207, %v2103, %v2154
      %v2209 = vsel %vm2207, %v2104, %v2155
      %v2210 = vsel %vm2207, %v2105, %v2156
      %v2211 = vsel %vm2207, %v2106, %v2157
      %v2212 = vsel %vm2207, %v2107, %v2158
      %v2213 = vsel %vm2207, %v2108, %v2159
      %v2214 = vsel %vm2207, %v2109, %v2160
      %v2215 = vsel %vm2207, %v2110, %v2161
      %v2216 = vsel %vm2207, %v2111, %v2162
      %v2217 = vsel %vm2207, %v2112, %v2163
      %v2218 = vsel %vm2207, %v2113, %v2164
      %v2219 = vsel %vm2207, %v2114, %v2165
      %v2220 = vsel %vm2207, %v2115, %v2166
      %v2221 = vsel %vm2207, %v2116, %v2167
      %v2222 = vsel %vm2207, %v2117, %v2168
      %v2223 = vsel %vm2207, %v2118, %v2169
      %v2224 = vsel %vm2207, %v2119, %v2170
      %v2225 = vsel %vm2207, %v2120, %v2171
      %v2226 = vsel %vm2207, %v2121, %v2172
      %v2227 = vsel %vm2207, %v2122, %v2173
      %v2228 = vsel %vm2207, %v2123, %v2174
      %v2229 = vsel %vm2207, %v2124, %v2175
      %v2230 = vsel %vm2207, %v2125, %v2176
      %v2231 = vsel %vm2207, %v2126, %v2177
      %v2232 = vsel %vm2207, %v2127, %v2178
      %v2233 = vsel %vm2207, %v2128, %v2179
      %v2234 = vsel %vm2207, %v2129, %v2180
      %v2235 = vsel %vm2207, %v2130, %v2181
      %v2236 = vsel %vm2207, %v2131, %v2182
      %v2237 = vsel %vm2207, %v2132, %v2183
      %v2238 = vsel %vm2207, %v2133, %v2184
      %v2239 = vsel %vm2207, %v2134, %v2185
      %v2240 = vsel %vm2207, %v2135, %v2186
      %v2241 = vsel %vm2207, %v2136, %v2187
      %v2242 = vsel %vm2207, %v2137, %v2188
      %v2243 = vsel %vm2207, %v2138, %v2189
      %v2244 = vsel %vm2207, %v2139, %v2190
      %v2245 = vsel %vm2207, %v2140, %v2191
      %v2246 = vsel %vm2207, %v2141, %v2192
      %v2247 = vsel %vm2207, %v2142, %v2193
      %v2248 = vsel %vm2207, %v2143, %v2194
      %v2249 = vsel %vm2207, %v2144, %v2195
      %v2250 = vsel %vm2207, %v2145, %v2196
      %v2251 = vsel %vm2207, %v2146, %v2197
      %v2252 = vsel %vm2207, %v2147, %v2198
      %v2253 = vsel %vm2207, %v2148, %v2199
      %v2254 = vsel %vm2207, %v2149, %v2200
      %v2255 = vsel %vm2207, %v2150, %v2201
      %v2256 = vsel %vm2207, %v2151, %v2202
      %v2257 = vsel %vm2207, %v2152, %v2203
      %v2258 = vsel %vm2207, %v2153, %v2204
      %v2259 = vsel %vm2206, %v2052, %v2208
      %v2260 = vsel %vm2206, %v2053, %v2209
      %v2261 = vsel %vm2206, %v2054, %v2210
      %v2262 = vsel %vm2206, %v2055, %v2211
      %v2263 = vsel %vm2206, %v2056, %v2212
      %v2264 = vsel %vm2206, %v2057, %v2213
      %v2265 = vsel %vm2206, %v2058, %v2214
      %v2266 = vsel %vm2206, %v2059, %v2215
      %v2267 = vsel %vm2206, %v2060, %v2216
      %v2268 = vsel %vm2206, %v2061, %v2217
      %v2269 = vsel %vm2206, %v2062, %v2218
      %v2270 = vsel %vm2206, %v2063, %v2219
      %v2271 = vsel %vm2206, %v2064, %v2220
      %v2272 = vsel %vm2206, %v2065, %v2221
      %v2273 = vsel %vm2206, %v2066, %v2222
      %v2274 = vsel %vm2206, %v2067, %v2223
      %v2275 = vsel %vm2206, %v2068, %v2224
      %v2276 = vsel %vm2206, %v2069, %v2225
      %v2277 = vsel %vm2206, %v2070, %v2226
      %v2278 = vsel %vm2206, %v2071, %v2227
      %v2279 = vsel %vm2206, %v2072, %v2228
      %v2280 = vsel %vm2206, %v2073, %v2229
      %v2281 = vsel %vm2206, %v2074, %v2230
      %v2282 = vsel %vm2206, %v2075, %v2231
      %v2283 = vsel %vm2206, %v2076, %v2232
      %v2284 = vsel %vm2206, %v2077, %v2233
      %v2285 = vsel %vm2206, %v2078, %v2234
      %v2286 = vsel %vm2206, %v2079, %v2235
      %v2287 = vsel %vm2206, %v2080, %v2236
      %v2288 = vsel %vm2206, %v2081, %v2237
      %v2289 = vsel %vm2206, %v2082, %v2238
      %v2290 = vsel %vm2206, %v2083, %v2239
      %v2291 = vsel %vm2206, %v2084, %v2240
      %v2292 = vsel %vm2206, %v2085, %v2241
      %v2293 = vsel %vm2206, %v2086, %v2242
      %v2294 = vsel %vm2206, %v2087, %v2243
      %v2295 = vsel %vm2206, %v2088, %v2244
      %v2296 = vsel %vm2206, %v2089, %v2245
      %v2297 = vsel %vm2206, %v2090, %v2246
      %v2298 = vsel %vm2206, %v2091, %v2247
      %v2299 = vsel %vm2206, %v2092, %v2248
      %v2300 = vsel %vm2206, %v2093, %v2249
      %v2301 = vsel %vm2206, %v2094, %v2250
      %v2302 = vsel %vm2206, %v2095, %v2251
      %v2303 = vsel %vm2206, %v2096, %v2252
      %v2304 = vsel %vm2206, %v2097, %v2253
      %v2305 = vsel %vm2206, %v2098, %v2254
      %v2306 = vsel %vm2206, %v2099, %v2255
      %v2307 = vsel %vm2206, %v2100, %v2256
      %v2308 = vsel %vm2206, %v2101, %v2257
      %v2309 = vsel %vm2206, %v2102, %v2258
      %v2310 = vsel %vm2205, %v2001, %v2259
      %v2311 = vsel %vm2205, %v2002, %v2260
      %v2312 = vsel %vm2205, %v2003, %v2261
      %v2313 = vsel %vm2205, %v2004, %v2262
      %v2314 = vsel %vm2205, %v2005, %v2263
      %v2315 = vsel %vm2205, %v2006, %v2264
      %v2316 = vsel %vm2205, %v2007, %v2265
      %v2317 = vsel %vm2205, %v2008, %v2266
      %v2318 = vsel %vm2205, %v2009, %v2267
      %v2319 = vsel %vm2205, %v2010, %v2268
      %v2320 = vsel %vm2205, %v2011, %v2269
      %v2321 = vsel %vm2205, %v2012, %v2270
      %v2322 = vsel %vm2205, %v2013, %v2271
      %v2323 = vsel %vm2205, %v2014, %v2272
      %v2324 = vsel %vm2205, %v2015, %v2273
      %v2325 = vsel %vm2205, %v2016, %v2274
      %v2326 = vsel %vm2205, %v2017, %v2275
      %v2327 = vsel %vm2205, %v2018, %v2276
      %v2328 = vsel %vm2205, %v2019, %v2277
      %v2329 = vsel %vm2205, %v2020, %v2278
      %v2330 = vsel %vm2205, %v2021, %v2279
      %v2331 = vsel %vm2205, %v2022, %v2280
      %v2332 = vsel %vm2205, %v2023, %v2281
      %v2333 = vsel %vm2205, %v2024, %v2282
      %v2334 = vsel %vm2205, %v2025, %v2283
      %v2335 = vsel %vm2205, %v2026, %v2284
      %v2336 = vsel %vm2205, %v2027, %v2285
      %v2337 = vsel %vm2205, %v2028, %v2286
      %v2338 = vsel %vm2205, %v2029, %v2287
      %v2339 = vsel %vm2205, %v2030, %v2288
      %v2340 = vsel %vm2205, %v2031, %v2289
      %v2341 = vsel %vm2205, %v2032, %v2290
      %v2342 = vsel %vm2205, %v2033, %v2291
      %v2343 = vsel %vm2205, %v2034, %v2292
      %v2344 = vsel %vm2205, %v2035, %v2293
      %v2345 = vsel %vm2205, %v2036, %v2294
      %v2346 = vsel %vm2205, %v2037, %v2295
      %v2347 = vsel %vm2205, %v2038, %v2296
      %v2348 = vsel %vm2205, %v2039, %v2297
      %v2349 = vsel %vm2205, %v2040, %v2298
      %v2350 = vsel %vm2205, %v2041, %v2299
      %v2351 = vsel %vm2205, %v2042, %v2300
      %v2352 = vsel %vm2205, %v2043, %v2301
      %v2353 = vsel %vm2205, %v2044, %v2302
      %v2354 = vsel %vm2205, %v2045, %v2303
      %v2355 = vsel %vm2205, %v2046, %v2304
      %v2356 = vsel %vm2205, %v2047, %v2305
      %v2357 = vsel %vm2205, %v2048, %v2306
      %v2358 = vsel %vm2205, %v2049, %v2307
      %v2359 = vsel %vm2205, %v2050, %v2308
      %v2360 = vsel %vm2205, %v2051, %v2309
      %v2361 = vpack.c.bf16 %v2310, %v2310
      %v2362 = vpack.c.bf16 %v2311, %v2311
      %v2363 = vpack.c.bf16 %v2312, %v2312
      %v2364 = vpack.c.bf16 %v2313, %v2313
      %v2365 = vpack.c.bf16 %v2314, %v2314
      %v2366 = vpack.c.bf16 %v2315, %v2315
      %v2367 = vpack.c.bf16 %v2316, %v2316
      %v2368 = vpack.c.bf16 %v2317, %v2317
      %v2369 = vpack.c.bf16 %v2318, %v2318
      %v2370 = vpack.c.bf16 %v2319, %v2319
      %v2371 = vpack.c.bf16 %v2320, %v2320
      %v2372 = vpack.c.bf16 %v2321, %v2321
      %v2373 = vpack.c.bf16 %v2322, %v2322
      %v2374 = vpack.c.bf16 %v2323, %v2323
      %v2375 = vpack.c.bf16 %v2324, %v2324
      %v2376 = vpack.c.bf16 %v2325, %v2325
      %v2377 = vpack.c.bf16 %v2326, %v2326
      %v2378 = vpack.c.bf16 %v2327, %v2327
      %v2379 = vpack.c.bf16 %v2328, %v2328
      %v2380 = vpack.c.bf16 %v2329, %v2329
      %v2381 = vpack.c.bf16 %v2330, %v2330
      %v2382 = vpack.c.bf16 %v2331, %v2331
      %v2383 = vpack.c.bf16 %v2332, %v2332
      %v2384 = vpack.c.bf16 %v2333, %v2333
      %v2385 = vpack.c.bf16 %v2334, %v2334
      %v2386 = vpack.c.bf16 %v2335, %v2335
      %v2387 = vpack.c.bf16 %v2336, %v2336
      %v2388 = vpack.c.bf16 %v2337, %v2337
      %v2389 = vpack.c.bf16 %v2338, %v2338
      %v2390 = vpack.c.bf16 %v2339, %v2339
      %v2391 = vpack.c.bf16 %v2340, %v2340
      %v2392 = vpack.c.bf16 %v2341, %v2341
      %v2393 = vpack.c.bf16 %v2342, %v2342
      %v2394 = vpack.c.bf16 %v2343, %v2343
      %v2395 = vpack.c.bf16 %v2344, %v2344
      %v2396 = vpack.c.bf16 %v2345, %v2345
      %v2397 = vpack.c.bf16 %v2346, %v2346
      %v2398 = vpack.c.bf16 %v2347, %v2347
      %v2399 = vpack.c.bf16 %v2348, %v2348
      %v2400 = vpack.c.bf16 %v2349, %v2349
      %v2401 = vpack.c.bf16 %v2350, %v2350
      %v2402 = vpack.c.bf16 %v2351, %v2351
      %v2403 = vpack.c.bf16 %v2352, %v2352
      %v2404 = vpack.c.bf16 %v2353, %v2353
      %v2405 = vpack.c.bf16 %v2354, %v2354
      %v2406 = vpack.c.bf16 %v2355, %v2355
      %v2407 = vpack.c.bf16 %v2356, %v2356
      %v2408 = vpack.c.bf16 %v2357, %v2357
      %v2409 = vpack.c.bf16 %v2358, %v2358
      %v2410 = vpack.c.bf16 %v2359, %v2359
      %v2411 = vpack.c.bf16 %v2360, %v2360
      %2412 = vst [vmem:[#allocation4] sm:$0xf] %v2361
      %2413 = vst [vmem:[#allocation4 + $0x4] sm:$0xf] %v2362
      %2414 = vst [vmem:[#allocation4 + $0x8] sm:$0xf] %v2363
      %2415 = vst [vmem:[#allocation4 + $0xc] sm:$0xf] %v2364
      %2416 = vst [vmem:[#allocation4 + $0x10] sm:$0xf] %v2365
      %2417 = vst [vmem:[#allocation4 + $0x14] sm:$0xf] %v2366
      %2418 = vst [vmem:[#allocation4 + $0x18] sm:$0xf] %v2367
      %2419 = vst [vmem:[#allocation4 + $0x1c] sm:$0xf] %v2368
      %2420 = vst [vmem:[#allocation4 + $0x20] sm:$0xf] %v2369
      %2421 = vst [vmem:[#allocation4 + $0x24] sm:$0xf] %v2370
      %2422 = vst [vmem:[#allocation4 + $0x28] sm:$0xf] %v2371
      %2423 = vst [vmem:[#allocation4 + $0x2c] sm:$0xf] %v2372
      %2424 = vst [vmem:[#allocation4 + $0x30] sm:$0xf] %v2373
      %2425 = vst [vmem:[#allocation4 + $0x34] sm:$0xf] %v2374
      %2426 = vst [vmem:[#allocation4 + $0x38] sm:$0xf] %v2375
      %2427 = vst [vmem:[#allocation4 + $0x3c] sm:$0xf] %v2376
      %2428 = vst [vmem:[#allocation4 + $0x40] sm:$0xf] %v2377
      %2429 = vst [vmem:[#allocation4 + $0x44] sm:$0xf] %v2378
      %2430 = vst [vmem:[#allocation4 + $0x48] sm:$0xf] %v2379
      %2431 = vst [vmem:[#allocation4 + $0x4c] sm:$0xf] %v2380
      %2432 = vst [vmem:[#allocation4 + $0x50] sm:$0xf] %v2381
      %2433 = vst [vmem:[#allocation4 + $0x54] sm:$0xf] %v2382
      %2434 = vst [vmem:[#allocation4 + $0x58] sm:$0xf] %v2383
      %2435 = vst [vmem:[#allocation4 + $0x5c] sm:$0xf] %v2384
      %2436 = vst [vmem:[#allocation4 + $0x60] sm:$0xf] %v2385
      %2437 = vst [vmem:[#allocation4 + $0x64] sm:$0xf] %v2386
      %2438 = vst [vmem:[#allocation4 + $0x68] sm:$0xf] %v2387
      %2439 = vst [vmem:[#allocation4 + $0x6c] sm:$0xf] %v2388
      %2440 = vst [vmem:[#allocation4 + $0x70] sm:$0xf] %v2389
      %2441 = vst [vmem:[#allocation4 + $0x74] sm:$0xf] %v2390
      %2442 = vst [vmem:[#allocation4 + $0x78] sm:$0xf] %v2391
      %2443 = vst [vmem:[#allocation4 + $0x7c] sm:$0xf] %v2392
      %2444 = vst [vmem:[#allocation4 + $0x80] sm:$0xf] %v2393
      %2445 = vst [vmem:[#allocation4 + $0x84] sm:$0xf] %v2394
      %2446 = vst [vmem:[#allocation4 + $0x88] sm:$0xf] %v2395
      %2447 = vst [vmem:[#allocation4 + $0x8c] sm:$0xf] %v2396
      %2448 = vst [vmem:[#allocation4 + $0x90] sm:$0xf] %v2397
      %2449 = vst [vmem:[#allocation4 + $0x94] sm:$0xf] %v2398
      %2450 = vst [vmem:[#allocation4 + $0x98] sm:$0xf] %v2399
      %2451 = vst [vmem:[#allocation4 + $0x9c] sm:$0xf] %v2400
      %2452 = vst [vmem:[#allocation4 + $0xa0] sm:$0xf] %v2401
      %2453 = vst [vmem:[#allocation4 + $0xa4] sm:$0xf] %v2402
      %2454 = vst [vmem:[#allocation4 + $0xa8] sm:$0xf] %v2403
      %2455 = vst [vmem:[#allocation4 + $0xac] sm:$0xf] %v2404
      %2456 = vst [vmem:[#allocation4 + $0xb0] sm:$0xf] %v2405
      %2457 = vst [vmem:[#allocation4 + $0xb4] sm:$0xf] %v2406
      %2458 = vst [vmem:[#allocation4 + $0xb8] sm:$0xf] %v2407
      %2459 = vst [vmem:[#allocation4 + $0xbc] sm:$0xf] %v2408
      %2460 = vst [vmem:[#allocation4 + $0xc0] sm:$0xf] %v2409
      %2461 = vst [vmem:[#allocation4 + $0xc4] sm:$0xf] %v2410
      %2462 = vst [vmem:[#allocation4 + $0xc8] sm:$0xf] %v2411
      %v2463 = vld [vmem:[#allocation4] sm:$0xf]
      %v2464 = vld [vmem:[#allocation4 + $0x4] sm:$0xf]
      %v2465 = vld [vmem:[#allocation4 + $0x8] sm:$0xf]
      %v2466 = vld [vmem:[#allocation4 + $0xc] sm:$0xf]
      %v2467 = vld [vmem:[#allocation4 + $0x10] sm:$0xf]
      %v2468 = vld [vmem:[#allocation4 + $0x14] sm:$0xf]
      %v2469 = vld [vmem:[#allocation4 + $0x18] sm:$0xf]
      %v2470 = vld [vmem:[#allocation4 + $0x1c] sm:$0xf]
      %v2471 = vld [vmem:[#allocation4 + $0x20] sm:$0xf]
      %v2472 = vld [vmem:[#allocation4 + $0x24] sm:$0xf]
      %v2473 = vld [vmem:[#allocation4 + $0x28] sm:$0xf]
      %v2474 = vld [vmem:[#allocation4 + $0x2c] sm:$0xf]
      %v2475 = vld [vmem:[#allocation4 + $0x30] sm:$0xf]
      %v2476 = vld [vmem:[#allocation4 + $0x34] sm:$0xf]
      %v2477 = vld [vmem:[#allocation4 + $0x38] sm:$0xf]
      %v2478 = vld [vmem:[#allocation4 + $0x3c] sm:$0xf]
      %v2479 = vld [vmem:[#allocation4 + $0x40] sm:$0xf]
      %v2480 = vld [vmem:[#allocation4 + $0x44] sm:$0xf]
      %v2481 = vld [vmem:[%s3] sm:$0xf]
      %v2482 = vld [vmem:[%s3 + $0x4] sm:$0xf]
      %v2483 = vld [vmem:[%s3 + $0x8] sm:$0xf]
      %v2484 = vld [vmem:[%s3 + $0xc] sm:$0xf]
      %v2485 = vld [vmem:[%s3 + $0x10] sm:$0xf]
      %v2486 = vld [vmem:[%s3 + $0x14] sm:$0xf]
      %v2487 = vld [vmem:[%s3 + $0x18] sm:$0xf]
      %v2488 = vld [vmem:[%s3 + $0x1c] sm:$0xf]
      %v2489 = vld [vmem:[%s3 + $0x20] sm:$0xf]
      %v2490 = vld [vmem:[%s3 + $0x24] sm:$0xf]
      %v2491 = vld [vmem:[%s3 + $0x28] sm:$0xf]
      %v2492 = vld [vmem:[%s3 + $0x2c] sm:$0xf]
      %v2493 = vld [vmem:[%s3 + $0x30] sm:$0xf]
      %v2494 = vld [vmem:[%s3 + $0x34] sm:$0xf]
      %v2495 = vld [vmem:[%s3 + $0x38] sm:$0xf]
      %v2496 = vld [vmem:[%s3 + $0x3c] sm:$0xf]
      %v2497 = vld [vmem:[#allocation4 + $0xc] sm:$0xc]
      %v2498 = vld [vmem:[#allocation4 + $0x48] sm:$0xf]
      %v2499 = vld [vmem:[#allocation4 + $0x4c] sm:$0xf]
      %v2500 = vld [vmem:[#allocation4 + $0x50] sm:$0xf]
      %v2501 = vld [vmem:[#allocation4 + $0x54] sm:$0x3]
      %s2502 = scalar_lea.vmem %s3, 64
      %v2503 = vld [vmem:[%s2502] sm:$0xf]
      %v2504 = vld [vmem:[%s2502 + $0x4] sm:$0xf]
      %v2505 = vld [vmem:[%s2502 + $0x8] sm:$0xf]
      %v2506 = vld [vmem:[%s2502 + $0xc] sm:$0xf]
      %v2507 = vld [vmem:[%s2502 + $0x10] sm:$0xf]
      %v2508 = vld [vmem:[%s2502 + $0x14] sm:$0xf]
      %v2509 = vld [vmem:[%s2502 + $0x18] sm:$0xf]
      %v2510 = vld [vmem:[%s2502 + $0x1c] sm:$0xf]
      %v2511 = vld [vmem:[%s2502 + $0x20] sm:$0xf]
      %v2512 = vld [vmem:[%s2502 + $0x24] sm:$0xf]
      %v2513 = vld [vmem:[%s2502 + $0x28] sm:$0xf]
      %v2514 = vld [vmem:[%s2502 + $0x2c] sm:$0xf]
      %v2515 = vld [vmem:[%s2502 + $0x30] sm:$0xf]
      %v2516 = vld [vmem:[%s2502 + $0x34] sm:$0xf]
      %v2517 = vld [vmem:[%s2502 + $0x38] sm:$0xf]
      %v2518 = vld [vmem:[%s2502 + $0x3c] sm:$0xf]
      %v2538 = vunpack.c.l.b16 %v2497
      %v2539 = vunpack.c.l.b16 %v2467
      %v2540 = vunpack.c.l.b16 %v2468
      %v2541 = vunpack.c.l.b16 %v2469
      %v2542 = vunpack.c.l.b16 %v2470
      %v2543 = vunpack.c.l.b16 %v2471
      %v2544 = vunpack.c.l.b16 %v2472
      %v2545 = vunpack.c.l.b16 %v2473
      %v2546 = vunpack.c.l.b16 %v2474
      %v2547 = vunpack.c.l.b16 %v2475
      %v2548 = vunpack.c.l.b16 %v2476
      %v2549 = vunpack.c.l.b16 %v2477
      %v2550 = vunpack.c.l.b16 %v2478
      %v2551 = vunpack.c.l.b16 %v2479
      %v2552 = vunpack.c.l.b16 %v2480
      %v2553 = vunpack.c.l.b16 %v2498
      %v2554 = vunpack.c.l.b16 %v2499
      %v2555 = vunpack.c.l.b16 %v2500
      %v2556 = vunpack.c.l.b16 %v2501
      %v2557 = vpack.c.b16 %v2539, %v2538
      %v2558 = vpack.c.b16 %v2541, %v2540
      %v2559 = vpack.c.b16 %v2543, %v2542
      %v2560 = vpack.c.b16 %v2545, %v2544
      %v2561 = vpack.c.b16 %v2547, %v2546
      %v2562 = vpack.c.b16 %v2549, %v2548
      %v2563 = vpack.c.b16 %v2551, %v2550
      %v2564 = vpack.c.b16 %v2553, %v2552
      %v2565 = vpack.c.b16 %v2555, %v2554
      %v2566 = vpack.c.b16 %v2556, %v2556
      %vm2567 = vcmask 1045504
      %v2568 = vrot.slane %v2557, 2
      %v2569 = vrot.slane %v2558, 2
      %v2570 = vsel %vm2567, %v2568, %v2569
      %v2571 = vrot.slane %v2559, 2
      %v2572 = vsel %vm2567, %v2569, %v2571
      %v2573 = vrot.slane %v2560, 2
      %v2574 = vsel %vm2567, %v2571, %v2573
      %v2575 = vrot.slane %v2561, 2
      %v2576 = vsel %vm2567, %v2573, %v2575
      %v2577 = vrot.slane %v2562, 2
      %v2578 = vsel %vm2567, %v2575, %v2577
      %v2579 = vrot.slane %v2563, 2
      %v2580 = vsel %vm2567, %v2577, %v2579
      %v2581 = vrot.slane %v2564, 2
      %v2582 = vsel %vm2567, %v2579, %v2581
      %v2583 = vrot.slane %v2565, 2
      %v2584 = vsel %vm2567, %v2581, %v2583
      %v2585 = vrot.slane %v2566, 2
      %v2586 = vsel %vm2567, %v2583, %v2585
      %v2612 = vunpack.c.l.b16 %v2503
      %v2613 = vunpack.c.l.b16 %v2504
      %v2614 = vunpack.c.l.b16 %v2505
      %v2615 = vunpack.c.l.b16 %v2506
      %v2616 = vunpack.c.l.b16 %v2507
      %v2617 = vunpack.c.l.b16 %v2508
      %v2618 = vunpack.c.l.b16 %v2509
      %v2619 = vunpack.c.l.b16 %v2510
      %v2620 = vunpack.c.l.b16 %v2511
      %v2621 = vunpack.c.l.b16 %v2512
      %v2622 = vunpack.c.l.b16 %v2513
      %v2623 = vunpack.c.l.b16 %v2514
      %v2624 = vunpack.c.l.b16 %v2515
      %v2625 = vunpack.c.l.b16 %v2516
      %v2626 = vunpack.c.l.b16 %v2517
      %v2627 = vunpack.c.l.b16 %v2518
      %v2628 = vpack.c.b16 %v2613, %v2612
      %v2629 = vpack.c.b16 %v2615, %v2614
      %v2630 = vpack.c.b16 %v2617, %v2616
      %v2631 = vpack.c.b16 %v2619, %v2618
      %v2632 = vpack.c.b16 %v2621, %v2620
      %v2633 = vpack.c.b16 %v2623, %v2622
      %v2634 = vpack.c.b16 %v2625, %v2624
      %v2635 = vpack.c.b16 %v2627, %v2626
      %2644 = vmatpush.bf16.msra.mxu0 %v2635
      %2645 = vmatpush.bf16.msra.mxu0 %v2634
      %2646 = vmatpush.bf16.msra.mxu0 %v2633
      %2647 = vmatpush.bf16.msra.mxu0 %v2632
      %2648 = vmatpush.bf16.msra.mxu0 %v2631
      %2649 = vmatpush.bf16.msra.mxu0 %v2630
      %2650 = vmatpush.bf16.msra.mxu0 %v2629
      %2651 = vmatpush.bf16.msra.mxu0 %v2628
      %2652 = vmatmul.bf16.gmra.mxu0 %v2570
      %v2653 = vpop.f32.mrf.mxu0
      %v2654 = vadd.f32 0.0, %v2653
      %v2655 = vpop.f32.mrf.mxu0
      %v2656 = vadd.f32 0.0, %v2655
      %2657 = vmatmul.bf16.gmra.mxu0 %v2572
      %v2658 = vpop.f32.mrf.mxu0
      %v2659 = vadd.f32 0.0, %v2658
      %v2660 = vpop.f32.mrf.mxu0
      %v2661 = vadd.f32 0.0, %v2660
      %2662 = vmatmul.bf16.gmra.mxu0 %v2574
      %v2663 = vpop.f32.mrf.mxu0
      %v2664 = vadd.f32 0.0, %v2663
      %v2665 = vpop.f32.mrf.mxu0
      %v2666 = vadd.f32 0.0, %v2665
      %2667 = vmatmul.bf16.gmra.mxu0 %v2576
      %v2668 = vpop.f32.mrf.mxu0
      %v2669 = vadd.f32 0.0, %v2668
      %v2670 = vpop.f32.mrf.mxu0
      %v2671 = vadd.f32 0.0, %v2670
      %2672 = vmatmul.bf16.gmra.mxu0 %v2578
      %v2673 = vpop.f32.mrf.mxu0
      %v2674 = vadd.f32 0.0, %v2673
      %v2675 = vpop.f32.mrf.mxu0
      %v2676 = vadd.f32 0.0, %v2675
      %2677 = vmatmul.bf16.gmra.mxu0 %v2580
      %v2678 = vpop.f32.mrf.mxu0
      %v2679 = vadd.f32 0.0, %v2678
      %v2680 = vpop.f32.mrf.mxu0
      %v2681 = vadd.f32 0.0, %v2680
      %2682 = vmatmul.bf16.gmra.mxu0 %v2582
      %v2683 = vpop.f32.mrf.mxu0
      %v2684 = vadd.f32 0.0, %v2683
      %v2685 = vpop.f32.mrf.mxu0
      %v2686 = vadd.f32 0.0, %v2685
      %2687 = vmatmul.bf16.gmra.mxu0 %v2584
      %v2688 = vpop.f32.mrf.mxu0
      %v2689 = vadd.f32 0.0, %v2688
      %v2690 = vpop.f32.mrf.mxu0
      %v2691 = vadd.f32 0.0, %v2690
      %2692 = vmatmul.bf16.gmra.mxu0 %v2586
      %v2693 = vpop.f32.mrf.mxu0
      %v2694 = vadd.f32 0.0, %v2693
      %v2695 = vpop.f32.mrf.mxu0
      %v2696 = vadd.f32 0.0, %v2695
      %2697 = vdwg.mxu0
      %v2702 = vunpack.c.l.b16 %v2463
      %v2703 = vunpack.c.l.b16 %v2464
      %v2704 = vunpack.c.l.b16 %v2465
      %v2705 = vunpack.c.l.b16 %v2466
      %v2706 = vpack.c.b16 %v2703, %v2702
      %v2707 = vpack.c.b16 %v2705, %v2704
      %v2708 = vpack.c.b16 %v2540, %v2539
      %v2709 = vpack.c.b16 %v2542, %v2541
      %v2710 = vpack.c.b16 %v2544, %v2543
      %v2711 = vpack.c.b16 %v2546, %v2545
      %v2712 = vpack.c.b16 %v2548, %v2547
      %v2713 = vpack.c.b16 %v2550, %v2549
      %v2714 = vpack.c.b16 %v2552, %v2551
      %v2740 = vunpack.c.l.b16 %v2481
      %v2741 = vunpack.c.l.b16 %v2482
      %v2742 = vunpack.c.l.b16 %v2483
      %v2743 = vunpack.c.l.b16 %v2484
      %v2744 = vunpack.c.l.b16 %v2485
      %v2745 = vunpack.c.l.b16 %v2486
      %v2746 = vunpack.c.l.b16 %v2487
      %v2747 = vunpack.c.l.b16 %v2488
      %v2748 = vunpack.c.l.b16 %v2489
      %v2749 = vunpack.c.l.b16 %v2490
      %v2750 = vunpack.c.l.b16 %v2491
      %v2751 = vunpack.c.l.b16 %v2492
      %v2752 = vunpack.c.l.b16 %v2493
      %v2753 = vunpack.c.l.b16 %v2494
      %v2754 = vunpack.c.l.b16 %v2495
      %v2755 = vunpack.c.l.b16 %v2496
      %v2756 = vpack.c.b16 %v2741, %v2740
      %v2757 = vpack.c.b16 %v2743, %v2742
      %v2758 = vpack.c.b16 %v2745, %v2744
      %v2759 = vpack.c.b16 %v2747, %v2746
      %v2760 = vpack.c.b16 %v2749, %v2748
      %v2761 = vpack.c.b16 %v2751, %v2750
      %v2762 = vpack.c.b16 %v2753, %v2752
      %v2763 = vpack.c.b16 %v2755, %v2754
      %2772 = vmatpush.bf16.msra.mxu0 %v2763
      %2773 = vmatpush.bf16.msra.mxu0 %v2762
      %2774 = vmatpush.bf16.msra.mxu0 %v2761
      %2775 = vmatpush.bf16.msra.mxu0 %v2760
      %2776 = vmatpush.bf16.msra.mxu0 %v2759
      %2777 = vmatpush.bf16.msra.mxu0 %v2758
      %2778 = vmatpush.bf16.msra.mxu0 %v2757
      %2779 = vmatpush.bf16.msra.mxu0 %v2756
      %2780 = vmatmul.bf16.gmra.mxu0 %v2706
      %v2781 = vpop.f32.mrf.mxu0
      %v2782 = vadd.f32 %v2654, %v2781
      %v2783 = vpop.f32.mrf.mxu0
      %v2784 = vadd.f32 %v2656, %v2783
      %2785 = vmatmul.bf16.gmra.mxu0 %v2707
      %v2786 = vpop.f32.mrf.mxu0
      %v2787 = vadd.f32 %v2659, %v2786
      %v2788 = vpop.f32.mrf.mxu0
      %v2789 = vadd.f32 %v2661, %v2788
      %2790 = vmatmul.bf16.gmra.mxu0 %v2708
      %v2791 = vpop.f32.mrf.mxu0
      %v2792 = vadd.f32 %v2664, %v2791
      %v2793 = vpop.f32.mrf.mxu0
      %v2794 = vadd.f32 %v2666, %v2793
      %2795 = vmatmul.bf16.gmra.mxu0 %v2709
      %v2796 = vpop.f32.mrf.mxu0
      %v2797 = vadd.f32 %v2669, %v2796
      %v2798 = vpop.f32.mrf.mxu0
      %v2799 = vadd.f32 %v2671, %v2798
      %2800 = vmatmul.bf16.gmra.mxu0 %v2710
      %v2801 = vpop.f32.mrf.mxu0
      %v2802 = vadd.f32 %v2674, %v2801
      %v2803 = vpop.f32.mrf.mxu0
      %v2804 = vadd.f32 %v2676, %v2803
      %2805 = vmatmul.bf16.gmra.mxu0 %v2711
      %v2806 = vpop.f32.mrf.mxu0
      %v2807 = vadd.f32 %v2679, %v2806
      %v2808 = vpop.f32.mrf.mxu0
      %v2809 = vadd.f32 %v2681, %v2808
      %2810 = vmatmul.bf16.gmra.mxu0 %v2712
      %v2811 = vpop.f32.mrf.mxu0
      %v2812 = vadd.f32 %v2684, %v2811
      %v2813 = vpop.f32.mrf.mxu0
      %v2814 = vadd.f32 %v2686, %v2813
      %2815 = vmatmul.bf16.gmra.mxu0 %v2713
      %v2816 = vpop.f32.mrf.mxu0
      %v2817 = vadd.f32 %v2689, %v2816
      %v2818 = vpop.f32.mrf.mxu0
      %v2819 = vadd.f32 %v2691, %v2818
      %2820 = vmatmul.bf16.gmra.mxu0 %v2714
      %v2821 = vpop.f32.mrf.mxu0
      %v2822 = vadd.f32 %v2694, %v2821
      %v2823 = vpop.f32.mrf.mxu0
      %v2824 = vadd.f32 %v2696, %v2823
      %2825 = vdwg.mxu0
      %v2826 = vld [vmem:[#allocation4 + $0x1c] sm:$0xf]
      %v2827 = vld [vmem:[#allocation4 + $0x20] sm:$0xf]
      %v2828 = vld [vmem:[#allocation4 + $0x24] sm:$0xf]
      %v2829 = vld [vmem:[#allocation4 + $0x28] sm:$0xf]
      %v2830 = vld [vmem:[#allocation4 + $0x2c] sm:$0xf]
      %v2831 = vld [vmem:[#allocation4 + $0x30] sm:$0xf]
      %v2832 = vld [vmem:[#allocation4 + $0x34] sm:$0xf]
      %v2833 = vld [vmem:[#allocation4 + $0x38] sm:$0xf]
      %v2834 = vld [vmem:[#allocation4 + $0x3c] sm:$0xf]
      %v2835 = vld [vmem:[#allocation4 + $0x40] sm:$0xf]
      %v2836 = vld [vmem:[#allocation4 + $0x44] sm:$0xf]
      %v2837 = vld [vmem:[#allocation4 + $0x48] sm:$0xf]
      %v2838 = vld [vmem:[#allocation4 + $0x4c] sm:$0xf]
      %v2839 = vld [vmem:[#allocation4 + $0x50] sm:$0xf]
      %v2840 = vld [vmem:[#allocation4 + $0x54] sm:$0xf]
      %v2841 = vld [vmem:[#allocation4 + $0x58] sm:$0xf]
      %v2842 = vld [vmem:[#allocation4 + $0x5c] sm:$0xf]
      %v2843 = vld [vmem:[#allocation4 + $0x60] sm:$0xf]
      %s2844 = scalar_lea.vmem %s3, 128
      %v2845 = vld [vmem:[%s2844] sm:$0xf]
      %v2846 = vld [vmem:[%s2844 + $0x4] sm:$0xf]
      %v2847 = vld [vmem:[%s2844 + $0x8] sm:$0xf]
      %v2848 = vld [vmem:[%s2844 + $0xc] sm:$0xf]
      %v2849 = vld [vmem:[%s2844 + $0x10] sm:$0xf]
      %v2850 = vld [vmem:[%s2844 + $0x14] sm:$0xf]
      %v2851 = vld [vmem:[%s2844 + $0x18] sm:$0xf]
      %v2852 = vld [vmem:[%s2844 + $0x1c] sm:$0xf]
      %v2853 = vld [vmem:[%s2844 + $0x20] sm:$0xf]
      %v2854 = vld [vmem:[%s2844 + $0x24] sm:$0xf]
      %v2855 = vld [vmem:[%s2844 + $0x28] sm:$0xf]
      %v2856 = vld [vmem:[%s2844 + $0x2c] sm:$0xf]
      %v2857 = vld [vmem:[%s2844 + $0x30] sm:$0xf]
      %v2858 = vld [vmem:[%s2844 + $0x34] sm:$0xf]
      %v2859 = vld [vmem:[%s2844 + $0x38] sm:$0xf]
      %v2860 = vld [vmem:[%s2844 + $0x3c] sm:$0xf]
      %v2879 = vunpack.c.l.b16 %v2826
      %v2880 = vunpack.c.l.b16 %v2827
      %v2881 = vunpack.c.l.b16 %v2828
      %v2882 = vunpack.c.l.b16 %v2829
      %v2883 = vunpack.c.l.b16 %v2830
      %v2884 = vunpack.c.l.b16 %v2831
      %v2885 = vunpack.c.l.b16 %v2832
      %v2886 = vunpack.c.l.b16 %v2833
      %v2887 = vunpack.c.l.b16 %v2834
      %v2888 = vunpack.c.l.b16 %v2835
      %v2889 = vunpack.c.l.b16 %v2836
      %v2890 = vunpack.c.l.b16 %v2837
      %v2891 = vunpack.c.l.b16 %v2838
      %v2892 = vunpack.c.l.b16 %v2839
      %v2893 = vunpack.c.l.b16 %v2840
      %v2894 = vunpack.c.l.b16 %v2841
      %v2895 = vunpack.c.l.b16 %v2842
      %v2896 = vunpack.c.l.b16 %v2843
      %v2897 = vpack.c.b16 %v2880, %v2879
      %v2898 = vpack.c.b16 %v2882, %v2881
      %v2899 = vpack.c.b16 %v2884, %v2883
      %v2900 = vpack.c.b16 %v2886, %v2885
      %v2901 = vpack.c.b16 %v2888, %v2887
      %v2902 = vpack.c.b16 %v2890, %v2889
      %v2903 = vpack.c.b16 %v2892, %v2891
      %v2904 = vpack.c.b16 %v2894, %v2893
      %v2905 = vpack.c.b16 %v2896, %v2895
      %v2931 = vunpack.c.l.b16 %v2845
      %v2932 = vunpack.c.l.b16 %v2846
      %v2933 = vunpack.c.l.b16 %v2847
      %v2934 = vunpack.c.l.b16 %v2848
      %v2935 = vunpack.c.l.b16 %v2849
      %v2936 = vunpack.c.l.b16 %v2850
      %v2937 = vunpack.c.l.b16 %v2851
      %v2938 = vunpack.c.l.b16 %v2852
      %v2939 = vunpack.c.l.b16 %v2853
      %v2940 = vunpack.c.l.b16 %v2854
      %v2941 = vunpack.c.l.b16 %v2855
      %v2942 = vunpack.c.l.b16 %v2856
      %v2943 = vunpack.c.l.b16 %v2857
      %v2944 = vunpack.c.l.b16 %v2858
      %v2945 = vunpack.c.l.b16 %v2859
      %v2946 = vunpack.c.l.b16 %v2860
      %v2947 = vpack.c.b16 %v2932, %v2931
      %v2948 = vpack.c.b16 %v2934, %v2933
      %v2949 = vpack.c.b16 %v2936, %v2935
      %v2950 = vpack.c.b16 %v2938, %v2937
      %v2951 = vpack.c.b16 %v2940, %v2939
      %v2952 = vpack.c.b16 %v2942, %v2941
      %v2953 = vpack.c.b16 %v2944, %v2943
      %v2954 = vpack.c.b16 %v2946, %v2945
      %2963 = vmatpush.bf16.msra.mxu0 %v2954
      %2964 = vmatpush.bf16.msra.mxu0 %v2953
      %2965 = vmatpush.bf16.msra.mxu0 %v2952
      %2966 = vmatpush.bf16.msra.mxu0 %v2951
      %2967 = vmatpush.bf16.msra.mxu0 %v2950
      %2968 = vmatpush.bf16.msra.mxu0 %v2949
      %2969 = vmatpush.bf16.msra.mxu0 %v2948
      %2970 = vmatpush.bf16.msra.mxu0 %v2947
      %2971 = vmatmul.bf16.gmra.mxu0 %v2897
      %v2972 = vpop.f32.mrf.mxu0
      %v2973 = vadd.f32 0.0, %v2972
      %v2974 = vpop.f32.mrf.mxu0
      %v2975 = vadd.f32 0.0, %v2974
      %2976 = vmatmul.bf16.gmra.mxu0 %v2898
      %v2977 = vpop.f32.mrf.mxu0
      %v2978 = vadd.f32 0.0, %v2977
      %v2979 = vpop.f32.mrf.mxu0
      %v2980 = vadd.f32 0.0, %v2979
      %2981 = vmatmul.bf16.gmra.mxu0 %v2899
      %v2982 = vpop.f32.mrf.mxu0
      %v2983 = vadd.f32 0.0, %v2982
      %v2984 = vpop.f32.mrf.mxu0
      %v2985 = vadd.f32 0.0, %v2984
      %2986 = vmatmul.bf16.gmra.mxu0 %v2900
      %v2987 = vpop.f32.mrf.mxu0
      %v2988 = vadd.f32 0.0, %v2987
      %v2989 = vpop.f32.mrf.mxu0
      %v2990 = vadd.f32 0.0, %v2989
      %2991 = vmatmul.bf16.gmra.mxu0 %v2901
      %v2992 = vpop.f32.mrf.mxu0
      %v2993 = vadd.f32 0.0, %v2992
      %v2994 = vpop.f32.mrf.mxu0
      %v2995 = vadd.f32 0.0, %v2994
      %2996 = vmatmul.bf16.gmra.mxu0 %v2902
      %v2997 = vpop.f32.mrf.mxu0
      %v2998 = vadd.f32 0.0, %v2997
      %v2999 = vpop.f32.mrf.mxu0
      %v3000 = vadd.f32 0.0, %v2999
      %3001 = vmatmul.bf16.gmra.mxu0 %v2903
      %v3002 = vpop.f32.mrf.mxu0
      %v3003 = vadd.f32 0.0, %v3002
      %v3004 = vpop.f32.mrf.mxu0
      %v3005 = vadd.f32 0.0, %v3004
      %3006 = vmatmul.bf16.gmra.mxu0 %v2904
      %v3007 = vpop.f32.mrf.mxu0
      %v3008 = vadd.f32 0.0, %v3007
      %v3009 = vpop.f32.mrf.mxu0
      %v3010 = vadd.f32 0.0, %v3009
      %3011 = vmatmul.bf16.gmra.mxu0 %v2905
      %v3012 = vpop.f32.mrf.mxu0
      %v3013 = vadd.f32 0.0, %v3012
      %v3014 = vpop.f32.mrf.mxu0
      %v3015 = vadd.f32 0.0, %v3014
      %3016 = vdwg.mxu0
      %v3017 = vadd.f32 %v2782, %v2973
      %v3018 = vadd.f32 %v2784, %v2975
      %v3019 = vadd.f32 %v2787, %v2978
      %v3020 = vadd.f32 %v2789, %v2980
      %v3021 = vadd.f32 %v2792, %v2983
      %v3022 = vadd.f32 %v2794, %v2985
      %v3023 = vadd.f32 %v2797, %v2988
      %v3024 = vadd.f32 %v2799, %v2990
      %v3025 = vadd.f32 %v2802, %v2993
      %v3026 = vadd.f32 %v2804, %v2995
      %v3027 = vadd.f32 %v2807, %v2998
      %v3028 = vadd.f32 %v2809, %v3000
      %v3029 = vadd.f32 %v2812, %v3003
      %v3030 = vadd.f32 %v2814, %v3005
      %v3031 = vadd.f32 %v2817, %v3008
      %v3032 = vadd.f32 %v2819, %v3010
      %v3033 = vadd.f32 %v2822, %v3013
      %v3034 = vadd.f32 %v2824, %v3015
      %v3035 = vld [vmem:[#allocation4 + $0x28] sm:$0xc]
      %v3036 = vld [vmem:[#allocation4 + $0x2c] sm:$0xf]
      %v3037 = vld [vmem:[#allocation4 + $0x30] sm:$0xf]
      %v3038 = vld [vmem:[#allocation4 + $0x34] sm:$0xf]
      %v3039 = vld [vmem:[#allocation4 + $0x38] sm:$0xf]
      %v3040 = vld [vmem:[#allocation4 + $0x3c] sm:$0xf]
      %v3041 = vld [vmem:[#allocation4 + $0x40] sm:$0xf]
      %v3042 = vld [vmem:[#allocation4 + $0x44] sm:$0xf]
      %v3043 = vld [vmem:[#allocation4 + $0x48] sm:$0xf]
      %v3044 = vld [vmem:[#allocation4 + $0x4c] sm:$0xf]
      %v3045 = vld [vmem:[#allocation4 + $0x50] sm:$0xf]
      %v3046 = vld [vmem:[#allocation4 + $0x54] sm:$0xf]
      %v3047 = vld [vmem:[#allocation4 + $0x58] sm:$0xf]
      %v3048 = vld [vmem:[#allocation4 + $0x5c] sm:$0xf]
      %v3049 = vld [vmem:[#allocation4 + $0x60] sm:$0xf]
      %v3050 = vld [vmem:[#allocation4 + $0x64] sm:$0xf]
      %v3051 = vld [vmem:[#allocation4 + $0x68] sm:$0xf]
      %v3052 = vld [vmem:[#allocation4 + $0x6c] sm:$0xf]
      %v3053 = vld [vmem:[#allocation4 + $0x70] sm:$0x3]
      %s3054 = scalar_lea.vmem %s3, 192
      %v3055 = vld [vmem:[%s3054] sm:$0xf]
      %v3056 = vld [vmem:[%s3054 + $0x4] sm:$0xf]
      %v3057 = vld [vmem:[%s3054 + $0x8] sm:$0xf]
      %v3058 = vld [vmem:[%s3054 + $0xc] sm:$0xf]
      %v3059 = vld [vmem:[%s3054 + $0x10] sm:$0xf]
      %v3060 = vld [vmem:[%s3054 + $0x14] sm:$0xf]
      %v3061 = vld [vmem:[%s3054 + $0x18] sm:$0xf]
      %v3062 = vld [vmem:[%s3054 + $0x1c] sm:$0xf]
      %v3063 = vld [vmem:[%s3054 + $0x20] sm:$0xf]
      %v3064 = vld [vmem:[%s3054 + $0x24] sm:$0xf]
      %v3065 = vld [vmem:[%s3054 + $0x28] sm:$0xf]
      %v3066 = vld [vmem:[%s3054 + $0x2c] sm:$0xf]
      %v3067 = vld [vmem:[%s3054 + $0x30] sm:$0xf]
      %v3068 = vld [vmem:[%s3054 + $0x34] sm:$0xf]
      %v3069 = vld [vmem:[%s3054 + $0x38] sm:$0xf]
      %v3070 = vld [vmem:[%s3054 + $0x3c] sm:$0xf]
      %v3090 = vunpack.c.l.b16 %v3035
      %v3091 = vunpack.c.l.b16 %v3036
      %v3092 = vunpack.c.l.b16 %v3037
      %v3093 = vunpack.c.l.b16 %v3038
      %v3094 = vunpack.c.l.b16 %v3039
      %v3095 = vunpack.c.l.b16 %v3040
      %v3096 = vunpack.c.l.b16 %v3041
      %v3097 = vunpack.c.l.b16 %v3042
      %v3098 = vunpack.c.l.b16 %v3043
      %v3099 = vunpack.c.l.b16 %v3044
      %v3100 = vunpack.c.l.b16 %v3045
      %v3101 = vunpack.c.l.b16 %v3046
      %v3102 = vunpack.c.l.b16 %v3047
      %v3103 = vunpack.c.l.b16 %v3048
      %v3104 = vunpack.c.l.b16 %v3049
      %v3105 = vunpack.c.l.b16 %v3050
      %v3106 = vunpack.c.l.b16 %v3051
      %v3107 = vunpack.c.l.b16 %v3052
      %v3108 = vunpack.c.l.b16 %v3053
      %v3109 = vpack.c.b16 %v3091, %v3090
      %v3110 = vpack.c.b16 %v3093, %v3092
      %v3111 = vpack.c.b16 %v3095, %v3094
      %v3112 = vpack.c.b16 %v3097, %v3096
      %v3113 = vpack.c.b16 %v3099, %v3098
      %v3114 = vpack.c.b16 %v3101, %v3100
      %v3115 = vpack.c.b16 %v3103, %v3102
      %v3116 = vpack.c.b16 %v3105, %v3104
      %v3117 = vpack.c.b16 %v3107, %v3106
      %v3118 = vpack.c.b16 %v3108, %v3108
      %v3119 = vrot.slane %v3109, 2
      %v3120 = vrot.slane %v3110, 2
      %v3121 = vsel %vm2567, %v3119, %v3120
      %v3122 = vrot.slane %v3111, 2
      %v3123 = vsel %vm2567, %v3120, %v3122
      %v3124 = vrot.slane %v3112, 2
      %v3125 = vsel %vm2567, %v3122, %v3124
      %v3126 = vrot.slane %v3113, 2
      %v3127 = vsel %vm2567, %v3124, %v3126
      %v3128 = vrot.slane %v3114, 2
      %v3129 = vsel %vm2567, %v3126, %v3128
      %v3130 = vrot.slane %v3115, 2
      %v3131 = vsel %vm2567, %v3128, %v3130
      %v3132 = vrot.slane %v3116, 2
      %v3133 = vsel %vm2567, %v3130, %v3132
      %v3134 = vrot.slane %v3117, 2
      %v3135 = vsel %vm2567, %v3132, %v3134
      %v3136 = vrot.slane %v3118, 2
      %v3137 = vsel %vm2567, %v3134, %v3136
      %v3163 = vunpack.c.l.b16 %v3055
      %v3164 = vunpack.c.l.b16 %v3056
      %v3165 = vunpack.c.l.b16 %v3057
      %v3166 = vunpack.c.l.b16 %v3058
      %v3167 = vunpack.c.l.b16 %v3059
      %v3168 = vunpack.c.l.b16 %v3060
      %v3169 = vunpack.c.l.b16 %v3061
      %v3170 = vunpack.c.l.b16 %v3062
      %v3171 = vunpack.c.l.b16 %v3063
      %v3172 = vunpack.c.l.b16 %v3064
      %v3173 = vunpack.c.l.b16 %v3065
      %v3174 = vunpack.c.l.b16 %v3066
      %v3175 = vunpack.c.l.b16 %v3067
      %v3176 = vunpack.c.l.b16 %v3068
      %v3177 = vunpack.c.l.b16 %v3069
      %v3178 = vunpack.c.l.b16 %v3070
      %v3179 = vpack.c.b16 %v3164, %v3163
      %v3180 = vpack.c.b16 %v3166, %v3165
      %v3181 = vpack.c.b16 %v3168, %v3167
      %v3182 = vpack.c.b16 %v3170, %v3169
      %v3183 = vpack.c.b16 %v3172, %v3171
      %v3184 = vpack.c.b16 %v3174, %v3173
      %v3185 = vpack.c.b16 %v3176, %v3175
      %v3186 = vpack.c.b16 %v3178, %v3177
      %3195 = vmatpush.bf16.msra.mxu0 %v3186
      %3196 = vmatpush.bf16.msra.mxu0 %v3185
      %3197 = vmatpush.bf16.msra.mxu0 %v3184
      %3198 = vmatpush.bf16.msra.mxu0 %v3183
      %3199 = vmatpush.bf16.msra.mxu0 %v3182
      %3200 = vmatpush.bf16.msra.mxu0 %v3181
      %3201 = vmatpush.bf16.msra.mxu0 %v3180
      %3202 = vmatpush.bf16.msra.mxu0 %v3179
      %3203 = vmatmul.bf16.gmra.mxu0 %v3121
      %v3204 = vpop.f32.mrf.mxu0
      %v3205 = vadd.f32 0.0, %v3204
      %v3206 = vpop.f32.mrf.mxu0
      %v3207 = vadd.f32 0.0, %v3206
      %3208 = vmatmul.bf16.gmra.mxu0 %v3123
      %v3209 = vpop.f32.mrf.mxu0
      %v3210 = vadd.f32 0.0, %v3209
      %v3211 = vpop.f32.mrf.mxu0
      %v3212 = vadd.f32 0.0, %v3211
      %3213 = vmatmul.bf16.gmra.mxu0 %v3125
      %v3214 = vpop.f32.mrf.mxu0
      %v3215 = vadd.f32 0.0, %v3214
      %v3216 = vpop.f32.mrf.mxu0
      %v3217 = vadd.f32 0.0, %v3216
      %3218 = vmatmul.bf16.gmra.mxu0 %v3127
      %v3219 = vpop.f32.mrf.mxu0
      %v3220 = vadd.f32 0.0, %v3219
      %v3221 = vpop.f32.mrf.mxu0
      %v3222 = vadd.f32 0.0, %v3221
      %3223 = vmatmul.bf16.gmra.mxu0 %v3129
      %v3224 = vpop.f32.mrf.mxu0
      %v3225 = vadd.f32 0.0, %v3224
      %v3226 = vpop.f32.mrf.mxu0
      %v3227 = vadd.f32 0.0, %v3226
      %3228 = vmatmul.bf16.gmra.mxu0 %v3131
      %v3229 = vpop.f32.mrf.mxu0
      %v3230 = vadd.f32 0.0, %v3229
      %v3231 = vpop.f32.mrf.mxu0
      %v3232 = vadd.f32 0.0, %v3231
      %3233 = vmatmul.bf16.gmra.mxu0 %v3133
      %v3234 = vpop.f32.mrf.mxu0
      %v3235 = vadd.f32 0.0, %v3234
      %v3236 = vpop.f32.mrf.mxu0
      %v3237 = vadd.f32 0.0, %v3236
      %3238 = vmatmul.bf16.gmra.mxu0 %v3135
      %v3239 = vpop.f32.mrf.mxu0
      %v3240 = vadd.f32 0.0, %v3239
      %v3241 = vpop.f32.mrf.mxu0
      %v3242 = vadd.f32 0.0, %v3241
      %3243 = vmatmul.bf16.gmra.mxu0 %v3137
      %v3244 = vpop.f32.mrf.mxu0
      %v3245 = vadd.f32 0.0, %v3244
      %v3246 = vpop.f32.mrf.mxu0
      %v3247 = vadd.f32 0.0, %v3246
      %3248 = vdwg.mxu0
      %v3249 = vadd.f32 %v3017, %v3205
      %v3250 = vadd.f32 %v3018, %v3207
      %v3251 = vadd.f32 %v3019, %v3210
      %v3252 = vadd.f32 %v3020, %v3212
      %v3253 = vadd.f32 %v3021, %v3215
      %v3254 = vadd.f32 %v3022, %v3217
      %v3255 = vadd.f32 %v3023, %v3220
      %v3256 = vadd.f32 %v3024, %v3222
      %v3257 = vadd.f32 %v3025, %v3225
      %v3258 = vadd.f32 %v3026, %v3227
      %v3259 = vadd.f32 %v3027, %v3230
      %v3260 = vadd.f32 %v3028, %v3232
      %v3261 = vadd.f32 %v3029, %v3235
      %v3262 = vadd.f32 %v3030, %v3237
      %v3263 = vadd.f32 %v3031, %v3240
      %v3264 = vadd.f32 %v3032, %v3242
      %v3265 = vadd.f32 %v3033, %v3245
      %v3266 = vadd.f32 %v3034, %v3247
      %v3267 = vld [vmem:[#allocation4 + $0x38] sm:$0xf]
      %v3268 = vld [vmem:[#allocation4 + $0x3c] sm:$0xf]
      %v3269 = vld [vmem:[#allocation4 + $0x40] sm:$0xf]
      %v3270 = vld [vmem:[#allocation4 + $0x44] sm:$0xf]
      %v3271 = vld [vmem:[#allocation4 + $0x48] sm:$0xf]
      %v3272 = vld [vmem:[#allocation4 + $0x4c] sm:$0xf]
      %v3273 = vld [vmem:[#allocation4 + $0x50] sm:$0xf]
      %v3274 = vld [vmem:[#allocation4 + $0x54] sm:$0xf]
      %v3275 = vld [vmem:[#allocation4 + $0x58] sm:$0xf]
      %v3276 = vld [vmem:[#allocation4 + $0x5c] sm:$0xf]
      %v3277 = vld [vmem:[#allocation4 + $0x60] sm:$0xf]
      %v3278 = vld [vmem:[#allocation4 + $0x64] sm:$0xf]
      %v3279 = vld [vmem:[#allocation4 + $0x68] sm:$0xf]
      %v3280 = vld [vmem:[#allocation4 + $0x6c] sm:$0xf]
      %v3281 = vld [vmem:[#allocation4 + $0x70] sm:$0xf]
      %v3282 = vld [vmem:[#allocation4 + $0x74] sm:$0xf]
      %v3283 = vld [vmem:[#allocation4 + $0x78] sm:$0xf]
      %v3284 = vld [vmem:[#allocation4 + $0x7c] sm:$0xf]
      %s3285 = scalar_lea.vmem %s3, 256
      %v3286 = vld [vmem:[%s3285] sm:$0xf]
      %v3287 = vld [vmem:[%s3285 + $0x4] sm:$0xf]
      %v3288 = vld [vmem:[%s3285 + $0x8] sm:$0xf]
      %v3289 = vld [vmem:[%s3285 + $0xc] sm:$0xf]
      %v3290 = vld [vmem:[%s3285 + $0x10] sm:$0xf]
      %v3291 = vld [vmem:[%s3285 + $0x14] sm:$0xf]
      %v3292 = vld [vmem:[%s3285 + $0x18] sm:$0xf]
      %v3293 = vld [vmem:[%s3285 + $0x1c] sm:$0xf]
      %v3294 = vld [vmem:[%s3285 + $0x20] sm:$0xf]
      %v3295 = vld [vmem:[%s3285 + $0x24] sm:$0xf]
      %v3296 = vld [vmem:[%s3285 + $0x28] sm:$0xf]
      %v3297 = vld [vmem:[%s3285 + $0x2c] sm:$0xf]
      %v3298 = vld [vmem:[%s3285 + $0x30] sm:$0xf]
      %v3299 = vld [vmem:[%s3285 + $0x34] sm:$0xf]
      %v3300 = vld [vmem:[%s3285 + $0x38] sm:$0xf]
      %v3301 = vld [vmem:[%s3285 + $0x3c] sm:$0xf]
      %v3320 = vunpack.c.l.b16 %v3267
      %v3321 = vunpack.c.l.b16 %v3268
      %v3322 = vunpack.c.l.b16 %v3269
      %v3323 = vunpack.c.l.b16 %v3270
      %v3324 = vunpack.c.l.b16 %v3271
      %v3325 = vunpack.c.l.b16 %v3272
      %v3326 = vunpack.c.l.b16 %v3273
      %v3327 = vunpack.c.l.b16 %v3274
      %v3328 = vunpack.c.l.b16 %v3275
      %v3329 = vunpack.c.l.b16 %v3276
      %v3330 = vunpack.c.l.b16 %v3277
      %v3331 = vunpack.c.l.b16 %v3278
      %v3332 = vunpack.c.l.b16 %v3279
      %v3333 = vunpack.c.l.b16 %v3280
      %v3334 = vunpack.c.l.b16 %v3281
      %v3335 = vunpack.c.l.b16 %v3282
      %v3336 = vunpack.c.l.b16 %v3283
      %v3337 = vunpack.c.l.b16 %v3284
      %v3338 = vpack.c.b16 %v3321, %v3320
      %v3339 = vpack.c.b16 %v3323, %v3322
      %v3340 = vpack.c.b16 %v3325, %v3324
      %v3341 = vpack.c.b16 %v3327, %v3326
      %v3342 = vpack.c.b16 %v3329, %v3328
      %v3343 = vpack.c.b16 %v3331, %v3330
      %v3344 = vpack.c.b16 %v3333, %v3332
      %v3345 = vpack.c.b16 %v3335, %v3334
      %v3346 = vpack.c.b16 %v3337, %v3336
      %v3372 = vunpack.c.l.b16 %v3286
      %v3373 = vunpack.c.l.b16 %v3287
      %v3374 = vunpack.c.l.b16 %v3288
      %v3375 = vunpack.c.l.b16 %v3289
      %v3376 = vunpack.c.l.b16 %v3290
      %v3377 = vunpack.c.l.b16 %v3291
      %v3378 = vunpack.c.l.b16 %v3292
      %v3379 = vunpack.c.l.b16 %v3293
      %v3380 = vunpack.c.l.b16 %v3294
      %v3381 = vunpack.c.l.b16 %v3295
      %v3382 = vunpack.c.l.b16 %v3296
      %v3383 = vunpack.c.l.b16 %v3297
      %v3384 = vunpack.c.l.b16 %v3298
      %v3385 = vunpack.c.l.b16 %v3299
      %v3386 = vunpack.c.l.b16 %v3300
      %v3387 = vunpack.c.l.b16 %v3301
      %v3388 = vpack.c.b16 %v3373, %v3372
      %v3389 = vpack.c.b16 %v3375, %v3374
      %v3390 = vpack.c.b16 %v3377, %v3376
      %v3391 = vpack.c.b16 %v3379, %v3378
      %v3392 = vpack.c.b16 %v3381, %v3380
      %v3393 = vpack.c.b16 %v3383, %v3382
      %v3394 = vpack.c.b16 %v3385, %v3384
      %v3395 = vpack.c.b16 %v3387, %v3386
      %3404 = vmatpush.bf16.msra.mxu0 %v3395
      %3405 = vmatpush.bf16.msra.mxu0 %v3394
      %3406 = vmatpush.bf16.msra.mxu0 %v3393
      %3407 = vmatpush.bf16.msra.mxu0 %v3392
      %3408 = vmatpush.bf16.msra.mxu0 %v3391
      %3409 = vmatpush.bf16.msra.mxu0 %v3390
      %3410 = vmatpush.bf16.msra.mxu0 %v3389
      %3411 = vmatpush.bf16.msra.mxu0 %v3388
      %3412 = vmatmul.bf16.gmra.mxu0 %v3338
      %v3413 = vpop.f32.mrf.mxu0
      %v3414 = vadd.f32 0.0, %v3413
      %v3415 = vpop.f32.mrf.mxu0
      %v3416 = vadd.f32 0.0, %v3415
      %3417 = vmatmul.bf16.gmra.mxu0 %v3339
      %v3418 = vpop.f32.mrf.mxu0
      %v3419 = vadd.f32 0.0, %v3418
      %v3420 = vpop.f32.mrf.mxu0
      %v3421 = vadd.f32 0.0, %v3420
      %3422 = vmatmul.bf16.gmra.mxu0 %v3340
      %v3423 = vpop.f32.mrf.mxu0
      %v3424 = vadd.f32 0.0, %v3423
      %v3425 = vpop.f32.mrf.mxu0
      %v3426 = vadd.f32 0.0, %v3425
      %3427 = vmatmul.bf16.gmra.mxu0 %v3341
      %v3428 = vpop.f32.mrf.mxu0
      %v3429 = vadd.f32 0.0, %v3428
      %v3430 = vpop.f32.mrf.mxu0
      %v3431 = vadd.f32 0.0, %v3430
      %3432 = vmatmul.bf16.gmra.mxu0 %v3342
      %v3433 = vpop.f32.mrf.mxu0
      %v3434 = vadd.f32 0.0, %v3433
      %v3435 = vpop.f32.mrf.mxu0
      %v3436 = vadd.f32 0.0, %v3435
      %3437 = vmatmul.bf16.gmra.mxu0 %v3343
      %v3438 = vpop.f32.mrf.mxu0
      %v3439 = vadd.f32 0.0, %v3438
      %v3440 = vpop.f32.mrf.mxu0
      %v3441 = vadd.f32 0.0, %v3440
      %3442 = vmatmul.bf16.gmra.mxu0 %v3344
      %v3443 = vpop.f32.mrf.mxu0
      %v3444 = vadd.f32 0.0, %v3443
      %v3445 = vpop.f32.mrf.mxu0
      %v3446 = vadd.f32 0.0, %v3445
      %3447 = vmatmul.bf16.gmra.mxu0 %v3345
      %v3448 = vpop.f32.mrf.mxu0
      %v3449 = vadd.f32 0.0, %v3448
      %v3450 = vpop.f32.mrf.mxu0
      %v3451 = vadd.f32 0.0, %v3450
      %3452 = vmatmul.bf16.gmra.mxu0 %v3346
      %v3453 = vpop.f32.mrf.mxu0
      %v3454 = vadd.f32 0.0, %v3453
      %v3455 = vpop.f32.mrf.mxu0
      %v3456 = vadd.f32 0.0, %v3455
      %3457 = vdwg.mxu0
      %v3458 = vadd.f32 %v3249, %v3414
      %v3459 = vadd.f32 %v3250, %v3416
      %v3460 = vadd.f32 %v3251, %v3419
      %v3461 = vadd.f32 %v3252, %v3421
      %v3462 = vadd.f32 %v3253, %v3424
      %v3463 = vadd.f32 %v3254, %v3426
      %v3464 = vadd.f32 %v3255, %v3429
      %v3465 = vadd.f32 %v3256, %v3431
      %v3466 = vadd.f32 %v3257, %v3434
      %v3467 = vadd.f32 %v3258, %v3436
      %v3468 = vadd.f32 %v3259, %v3439
      %v3469 = vadd.f32 %v3260, %v3441
      %v3470 = vadd.f32 %v3261, %v3444
      %v3471 = vadd.f32 %v3262, %v3446
      %v3472 = vadd.f32 %v3263, %v3449
      %v3473 = vadd.f32 %v3264, %v3451
      %v3474 = vadd.f32 %v3265, %v3454
      %v3475 = vadd.f32 %v3266, %v3456
      %v3476 = vld [vmem:[#allocation4] sm:$0xc]
      %v3477 = vld [vmem:[#allocation4 + $0x4] sm:$0xf]
      %v3478 = vld [vmem:[#allocation4 + $0x8] sm:$0xf]
      %v3479 = vld [vmem:[#allocation4 + $0xc] sm:$0xf]
      %v3480 = vld [vmem:[#allocation4 + $0x10] sm:$0xf]
      %v3481 = vld [vmem:[#allocation4 + $0x14] sm:$0xf]
      %v3482 = vld [vmem:[#allocation4 + $0x18] sm:$0xf]
      %v3483 = vld [vmem:[#allocation4 + $0x1c] sm:$0xf]
      %v3484 = vld [vmem:[#allocation4 + $0x20] sm:$0xf]
      %v3485 = vld [vmem:[#allocation4 + $0x24] sm:$0xf]
      %v3486 = vld [vmem:[#allocation4 + $0x28] sm:$0xf]
      %v3487 = vld [vmem:[#allocation4 + $0x2c] sm:$0xf]
      %v3488 = vld [vmem:[#allocation4 + $0x30] sm:$0xf]
      %v3489 = vld [vmem:[#allocation4 + $0x34] sm:$0xf]
      %v3490 = vld [vmem:[#allocation4 + $0x38] sm:$0xf]
      %v3491 = vld [vmem:[#allocation4 + $0x3c] sm:$0xf]
      %v3492 = vld [vmem:[#allocation4 + $0x40] sm:$0xf]
      %v3493 = vld [vmem:[#allocation4 + $0x44] sm:$0xf]
      %v3494 = vld [vmem:[#allocation4 + $0x48] sm:$0x3]
      %s3495 = scalar_lea.vmem %s3, 320
      %v3496 = vld [vmem:[%s3495] sm:$0xf]
      %v3497 = vld [vmem:[%s3495 + $0x4] sm:$0xf]
      %v3498 = vld [vmem:[%s3495 + $0x8] sm:$0xf]
      %v3499 = vld [vmem:[%s3495 + $0xc] sm:$0xf]
      %v3500 = vld [vmem:[%s3495 + $0x10] sm:$0xf]
      %v3501 = vld [vmem:[%s3495 + $0x14] sm:$0xf]
      %v3502 = vld [vmem:[%s3495 + $0x18] sm:$0xf]
      %v3503 = vld [vmem:[%s3495 + $0x1c] sm:$0xf]
      %v3504 = vld [vmem:[%s3495 + $0x20] sm:$0xf]
      %v3505 = vld [vmem:[%s3495 + $0x24] sm:$0xf]
      %v3506 = vld [vmem:[%s3495 + $0x28] sm:$0xf]
      %v3507 = vld [vmem:[%s3495 + $0x2c] sm:$0xf]
      %v3508 = vld [vmem:[%s3495 + $0x30] sm:$0xf]
      %v3509 = vld [vmem:[%s3495 + $0x34] sm:$0xf]
      %v3510 = vld [vmem:[%s3495 + $0x38] sm:$0xf]
      %v3511 = vld [vmem:[%s3495 + $0x3c] sm:$0xf]
      %v3531 = vunpack.c.l.b16 %v3476
      %v3532 = vunpack.c.l.b16 %v3477
      %v3533 = vunpack.c.l.b16 %v3478
      %v3534 = vunpack.c.l.b16 %v3479
      %v3535 = vunpack.c.l.b16 %v3480
      %v3536 = vunpack.c.l.b16 %v3481
      %v3537 = vunpack.c.l.b16 %v3482
      %v3538 = vunpack.c.l.b16 %v3483
      %v3539 = vunpack.c.l.b16 %v3484
      %v3540 = vunpack.c.l.b16 %v3485
      %v3541 = vunpack.c.l.b16 %v3486
      %v3542 = vunpack.c.l.b16 %v3487
      %v3543 = vunpack.c.l.b16 %v3488
      %v3544 = vunpack.c.l.b16 %v3489
      %v3545 = vunpack.c.l.b16 %v3490
      %v3546 = vunpack.c.l.b16 %v3491
      %v3547 = vunpack.c.l.b16 %v3492
      %v3548 = vunpack.c.l.b16 %v3493
      %v3549 = vunpack.c.l.b16 %v3494
      %v3550 = vpack.c.b16 %v3532, %v3531
      %v3551 = vpack.c.b16 %v3534, %v3533
      %v3552 = vpack.c.b16 %v3536, %v3535
      %v3553 = vpack.c.b16 %v3538, %v3537
      %v3554 = vpack.c.b16 %v3540, %v3539
      %v3555 = vpack.c.b16 %v3542, %v3541
      %v3556 = vpack.c.b16 %v3544, %v3543
      %v3557 = vpack.c.b16 %v3546, %v3545
      %v3558 = vpack.c.b16 %v3548, %v3547
      %v3559 = vpack.c.b16 %v3549, %v3549
      %v3560 = vrot.slane %v3550, 2
      %v3561 = vrot.slane %v3551, 2
      %v3562 = vsel %vm2567, %v3560, %v3561
      %v3563 = vrot.slane %v3552, 2
      %v3564 = vsel %vm2567, %v3561, %v3563
      %v3565 = vrot.slane %v3553, 2
      %v3566 = vsel %vm2567, %v3563, %v3565
      %v3567 = vrot.slane %v3554, 2
      %v3568 = vsel %vm2567, %v3565, %v3567
      %v3569 = vrot.slane %v3555, 2
      %v3570 = vsel %vm2567, %v3567, %v3569
      %v3571 = vrot.slane %v3556, 2
      %v3572 = vsel %vm2567, %v3569, %v3571
      %v3573 = vrot.slane %v3557, 2
      %v3574 = vsel %vm2567, %v3571, %v3573
      %v3575 = vrot.slane %v3558, 2
      %v3576 = vsel %vm2567, %v3573, %v3575
      %v3577 = vrot.slane %v3559, 2
      %v3578 = vsel %vm2567, %v3575, %v3577
      %v3604 = vunpack.c.l.b16 %v3496
      %v3605 = vunpack.c.l.b16 %v3497
      %v3606 = vunpack.c.l.b16 %v3498
      %v3607 = vunpack.c.l.b16 %v3499
      %v3608 = vunpack.c.l.b16 %v3500
      %v3609 = vunpack.c.l.b16 %v3501
      %v3610 = vunpack.c.l.b16 %v3502
      %v3611 = vunpack.c.l.b16 %v3503
      %v3612 = vunpack.c.l.b16 %v3504
      %v3613 = vunpack.c.l.b16 %v3505
      %v3614 = vunpack.c.l.b16 %v3506
      %v3615 = vunpack.c.l.b16 %v3507
      %v3616 = vunpack.c.l.b16 %v3508
      %v3617 = vunpack.c.l.b16 %v3509
      %v3618 = vunpack.c.l.b16 %v3510
      %v3619 = vunpack.c.l.b16 %v3511
      %v3620 = vpack.c.b16 %v3605, %v3604
      %v3621 = vpack.c.b16 %v3607, %v3606
      %v3622 = vpack.c.b16 %v3609, %v3608
      %v3623 = vpack.c.b16 %v3611, %v3610
      %v3624 = vpack.c.b16 %v3613, %v3612
      %v3625 = vpack.c.b16 %v3615, %v3614
      %v3626 = vpack.c.b16 %v3617, %v3616
      %v3627 = vpack.c.b16 %v3619, %v3618
      %3636 = vmatpush.bf16.msra.mxu0 %v3627
      %3637 = vmatpush.bf16.msra.mxu0 %v3626
      %3638 = vmatpush.bf16.msra.mxu0 %v3625
      %3639 = vmatpush.bf16.msra.mxu0 %v3624
      %3640 = vmatpush.bf16.msra.mxu0 %v3623
      %3641 = vmatpush.bf16.msra.mxu0 %v3622
      %3642 = vmatpush.bf16.msra.mxu0 %v3621
      %3643 = vmatpush.bf16.msra.mxu0 %v3620
      %3644 = vmatmul.bf16.gmra.mxu0 %v3562
      %v3645 = vpop.f32.mrf.mxu0
      %v3646 = vadd.f32 0.0, %v3645
      %v3647 = vpop.f32.mrf.mxu0
      %v3648 = vadd.f32 0.0, %v3647
      %3649 = vmatmul.bf16.gmra.mxu0 %v3564
      %v3650 = vpop.f32.mrf.mxu0
      %v3651 = vadd.f32 0.0, %v3650
      %v3652 = vpop.f32.mrf.mxu0
      %v3653 = vadd.f32 0.0, %v3652
      %3654 = vmatmul.bf16.gmra.mxu0 %v3566
      %v3655 = vpop.f32.mrf.mxu0
      %v3656 = vadd.f32 0.0, %v3655
      %v3657 = vpop.f32.mrf.mxu0
      %v3658 = vadd.f32 0.0, %v3657
      %3659 = vmatmul.bf16.gmra.mxu0 %v3568
      %v3660 = vpop.f32.mrf.mxu0
      %v3661 = vadd.f32 0.0, %v3660
      %v3662 = vpop.f32.mrf.mxu0
      %v3663 = vadd.f32 0.0, %v3662
      %3664 = vmatmul.bf16.gmra.mxu0 %v3570
      %v3665 = vpop.f32.mrf.mxu0
      %v3666 = vadd.f32 0.0, %v3665
      %v3667 = vpop.f32.mrf.mxu0
      %v3668 = vadd.f32 0.0, %v3667
      %3669 = vmatmul.bf16.gmra.mxu0 %v3572
      %v3670 = vpop.f32.mrf.mxu0
      %v3671 = vadd.f32 0.0, %v3670
      %v3672 = vpop.f32.mrf.mxu0
      %v3673 = vadd.f32 0.0, %v3672
      %3674 = vmatmul.bf16.gmra.mxu0 %v3574
      %v3675 = vpop.f32.mrf.mxu0
      %v3676 = vadd.f32 0.0, %v3675
      %v3677 = vpop.f32.mrf.mxu0
      %v3678 = vadd.f32 0.0, %v3677
      %3679 = vmatmul.bf16.gmra.mxu0 %v3576
      %v3680 = vpop.f32.mrf.mxu0
      %v3681 = vadd.f32 0.0, %v3680
      %v3682 = vpop.f32.mrf.mxu0
      %v3683 = vadd.f32 0.0, %v3682
      %3684 = vmatmul.bf16.gmra.mxu0 %v3578
      %v3685 = vpop.f32.mrf.mxu0
      %v3686 = vadd.f32 0.0, %v3685
      %v3687 = vpop.f32.mrf.mxu0
      %v3688 = vadd.f32 0.0, %v3687
      %3689 = vdwg.mxu0
      %v3690 = vadd.f32 %v3458, %v3646
      %v3691 = vadd.f32 %v3459, %v3648
      %v3692 = vadd.f32 %v3460, %v3651
      %v3693 = vadd.f32 %v3461, %v3653
      %v3694 = vadd.f32 %v3462, %v3656
      %v3695 = vadd.f32 %v3463, %v3658
      %v3696 = vadd.f32 %v3464, %v3661
      %v3697 = vadd.f32 %v3465, %v3663
      %v3698 = vadd.f32 %v3466, %v3666
      %v3699 = vadd.f32 %v3467, %v3668
      %v3700 = vadd.f32 %v3468, %v3671
      %v3701 = vadd.f32 %v3469, %v3673
      %v3702 = vadd.f32 %v3470, %v3676
      %v3703 = vadd.f32 %v3471, %v3678
      %v3704 = vadd.f32 %v3472, %v3681
      %v3705 = vadd.f32 %v3473, %v3683
      %v3706 = vadd.f32 %v3474, %v3686
      %v3707 = vadd.f32 %v3475, %v3688
      %v3708 = vld [vmem:[#allocation4 + $0x54] sm:$0xf]
      %s3709 = scalar_lea.vmem %s3, 384
      %v3710 = vld [vmem:[%s3709] sm:$0xf]
      %v3711 = vld [vmem:[%s3709 + $0x4] sm:$0xf]
      %v3712 = vld [vmem:[%s3709 + $0x8] sm:$0xf]
      %v3713 = vld [vmem:[%s3709 + $0xc] sm:$0xf]
      %v3714 = vld [vmem:[%s3709 + $0x10] sm:$0xf]
      %v3715 = vld [vmem:[%s3709 + $0x14] sm:$0xf]
      %v3716 = vld [vmem:[%s3709 + $0x18] sm:$0xf]
      %v3717 = vld [vmem:[%s3709 + $0x1c] sm:$0xf]
      %v3718 = vld [vmem:[%s3709 + $0x20] sm:$0xf]
      %v3719 = vld [vmem:[%s3709 + $0x24] sm:$0xf]
      %v3720 = vld [vmem:[%s3709 + $0x28] sm:$0xf]
      %v3721 = vld [vmem:[%s3709 + $0x2c] sm:$0xf]
      %v3722 = vld [vmem:[%s3709 + $0x30] sm:$0xf]
      %v3723 = vld [vmem:[%s3709 + $0x34] sm:$0xf]
      %v3724 = vld [vmem:[%s3709 + $0x38] sm:$0xf]
      %v3725 = vld [vmem:[%s3709 + $0x3c] sm:$0xf]
      %v3727 = vunpack.c.l.b16 %v3708
      %v3728 = vpack.c.b16 %v2554, %v2553
      %v3729 = vpack.c.b16 %v3727, %v2555
      %v3748 = vunpack.c.l.b16 %v3710
      %v3749 = vunpack.c.l.b16 %v3711
      %v3750 = vunpack.c.l.b16 %v3712
      %v3751 = vunpack.c.l.b16 %v3713
      %v3752 = vunpack.c.l.b16 %v3714
      %v3753 = vunpack.c.l.b16 %v3715
      %v3754 = vunpack.c.l.b16 %v3716
      %v3755 = vunpack.c.l.b16 %v3717
      %v3756 = vunpack.c.l.b16 %v3718
      %v3757 = vunpack.c.l.b16 %v3719
      %v3758 = vunpack.c.l.b16 %v3720
      %v3759 = vunpack.c.l.b16 %v3721
      %v3760 = vunpack.c.l.b16 %v3722
      %v3761 = vunpack.c.l.b16 %v3723
      %v3762 = vunpack.c.l.b16 %v3724
      %v3763 = vunpack.c.l.b16 %v3725
      %v3764 = vpack.c.b16 %v3749, %v3748
      %v3765 = vpack.c.b16 %v3751, %v3750
      %v3766 = vpack.c.b16 %v3753, %v3752
      %v3767 = vpack.c.b16 %v3755, %v3754
      %v3768 = vpack.c.b16 %v3757, %v3756
      %v3769 = vpack.c.b16 %v3759, %v3758
      %v3770 = vpack.c.b16 %v3761, %v3760
      %v3771 = vpack.c.b16 %v3763, %v3762
      %3780 = vmatpush.bf16.msra.mxu0 %v3771
      %3781 = vmatpush.bf16.msra.mxu0 %v3770
      %3782 = vmatpush.bf16.msra.mxu0 %v3769
      %3783 = vmatpush.bf16.msra.mxu0 %v3768
      %3784 = vmatpush.bf16.msra.mxu0 %v3767
      %3785 = vmatpush.bf16.msra.mxu0 %v3766
      %3786 = vmatpush.bf16.msra.mxu0 %v3765
      %3787 = vmatpush.bf16.msra.mxu0 %v3764
      %3788 = vmatmul.bf16.gmra.mxu0 %v2708
      %v3789 = vpop.f32.mrf.mxu0
      %v3790 = vadd.f32 0.0, %v3789
      %v3791 = vpop.f32.mrf.mxu0
      %v3792 = vadd.f32 0.0, %v3791
      %3793 = vmatmul.bf16.gmra.mxu0 %v2709
      %v3794 = vpop.f32.mrf.mxu0
      %v3795 = vadd.f32 0.0, %v3794
      %v3796 = vpop.f32.mrf.mxu0
      %v3797 = vadd.f32 0.0, %v3796
      %3798 = vmatmul.bf16.gmra.mxu0 %v2710
      %v3799 = vpop.f32.mrf.mxu0
      %v3800 = vadd.f32 0.0, %v3799
      %v3801 = vpop.f32.mrf.mxu0
      %v3802 = vadd.f32 0.0, %v3801
      %3803 = vmatmul.bf16.gmra.mxu0 %v2711
      %v3804 = vpop.f32.mrf.mxu0
      %v3805 = vadd.f32 0.0, %v3804
      %v3806 = vpop.f32.mrf.mxu0
      %v3807 = vadd.f32 0.0, %v3806
      %3808 = vmatmul.bf16.gmra.mxu0 %v2712
      %v3809 = vpop.f32.mrf.mxu0
      %v3810 = vadd.f32 0.0, %v3809
      %v3811 = vpop.f32.mrf.mxu0
      %v3812 = vadd.f32 0.0, %v3811
      %3813 = vmatmul.bf16.gmra.mxu0 %v2713
      %v3814 = vpop.f32.mrf.mxu0
      %v3815 = vadd.f32 0.0, %v3814
      %v3816 = vpop.f32.mrf.mxu0
      %v3817 = vadd.f32 0.0, %v3816
      %3818 = vmatmul.bf16.gmra.mxu0 %v2714
      %v3819 = vpop.f32.mrf.mxu0
      %v3820 = vadd.f32 0.0, %v3819
      %v3821 = vpop.f32.mrf.mxu0
      %v3822 = vadd.f32 0.0, %v3821
      %3823 = vmatmul.bf16.gmra.mxu0 %v3728
      %v3824 = vpop.f32.mrf.mxu0
      %v3825 = vadd.f32 0.0, %v3824
      %v3826 = vpop.f32.mrf.mxu0
      %v3827 = vadd.f32 0.0, %v3826
      %3828 = vmatmul.bf16.gmra.mxu0 %v3729
      %v3829 = vpop.f32.mrf.mxu0
      %v3830 = vadd.f32 0.0, %v3829
      %v3831 = vpop.f32.mrf.mxu0
      %v3832 = vadd.f32 0.0, %v3831
      %3833 = vdwg.mxu0
      %v3834 = vadd.f32 %v3690, %v3790
      %v3835 = vadd.f32 %v3691, %v3792
      %v3836 = vadd.f32 %v3692, %v3795
      %v3837 = vadd.f32 %v3693, %v3797
      %v3838 = vadd.f32 %v3694, %v3800
      %v3839 = vadd.f32 %v3695, %v3802
      %v3840 = vadd.f32 %v3696, %v3805
      %v3841 = vadd.f32 %v3697, %v3807
      %v3842 = vadd.f32 %v3698, %v3810
      %v3843 = vadd.f32 %v3699, %v3812
      %v3844 = vadd.f32 %v3700, %v3815
      %v3845 = vadd.f32 %v3701, %v3817
      %v3846 = vadd.f32 %v3702, %v3820
      %v3847 = vadd.f32 %v3703, %v3822
      %v3848 = vadd.f32 %v3704, %v3825
      %v3849 = vadd.f32 %v3705, %v3827
      %v3850 = vadd.f32 %v3706, %v3830
      %v3851 = vadd.f32 %v3707, %v3832
      %v3852 = vld [vmem:[#allocation4 + $0x1c] sm:$0xc]
      %v3853 = vld [vmem:[#allocation4 + $0x20] sm:$0xf]
      %v3854 = vld [vmem:[#allocation4 + $0x24] sm:$0xf]
      %v3855 = vld [vmem:[#allocation4 + $0x28] sm:$0xf]
      %v3856 = vld [vmem:[#allocation4 + $0x2c] sm:$0xf]
      %v3857 = vld [vmem:[#allocation4 + $0x30] sm:$0xf]
      %v3858 = vld [vmem:[#allocation4 + $0x34] sm:$0xf]
      %v3859 = vld [vmem:[#allocation4 + $0x38] sm:$0xf]
      %v3860 = vld [vmem:[#allocation4 + $0x3c] sm:$0xf]
      %v3861 = vld [vmem:[#allocation4 + $0x40] sm:$0xf]
      %v3862 = vld [vmem:[#allocation4 + $0x44] sm:$0xf]
      %v3863 = vld [vmem:[#allocation4 + $0x48] sm:$0xf]
      %v3864 = vld [vmem:[#allocation4 + $0x4c] sm:$0xf]
      %v3865 = vld [vmem:[#allocation4 + $0x50] sm:$0xf]
      %v3866 = vld [vmem:[#allocation4 + $0x54] sm:$0xf]
      %v3867 = vld [vmem:[#allocation4 + $0x58] sm:$0xf]
      %v3868 = vld [vmem:[#allocation4 + $0x5c] sm:$0xf]
      %v3869 = vld [vmem:[#allocation4 + $0x60] sm:$0xf]
      %v3870 = vld [vmem:[#allocation4 + $0x64] sm:$0x3]
      %s3871 = scalar_lea.vmem %s3, 448
      %v3872 = vld [vmem:[%s3871] sm:$0xf]
      %v3873 = vld [vmem:[%s3871 + $0x4] sm:$0xf]
      %v3874 = vld [vmem:[%s3871 + $0x8] sm:$0xf]
      %v3875 = vld [vmem:[%s3871 + $0xc] sm:$0xf]
      %v3876 = vld [vmem:[%s3871 + $0x10] sm:$0xf]
      %v3877 = vld [vmem:[%s3871 + $0x14] sm:$0xf]
      %v3878 = vld [vmem:[%s3871 + $0x18] sm:$0xf]
      %v3879 = vld [vmem:[%s3871 + $0x1c] sm:$0xf]
      %v3880 = vld [vmem:[%s3871 + $0x20] sm:$0xf]
      %v3881 = vld [vmem:[%s3871 + $0x24] sm:$0xf]
      %v3882 = vld [vmem:[%s3871 + $0x28] sm:$0xf]
      %v3883 = vld [vmem:[%s3871 + $0x2c] sm:$0xf]
      %v3884 = vld [vmem:[%s3871 + $0x30] sm:$0xf]
      %v3885 = vld [vmem:[%s3871 + $0x34] sm:$0xf]
      %v3886 = vld [vmem:[%s3871 + $0x38] sm:$0xf]
      %v3887 = vld [vmem:[%s3871 + $0x3c] sm:$0xf]
      %v3907 = vunpack.c.l.b16 %v3852
      %v3908 = vunpack.c.l.b16 %v3853
      %v3909 = vunpack.c.l.b16 %v3854
      %v3910 = vunpack.c.l.b16 %v3855
      %v3911 = vunpack.c.l.b16 %v3856
      %v3912 = vunpack.c.l.b16 %v3857
      %v3913 = vunpack.c.l.b16 %v3858
      %v3914 = vunpack.c.l.b16 %v3859
      %v3915 = vunpack.c.l.b16 %v3860
      %v3916 = vunpack.c.l.b16 %v3861
      %v3917 = vunpack.c.l.b16 %v3862
      %v3918 = vunpack.c.l.b16 %v3863
      %v3919 = vunpack.c.l.b16 %v3864
      %v3920 = vunpack.c.l.b16 %v3865
      %v3921 = vunpack.c.l.b16 %v3866
      %v3922 = vunpack.c.l.b16 %v3867
      %v3923 = vunpack.c.l.b16 %v3868
      %v3924 = vunpack.c.l.b16 %v3869
      %v3925 = vunpack.c.l.b16 %v3870
      %v3926 = vpack.c.b16 %v3908, %v3907
      %v3927 = vpack.c.b16 %v3910, %v3909
      %v3928 = vpack.c.b16 %v3912, %v3911
      %v3929 = vpack.c.b16 %v3914, %v3913
      %v3930 = vpack.c.b16 %v3916, %v3915
      %v3931 = vpack.c.b16 %v3918, %v3917
      %v3932 = vpack.c.b16 %v3920, %v3919
      %v3933 = vpack.c.b16 %v3922, %v3921
      %v3934 = vpack.c.b16 %v3924, %v3923
      %v3935 = vpack.c.b16 %v3925, %v3925
      %v3936 = vrot.slane %v3926, 2
      %v3937 = vrot.slane %v3927, 2
      %v3938 = vsel %vm2567, %v3936, %v3937
      %v3939 = vrot.slane %v3928, 2
      %v3940 = vsel %vm2567, %v3937, %v3939
      %v3941 = vrot.slane %v3929, 2
      %v3942 = vsel %vm2567, %v3939, %v3941
      %v3943 = vrot.slane %v3930, 2
      %v3944 = vsel %vm2567, %v3941, %v3943
      %v3945 = vrot.slane %v3931, 2
      %v3946 = vsel %vm2567, %v3943, %v3945
      %v3947 = vrot.slane %v3932, 2
      %v3948 = vsel %vm2567, %v3945, %v3947
      %v3949 = vrot.slane %v3933, 2
      %v3950 = vsel %vm2567, %v3947, %v3949
      %v3951 = vrot.slane %v3934, 2
      %v3952 = vsel %vm2567, %v3949, %v3951
      %v3953 = vrot.slane %v3935, 2
      %v3954 = vsel %vm2567, %v3951, %v3953
      %v3980 = vunpack.c.l.b16 %v3872
      %v3981 = vunpack.c.l.b16 %v3873
      %v3982 = vunpack.c.l.b16 %v3874
      %v3983 = vunpack.c.l.b16 %v3875
      %v3984 = vunpack.c.l.b16 %v3876
      %v3985 = vunpack.c.l.b16 %v3877
      %v3986 = vunpack.c.l.b16 %v3878
      %v3987 = vunpack.c.l.b16 %v3879
      %v3988 = vunpack.c.l.b16 %v3880
      %v3989 = vunpack.c.l.b16 %v3881
      %v3990 = vunpack.c.l.b16 %v3882
      %v3991 = vunpack.c.l.b16 %v3883
      %v3992 = vunpack.c.l.b16 %v3884
      %v3993 = vunpack.c.l.b16 %v3885
      %v3994 = vunpack.c.l.b16 %v3886
      %v3995 = vunpack.c.l.b16 %v3887
      %v3996 = vpack.c.b16 %v3981, %v3980
      %v3997 = vpack.c.b16 %v3983, %v3982
      %v3998 = vpack.c.b16 %v3985, %v3984
      %v3999 = vpack.c.b16 %v3987, %v3986
      %v4000 = vpack.c.b16 %v3989, %v3988
      %v4001 = vpack.c.b16 %v3991, %v3990
      %v4002 = vpack.c.b16 %v3993, %v3992
      %v4003 = vpack.c.b16 %v3995, %v3994
      %4012 = vmatpush.bf16.msra.mxu0 %v4003
      %4013 = vmatpush.bf16.msra.mxu0 %v4002
      %4014 = vmatpush.bf16.msra.mxu0 %v4001
      %4015 = vmatpush.bf16.msra.mxu0 %v4000
      %4016 = vmatpush.bf16.msra.mxu0 %v3999
      %4017 = vmatpush.bf16.msra.mxu0 %v3998
      %4018 = vmatpush.bf16.msra.mxu0 %v3997
      %4019 = vmatpush.bf16.msra.mxu0 %v3996
      %4020 = vmatmul.bf16.gmra.mxu0 %v3938
      %v4021 = vpop.f32.mrf.mxu0
      %v4022 = vadd.f32 0.0, %v4021
      %v4023 = vpop.f32.mrf.mxu0
      %v4024 = vadd.f32 0.0, %v4023
      %4025 = vmatmul.bf16.gmra.mxu0 %v3940
      %v4026 = vpop.f32.mrf.mxu0
      %v4027 = vadd.f32 0.0, %v4026
      %v4028 = vpop.f32.mrf.mxu0
      %v4029 = vadd.f32 0.0, %v4028
      %4030 = vmatmul.bf16.gmra.mxu0 %v3942
      %v4031 = vpop.f32.mrf.mxu0
      %v4032 = vadd.f32 0.0, %v4031
      %v4033 = vpop.f32.mrf.mxu0
      %v4034 = vadd.f32 0.0, %v4033
      %4035 = vmatmul.bf16.gmra.mxu0 %v3944
      %v4036 = vpop.f32.mrf.mxu0
      %v4037 = vadd.f32 0.0, %v4036
      %v4038 = vpop.f32.mrf.mxu0
      %v4039 = vadd.f32 0.0, %v4038
      %4040 = vmatmul.bf16.gmra.mxu0 %v3946
      %v4041 = vpop.f32.mrf.mxu0
      %v4042 = vadd.f32 0.0, %v4041
      %v4043 = vpop.f32.mrf.mxu0
      %v4044 = vadd.f32 0.0, %v4043
      %4045 = vmatmul.bf16.gmra.mxu0 %v3948
      %v4046 = vpop.f32.mrf.mxu0
      %v4047 = vadd.f32 0.0, %v4046
      %v4048 = vpop.f32.mrf.mxu0
      %v4049 = vadd.f32 0.0, %v4048
      %4050 = vmatmul.bf16.gmra.mxu0 %v3950
      %v4051 = vpop.f32.mrf.mxu0
      %v4052 = vadd.f32 0.0, %v4051
      %v4053 = vpop.f32.mrf.mxu0
      %v4054 = vadd.f32 0.0, %v4053
      %4055 = vmatmul.bf16.gmra.mxu0 %v3952
      %v4056 = vpop.f32.mrf.mxu0
      %v4057 = vadd.f32 0.0, %v4056
      %v4058 = vpop.f32.mrf.mxu0
      %v4059 = vadd.f32 0.0, %v4058
      %4060 = vmatmul.bf16.gmra.mxu0 %v3954
      %v4061 = vpop.f32.mrf.mxu0
      %v4062 = vadd.f32 0.0, %v4061
      %v4063 = vpop.f32.mrf.mxu0
      %v4064 = vadd.f32 0.0, %v4063
      %4065 = vdwg.mxu0
      %v4066 = vadd.f32 %v3834, %v4022
      %v4067 = vadd.f32 %v3835, %v4024
      %v4068 = vadd.f32 %v3836, %v4027
      %v4069 = vadd.f32 %v3837, %v4029
      %v4070 = vadd.f32 %v3838, %v4032
      %v4071 = vadd.f32 %v3839, %v4034
      %v4072 = vadd.f32 %v3840, %v4037
      %v4073 = vadd.f32 %v3841, %v4039
      %v4074 = vadd.f32 %v3842, %v4042
      %v4075 = vadd.f32 %v3843, %v4044
      %v4076 = vadd.f32 %v3844, %v4047
      %v4077 = vadd.f32 %v3845, %v4049
      %v4078 = vadd.f32 %v3846, %v4052
      %v4079 = vadd.f32 %v3847, %v4054
      %v4080 = vadd.f32 %v3848, %v4057
      %v4081 = vadd.f32 %v3849, %v4059
      %v4082 = vadd.f32 %v3850, %v4062
      %v4083 = vadd.f32 %v3851, %v4064
      %v4084 = vld [vmem:[#allocation4 + $0x70] sm:$0xf]
      %s4085 = scalar_lea.vmem %s3, 512
      %v4086 = vld [vmem:[%s4085] sm:$0xf]
      %v4087 = vld [vmem:[%s4085 + $0x4] sm:$0xf]
      %v4088 = vld [vmem:[%s4085 + $0x8] sm:$0xf]
      %v4089 = vld [vmem:[%s4085 + $0xc] sm:$0xf]
      %v4090 = vld [vmem:[%s4085 + $0x10] sm:$0xf]
      %v4091 = vld [vmem:[%s4085 + $0x14] sm:$0xf]
      %v4092 = vld [vmem:[%s4085 + $0x18] sm:$0xf]
      %v4093 = vld [vmem:[%s4085 + $0x1c] sm:$0xf]
      %v4094 = vld [vmem:[%s4085 + $0x20] sm:$0xf]
      %v4095 = vld [vmem:[%s4085 + $0x24] sm:$0xf]
      %v4096 = vld [vmem:[%s4085 + $0x28] sm:$0xf]
      %v4097 = vld [vmem:[%s4085 + $0x2c] sm:$0xf]
      %v4098 = vld [vmem:[%s4085 + $0x30] sm:$0xf]
      %v4099 = vld [vmem:[%s4085 + $0x34] sm:$0xf]
      %v4100 = vld [vmem:[%s4085 + $0x38] sm:$0xf]
      %v4101 = vld [vmem:[%s4085 + $0x3c] sm:$0xf]
      %v4103 = vunpack.c.l.b16 %v4084
      %v4104 = vpack.c.b16 %v3092, %v3091
      %v4105 = vpack.c.b16 %v3094, %v3093
      %v4106 = vpack.c.b16 %v3096, %v3095
      %v4107 = vpack.c.b16 %v3098, %v3097
      %v4108 = vpack.c.b16 %v3100, %v3099
      %v4109 = vpack.c.b16 %v3102, %v3101
      %v4110 = vpack.c.b16 %v3104, %v3103
      %v4111 = vpack.c.b16 %v3106, %v3105
      %v4112 = vpack.c.b16 %v4103, %v3107
      %v4138 = vunpack.c.l.b16 %v4086
      %v4139 = vunpack.c.l.b16 %v4087
      %v4140 = vunpack.c.l.b16 %v4088
      %v4141 = vunpack.c.l.b16 %v4089
      %v4142 = vunpack.c.l.b16 %v4090
      %v4143 = vunpack.c.l.b16 %v4091
      %v4144 = vunpack.c.l.b16 %v4092
      %v4145 = vunpack.c.l.b16 %v4093
      %v4146 = vunpack.c.l.b16 %v4094
      %v4147 = vunpack.c.l.b16 %v4095
      %v4148 = vunpack.c.l.b16 %v4096
      %v4149 = vunpack.c.l.b16 %v4097
      %v4150 = vunpack.c.l.b16 %v4098
      %v4151 = vunpack.c.l.b16 %v4099
      %v4152 = vunpack.c.l.b16 %v4100
      %v4153 = vunpack.c.l.b16 %v4101
      %v4154 = vpack.c.b16 %v4139, %v4138
      %v4155 = vpack.c.b16 %v4141, %v4140
      %v4156 = vpack.c.b16 %v4143, %v4142
      %v4157 = vpack.c.b16 %v4145, %v4144
      %v4158 = vpack.c.b16 %v4147, %v4146
      %v4159 = vpack.c.b16 %v4149, %v4148
      %v4160 = vpack.c.b16 %v4151, %v4150
      %v4161 = vpack.c.b16 %v4153, %v4152
      %4170 = vmatpush.bf16.msra.mxu0 %v4161
      %4171 = vmatpush.bf16.msra.mxu0 %v4160
      %4172 = vmatpush.bf16.msra.mxu0 %v4159
      %4173 = vmatpush.bf16.msra.mxu0 %v4158
      %4174 = vmatpush.bf16.msra.mxu0 %v4157
      %4175 = vmatpush.bf16.msra.mxu0 %v4156
      %4176 = vmatpush.bf16.msra.mxu0 %v4155
      %4177 = vmatpush.bf16.msra.mxu0 %v4154
      %4178 = vmatmul.bf16.gmra.mxu0 %v4104
      %v4179 = vpop.f32.mrf.mxu0
      %v4180 = vadd.f32 0.0, %v4179
      %v4181 = vpop.f32.mrf.mxu0
      %v4182 = vadd.f32 0.0, %v4181
      %4183 = vmatmul.bf16.gmra.mxu0 %v4105
      %v4184 = vpop.f32.mrf.mxu0
      %v4185 = vadd.f32 0.0, %v4184
      %v4186 = vpop.f32.mrf.mxu0
      %v4187 = vadd.f32 0.0, %v4186
      %4188 = vmatmul.bf16.gmra.mxu0 %v4106
      %v4189 = vpop.f32.mrf.mxu0
      %v4190 = vadd.f32 0.0, %v4189
      %v4191 = vpop.f32.mrf.mxu0
      %v4192 = vadd.f32 0.0, %v4191
      %4193 = vmatmul.bf16.gmra.mxu0 %v4107
      %v4194 = vpop.f32.mrf.mxu0
      %v4195 = vadd.f32 0.0, %v4194
      %v4196 = vpop.f32.mrf.mxu0
      %v4197 = vadd.f32 0.0, %v4196
      %4198 = vmatmul.bf16.gmra.mxu0 %v4108
      %v4199 = vpop.f32.mrf.mxu0
      %v4200 = vadd.f32 0.0, %v4199
      %v4201 = vpop.f32.mrf.mxu0
      %v4202 = vadd.f32 0.0, %v4201
      %4203 = vmatmul.bf16.gmra.mxu0 %v4109
      %v4204 = vpop.f32.mrf.mxu0
      %v4205 = vadd.f32 0.0, %v4204
      %v4206 = vpop.f32.mrf.mxu0
      %v4207 = vadd.f32 0.0, %v4206
      %4208 = vmatmul.bf16.gmra.mxu0 %v4110
      %v4209 = vpop.f32.mrf.mxu0
      %v4210 = vadd.f32 0.0, %v4209
      %v4211 = vpop.f32.mrf.mxu0
      %v4212 = vadd.f32 0.0, %v4211
      %4213 = vmatmul.bf16.gmra.mxu0 %v4111
      %v4214 = vpop.f32.mrf.mxu0
      %v4215 = vadd.f32 0.0, %v4214
      %v4216 = vpop.f32.mrf.mxu0
      %v4217 = vadd.f32 0.0, %v4216
      %4218 = vmatmul.bf16.gmra.mxu0 %v4112
      %v4219 = vpop.f32.mrf.mxu0
      %v4220 = vadd.f32 0.0, %v4219
      %v4221 = vpop.f32.mrf.mxu0
      %v4222 = vadd.f32 0.0, %v4221
      %4223 = vdwg.mxu0
      %v4224 = vadd.f32 %v4066, %v4180
      %v4225 = vadd.f32 %v4067, %v4182
      %v4226 = vadd.f32 %v4068, %v4185
      %v4227 = vadd.f32 %v4069, %v4187
      %v4228 = vadd.f32 %v4070, %v4190
      %v4229 = vadd.f32 %v4071, %v4192
      %v4230 = vadd.f32 %v4072, %v4195
      %v4231 = vadd.f32 %v4073, %v4197
      %v4232 = vadd.f32 %v4074, %v4200
      %v4233 = vadd.f32 %v4075, %v4202
      %v4234 = vadd.f32 %v4076, %v4205
      %v4235 = vadd.f32 %v4077, %v4207
      %v4236 = vadd.f32 %v4078, %v4210
      %v4237 = vadd.f32 %v4079, %v4212
      %v4238 = vadd.f32 %v4080, %v4215
      %v4239 = vadd.f32 %v4081, %v4217
      %v4240 = vadd.f32 %v4082, %v4220
      %v4241 = vadd.f32 %v4083, %v4222
      %v4242 = vld [vmem:[#allocation4 + $0x38] sm:$0xc]
      %v4243 = vld [vmem:[#allocation4 + $0x3c] sm:$0xf]
      %v4244 = vld [vmem:[#allocation4 + $0x40] sm:$0xf]
      %v4245 = vld [vmem:[#allocation4 + $0x44] sm:$0xf]
      %v4246 = vld [vmem:[#allocation4 + $0x48] sm:$0xf]
      %v4247 = vld [vmem:[#allocation4 + $0x4c] sm:$0xf]
      %v4248 = vld [vmem:[#allocation4 + $0x50] sm:$0xf]
      %v4249 = vld [vmem:[#allocation4 + $0x54] sm:$0xf]
      %v4250 = vld [vmem:[#allocation4 + $0x58] sm:$0xf]
      %v4251 = vld [vmem:[#allocation4 + $0x5c] sm:$0xf]
      %v4252 = vld [vmem:[#allocation4 + $0x60] sm:$0xf]
      %v4253 = vld [vmem:[#allocation4 + $0x64] sm:$0xf]
      %v4254 = vld [vmem:[#allocation4 + $0x68] sm:$0xf]
      %v4255 = vld [vmem:[#allocation4 + $0x6c] sm:$0xf]
      %v4256 = vld [vmem:[#allocation4 + $0x70] sm:$0xf]
      %v4257 = vld [vmem:[#allocation4 + $0x74] sm:$0xf]
      %v4258 = vld [vmem:[#allocation4 + $0x78] sm:$0xf]
      %v4259 = vld [vmem:[#allocation4 + $0x7c] sm:$0xf]
      %v4260 = vld [vmem:[#allocation4 + $0x80] sm:$0x3]
      %s4261 = scalar_lea.vmem %s3, 576
      %v4262 = vld [vmem:[%s4261] sm:$0xf]
      %v4263 = vld [vmem:[%s4261 + $0x4] sm:$0xf]
      %v4264 = vld [vmem:[%s4261 + $0x8] sm:$0xf]
      %v4265 = vld [vmem:[%s4261 + $0xc] sm:$0xf]
      %v4266 = vld [vmem:[%s4261 + $0x10] sm:$0xf]
      %v4267 = vld [vmem:[%s4261 + $0x14] sm:$0xf]
      %v4268 = vld [vmem:[%s4261 + $0x18] sm:$0xf]
      %v4269 = vld [vmem:[%s4261 + $0x1c] sm:$0xf]
      %v4270 = vld [vmem:[%s4261 + $0x20] sm:$0xf]
      %v4271 = vld [vmem:[%s4261 + $0x24] sm:$0xf]
      %v4272 = vld [vmem:[%s4261 + $0x28] sm:$0xf]
      %v4273 = vld [vmem:[%s4261 + $0x2c] sm:$0xf]
      %v4274 = vld [vmem:[%s4261 + $0x30] sm:$0xf]
      %v4275 = vld [vmem:[%s4261 + $0x34] sm:$0xf]
      %v4276 = vld [vmem:[%s4261 + $0x38] sm:$0xf]
      %v4277 = vld [vmem:[%s4261 + $0x3c] sm:$0xf]
      %v4297 = vunpack.c.l.b16 %v4242
      %v4298 = vunpack.c.l.b16 %v4243
      %v4299 = vunpack.c.l.b16 %v4244
      %v4300 = vunpack.c.l.b16 %v4245
      %v4301 = vunpack.c.l.b16 %v4246
      %v4302 = vunpack.c.l.b16 %v4247
      %v4303 = vunpack.c.l.b16 %v4248
      %v4304 = vunpack.c.l.b16 %v4249
      %v4305 = vunpack.c.l.b16 %v4250
      %v4306 = vunpack.c.l.b16 %v4251
      %v4307 = vunpack.c.l.b16 %v4252
      %v4308 = vunpack.c.l.b16 %v4253
      %v4309 = vunpack.c.l.b16 %v4254
      %v4310 = vunpack.c.l.b16 %v4255
      %v4311 = vunpack.c.l.b16 %v4256
      %v4312 = vunpack.c.l.b16 %v4257
      %v4313 = vunpack.c.l.b16 %v4258
      %v4314 = vunpack.c.l.b16 %v4259
      %v4315 = vunpack.c.l.b16 %v4260
      %v4316 = vpack.c.b16 %v4298, %v4297
      %v4317 = vpack.c.b16 %v4300, %v4299
      %v4318 = vpack.c.b16 %v4302, %v4301
      %v4319 = vpack.c.b16 %v4304, %v4303
      %v4320 = vpack.c.b16 %v4306, %v4305
      %v4321 = vpack.c.b16 %v4308, %v4307
      %v4322 = vpack.c.b16 %v4310, %v4309
      %v4323 = vpack.c.b16 %v4312, %v4311
      %v4324 = vpack.c.b16 %v4314, %v4313
      %v4325 = vpack.c.b16 %v4315, %v4315
      %v4326 = vrot.slane %v4316, 2
      %v4327 = vrot.slane %v4317, 2
      %v4328 = vsel %vm2567, %v4326, %v4327
      %v4329 = vrot.slane %v4318, 2
      %v4330 = vsel %vm2567, %v4327, %v4329
      %v4331 = vrot.slane %v4319, 2
      %v4332 = vsel %vm2567, %v4329, %v4331
      %v4333 = vrot.slane %v4320, 2
      %v4334 = vsel %vm2567, %v4331, %v4333
      %v4335 = vrot.slane %v4321, 2
      %v4336 = vsel %vm2567, %v4333, %v4335
      %v4337 = vrot.slane %v4322, 2
      %v4338 = vsel %vm2567, %v4335, %v4337
      %v4339 = vrot.slane %v4323, 2
      %v4340 = vsel %vm2567, %v4337, %v4339
      %v4341 = vrot.slane %v4324, 2
      %v4342 = vsel %vm2567, %v4339, %v4341
      %v4343 = vrot.slane %v4325, 2
      %v4344 = vsel %vm2567, %v4341, %v4343
      %v4370 = vunpack.c.l.b16 %v4262
      %v4371 = vunpack.c.l.b16 %v4263
      %v4372 = vunpack.c.l.b16 %v4264
      %v4373 = vunpack.c.l.b16 %v4265
      %v4374 = vunpack.c.l.b16 %v4266
      %v4375 = vunpack.c.l.b16 %v4267
      %v4376 = vunpack.c.l.b16 %v4268
      %v4377 = vunpack.c.l.b16 %v4269
      %v4378 = vunpack.c.l.b16 %v4270
      %v4379 = vunpack.c.l.b16 %v4271
      %v4380 = vunpack.c.l.b16 %v4272
      %v4381 = vunpack.c.l.b16 %v4273
      %v4382 = vunpack.c.l.b16 %v4274
      %v4383 = vunpack.c.l.b16 %v4275
      %v4384 = vunpack.c.l.b16 %v4276
      %v4385 = vunpack.c.l.b16 %v4277
      %v4386 = vpack.c.b16 %v4371, %v4370
      %v4387 = vpack.c.b16 %v4373, %v4372
      %v4388 = vpack.c.b16 %v4375, %v4374
      %v4389 = vpack.c.b16 %v4377, %v4376
      %v4390 = vpack.c.b16 %v4379, %v4378
      %v4391 = vpack.c.b16 %v4381, %v4380
      %v4392 = vpack.c.b16 %v4383, %v4382
      %v4393 = vpack.c.b16 %v4385, %v4384
      %4402 = vmatpush.bf16.msra.mxu0 %v4393
      %4403 = vmatpush.bf16.msra.mxu0 %v4392
      %4404 = vmatpush.bf16.msra.mxu0 %v4391
      %4405 = vmatpush.bf16.msra.mxu0 %v4390
      %4406 = vmatpush.bf16.msra.mxu0 %v4389
      %4407 = vmatpush.bf16.msra.mxu0 %v4388
      %4408 = vmatpush.bf16.msra.mxu0 %v4387
      %4409 = vmatpush.bf16.msra.mxu0 %v4386
      %4410 = vmatmul.bf16.gmra.mxu0 %v4328
      %v4411 = vpop.f32.mrf.mxu0
      %v4412 = vadd.f32 0.0, %v4411
      %v4413 = vpop.f32.mrf.mxu0
      %v4414 = vadd.f32 0.0, %v4413
      %4415 = vmatmul.bf16.gmra.mxu0 %v4330
      %v4416 = vpop.f32.mrf.mxu0
      %v4417 = vadd.f32 0.0, %v4416
      %v4418 = vpop.f32.mrf.mxu0
      %v4419 = vadd.f32 0.0, %v4418
      %4420 = vmatmul.bf16.gmra.mxu0 %v4332
      %v4421 = vpop.f32.mrf.mxu0
      %v4422 = vadd.f32 0.0, %v4421
      %v4423 = vpop.f32.mrf.mxu0
      %v4424 = vadd.f32 0.0, %v4423
      %4425 = vmatmul.bf16.gmra.mxu0 %v4334
      %v4426 = vpop.f32.mrf.mxu0
      %v4427 = vadd.f32 0.0, %v4426
      %v4428 = vpop.f32.mrf.mxu0
      %v4429 = vadd.f32 0.0, %v4428
      %4430 = vmatmul.bf16.gmra.mxu0 %v4336
      %v4431 = vpop.f32.mrf.mxu0
      %v4432 = vadd.f32 0.0, %v4431
      %v4433 = vpop.f32.mrf.mxu0
      %v4434 = vadd.f32 0.0, %v4433
      %4435 = vmatmul.bf16.gmra.mxu0 %v4338
      %v4436 = vpop.f32.mrf.mxu0
      %v4437 = vadd.f32 0.0, %v4436
      %v4438 = vpop.f32.mrf.mxu0
      %v4439 = vadd.f32 0.0, %v4438
      %4440 = vmatmul.bf16.gmra.mxu0 %v4340
      %v4441 = vpop.f32.mrf.mxu0
      %v4442 = vadd.f32 0.0, %v4441
      %v4443 = vpop.f32.mrf.mxu0
      %v4444 = vadd.f32 0.0, %v4443
      %4445 = vmatmul.bf16.gmra.mxu0 %v4342
      %v4446 = vpop.f32.mrf.mxu0
      %v4447 = vadd.f32 0.0, %v4446
      %v4448 = vpop.f32.mrf.mxu0
      %v4449 = vadd.f32 0.0, %v4448
      %4450 = vmatmul.bf16.gmra.mxu0 %v4344
      %v4451 = vpop.f32.mrf.mxu0
      %v4452 = vadd.f32 0.0, %v4451
      %v4453 = vpop.f32.mrf.mxu0
      %v4454 = vadd.f32 0.0, %v4453
      %4455 = vdwg.mxu0
      %v4456 = vadd.f32 %v4224, %v4412
      %v4457 = vadd.f32 %v4225, %v4414
      %v4458 = vadd.f32 %v4226, %v4417
      %v4459 = vadd.f32 %v4227, %v4419
      %v4460 = vadd.f32 %v4228, %v4422
      %v4461 = vadd.f32 %v4229, %v4424
      %v4462 = vadd.f32 %v4230, %v4427
      %v4463 = vadd.f32 %v4231, %v4429
      %v4464 = vadd.f32 %v4232, %v4432
      %v4465 = vadd.f32 %v4233, %v4434
      %v4466 = vadd.f32 %v4234, %v4437
      %v4467 = vadd.f32 %v4235, %v4439
      %v4468 = vadd.f32 %v4236, %v4442
      %v4469 = vadd.f32 %v4237, %v4444
      %v4470 = vadd.f32 %v4238, %v4447
      %v4471 = vadd.f32 %v4239, %v4449
      %v4472 = vadd.f32 %v4240, %v4452
      %v4473 = vadd.f32 %v4241, %v4454
      %4474 = vst [vmem:[#allocation5] sm:$0xff] %v4456
      %4475 = vst [vmem:[#allocation5 + $0x8] sm:$0xff] %v4457
      %4476 = vst [vmem:[#allocation5 + $0x10] sm:$0xff] %v4458
      %4477 = vst [vmem:[#allocation5 + $0x18] sm:$0xff] %v4459
      %4478 = vst [vmem:[#allocation5 + $0x20] sm:$0xff] %v4460
      %4479 = vst [vmem:[#allocation5 + $0x28] sm:$0xff] %v4461
      %4480 = vst [vmem:[#allocation5 + $0x30] sm:$0xff] %v4462
      %4481 = vst [vmem:[#allocation5 + $0x38] sm:$0xff] %v4463
      %4482 = vst [vmem:[#allocation5 + $0x40] sm:$0xff] %v4464
      %4483 = vst [vmem:[#allocation5 + $0x48] sm:$0xff] %v4465
      %4484 = vst [vmem:[#allocation5 + $0x50] sm:$0xff] %v4466
      %4485 = vst [vmem:[#allocation5 + $0x58] sm:$0xff] %v4467
      %4486 = vst [vmem:[#allocation5 + $0x60] sm:$0xff] %v4468
      %4487 = vst [vmem:[#allocation5 + $0x68] sm:$0xff] %v4469
      %4488 = vst [vmem:[#allocation5 + $0x70] sm:$0xff] %v4470
      %4489 = vst [vmem:[#allocation5 + $0x78] sm:$0xff] %v4471
      %4490 = vst [vmem:[#allocation5 + $0x80] sm:$0xff] %v4472
      %4491 = vst [vmem:[#allocation5 + $0x88] sm:$0xff] %v4473
      %v4492 = vld [vmem:[#allocation4 + $0x48] sm:$0xf]
      %v4493 = vld [vmem:[#allocation4 + $0x4c] sm:$0xf]
      %v4494 = vld [vmem:[#allocation4 + $0x50] sm:$0xf]
      %v4495 = vld [vmem:[#allocation4 + $0x54] sm:$0xf]
      %v4496 = vld [vmem:[#allocation4 + $0x58] sm:$0xf]
      %v4497 = vld [vmem:[#allocation4 + $0x5c] sm:$0xf]
      %v4498 = vld [vmem:[#allocation4 + $0x60] sm:$0xf]
      %v4499 = vld [vmem:[#allocation4 + $0x64] sm:$0xf]
      %v4500 = vld [vmem:[#allocation4 + $0x68] sm:$0xf]
      %v4501 = vld [vmem:[#allocation4 + $0x6c] sm:$0xf]
      %v4502 = vld [vmem:[#allocation4 + $0x70] sm:$0xf]
      %v4503 = vld [vmem:[#allocation4 + $0x74] sm:$0xf]
      %v4504 = vld [vmem:[#allocation4 + $0x78] sm:$0xf]
      %v4505 = vld [vmem:[#allocation4 + $0x7c] sm:$0xf]
      %v4506 = vld [vmem:[#allocation4 + $0x80] sm:$0xf]
      %v4507 = vld [vmem:[#allocation4 + $0x84] sm:$0xf]
      %v4508 = vld [vmem:[#allocation4 + $0x88] sm:$0xf]
      %v4509 = vld [vmem:[#allocation4 + $0x8c] sm:$0xf]
      %v4510 = vld [vmem:[%s3] sm:$0xf]
      %v4511 = vld [vmem:[%s3 + $0x4] sm:$0xf]
      %v4512 = vld [vmem:[%s3 + $0x8] sm:$0xf]
      %v4513 = vld [vmem:[%s3 + $0xc] sm:$0xf]
      %v4514 = vld [vmem:[%s3 + $0x10] sm:$0xf]
      %v4515 = vld [vmem:[%s3 + $0x14] sm:$0xf]
      %v4516 = vld [vmem:[%s3 + $0x18] sm:$0xf]
      %v4517 = vld [vmem:[%s3 + $0x1c] sm:$0xf]
      %v4518 = vld [vmem:[%s3 + $0x20] sm:$0xf]
      %v4519 = vld [vmem:[%s3 + $0x24] sm:$0xf]
      %v4520 = vld [vmem:[%s3 + $0x28] sm:$0xf]
      %v4521 = vld [vmem:[%s3 + $0x2c] sm:$0xf]
      %v4522 = vld [vmem:[%s3 + $0x30] sm:$0xf]
      %v4523 = vld [vmem:[%s3 + $0x34] sm:$0xf]
      %v4524 = vld [vmem:[%s3 + $0x38] sm:$0xf]
      %v4525 = vld [vmem:[%s3 + $0x3c] sm:$0xf]
      %v4526 = vld [vmem:[#allocation4 + $0x54] sm:$0xc]
      %v4527 = vld [vmem:[#allocation4 + $0x90] sm:$0xf]
      %v4528 = vld [vmem:[#allocation4 + $0x94] sm:$0xf]
      %v4529 = vld [vmem:[#allocation4 + $0x98] sm:$0xf]
      %v4530 = vld [vmem:[#allocation4 + $0x9c] sm:$0x3]
      %v4531 = vld [vmem:[%s2502] sm:$0xf]
      %v4532 = vld [vmem:[%s2502 + $0x4] sm:$0xf]
      %v4533 = vld [vmem:[%s2502 + $0x8] sm:$0xf]
      %v4534 = vld [vmem:[%s2502 + $0xc] sm:$0xf]
      %v4535 = vld [vmem:[%s2502 + $0x10] sm:$0xf]
      %v4536 = vld [vmem:[%s2502 + $0x14] sm:$0xf]
      %v4537 = vld [vmem:[%s2502 + $0x18] sm:$0xf]
      %v4538 = vld [vmem:[%s2502 + $0x1c] sm:$0xf]
      %v4539 = vld [vmem:[%s2502 + $0x20] sm:$0xf]
      %v4540 = vld [vmem:[%s2502 + $0x24] sm:$0xf]
      %v4541 = vld [vmem:[%s2502 + $0x28] sm:$0xf]
      %v4542 = vld [vmem:[%s2502 + $0x2c] sm:$0xf]
      %v4543 = vld [vmem:[%s2502 + $0x30] sm:$0xf]
      %v4544 = vld [vmem:[%s2502 + $0x34] sm:$0xf]
      %v4545 = vld [vmem:[%s2502 + $0x38] sm:$0xf]
      %v4546 = vld [vmem:[%s2502 + $0x3c] sm:$0xf]
      %v4566 = vunpack.c.l.b16 %v4526
      %v4567 = vunpack.c.l.b16 %v4496
      %v4568 = vunpack.c.l.b16 %v4497
      %v4569 = vunpack.c.l.b16 %v4498
      %v4570 = vunpack.c.l.b16 %v4499
      %v4571 = vunpack.c.l.b16 %v4500
      %v4572 = vunpack.c.l.b16 %v4501
      %v4573 = vunpack.c.l.b16 %v4502
      %v4574 = vunpack.c.l.b16 %v4503
      %v4575 = vunpack.c.l.b16 %v4504
      %v4576 = vunpack.c.l.b16 %v4505
      %v4577 = vunpack.c.l.b16 %v4506
      %v4578 = vunpack.c.l.b16 %v4507
      %v4579 = vunpack.c.l.b16 %v4508
      %v4580 = vunpack.c.l.b16 %v4509
      %v4581 = vunpack.c.l.b16 %v4527
      %v4582 = vunpack.c.l.b16 %v4528
      %v4583 = vunpack.c.l.b16 %v4529
      %v4584 = vunpack.c.l.b16 %v4530
      %v4585 = vpack.c.b16 %v4567, %v4566
      %v4586 = vpack.c.b16 %v4569, %v4568
      %v4587 = vpack.c.b16 %v4571, %v4570
      %v4588 = vpack.c.b16 %v4573, %v4572
      %v4589 = vpack.c.b16 %v4575, %v4574
      %v4590 = vpack.c.b16 %v4577, %v4576
      %v4591 = vpack.c.b16 %v4579, %v4578
      %v4592 = vpack.c.b16 %v4581, %v4580
      %v4593 = vpack.c.b16 %v4583, %v4582
      %v4594 = vpack.c.b16 %v4584, %v4584
      %v4595 = vrot.slane %v4585, 2
      %v4596 = vrot.slane %v4586, 2
      %v4597 = vsel %vm2567, %v4595, %v4596
      %v4598 = vrot.slane %v4587, 2
      %v4599 = vsel %vm2567, %v4596, %v4598
      %v4600 = vrot.slane %v4588, 2
      %v4601 = vsel %vm2567, %v4598, %v4600
      %v4602 = vrot.slane %v4589, 2
      %v4603 = vsel %vm2567, %v4600, %v4602
      %v4604 = vrot.slane %v4590, 2
      %v4605 = vsel %vm2567, %v4602, %v4604
      %v4606 = vrot.slane %v4591, 2
      %v4607 = vsel %vm2567, %v4604, %v4606
      %v4608 = vrot.slane %v4592, 2
      %v4609 = vsel %vm2567, %v4606, %v4608
      %v4610 = vrot.slane %v4593, 2
      %v4611 = vsel %vm2567, %v4608, %v4610
      %v4612 = vrot.slane %v4594, 2
      %v4613 = vsel %vm2567, %v4610, %v4612
      %v4639 = vunpack.c.l.b16 %v4531
      %v4640 = vunpack.c.l.b16 %v4532
      %v4641 = vunpack.c.l.b16 %v4533
      %v4642 = vunpack.c.l.b16 %v4534
      %v4643 = vunpack.c.l.b16 %v4535
      %v4644 = vunpack.c.l.b16 %v4536
      %v4645 = vunpack.c.l.b16 %v4537
      %v4646 = vunpack.c.l.b16 %v4538
      %v4647 = vunpack.c.l.b16 %v4539
      %v4648 = vunpack.c.l.b16 %v4540
      %v4649 = vunpack.c.l.b16 %v4541
      %v4650 = vunpack.c.l.b16 %v4542
      %v4651 = vunpack.c.l.b16 %v4543
      %v4652 = vunpack.c.l.b16 %v4544
      %v4653 = vunpack.c.l.b16 %v4545
      %v4654 = vunpack.c.l.b16 %v4546
      %v4655 = vpack.c.b16 %v4640, %v4639
      %v4656 = vpack.c.b16 %v4642, %v4641
      %v4657 = vpack.c.b16 %v4644, %v4643
      %v4658 = vpack.c.b16 %v4646, %v4645
      %v4659 = vpack.c.b16 %v4648, %v4647
      %v4660 = vpack.c.b16 %v4650, %v4649
      %v4661 = vpack.c.b16 %v4652, %v4651
      %v4662 = vpack.c.b16 %v4654, %v4653
      %4671 = vmatpush.bf16.msra.mxu0 %v4662
      %4672 = vmatpush.bf16.msra.mxu0 %v4661
      %4673 = vmatpush.bf16.msra.mxu0 %v4660
      %4674 = vmatpush.bf16.msra.mxu0 %v4659
      %4675 = vmatpush.bf16.msra.mxu0 %v4658
      %4676 = vmatpush.bf16.msra.mxu0 %v4657
      %4677 = vmatpush.bf16.msra.mxu0 %v4656
      %4678 = vmatpush.bf16.msra.mxu0 %v4655
      %4679 = vmatmul.bf16.gmra.mxu0 %v4597
      %v4680 = vpop.f32.mrf.mxu0
      %v4681 = vadd.f32 0.0, %v4680
      %v4682 = vpop.f32.mrf.mxu0
      %v4683 = vadd.f32 0.0, %v4682
      %4684 = vmatmul.bf16.gmra.mxu0 %v4599
      %v4685 = vpop.f32.mrf.mxu0
      %v4686 = vadd.f32 0.0, %v4685
      %v4687 = vpop.f32.mrf.mxu0
      %v4688 = vadd.f32 0.0, %v4687
      %4689 = vmatmul.bf16.gmra.mxu0 %v4601
      %v4690 = vpop.f32.mrf.mxu0
      %v4691 = vadd.f32 0.0, %v4690
      %v4692 = vpop.f32.mrf.mxu0
      %v4693 = vadd.f32 0.0, %v4692
      %4694 = vmatmul.bf16.gmra.mxu0 %v4603
      %v4695 = vpop.f32.mrf.mxu0
      %v4696 = vadd.f32 0.0, %v4695
      %v4697 = vpop.f32.mrf.mxu0
      %v4698 = vadd.f32 0.0, %v4697
      %4699 = vmatmul.bf16.gmra.mxu0 %v4605
      %v4700 = vpop.f32.mrf.mxu0
      %v4701 = vadd.f32 0.0, %v4700
      %v4702 = vpop.f32.mrf.mxu0
      %v4703 = vadd.f32 0.0, %v4702
      %4704 = vmatmul.bf16.gmra.mxu0 %v4607
      %v4705 = vpop.f32.mrf.mxu0
      %v4706 = vadd.f32 0.0, %v4705
      %v4707 = vpop.f32.mrf.mxu0
      %v4708 = vadd.f32 0.0, %v4707
      %4709 = vmatmul.bf16.gmra.mxu0 %v4609
      %v4710 = vpop.f32.mrf.mxu0
      %v4711 = vadd.f32 0.0, %v4710
      %v4712 = vpop.f32.mrf.mxu0
      %v4713 = vadd.f32 0.0, %v4712
      %4714 = vmatmul.bf16.gmra.mxu0 %v4611
      %v4715 = vpop.f32.mrf.mxu0
      %v4716 = vadd.f32 0.0, %v4715
      %v4717 = vpop.f32.mrf.mxu0
      %v4718 = vadd.f32 0.0, %v4717
      %4719 = vmatmul.bf16.gmra.mxu0 %v4613
      %v4720 = vpop.f32.mrf.mxu0
      %v4721 = vadd.f32 0.0, %v4720
      %v4722 = vpop.f32.mrf.mxu0
      %v4723 = vadd.f32 0.0, %v4722
      %4724 = vdwg.mxu0
      %v4729 = vunpack.c.l.b16 %v4492
      %v4730 = vunpack.c.l.b16 %v4493
      %v4731 = vunpack.c.l.b16 %v4494
      %v4732 = vunpack.c.l.b16 %v4495
      %v4733 = vpack.c.b16 %v4730, %v4729
      %v4734 = vpack.c.b16 %v4732, %v4731
      %v4735 = vpack.c.b16 %v4568, %v4567
      %v4736 = vpack.c.b16 %v4570, %v4569
      %v4737 = vpack.c.b16 %v4572, %v4571
      %v4738 = vpack.c.b16 %v4574, %v4573
      %v4739 = vpack.c.b16 %v4576, %v4575
      %v4740 = vpack.c.b16 %v4578, %v4577
      %v4741 = vpack.c.b16 %v4580, %v4579
      %v4767 = vunpack.c.l.b16 %v4510
      %v4768 = vunpack.c.l.b16 %v4511
      %v4769 = vunpack.c.l.b16 %v4512
      %v4770 = vunpack.c.l.b16 %v4513
      %v4771 = vunpack.c.l.b16 %v4514
      %v4772 = vunpack.c.l.b16 %v4515
      %v4773 = vunpack.c.l.b16 %v4516
      %v4774 = vunpack.c.l.b16 %v4517
      %v4775 = vunpack.c.l.b16 %v4518
      %v4776 = vunpack.c.l.b16 %v4519
      %v4777 = vunpack.c.l.b16 %v4520
      %v4778 = vunpack.c.l.b16 %v4521
      %v4779 = vunpack.c.l.b16 %v4522
      %v4780 = vunpack.c.l.b16 %v4523
      %v4781 = vunpack.c.l.b16 %v4524
      %v4782 = vunpack.c.l.b16 %v4525
      %v4783 = vpack.c.b16 %v4768, %v4767
      %v4784 = vpack.c.b16 %v4770, %v4769
      %v4785 = vpack.c.b16 %v4772, %v4771
      %v4786 = vpack.c.b16 %v4774, %v4773
      %v4787 = vpack.c.b16 %v4776, %v4775
      %v4788 = vpack.c.b16 %v4778, %v4777
      %v4789 = vpack.c.b16 %v4780, %v4779
      %v4790 = vpack.c.b16 %v4782, %v4781
      %4799 = vmatpush.bf16.msra.mxu0 %v4790
      %4800 = vmatpush.bf16.msra.mxu0 %v4789
      %4801 = vmatpush.bf16.msra.mxu0 %v4788
      %4802 = vmatpush.bf16.msra.mxu0 %v4787
      %4803 = vmatpush.bf16.msra.mxu0 %v4786
      %4804 = vmatpush.bf16.msra.mxu0 %v4785
      %4805 = vmatpush.bf16.msra.mxu0 %v4784
      %4806 = vmatpush.bf16.msra.mxu0 %v4783
      %4807 = vmatmul.bf16.gmra.mxu0 %v4733
      %v4808 = vpop.f32.mrf.mxu0
      %v4809 = vadd.f32 %v4681, %v4808
      %v4810 = vpop.f32.mrf.mxu0
      %v4811 = vadd.f32 %v4683, %v4810
      %4812 = vmatmul.bf16.gmra.mxu0 %v4734
      %v4813 = vpop.f32.mrf.mxu0
      %v4814 = vadd.f32 %v4686, %v4813
      %v4815 = vpop.f32.mrf.mxu0
      %v4816 = vadd.f32 %v4688, %v4815
      %4817 = vmatmul.bf16.gmra.mxu0 %v4735
      %v4818 = vpop.f32.mrf.mxu0
      %v4819 = vadd.f32 %v4691, %v4818
      %v4820 = vpop.f32.mrf.mxu0
      %v4821 = vadd.f32 %v4693, %v4820
      %4822 = vmatmul.bf16.gmra.mxu0 %v4736
      %v4823 = vpop.f32.mrf.mxu0
      %v4824 = vadd.f32 %v4696, %v4823
      %v4825 = vpop.f32.mrf.mxu0
      %v4826 = vadd.f32 %v4698, %v4825
      %4827 = vmatmul.bf16.gmra.mxu0 %v4737
      %v4828 = vpop.f32.mrf.mxu0
      %v4829 = vadd.f32 %v4701, %v4828
      %v4830 = vpop.f32.mrf.mxu0
      %v4831 = vadd.f32 %v4703, %v4830
      %4832 = vmatmul.bf16.gmra.mxu0 %v4738
      %v4833 = vpop.f32.mrf.mxu0
      %v4834 = vadd.f32 %v4706, %v4833
      %v4835 = vpop.f32.mrf.mxu0
      %v4836 = vadd.f32 %v4708, %v4835
      %4837 = vmatmul.bf16.gmra.mxu0 %v4739
      %v4838 = vpop.f32.mrf.mxu0
      %v4839 = vadd.f32 %v4711, %v4838
      %v4840 = vpop.f32.mrf.mxu0
      %v4841 = vadd.f32 %v4713, %v4840
      %4842 = vmatmul.bf16.gmra.mxu0 %v4740
      %v4843 = vpop.f32.mrf.mxu0
      %v4844 = vadd.f32 %v4716, %v4843
      %v4845 = vpop.f32.mrf.mxu0
      %v4846 = vadd.f32 %v4718, %v4845
      %4847 = vmatmul.bf16.gmra.mxu0 %v4741
      %v4848 = vpop.f32.mrf.mxu0
      %v4849 = vadd.f32 %v4721, %v4848
      %v4850 = vpop.f32.mrf.mxu0
      %v4851 = vadd.f32 %v4723, %v4850
      %4852 = vdwg.mxu0
      %v4853 = vld [vmem:[#allocation4 + $0x64] sm:$0xf]
      %v4854 = vld [vmem:[#allocation4 + $0x68] sm:$0xf]
      %v4855 = vld [vmem:[#allocation4 + $0x6c] sm:$0xf]
      %v4856 = vld [vmem:[#allocation4 + $0x70] sm:$0xf]
      %v4857 = vld [vmem:[#allocation4 + $0x74] sm:$0xf]
      %v4858 = vld [vmem:[#allocation4 + $0x78] sm:$0xf]
      %v4859 = vld [vmem:[#allocation4 + $0x7c] sm:$0xf]
      %v4860 = vld [vmem:[#allocation4 + $0x80] sm:$0xf]
      %v4861 = vld [vmem:[#allocation4 + $0x84] sm:$0xf]
      %v4862 = vld [vmem:[#allocation4 + $0x88] sm:$0xf]
      %v4863 = vld [vmem:[#allocation4 + $0x8c] sm:$0xf]
      %v4864 = vld [vmem:[#allocation4 + $0x90] sm:$0xf]
      %v4865 = vld [vmem:[#allocation4 + $0x94] sm:$0xf]
      %v4866 = vld [vmem:[#allocation4 + $0x98] sm:$0xf]
      %v4867 = vld [vmem:[#allocation4 + $0x9c] sm:$0xf]
      %v4868 = vld [vmem:[#allocation4 + $0xa0] sm:$0xf]
      %v4869 = vld [vmem:[#allocation4 + $0xa4] sm:$0xf]
      %v4870 = vld [vmem:[#allocation4 + $0xa8] sm:$0xf]
      %v4871 = vld [vmem:[%s2844] sm:$0xf]
      %v4872 = vld [vmem:[%s2844 + $0x4] sm:$0xf]
      %v4873 = vld [vmem:[%s2844 + $0x8] sm:$0xf]
      %v4874 = vld [vmem:[%s2844 + $0xc] sm:$0xf]
      %v4875 = vld [vmem:[%s2844 + $0x10] sm:$0xf]
      %v4876 = vld [vmem:[%s2844 + $0x14] sm:$0xf]
      %v4877 = vld [vmem:[%s2844 + $0x18] sm:$0xf]
      %v4878 = vld [vmem:[%s2844 + $0x1c] sm:$0xf]
      %v4879 = vld [vmem:[%s2844 + $0x20] sm:$0xf]
      %v4880 = vld [vmem:[%s2844 + $0x24] sm:$0xf]
      %v4881 = vld [vmem:[%s2844 + $0x28] sm:$0xf]
      %v4882 = vld [vmem:[%s2844 + $0x2c] sm:$0xf]
      %v4883 = vld [vmem:[%s2844 + $0x30] sm:$0xf]
      %v4884 = vld [vmem:[%s2844 + $0x34] sm:$0xf]
      %v4885 = vld [vmem:[%s2844 + $0x38] sm:$0xf]
      %v4886 = vld [vmem:[%s2844 + $0x3c] sm:$0xf]
      %v4905 = vunpack.c.l.b16 %v4853
      %v4906 = vunpack.c.l.b16 %v4854
      %v4907 = vunpack.c.l.b16 %v4855
      %v4908 = vunpack.c.l.b16 %v4856
      %v4909 = vunpack.c.l.b16 %v4857
      %v4910 = vunpack.c.l.b16 %v4858
      %v4911 = vunpack.c.l.b16 %v4859
      %v4912 = vunpack.c.l.b16 %v4860
      %v4913 = vunpack.c.l.b16 %v4861
      %v4914 = vunpack.c.l.b16 %v4862
      %v4915 = vunpack.c.l.b16 %v4863
      %v4916 = vunpack.c.l.b16 %v4864
      %v4917 = vunpack.c.l.b16 %v4865
      %v4918 = vunpack.c.l.b16 %v4866
      %v4919 = vunpack.c.l.b16 %v4867
      %v4920 = vunpack.c.l.b16 %v4868
      %v4921 = vunpack.c.l.b16 %v4869
      %v4922 = vunpack.c.l.b16 %v4870
      %v4923 = vpack.c.b16 %v4906, %v4905
      %v4924 = vpack.c.b16 %v4908, %v4907
      %v4925 = vpack.c.b16 %v4910, %v4909
      %v4926 = vpack.c.b16 %v4912, %v4911
      %v4927 = vpack.c.b16 %v4914, %v4913
      %v4928 = vpack.c.b16 %v4916, %v4915
      %v4929 = vpack.c.b16 %v4918, %v4917
      %v4930 = vpack.c.b16 %v4920, %v4919
      %v4931 = vpack.c.b16 %v4922, %v4921
      %v4957 = vunpack.c.l.b16 %v4871
      %v4958 = vunpack.c.l.b16 %v4872
      %v4959 = vunpack.c.l.b16 %v4873
      %v4960 = vunpack.c.l.b16 %v4874
      %v4961 = vunpack.c.l.b16 %v4875
      %v4962 = vunpack.c.l.b16 %v4876
      %v4963 = vunpack.c.l.b16 %v4877
      %v4964 = vunpack.c.l.b16 %v4878
      %v4965 = vunpack.c.l.b16 %v4879
      %v4966 = vunpack.c.l.b16 %v4880
      %v4967 = vunpack.c.l.b16 %v4881
      %v4968 = vunpack.c.l.b16 %v4882
      %v4969 = vunpack.c.l.b16 %v4883
      %v4970 = vunpack.c.l.b16 %v4884
      %v4971 = vunpack.c.l.b16 %v4885
      %v4972 = vunpack.c.l.b16 %v4886
      %v4973 = vpack.c.b16 %v4958, %v4957
      %v4974 = vpack.c.b16 %v4960, %v4959
      %v4975 = vpack.c.b16 %v4962, %v4961
      %v4976 = vpack.c.b16 %v4964, %v4963
      %v4977 = vpack.c.b16 %v4966, %v4965
      %v4978 = vpack.c.b16 %v4968, %v4967
      %v4979 = vpack.c.b16 %v4970, %v4969
      %v4980 = vpack.c.b16 %v4972, %v4971
      %4989 = vmatpush.bf16.msra.mxu0 %v4980
      %4990 = vmatpush.bf16.msra.mxu0 %v4979
      %4991 = vmatpush.bf16.msra.mxu0 %v4978
      %4992 = vmatpush.bf16.msra.mxu0 %v4977
      %4993 = vmatpush.bf16.msra.mxu0 %v4976
      %4994 = vmatpush.bf16.msra.mxu0 %v4975
      %4995 = vmatpush.bf16.msra.mxu0 %v4974
      %4996 = vmatpush.bf16.msra.mxu0 %v4973
      %4997 = vmatmul.bf16.gmra.mxu0 %v4923
      %v4998 = vpop.f32.mrf.mxu0
      %v4999 = vadd.f32 0.0, %v4998
      %v5000 = vpop.f32.mrf.mxu0
      %v5001 = vadd.f32 0.0, %v5000
      %5002 = vmatmul.bf16.gmra.mxu0 %v4924
      %v5003 = vpop.f32.mrf.mxu0
      %v5004 = vadd.f32 0.0, %v5003
      %v5005 = vpop.f32.mrf.mxu0
      %v5006 = vadd.f32 0.0, %v5005
      %5007 = vmatmul.bf16.gmra.mxu0 %v4925
      %v5008 = vpop.f32.mrf.mxu0
      %v5009 = vadd.f32 0.0, %v5008
      %v5010 = vpop.f32.mrf.mxu0
      %v5011 = vadd.f32 0.0, %v5010
      %5012 = vmatmul.bf16.gmra.mxu0 %v4926
      %v5013 = vpop.f32.mrf.mxu0
      %v5014 = vadd.f32 0.0, %v5013
      %v5015 = vpop.f32.mrf.mxu0
      %v5016 = vadd.f32 0.0, %v5015
      %5017 = vmatmul.bf16.gmra.mxu0 %v4927
      %v5018 = vpop.f32.mrf.mxu0
      %v5019 = vadd.f32 0.0, %v5018
      %v5020 = vpop.f32.mrf.mxu0
      %v5021 = vadd.f32 0.0, %v5020
      %5022 = vmatmul.bf16.gmra.mxu0 %v4928
      %v5023 = vpop.f32.mrf.mxu0
      %v5024 = vadd.f32 0.0, %v5023
      %v5025 = vpop.f32.mrf.mxu0
      %v5026 = vadd.f32 0.0, %v5025
      %5027 = vmatmul.bf16.gmra.mxu0 %v4929
      %v5028 = vpop.f32.mrf.mxu0
      %v5029 = vadd.f32 0.0, %v5028
      %v5030 = vpop.f32.mrf.mxu0
      %v5031 = vadd.f32 0.0, %v5030
      %5032 = vmatmul.bf16.gmra.mxu0 %v4930
      %v5033 = vpop.f32.mrf.mxu0
      %v5034 = vadd.f32 0.0, %v5033
      %v5035 = vpop.f32.mrf.mxu0
      %v5036 = vadd.f32 0.0, %v5035
      %5037 = vmatmul.bf16.gmra.mxu0 %v4931
      %v5038 = vpop.f32.mrf.mxu0
      %v5039 = vadd.f32 0.0, %v5038
      %v5040 = vpop.f32.mrf.mxu0
      %v5041 = vadd.f32 0.0, %v5040
      %5042 = vdwg.mxu0
      %v5043 = vadd.f32 %v4809, %v4999
      %v5044 = vadd.f32 %v4811, %v5001
      %v5045 = vadd.f32 %v4814, %v5004
      %v5046 = vadd.f32 %v4816, %v5006
      %v5047 = vadd.f32 %v4819, %v5009
      %v5048 = vadd.f32 %v4821, %v5011
      %v5049 = vadd.f32 %v4824, %v5014
      %v5050 = vadd.f32 %v4826, %v5016
      %v5051 = vadd.f32 %v4829, %v5019
      %v5052 = vadd.f32 %v4831, %v5021
      %v5053 = vadd.f32 %v4834, %v5024
      %v5054 = vadd.f32 %v4836, %v5026
      %v5055 = vadd.f32 %v4839, %v5029
      %v5056 = vadd.f32 %v4841, %v5031
      %v5057 = vadd.f32 %v4844, %v5034
      %v5058 = vadd.f32 %v4846, %v5036
      %v5059 = vadd.f32 %v4849, %v5039
      %v5060 = vadd.f32 %v4851, %v5041
      %v5061 = vld [vmem:[#allocation4 + $0x70] sm:$0xc]
      %v5062 = vld [vmem:[#allocation4 + $0x74] sm:$0xf]
      %v5063 = vld [vmem:[#allocation4 + $0x78] sm:$0xf]
      %v5064 = vld [vmem:[#allocation4 + $0x7c] sm:$0xf]
      %v5065 = vld [vmem:[#allocation4 + $0x80] sm:$0xf]
      %v5066 = vld [vmem:[#allocation4 + $0x84] sm:$0xf]
      %v5067 = vld [vmem:[#allocation4 + $0x88] sm:$0xf]
      %v5068 = vld [vmem:[#allocation4 + $0x8c] sm:$0xf]
      %v5069 = vld [vmem:[#allocation4 + $0x90] sm:$0xf]
      %v5070 = vld [vmem:[#allocation4 + $0x94] sm:$0xf]
      %v5071 = vld [vmem:[#allocation4 + $0x98] sm:$0xf]
      %v5072 = vld [vmem:[#allocation4 + $0x9c] sm:$0xf]
      %v5073 = vld [vmem:[#allocation4 + $0xa0] sm:$0xf]
      %v5074 = vld [vmem:[#allocation4 + $0xa4] sm:$0xf]
      %v5075 = vld [vmem:[#allocation4 + $0xa8] sm:$0xf]
      %v5076 = vld [vmem:[#allocation4 + $0xac] sm:$0xf]
      %v5077 = vld [vmem:[#allocation4 + $0xb0] sm:$0xf]
      %v5078 = vld [vmem:[#allocation4 + $0xb4] sm:$0xf]
      %v5079 = vld [vmem:[#allocation4 + $0xb8] sm:$0x3]
      %v5080 = vld [vmem:[%s3054] sm:$0xf]
      %v5081 = vld [vmem:[%s3054 + $0x4] sm:$0xf]
      %v5082 = vld [vmem:[%s3054 + $0x8] sm:$0xf]
      %v5083 = vld [vmem:[%s3054 + $0xc] sm:$0xf]
      %v5084 = vld [vmem:[%s3054 + $0x10] sm:$0xf]
      %v5085 = vld [vmem:[%s3054 + $0x14] sm:$0xf]
      %v5086 = vld [vmem:[%s3054 + $0x18] sm:$0xf]
      %v5087 = vld [vmem:[%s3054 + $0x1c] sm:$0xf]
      %v5088 = vld [vmem:[%s3054 + $0x20] sm:$0xf]
      %v5089 = vld [vmem:[%s3054 + $0x24] sm:$0xf]
      %v5090 = vld [vmem:[%s3054 + $0x28] sm:$0xf]
      %v5091 = vld [vmem:[%s3054 + $0x2c] sm:$0xf]
      %v5092 = vld [vmem:[%s3054 + $0x30] sm:$0xf]
      %v5093 = vld [vmem:[%s3054 + $0x34] sm:$0xf]
      %v5094 = vld [vmem:[%s3054 + $0x38] sm:$0xf]
      %v5095 = vld [vmem:[%s3054 + $0x3c] sm:$0xf]
      %v5115 = vunpack.c.l.b16 %v5061
      %v5116 = vunpack.c.l.b16 %v5062
      %v5117 = vunpack.c.l.b16 %v5063
      %v5118 = vunpack.c.l.b16 %v5064
      %v5119 = vunpack.c.l.b16 %v5065
      %v5120 = vunpack.c.l.b16 %v5066
      %v5121 = vunpack.c.l.b16 %v5067
      %v5122 = vunpack.c.l.b16 %v5068
      %v5123 = vunpack.c.l.b16 %v5069
      %v5124 = vunpack.c.l.b16 %v5070
      %v5125 = vunpack.c.l.b16 %v5071
      %v5126 = vunpack.c.l.b16 %v5072
      %v5127 = vunpack.c.l.b16 %v5073
      %v5128 = vunpack.c.l.b16 %v5074
      %v5129 = vunpack.c.l.b16 %v5075
      %v5130 = vunpack.c.l.b16 %v5076
      %v5131 = vunpack.c.l.b16 %v5077
      %v5132 = vunpack.c.l.b16 %v5078
      %v5133 = vunpack.c.l.b16 %v5079
      %v5134 = vpack.c.b16 %v5116, %v5115
      %v5135 = vpack.c.b16 %v5118, %v5117
      %v5136 = vpack.c.b16 %v5120, %v5119
      %v5137 = vpack.c.b16 %v5122, %v5121
      %v5138 = vpack.c.b16 %v5124, %v5123
      %v5139 = vpack.c.b16 %v5126, %v5125
      %v5140 = vpack.c.b16 %v5128, %v5127
      %v5141 = vpack.c.b16 %v5130, %v5129
      %v5142 = vpack.c.b16 %v5132, %v5131
      %v5143 = vpack.c.b16 %v5133, %v5133
      %v5144 = vrot.slane %v5134, 2
      %v5145 = vrot.slane %v5135, 2
      %v5146 = vsel %vm2567, %v5144, %v5145
      %v5147 = vrot.slane %v5136, 2
      %v5148 = vsel %vm2567, %v5145, %v5147
      %v5149 = vrot.slane %v5137, 2
      %v5150 = vsel %vm2567, %v5147, %v5149
      %v5151 = vrot.slane %v5138, 2
      %v5152 = vsel %vm2567, %v5149, %v5151
      %v5153 = vrot.slane %v5139, 2
      %v5154 = vsel %vm2567, %v5151, %v5153
      %v5155 = vrot.slane %v5140, 2
      %v5156 = vsel %vm2567, %v5153, %v5155
      %v5157 = vrot.slane %v5141, 2
      %v5158 = vsel %vm2567, %v5155, %v5157
      %v5159 = vrot.slane %v5142, 2
      %v5160 = vsel %vm2567, %v5157, %v5159
      %v5161 = vrot.slane %v5143, 2
      %v5162 = vsel %vm2567, %v5159, %v5161
      %v5188 = vunpack.c.l.b16 %v5080
      %v5189 = vunpack.c.l.b16 %v5081
      %v5190 = vunpack.c.l.b16 %v5082
      %v5191 = vunpack.c.l.b16 %v5083
      %v5192 = vunpack.c.l.b16 %v5084
      %v5193 = vunpack.c.l.b16 %v5085
      %v5194 = vunpack.c.l.b16 %v5086
      %v5195 = vunpack.c.l.b16 %v5087
      %v5196 = vunpack.c.l.b16 %v5088
      %v5197 = vunpack.c.l.b16 %v5089
      %v5198 = vunpack.c.l.b16 %v5090
      %v5199 = vunpack.c.l.b16 %v5091
      %v5200 = vunpack.c.l.b16 %v5092
      %v5201 = vunpack.c.l.b16 %v5093
      %v5202 = vunpack.c.l.b16 %v5094
      %v5203 = vunpack.c.l.b16 %v5095
      %v5204 = vpack.c.b16 %v5189, %v5188
      %v5205 = vpack.c.b16 %v5191, %v5190
      %v5206 = vpack.c.b16 %v5193, %v5192
      %v5207 = vpack.c.b16 %v5195, %v5194
      %v5208 = vpack.c.b16 %v5197, %v5196
      %v5209 = vpack.c.b16 %v5199, %v5198
      %v5210 = vpack.c.b16 %v5201, %v5200
      %v5211 = vpack.c.b16 %v5203, %v5202
      %5220 = vmatpush.bf16.msra.mxu0 %v5211
      %5221 = vmatpush.bf16.msra.mxu0 %v5210
      %5222 = vmatpush.bf16.msra.mxu0 %v5209
      %5223 = vmatpush.bf16.msra.mxu0 %v5208
      %5224 = vmatpush.bf16.msra.mxu0 %v5207
      %5225 = vmatpush.bf16.msra.mxu0 %v5206
      %5226 = vmatpush.bf16.msra.mxu0 %v5205
      %5227 = vmatpush.bf16.msra.mxu0 %v5204
      %5228 = vmatmul.bf16.gmra.mxu0 %v5146
      %v5229 = vpop.f32.mrf.mxu0
      %v5230 = vadd.f32 0.0, %v5229
      %v5231 = vpop.f32.mrf.mxu0
      %v5232 = vadd.f32 0.0, %v5231
      %5233 = vmatmul.bf16.gmra.mxu0 %v5148
      %v5234 = vpop.f32.mrf.mxu0
      %v5235 = vadd.f32 0.0, %v5234
      %v5236 = vpop.f32.mrf.mxu0
      %v5237 = vadd.f32 0.0, %v5236
      %5238 = vmatmul.bf16.gmra.mxu0 %v5150
      %v5239 = vpop.f32.mrf.mxu0
      %v5240 = vadd.f32 0.0, %v5239
      %v5241 = vpop.f32.mrf.mxu0
      %v5242 = vadd.f32 0.0, %v5241
      %5243 = vmatmul.bf16.gmra.mxu0 %v5152
      %v5244 = vpop.f32.mrf.mxu0
      %v5245 = vadd.f32 0.0, %v5244
      %v5246 = vpop.f32.mrf.mxu0
      %v5247 = vadd.f32 0.0, %v5246
      %5248 = vmatmul.bf16.gmra.mxu0 %v5154
      %v5249 = vpop.f32.mrf.mxu0
      %v5250 = vadd.f32 0.0, %v5249
      %v5251 = vpop.f32.mrf.mxu0
      %v5252 = vadd.f32 0.0, %v5251
      %5253 = vmatmul.bf16.gmra.mxu0 %v5156
      %v5254 = vpop.f32.mrf.mxu0
      %v5255 = vadd.f32 0.0, %v5254
      %v5256 = vpop.f32.mrf.mxu0
      %v5257 = vadd.f32 0.0, %v5256
      %5258 = vmatmul.bf16.gmra.mxu0 %v5158
      %v5259 = vpop.f32.mrf.mxu0
      %v5260 = vadd.f32 0.0, %v5259
      %v5261 = vpop.f32.mrf.mxu0
      %v5262 = vadd.f32 0.0, %v5261
      %5263 = vmatmul.bf16.gmra.mxu0 %v5160
      %v5264 = vpop.f32.mrf.mxu0
      %v5265 = vadd.f32 0.0, %v5264
      %v5266 = vpop.f32.mrf.mxu0
      %v5267 = vadd.f32 0.0, %v5266
      %5268 = vmatmul.bf16.gmra.mxu0 %v5162
      %v5269 = vpop.f32.mrf.mxu0
      %v5270 = vadd.f32 0.0, %v5269
      %v5271 = vpop.f32.mrf.mxu0
      %v5272 = vadd.f32 0.0, %v5271
      %5273 = vdwg.mxu0
      %v5274 = vadd.f32 %v5043, %v5230
      %v5275 = vadd.f32 %v5044, %v5232
      %v5276 = vadd.f32 %v5045, %v5235
      %v5277 = vadd.f32 %v5046, %v5237
      %v5278 = vadd.f32 %v5047, %v5240
      %v5279 = vadd.f32 %v5048, %v5242
      %v5280 = vadd.f32 %v5049, %v5245
      %v5281 = vadd.f32 %v5050, %v5247
      %v5282 = vadd.f32 %v5051, %v5250
      %v5283 = vadd.f32 %v5052, %v5252
      %v5284 = vadd.f32 %v5053, %v5255
      %v5285 = vadd.f32 %v5054, %v5257
      %v5286 = vadd.f32 %v5055, %v5260
      %v5287 = vadd.f32 %v5056, %v5262
      %v5288 = vadd.f32 %v5057, %v5265
      %v5289 = vadd.f32 %v5058, %v5267
      %v5290 = vadd.f32 %v5059, %v5270
      %v5291 = vadd.f32 %v5060, %v5272
      %v5292 = vld [vmem:[#allocation4 + $0x80] sm:$0xf]
      %v5293 = vld [vmem:[#allocation4 + $0x84] sm:$0xf]
      %v5294 = vld [vmem:[#allocation4 + $0x88] sm:$0xf]
      %v5295 = vld [vmem:[#allocation4 + $0x8c] sm:$0xf]
      %v5296 = vld [vmem:[#allocation4 + $0x90] sm:$0xf]
      %v5297 = vld [vmem:[#allocation4 + $0x94] sm:$0xf]
      %v5298 = vld [vmem:[#allocation4 + $0x98] sm:$0xf]
      %v5299 = vld [vmem:[#allocation4 + $0x9c] sm:$0xf]
      %v5300 = vld [vmem:[#allocation4 + $0xa0] sm:$0xf]
      %v5301 = vld [vmem:[#allocation4 + $0xa4] sm:$0xf]
      %v5302 = vld [vmem:[#allocation4 + $0xa8] sm:$0xf]
      %v5303 = vld [vmem:[#allocation4 + $0xac] sm:$0xf]
      %v5304 = vld [vmem:[#allocation4 + $0xb0] sm:$0xf]
      %v5305 = vld [vmem:[#allocation4 + $0xb4] sm:$0xf]
      %v5306 = vld [vmem:[#allocation4 + $0xb8] sm:$0xf]
      %v5307 = vld [vmem:[#allocation4 + $0xbc] sm:$0xf]
      %v5308 = vld [vmem:[#allocation4 + $0xc0] sm:$0xf]
      %v5309 = vld [vmem:[#allocation4 + $0xc4] sm:$0xf]
      %v5310 = vld [vmem:[%s3285] sm:$0xf]
      %v5311 = vld [vmem:[%s3285 + $0x4] sm:$0xf]
      %v5312 = vld [vmem:[%s3285 + $0x8] sm:$0xf]
      %v5313 = vld [vmem:[%s3285 + $0xc] sm:$0xf]
      %v5314 = vld [vmem:[%s3285 + $0x10] sm:$0xf]
      %v5315 = vld [vmem:[%s3285 + $0x14] sm:$0xf]
      %v5316 = vld [vmem:[%s3285 + $0x18] sm:$0xf]
      %v5317 = vld [vmem:[%s3285 + $0x1c] sm:$0xf]
      %v5318 = vld [vmem:[%s3285 + $0x20] sm:$0xf]
      %v5319 = vld [vmem:[%s3285 + $0x24] sm:$0xf]
      %v5320 = vld [vmem:[%s3285 + $0x28] sm:$0xf]
      %v5321 = vld [vmem:[%s3285 + $0x2c] sm:$0xf]
      %v5322 = vld [vmem:[%s3285 + $0x30] sm:$0xf]
      %v5323 = vld [vmem:[%s3285 + $0x34] sm:$0xf]
      %v5324 = vld [vmem:[%s3285 + $0x38] sm:$0xf]
      %v5325 = vld [vmem:[%s3285 + $0x3c] sm:$0xf]
      %v5344 = vunpack.c.l.b16 %v5292
      %v5345 = vunpack.c.l.b16 %v5293
      %v5346 = vunpack.c.l.b16 %v5294
      %v5347 = vunpack.c.l.b16 %v5295
      %v5348 = vunpack.c.l.b16 %v5296
      %v5349 = vunpack.c.l.b16 %v5297
      %v5350 = vunpack.c.l.b16 %v5298
      %v5351 = vunpack.c.l.b16 %v5299
      %v5352 = vunpack.c.l.b16 %v5300
      %v5353 = vunpack.c.l.b16 %v5301
      %v5354 = vunpack.c.l.b16 %v5302
      %v5355 = vunpack.c.l.b16 %v5303
      %v5356 = vunpack.c.l.b16 %v5304
      %v5357 = vunpack.c.l.b16 %v5305
      %v5358 = vunpack.c.l.b16 %v5306
      %v5359 = vunpack.c.l.b16 %v5307
      %v5360 = vunpack.c.l.b16 %v5308
      %v5361 = vunpack.c.l.b16 %v5309
      %v5362 = vpack.c.b16 %v5345, %v5344
      %v5363 = vpack.c.b16 %v5347, %v5346
      %v5364 = vpack.c.b16 %v5349, %v5348
      %v5365 = vpack.c.b16 %v5351, %v5350
      %v5366 = vpack.c.b16 %v5353, %v5352
      %v5367 = vpack.c.b16 %v5355, %v5354
      %v5368 = vpack.c.b16 %v5357, %v5356
      %v5369 = vpack.c.b16 %v5359, %v5358
      %v5370 = vpack.c.b16 %v5361, %v5360
      %v5396 = vunpack.c.l.b16 %v5310
      %v5397 = vunpack.c.l.b16 %v5311
      %v5398 = vunpack.c.l.b16 %v5312
      %v5399 = vunpack.c.l.b16 %v5313
      %v5400 = vunpack.c.l.b16 %v5314
      %v5401 = vunpack.c.l.b16 %v5315
      %v5402 = vunpack.c.l.b16 %v5316
      %v5403 = vunpack.c.l.b16 %v5317
      %v5404 = vunpack.c.l.b16 %v5318
      %v5405 = vunpack.c.l.b16 %v5319
      %v5406 = vunpack.c.l.b16 %v5320
      %v5407 = vunpack.c.l.b16 %v5321
      %v5408 = vunpack.c.l.b16 %v5322
      %v5409 = vunpack.c.l.b16 %v5323
      %v5410 = vunpack.c.l.b16 %v5324
      %v5411 = vunpack.c.l.b16 %v5325
      %v5412 = vpack.c.b16 %v5397, %v5396
      %v5413 = vpack.c.b16 %v5399, %v5398
      %v5414 = vpack.c.b16 %v5401, %v5400
      %v5415 = vpack.c.b16 %v5403, %v5402
      %v5416 = vpack.c.b16 %v5405, %v5404
      %v5417 = vpack.c.b16 %v5407, %v5406
      %v5418 = vpack.c.b16 %v5409, %v5408
      %v5419 = vpack.c.b16 %v5411, %v5410
      %5428 = vmatpush.bf16.msra.mxu0 %v5419
      %5429 = vmatpush.bf16.msra.mxu0 %v5418
      %5430 = vmatpush.bf16.msra.mxu0 %v5417
      %5431 = vmatpush.bf16.msra.mxu0 %v5416
      %5432 = vmatpush.bf16.msra.mxu0 %v5415
      %5433 = vmatpush.bf16.msra.mxu0 %v5414
      %5434 = vmatpush.bf16.msra.mxu0 %v5413
      %5435 = vmatpush.bf16.msra.mxu0 %v5412
      %5436 = vmatmul.bf16.gmra.mxu0 %v5362
      %v5437 = vpop.f32.mrf.mxu0
      %v5438 = vadd.f32 0.0, %v5437
      %v5439 = vpop.f32.mrf.mxu0
      %v5440 = vadd.f32 0.0, %v5439
      %5441 = vmatmul.bf16.gmra.mxu0 %v5363
      %v5442 = vpop.f32.mrf.mxu0
      %v5443 = vadd.f32 0.0, %v5442
      %v5444 = vpop.f32.mrf.mxu0
      %v5445 = vadd.f32 0.0, %v5444
      %5446 = vmatmul.bf16.gmra.mxu0 %v5364
      %v5447 = vpop.f32.mrf.mxu0
      %v5448 = vadd.f32 0.0, %v5447
      %v5449 = vpop.f32.mrf.mxu0
      %v5450 = vadd.f32 0.0, %v5449
      %5451 = vmatmul.bf16.gmra.mxu0 %v5365
      %v5452 = vpop.f32.mrf.mxu0
      %v5453 = vadd.f32 0.0, %v5452
      %v5454 = vpop.f32.mrf.mxu0
      %v5455 = vadd.f32 0.0, %v5454
      %5456 = vmatmul.bf16.gmra.mxu0 %v5366
      %v5457 = vpop.f32.mrf.mxu0
      %v5458 = vadd.f32 0.0, %v5457
      %v5459 = vpop.f32.mrf.mxu0
      %v5460 = vadd.f32 0.0, %v5459
      %5461 = vmatmul.bf16.gmra.mxu0 %v5367
      %v5462 = vpop.f32.mrf.mxu0
      %v5463 = vadd.f32 0.0, %v5462
      %v5464 = vpop.f32.mrf.mxu0
      %v5465 = vadd.f32 0.0, %v5464
      %5466 = vmatmul.bf16.gmra.mxu0 %v5368
      %v5467 = vpop.f32.mrf.mxu0
      %v5468 = vadd.f32 0.0, %v5467
      %v5469 = vpop.f32.mrf.mxu0
      %v5470 = vadd.f32 0.0, %v5469
      %5471 = vmatmul.bf16.gmra.mxu0 %v5369
      %v5472 = vpop.f32.mrf.mxu0
      %v5473 = vadd.f32 0.0, %v5472
      %v5474 = vpop.f32.mrf.mxu0
      %v5475 = vadd.f32 0.0, %v5474
      %5476 = vmatmul.bf16.gmra.mxu0 %v5370
      %v5477 = vpop.f32.mrf.mxu0
      %v5478 = vadd.f32 0.0, %v5477
      %v5479 = vpop.f32.mrf.mxu0
      %v5480 = vadd.f32 0.0, %v5479
      %5481 = vdwg.mxu0
      %v5482 = vadd.f32 %v5274, %v5438
      %v5483 = vadd.f32 %v5275, %v5440
      %v5484 = vadd.f32 %v5276, %v5443
      %v5485 = vadd.f32 %v5277, %v5445
      %v5486 = vadd.f32 %v5278, %v5448
      %v5487 = vadd.f32 %v5279, %v5450
      %v5488 = vadd.f32 %v5280, %v5453
      %v5489 = vadd.f32 %v5281, %v5455
      %v5490 = vadd.f32 %v5282, %v5458
      %v5491 = vadd.f32 %v5283, %v5460
      %v5492 = vadd.f32 %v5284, %v5463
      %v5493 = vadd.f32 %v5285, %v5465
      %v5494 = vadd.f32 %v5286, %v5468
      %v5495 = vadd.f32 %v5287, %v5470
      %v5496 = vadd.f32 %v5288, %v5473
      %v5497 = vadd.f32 %v5289, %v5475
      %v5498 = vadd.f32 %v5290, %v5478
      %v5499 = vadd.f32 %v5291, %v5480
      %v5500 = vld [vmem:[#allocation4 + $0x48] sm:$0xc]
      %v5501 = vld [vmem:[#allocation4 + $0x4c] sm:$0xf]
      %v5502 = vld [vmem:[#allocation4 + $0x50] sm:$0xf]
      %v5503 = vld [vmem:[#allocation4 + $0x54] sm:$0xf]
      %v5504 = vld [vmem:[#allocation4 + $0x58] sm:$0xf]
      %v5505 = vld [vmem:[#allocation4 + $0x5c] sm:$0xf]
      %v5506 = vld [vmem:[#allocation4 + $0x60] sm:$0xf]
      %v5507 = vld [vmem:[#allocation4 + $0x64] sm:$0xf]
      %v5508 = vld [vmem:[#allocation4 + $0x68] sm:$0xf]
      %v5509 = vld [vmem:[#allocation4 + $0x6c] sm:$0xf]
      %v5510 = vld [vmem:[#allocation4 + $0x70] sm:$0xf]
      %v5511 = vld [vmem:[#allocation4 + $0x74] sm:$0xf]
      %v5512 = vld [vmem:[#allocation4 + $0x78] sm:$0xf]
      %v5513 = vld [vmem:[#allocation4 + $0x7c] sm:$0xf]
      %v5514 = vld [vmem:[#allocation4 + $0x80] sm:$0xf]
      %v5515 = vld [vmem:[#allocation4 + $0x84] sm:$0xf]
      %v5516 = vld [vmem:[#allocation4 + $0x88] sm:$0xf]
      %v5517 = vld [vmem:[#allocation4 + $0x8c] sm:$0xf]
      %v5518 = vld [vmem:[#allocation4 + $0x90] sm:$0x3]
      %v5519 = vld [vmem:[%s3495] sm:$0xf]
      %v5520 = vld [vmem:[%s3495 + $0x4] sm:$0xf]
      %v5521 = vld [vmem:[%s3495 + $0x8] sm:$0xf]
      %v5522 = vld [vmem:[%s3495 + $0xc] sm:$0xf]
      %v5523 = vld [vmem:[%s3495 + $0x10] sm:$0xf]
      %v5524 = vld [vmem:[%s3495 + $0x14] sm:$0xf]
      %v5525 = vld [vmem:[%s3495 + $0x18] sm:$0xf]
      %v5526 = vld [vmem:[%s3495 + $0x1c] sm:$0xf]
      %v5527 = vld [vmem:[%s3495 + $0x20] sm:$0xf]
      %v5528 = vld [vmem:[%s3495 + $0x24] sm:$0xf]
      %v5529 = vld [vmem:[%s3495 + $0x28] sm:$0xf]
      %v5530 = vld [vmem:[%s3495 + $0x2c] sm:$0xf]
      %v5531 = vld [vmem:[%s3495 + $0x30] sm:$0xf]
      %v5532 = vld [vmem:[%s3495 + $0x34] sm:$0xf]
      %v5533 = vld [vmem:[%s3495 + $0x38] sm:$0xf]
      %v5534 = vld [vmem:[%s3495 + $0x3c] sm:$0xf]
      %v5554 = vunpack.c.l.b16 %v5500
      %v5555 = vunpack.c.l.b16 %v5501
      %v5556 = vunpack.c.l.b16 %v5502
      %v5557 = vunpack.c.l.b16 %v5503
      %v5558 = vunpack.c.l.b16 %v5504
      %v5559 = vunpack.c.l.b16 %v5505
      %v5560 = vunpack.c.l.b16 %v5506
      %v5561 = vunpack.c.l.b16 %v5507
      %v5562 = vunpack.c.l.b16 %v5508
      %v5563 = vunpack.c.l.b16 %v5509
      %v5564 = vunpack.c.l.b16 %v5510
      %v5565 = vunpack.c.l.b16 %v5511
      %v5566 = vunpack.c.l.b16 %v5512
      %v5567 = vunpack.c.l.b16 %v5513
      %v5568 = vunpack.c.l.b16 %v5514
      %v5569 = vunpack.c.l.b16 %v5515
      %v5570 = vunpack.c.l.b16 %v5516
      %v5571 = vunpack.c.l.b16 %v5517
      %v5572 = vunpack.c.l.b16 %v5518
      %v5573 = vpack.c.b16 %v5555, %v5554
      %v5574 = vpack.c.b16 %v5557, %v5556
      %v5575 = vpack.c.b16 %v5559, %v5558
      %v5576 = vpack.c.b16 %v5561, %v5560
      %v5577 = vpack.c.b16 %v5563, %v5562
      %v5578 = vpack.c.b16 %v5565, %v5564
      %v5579 = vpack.c.b16 %v5567, %v5566
      %v5580 = vpack.c.b16 %v5569, %v5568
      %v5581 = vpack.c.b16 %v5571, %v5570
      %v5582 = vpack.c.b16 %v5572, %v5572
      %v5583 = vrot.slane %v5573, 2
      %v5584 = vrot.slane %v5574, 2
      %v5585 = vsel %vm2567, %v5583, %v5584
      %v5586 = vrot.slane %v5575, 2
      %v5587 = vsel %vm2567, %v5584, %v5586
      %v5588 = vrot.slane %v5576, 2
      %v5589 = vsel %vm2567, %v5586, %v5588
      %v5590 = vrot.slane %v5577, 2
      %v5591 = vsel %vm2567, %v5588, %v5590
      %v5592 = vrot.slane %v5578, 2
      %v5593 = vsel %vm2567, %v5590, %v5592
      %v5594 = vrot.slane %v5579, 2
      %v5595 = vsel %vm2567, %v5592, %v5594
      %v5596 = vrot.slane %v5580, 2
      %v5597 = vsel %vm2567, %v5594, %v5596
      %v5598 = vrot.slane %v5581, 2
      %v5599 = vsel %vm2567, %v5596, %v5598
      %v5600 = vrot.slane %v5582, 2
      %v5601 = vsel %vm2567, %v5598, %v5600
      %v5627 = vunpack.c.l.b16 %v5519
      %v5628 = vunpack.c.l.b16 %v5520
      %v5629 = vunpack.c.l.b16 %v5521
      %v5630 = vunpack.c.l.b16 %v5522
      %v5631 = vunpack.c.l.b16 %v5523
      %v5632 = vunpack.c.l.b16 %v5524
      %v5633 = vunpack.c.l.b16 %v5525
      %v5634 = vunpack.c.l.b16 %v5526
      %v5635 = vunpack.c.l.b16 %v5527
      %v5636 = vunpack.c.l.b16 %v5528
      %v5637 = vunpack.c.l.b16 %v5529
      %v5638 = vunpack.c.l.b16 %v5530
      %v5639 = vunpack.c.l.b16 %v5531
      %v5640 = vunpack.c.l.b16 %v5532
      %v5641 = vunpack.c.l.b16 %v5533
      %v5642 = vunpack.c.l.b16 %v5534
      %v5643 = vpack.c.b16 %v5628, %v5627
      %v5644 = vpack.c.b16 %v5630, %v5629
      %v5645 = vpack.c.b16 %v5632, %v5631
      %v5646 = vpack.c.b16 %v5634, %v5633
      %v5647 = vpack.c.b16 %v5636, %v5635
      %v5648 = vpack.c.b16 %v5638, %v5637
      %v5649 = vpack.c.b16 %v5640, %v5639
      %v5650 = vpack.c.b16 %v5642, %v5641
      %5659 = vmatpush.bf16.msra.mxu0 %v5650
      %5660 = vmatpush.bf16.msra.mxu0 %v5649
      %5661 = vmatpush.bf16.msra.mxu0 %v5648
      %5662 = vmatpush.bf16.msra.mxu0 %v5647
      %5663 = vmatpush.bf16.msra.mxu0 %v5646
      %5664 = vmatpush.bf16.msra.mxu0 %v5645
      %5665 = vmatpush.bf16.msra.mxu0 %v5644
      %5666 = vmatpush.bf16.msra.mxu0 %v5643
      %5667 = vmatmul.bf16.gmra.mxu0 %v5585
      %v5668 = vpop.f32.mrf.mxu0
      %v5669 = vadd.f32 0.0, %v5668
      %v5670 = vpop.f32.mrf.mxu0
      %v5671 = vadd.f32 0.0, %v5670
      %5672 = vmatmul.bf16.gmra.mxu0 %v5587
      %v5673 = vpop.f32.mrf.mxu0
      %v5674 = vadd.f32 0.0, %v5673
      %v5675 = vpop.f32.mrf.mxu0
      %v5676 = vadd.f32 0.0, %v5675
      %5677 = vmatmul.bf16.gmra.mxu0 %v5589
      %v5678 = vpop.f32.mrf.mxu0
      %v5679 = vadd.f32 0.0, %v5678
      %v5680 = vpop.f32.mrf.mxu0
      %v5681 = vadd.f32 0.0, %v5680
      %5682 = vmatmul.bf16.gmra.mxu0 %v5591
      %v5683 = vpop.f32.mrf.mxu0
      %v5684 = vadd.f32 0.0, %v5683
      %v5685 = vpop.f32.mrf.mxu0
      %v5686 = vadd.f32 0.0, %v5685
      %5687 = vmatmul.bf16.gmra.mxu0 %v5593
      %v5688 = vpop.f32.mrf.mxu0
      %v5689 = vadd.f32 0.0, %v5688
      %v5690 = vpop.f32.mrf.mxu0
      %v5691 = vadd.f32 0.0, %v5690
      %5692 = vmatmul.bf16.gmra.mxu0 %v5595
      %v5693 = vpop.f32.mrf.mxu0
      %v5694 = vadd.f32 0.0, %v5693
      %v5695 = vpop.f32.mrf.mxu0
      %v5696 = vadd.f32 0.0, %v5695
      %5697 = vmatmul.bf16.gmra.mxu0 %v5597
      %v5698 = vpop.f32.mrf.mxu0
      %v5699 = vadd.f32 0.0, %v5698
      %v5700 = vpop.f32.mrf.mxu0
      %v5701 = vadd.f32 0.0, %v5700
      %5702 = vmatmul.bf16.gmra.mxu0 %v5599
      %v5703 = vpop.f32.mrf.mxu0
      %v5704 = vadd.f32 0.0, %v5703
      %v5705 = vpop.f32.mrf.mxu0
      %v5706 = vadd.f32 0.0, %v5705
      %5707 = vmatmul.bf16.gmra.mxu0 %v5601
      %v5708 = vpop.f32.mrf.mxu0
      %v5709 = vadd.f32 0.0, %v5708
      %v5710 = vpop.f32.mrf.mxu0
      %v5711 = vadd.f32 0.0, %v5710
      %5712 = vdwg.mxu0
      %v5713 = vadd.f32 %v5482, %v5669
      %v5714 = vadd.f32 %v5483, %v5671
      %v5715 = vadd.f32 %v5484, %v5674
      %v5716 = vadd.f32 %v5485, %v5676
      %v5717 = vadd.f32 %v5486, %v5679
      %v5718 = vadd.f32 %v5487, %v5681
      %v5719 = vadd.f32 %v5488, %v5684
      %v5720 = vadd.f32 %v5489, %v5686
      %v5721 = vadd.f32 %v5490, %v5689
      %v5722 = vadd.f32 %v5491, %v5691
      %v5723 = vadd.f32 %v5492, %v5694
      %v5724 = vadd.f32 %v5493, %v5696
      %v5725 = vadd.f32 %v5494, %v5699
      %v5726 = vadd.f32 %v5495, %v5701
      %v5727 = vadd.f32 %v5496, %v5704
      %v5728 = vadd.f32 %v5497, %v5706
      %v5729 = vadd.f32 %v5498, %v5709
      %v5730 = vadd.f32 %v5499, %v5711
      %v5731 = vld [vmem:[#allocation4 + $0x9c] sm:$0xf]
      %v5732 = vld [vmem:[%s3709] sm:$0xf]
      %v5733 = vld [vmem:[%s3709 + $0x4] sm:$0xf]
      %v5734 = vld [vmem:[%s3709 + $0x8] sm:$0xf]
      %v5735 = vld [vmem:[%s3709 + $0xc] sm:$0xf]
      %v5736 = vld [vmem:[%s3709 + $0x10] sm:$0xf]
      %v5737 = vld [vmem:[%s3709 + $0x14] sm:$0xf]
      %v5738 = vld [vmem:[%s3709 + $0x18] sm:$0xf]
      %v5739 = vld [vmem:[%s3709 + $0x1c] sm:$0xf]
      %v5740 = vld [vmem:[%s3709 + $0x20] sm:$0xf]
      %v5741 = vld [vmem:[%s3709 + $0x24] sm:$0xf]
      %v5742 = vld [vmem:[%s3709 + $0x28] sm:$0xf]
      %v5743 = vld [vmem:[%s3709 + $0x2c] sm:$0xf]
      %v5744 = vld [vmem:[%s3709 + $0x30] sm:$0xf]
      %v5745 = vld [vmem:[%s3709 + $0x34] sm:$0xf]
      %v5746 = vld [vmem:[%s3709 + $0x38] sm:$0xf]
      %v5747 = vld [vmem:[%s3709 + $0x3c] sm:$0xf]
      %v5749 = vunpack.c.l.b16 %v5731
      %v5750 = vpack.c.b16 %v4582, %v4581
      %v5751 = vpack.c.b16 %v5749, %v4583
      %v5770 = vunpack.c.l.b16 %v5732
      %v5771 = vunpack.c.l.b16 %v5733
      %v5772 = vunpack.c.l.b16 %v5734
      %v5773 = vunpack.c.l.b16 %v5735
      %v5774 = vunpack.c.l.b16 %v5736
      %v5775 = vunpack.c.l.b16 %v5737
      %v5776 = vunpack.c.l.b16 %v5738
      %v5777 = vunpack.c.l.b16 %v5739
      %v5778 = vunpack.c.l.b16 %v5740
      %v5779 = vunpack.c.l.b16 %v5741
      %v5780 = vunpack.c.l.b16 %v5742
      %v5781 = vunpack.c.l.b16 %v5743
      %v5782 = vunpack.c.l.b16 %v5744
      %v5783 = vunpack.c.l.b16 %v5745
      %v5784 = vunpack.c.l.b16 %v5746
      %v5785 = vunpack.c.l.b16 %v5747
      %v5786 = vpack.c.b16 %v5771, %v5770
      %v5787 = vpack.c.b16 %v5773, %v5772
      %v5788 = vpack.c.b16 %v5775, %v5774
      %v5789 = vpack.c.b16 %v5777, %v5776
      %v5790 = vpack.c.b16 %v5779, %v5778
      %v5791 = vpack.c.b16 %v5781, %v5780
      %v5792 = vpack.c.b16 %v5783, %v5782
      %v5793 = vpack.c.b16 %v5785, %v5784
      %5802 = vmatpush.bf16.msra.mxu0 %v5793
      %5803 = vmatpush.bf16.msra.mxu0 %v5792
      %5804 = vmatpush.bf16.msra.mxu0 %v5791
      %5805 = vmatpush.bf16.msra.mxu0 %v5790
      %5806 = vmatpush.bf16.msra.mxu0 %v5789
      %5807 = vmatpush.bf16.msra.mxu0 %v5788
      %5808 = vmatpush.bf16.msra.mxu0 %v5787
      %5809 = vmatpush.bf16.msra.mxu0 %v5786
      %5810 = vmatmul.bf16.gmra.mxu0 %v4735
      %v5811 = vpop.f32.mrf.mxu0
      %v5812 = vadd.f32 0.0, %v5811
      %v5813 = vpop.f32.mrf.mxu0
      %v5814 = vadd.f32 0.0, %v5813
      %5815 = vmatmul.bf16.gmra.mxu0 %v4736
      %v5816 = vpop.f32.mrf.mxu0
      %v5817 = vadd.f32 0.0, %v5816
      %v5818 = vpop.f32.mrf.mxu0
      %v5819 = vadd.f32 0.0, %v5818
      %5820 = vmatmul.bf16.gmra.mxu0 %v4737
      %v5821 = vpop.f32.mrf.mxu0
      %v5822 = vadd.f32 0.0, %v5821
      %v5823 = vpop.f32.mrf.mxu0
      %v5824 = vadd.f32 0.0, %v5823
      %5825 = vmatmul.bf16.gmra.mxu0 %v4738
      %v5826 = vpop.f32.mrf.mxu0
      %v5827 = vadd.f32 0.0, %v5826
      %v5828 = vpop.f32.mrf.mxu0
      %v5829 = vadd.f32 0.0, %v5828
      %5830 = vmatmul.bf16.gmra.mxu0 %v4739
      %v5831 = vpop.f32.mrf.mxu0
      %v5832 = vadd.f32 0.0, %v5831
      %v5833 = vpop.f32.mrf.mxu0
      %v5834 = vadd.f32 0.0, %v5833
      %5835 = vmatmul.bf16.gmra.mxu0 %v4740
      %v5836 = vpop.f32.mrf.mxu0
      %v5837 = vadd.f32 0.0, %v5836
      %v5838 = vpop.f32.mrf.mxu0
      %v5839 = vadd.f32 0.0, %v5838
      %5840 = vmatmul.bf16.gmra.mxu0 %v4741
      %v5841 = vpop.f32.mrf.mxu0
      %v5842 = vadd.f32 0.0, %v5841
      %v5843 = vpop.f32.mrf.mxu0
      %v5844 = vadd.f32 0.0, %v5843
      %5845 = vmatmul.bf16.gmra.mxu0 %v5750
      %v5846 = vpop.f32.mrf.mxu0
      %v5847 = vadd.f32 0.0, %v5846
      %v5848 = vpop.f32.mrf.mxu0
      %v5849 = vadd.f32 0.0, %v5848
      %5850 = vmatmul.bf16.gmra.mxu0 %v5751
      %v5851 = vpop.f32.mrf.mxu0
      %v5852 = vadd.f32 0.0, %v5851
      %v5853 = vpop.f32.mrf.mxu0
      %v5854 = vadd.f32 0.0, %v5853
      %5855 = vdwg.mxu0
      %v5856 = vadd.f32 %v5713, %v5812
      %v5857 = vadd.f32 %v5714, %v5814
      %v5858 = vadd.f32 %v5715, %v5817
      %v5859 = vadd.f32 %v5716, %v5819
      %v5860 = vadd.f32 %v5717, %v5822
      %v5861 = vadd.f32 %v5718, %v5824
      %v5862 = vadd.f32 %v5719, %v5827
      %v5863 = vadd.f32 %v5720, %v5829
      %v5864 = vadd.f32 %v5721, %v5832
      %v5865 = vadd.f32 %v5722, %v5834
      %v5866 = vadd.f32 %v5723, %v5837
      %v5867 = vadd.f32 %v5724, %v5839
      %v5868 = vadd.f32 %v5725, %v5842
      %v5869 = vadd.f32 %v5726, %v5844
      %v5870 = vadd.f32 %v5727, %v5847
      %v5871 = vadd.f32 %v5728, %v5849
      %v5872 = vadd.f32 %v5729, %v5852
      %v5873 = vadd.f32 %v5730, %v5854
      %v5874 = vld [vmem:[#allocation4 + $0x64] sm:$0xc]
      %v5875 = vld [vmem:[#allocation4 + $0x68] sm:$0xf]
      %v5876 = vld [vmem:[#allocation4 + $0x6c] sm:$0xf]
      %v5877 = vld [vmem:[#allocation4 + $0x70] sm:$0xf]
      %v5878 = vld [vmem:[#allocation4 + $0x74] sm:$0xf]
      %v5879 = vld [vmem:[#allocation4 + $0x78] sm:$0xf]
      %v5880 = vld [vmem:[#allocation4 + $0x7c] sm:$0xf]
      %v5881 = vld [vmem:[#allocation4 + $0x80] sm:$0xf]
      %v5882 = vld [vmem:[#allocation4 + $0x84] sm:$0xf]
      %v5883 = vld [vmem:[#allocation4 + $0x88] sm:$0xf]
      %v5884 = vld [vmem:[#allocation4 + $0x8c] sm:$0xf]
      %v5885 = vld [vmem:[#allocation4 + $0x90] sm:$0xf]
      %v5886 = vld [vmem:[#allocation4 + $0x94] sm:$0xf]
      %v5887 = vld [vmem:[#allocation4 + $0x98] sm:$0xf]
      %v5888 = vld [vmem:[#allocation4 + $0x9c] sm:$0xf]
      %v5889 = vld [vmem:[#allocation4 + $0xa0] sm:$0xf]
      %v5890 = vld [vmem:[#allocation4 + $0xa4] sm:$0xf]
      %v5891 = vld [vmem:[#allocation4 + $0xa8] sm:$0xf]
      %v5892 = vld [vmem:[#allocation4 + $0xac] sm:$0x3]
      %v5893 = vld [vmem:[%s3871] sm:$0xf]
      %v5894 = vld [vmem:[%s3871 + $0x4] sm:$0xf]
      %v5895 = vld [vmem:[%s3871 + $0x8] sm:$0xf]
      %v5896 = vld [vmem:[%s3871 + $0xc] sm:$0xf]
      %v5897 = vld [vmem:[%s3871 + $0x10] sm:$0xf]
      %v5898 = vld [vmem:[%s3871 + $0x14] sm:$0xf]
      %v5899 = vld [vmem:[%s3871 + $0x18] sm:$0xf]
      %v5900 = vld [vmem:[%s3871 + $0x1c] sm:$0xf]
      %v5901 = vld [vmem:[%s3871 + $0x20] sm:$0xf]
      %v5902 = vld [vmem:[%s3871 + $0x24] sm:$0xf]
      %v5903 = vld [vmem:[%s3871 + $0x28] sm:$0xf]
      %v5904 = vld [vmem:[%s3871 + $0x2c] sm:$0xf]
      %v5905 = vld [vmem:[%s3871 + $0x30] sm:$0xf]
      %v5906 = vld [vmem:[%s3871 + $0x34] sm:$0xf]
      %v5907 = vld [vmem:[%s3871 + $0x38] sm:$0xf]
      %v5908 = vld [vmem:[%s3871 + $0x3c] sm:$0xf]
      %v5928 = vunpack.c.l.b16 %v5874
      %v5929 = vunpack.c.l.b16 %v5875
      %v5930 = vunpack.c.l.b16 %v5876
      %v5931 = vunpack.c.l.b16 %v5877
      %v5932 = vunpack.c.l.b16 %v5878
      %v5933 = vunpack.c.l.b16 %v5879
      %v5934 = vunpack.c.l.b16 %v5880
      %v5935 = vunpack.c.l.b16 %v5881
      %v5936 = vunpack.c.l.b16 %v5882
      %v5937 = vunpack.c.l.b16 %v5883
      %v5938 = vunpack.c.l.b16 %v5884
      %v5939 = vunpack.c.l.b16 %v5885
      %v5940 = vunpack.c.l.b16 %v5886
      %v5941 = vunpack.c.l.b16 %v5887
      %v5942 = vunpack.c.l.b16 %v5888
      %v5943 = vunpack.c.l.b16 %v5889
      %v5944 = vunpack.c.l.b16 %v5890
      %v5945 = vunpack.c.l.b16 %v5891
      %v5946 = vunpack.c.l.b16 %v5892
      %v5947 = vpack.c.b16 %v5929, %v5928
      %v5948 = vpack.c.b16 %v5931, %v5930
      %v5949 = vpack.c.b16 %v5933, %v5932
      %v5950 = vpack.c.b16 %v5935, %v5934
      %v5951 = vpack.c.b16 %v5937, %v5936
      %v5952 = vpack.c.b16 %v5939, %v5938
      %v5953 = vpack.c.b16 %v5941, %v5940
      %v5954 = vpack.c.b16 %v5943, %v5942
      %v5955 = vpack.c.b16 %v5945, %v5944
      %v5956 = vpack.c.b16 %v5946, %v5946
      %v5957 = vrot.slane %v5947, 2
      %v5958 = vrot.slane %v5948, 2
      %v5959 = vsel %vm2567, %v5957, %v5958
      %v5960 = vrot.slane %v5949, 2
      %v5961 = vsel %vm2567, %v5958, %v5960
      %v5962 = vrot.slane %v5950, 2
      %v5963 = vsel %vm2567, %v5960, %v5962
      %v5964 = vrot.slane %v5951, 2
      %v5965 = vsel %vm2567, %v5962, %v5964
      %v5966 = vrot.slane %v5952, 2
      %v5967 = vsel %vm2567, %v5964, %v5966
      %v5968 = vrot.slane %v5953, 2
      %v5969 = vsel %vm2567, %v5966, %v5968
      %v5970 = vrot.slane %v5954, 2
      %v5971 = vsel %vm2567, %v5968, %v5970
      %v5972 = vrot.slane %v5955, 2
      %v5973 = vsel %vm2567, %v5970, %v5972
      %v5974 = vrot.slane %v5956, 2
      %v5975 = vsel %vm2567, %v5972, %v5974
      %v6001 = vunpack.c.l.b16 %v5893
      %v6002 = vunpack.c.l.b16 %v5894
      %v6003 = vunpack.c.l.b16 %v5895
      %v6004 = vunpack.c.l.b16 %v5896
      %v6005 = vunpack.c.l.b16 %v5897
      %v6006 = vunpack.c.l.b16 %v5898
      %v6007 = vunpack.c.l.b16 %v5899
      %v6008 = vunpack.c.l.b16 %v5900
      %v6009 = vunpack.c.l.b16 %v5901
      %v6010 = vunpack.c.l.b16 %v5902
      %v6011 = vunpack.c.l.b16 %v5903
      %v6012 = vunpack.c.l.b16 %v5904
      %v6013 = vunpack.c.l.b16 %v5905
      %v6014 = vunpack.c.l.b16 %v5906
      %v6015 = vunpack.c.l.b16 %v5907
      %v6016 = vunpack.c.l.b16 %v5908
      %v6017 = vpack.c.b16 %v6002, %v6001
      %v6018 = vpack.c.b16 %v6004, %v6003
      %v6019 = vpack.c.b16 %v6006, %v6005
      %v6020 = vpack.c.b16 %v6008, %v6007
      %v6021 = vpack.c.b16 %v6010, %v6009
      %v6022 = vpack.c.b16 %v6012, %v6011
      %v6023 = vpack.c.b16 %v6014, %v6013
      %v6024 = vpack.c.b16 %v6016, %v6015
      %6033 = vmatpush.bf16.msra.mxu0 %v6024
      %6034 = vmatpush.bf16.msra.mxu0 %v6023
      %6035 = vmatpush.bf16.msra.mxu0 %v6022
      %6036 = vmatpush.bf16.msra.mxu0 %v6021
      %6037 = vmatpush.bf16.msra.mxu0 %v6020
      %6038 = vmatpush.bf16.msra.mxu0 %v6019
      %6039 = vmatpush.bf16.msra.mxu0 %v6018
      %6040 = vmatpush.bf16.msra.mxu0 %v6017
      %6041 = vmatmul.bf16.gmra.mxu0 %v5959
      %v6042 = vpop.f32.mrf.mxu0
      %v6043 = vadd.f32 0.0, %v6042
      %v6044 = vpop.f32.mrf.mxu0
      %v6045 = vadd.f32 0.0, %v6044
      %6046 = vmatmul.bf16.gmra.mxu0 %v5961
      %v6047 = vpop.f32.mrf.mxu0
      %v6048 = vadd.f32 0.0, %v6047
      %v6049 = vpop.f32.mrf.mxu0
      %v6050 = vadd.f32 0.0, %v6049
      %6051 = vmatmul.bf16.gmra.mxu0 %v5963
      %v6052 = vpop.f32.mrf.mxu0
      %v6053 = vadd.f32 0.0, %v6052
      %v6054 = vpop.f32.mrf.mxu0
      %v6055 = vadd.f32 0.0, %v6054
      %6056 = vmatmul.bf16.gmra.mxu0 %v5965
      %v6057 = vpop.f32.mrf.mxu0
      %v6058 = vadd.f32 0.0, %v6057
      %v6059 = vpop.f32.mrf.mxu0
      %v6060 = vadd.f32 0.0, %v6059
      %6061 = vmatmul.bf16.gmra.mxu0 %v5967
      %v6062 = vpop.f32.mrf.mxu0
      %v6063 = vadd.f32 0.0, %v6062
      %v6064 = vpop.f32.mrf.mxu0
      %v6065 = vadd.f32 0.0, %v6064
      %6066 = vmatmul.bf16.gmra.mxu0 %v5969
      %v6067 = vpop.f32.mrf.mxu0
      %v6068 = vadd.f32 0.0, %v6067
      %v6069 = vpop.f32.mrf.mxu0
      %v6070 = vadd.f32 0.0, %v6069
      %6071 = vmatmul.bf16.gmra.mxu0 %v5971
      %v6072 = vpop.f32.mrf.mxu0
      %v6073 = vadd.f32 0.0, %v6072
      %v6074 = vpop.f32.mrf.mxu0
      %v6075 = vadd.f32 0.0, %v6074
      %6076 = vmatmul.bf16.gmra.mxu0 %v5973
      %v6077 = vpop.f32.mrf.mxu0
      %v6078 = vadd.f32 0.0, %v6077
      %v6079 = vpop.f32.mrf.mxu0
      %v6080 = vadd.f32 0.0, %v6079
      %6081 = vmatmul.bf16.gmra.mxu0 %v5975
      %v6082 = vpop.f32.mrf.mxu0
      %v6083 = vadd.f32 0.0, %v6082
      %v6084 = vpop.f32.mrf.mxu0
      %v6085 = vadd.f32 0.0, %v6084
      %6086 = vdwg.mxu0
      %v6087 = vadd.f32 %v5856, %v6043
      %v6088 = vadd.f32 %v5857, %v6045
      %v6089 = vadd.f32 %v5858, %v6048
      %v6090 = vadd.f32 %v5859, %v6050
      %v6091 = vadd.f32 %v5860, %v6053
      %v6092 = vadd.f32 %v5861, %v6055
      %v6093 = vadd.f32 %v5862, %v6058
      %v6094 = vadd.f32 %v5863, %v6060
      %v6095 = vadd.f32 %v5864, %v6063
      %v6096 = vadd.f32 %v5865, %v6065
      %v6097 = vadd.f32 %v5866, %v6068
      %v6098 = vadd.f32 %v5867, %v6070
      %v6099 = vadd.f32 %v5868, %v6073
      %v6100 = vadd.f32 %v5869, %v6075
      %v6101 = vadd.f32 %v5870, %v6078
      %v6102 = vadd.f32 %v5871, %v6080
      %v6103 = vadd.f32 %v5872, %v6083
      %v6104 = vadd.f32 %v5873, %v6085
      %v6105 = vld [vmem:[#allocation4 + $0xb8] sm:$0xf]
      %v6106 = vld [vmem:[%s4085] sm:$0xf]
      %v6107 = vld [vmem:[%s4085 + $0x4] sm:$0xf]
      %v6108 = vld [vmem:[%s4085 + $0x8] sm:$0xf]
      %v6109 = vld [vmem:[%s4085 + $0xc] sm:$0xf]
      %v6110 = vld [vmem:[%s4085 + $0x10] sm:$0xf]
      %v6111 = vld [vmem:[%s4085 + $0x14] sm:$0xf]
      %v6112 = vld [vmem:[%s4085 + $0x18] sm:$0xf]
      %v6113 = vld [vmem:[%s4085 + $0x1c] sm:$0xf]
      %v6114 = vld [vmem:[%s4085 + $0x20] sm:$0xf]
      %v6115 = vld [vmem:[%s4085 + $0x24] sm:$0xf]
      %v6116 = vld [vmem:[%s4085 + $0x28] sm:$0xf]
      %v6117 = vld [vmem:[%s4085 + $0x2c] sm:$0xf]
      %v6118 = vld [vmem:[%s4085 + $0x30] sm:$0xf]
      %v6119 = vld [vmem:[%s4085 + $0x34] sm:$0xf]
      %v6120 = vld [vmem:[%s4085 + $0x38] sm:$0xf]
      %v6121 = vld [vmem:[%s4085 + $0x3c] sm:$0xf]
      %v6123 = vunpack.c.l.b16 %v6105
      %v6124 = vpack.c.b16 %v5117, %v5116
      %v6125 = vpack.c.b16 %v5119, %v5118
      %v6126 = vpack.c.b16 %v5121, %v5120
      %v6127 = vpack.c.b16 %v5123, %v5122
      %v6128 = vpack.c.b16 %v5125, %v5124
      %v6129 = vpack.c.b16 %v5127, %v5126
      %v6130 = vpack.c.b16 %v5129, %v5128
      %v6131 = vpack.c.b16 %v5131, %v5130
      %v6132 = vpack.c.b16 %v6123, %v5132
      %v6158 = vunpack.c.l.b16 %v6106
      %v6159 = vunpack.c.l.b16 %v6107
      %v6160 = vunpack.c.l.b16 %v6108
      %v6161 = vunpack.c.l.b16 %v6109
      %v6162 = vunpack.c.l.b16 %v6110
      %v6163 = vunpack.c.l.b16 %v6111
      %v6164 = vunpack.c.l.b16 %v6112
      %v6165 = vunpack.c.l.b16 %v6113
      %v6166 = vunpack.c.l.b16 %v6114
      %v6167 = vunpack.c.l.b16 %v6115
      %v6168 = vunpack.c.l.b16 %v6116
      %v6169 = vunpack.c.l.b16 %v6117
      %v6170 = vunpack.c.l.b16 %v6118
      %v6171 = vunpack.c.l.b16 %v6119
      %v6172 = vunpack.c.l.b16 %v6120
      %v6173 = vunpack.c.l.b16 %v6121
      %v6174 = vpack.c.b16 %v6159, %v6158
      %v6175 = vpack.c.b16 %v6161, %v6160
      %v6176 = vpack.c.b16 %v6163, %v6162
      %v6177 = vpack.c.b16 %v6165, %v6164
      %v6178 = vpack.c.b16 %v6167, %v6166
      %v6179 = vpack.c.b16 %v6169, %v6168
      %v6180 = vpack.c.b16 %v6171, %v6170
      %v6181 = vpack.c.b16 %v6173, %v6172
      %6190 = vmatpush.bf16.msra.mxu0 %v6181
      %6191 = vmatpush.bf16.msra.mxu0 %v6180
      %6192 = vmatpush.bf16.msra.mxu0 %v6179
      %6193 = vmatpush.bf16.msra.mxu0 %v6178
      %6194 = vmatpush.bf16.msra.mxu0 %v6177
      %6195 = vmatpush.bf16.msra.mxu0 %v6176
      %6196 = vmatpush.bf16.msra.mxu0 %v6175
      %6197 = vmatpush.bf16.msra.mxu0 %v6174
      %6198 = vmatmul.bf16.gmra.mxu0 %v6124
      %v6199 = vpop.f32.mrf.mxu0
      %v6200 = vadd.f32 0.0, %v6199
      %v6201 = vpop.f32.mrf.mxu0
      %v6202 = vadd.f32 0.0, %v6201
      %6203 = vmatmul.bf16.gmra.mxu0 %v6125
      %v6204 = vpop.f32.mrf.mxu0
      %v6205 = vadd.f32 0.0, %v6204
      %v6206 = vpop.f32.mrf.mxu0
      %v6207 = vadd.f32 0.0, %v6206
      %6208 = vmatmul.bf16.gmra.mxu0 %v6126
      %v6209 = vpop.f32.mrf.mxu0
      %v6210 = vadd.f32 0.0, %v6209
      %v6211 = vpop.f32.mrf.mxu0
      %v6212 = vadd.f32 0.0, %v6211
      %6213 = vmatmul.bf16.gmra.mxu0 %v6127
      %v6214 = vpop.f32.mrf.mxu0
      %v6215 = vadd.f32 0.0, %v6214
      %v6216 = vpop.f32.mrf.mxu0
      %v6217 = vadd.f32 0.0, %v6216
      %6218 = vmatmul.bf16.gmra.mxu0 %v6128
      %v6219 = vpop.f32.mrf.mxu0
      %v6220 = vadd.f32 0.0, %v6219
      %v6221 = vpop.f32.mrf.mxu0
      %v6222 = vadd.f32 0.0, %v6221
      %6223 = vmatmul.bf16.gmra.mxu0 %v6129
      %v6224 = vpop.f32.mrf.mxu0
      %v6225 = vadd.f32 0.0, %v6224
      %v6226 = vpop.f32.mrf.mxu0
      %v6227 = vadd.f32 0.0, %v6226
      %6228 = vmatmul.bf16.gmra.mxu0 %v6130
      %v6229 = vpop.f32.mrf.mxu0
      %v6230 = vadd.f32 0.0, %v6229
      %v6231 = vpop.f32.mrf.mxu0
      %v6232 = vadd.f32 0.0, %v6231
      %6233 = vmatmul.bf16.gmra.mxu0 %v6131
      %v6234 = vpop.f32.mrf.mxu0
      %v6235 = vadd.f32 0.0, %v6234
      %v6236 = vpop.f32.mrf.mxu0
      %v6237 = vadd.f32 0.0, %v6236
      %6238 = vmatmul.bf16.gmra.mxu0 %v6132
      %v6239 = vpop.f32.mrf.mxu0
      %v6240 = vadd.f32 0.0, %v6239
      %v6241 = vpop.f32.mrf.mxu0
      %v6242 = vadd.f32 0.0, %v6241
      %6243 = vdwg.mxu0
      %v6244 = vadd.f32 %v6087, %v6200
      %v6245 = vadd.f32 %v6088, %v6202
      %v6246 = vadd.f32 %v6089, %v6205
      %v6247 = vadd.f32 %v6090, %v6207
      %v6248 = vadd.f32 %v6091, %v6210
      %v6249 = vadd.f32 %v6092, %v6212
      %v6250 = vadd.f32 %v6093, %v6215
      %v6251 = vadd.f32 %v6094, %v6217
      %v6252 = vadd.f32 %v6095, %v6220
      %v6253 = vadd.f32 %v6096, %v6222
      %v6254 = vadd.f32 %v6097, %v6225
      %v6255 = vadd.f32 %v6098, %v6227
      %v6256 = vadd.f32 %v6099, %v6230
      %v6257 = vadd.f32 %v6100, %v6232
      %v6258 = vadd.f32 %v6101, %v6235
      %v6259 = vadd.f32 %v6102, %v6237
      %v6260 = vadd.f32 %v6103, %v6240
      %v6261 = vadd.f32 %v6104, %v6242
      %v6262 = vld [vmem:[#allocation4 + $0x80] sm:$0xc]
      %v6263 = vld [vmem:[#allocation4 + $0x84] sm:$0xf]
      %v6264 = vld [vmem:[#allocation4 + $0x88] sm:$0xf]
      %v6265 = vld [vmem:[#allocation4 + $0x8c] sm:$0xf]
      %v6266 = vld [vmem:[#allocation4 + $0x90] sm:$0xf]
      %v6267 = vld [vmem:[#allocation4 + $0x94] sm:$0xf]
      %v6268 = vld [vmem:[#allocation4 + $0x98] sm:$0xf]
      %v6269 = vld [vmem:[#allocation4 + $0x9c] sm:$0xf]
      %v6270 = vld [vmem:[#allocation4 + $0xa0] sm:$0xf]
      %v6271 = vld [vmem:[#allocation4 + $0xa4] sm:$0xf]
      %v6272 = vld [vmem:[#allocation4 + $0xa8] sm:$0xf]
      %v6273 = vld [vmem:[#allocation4 + $0xac] sm:$0xf]
      %v6274 = vld [vmem:[#allocation4 + $0xb0] sm:$0xf]
      %v6275 = vld [vmem:[#allocation4 + $0xb4] sm:$0xf]
      %v6276 = vld [vmem:[#allocation4 + $0xb8] sm:$0xf]
      %v6277 = vld [vmem:[#allocation4 + $0xbc] sm:$0xf]
      %v6278 = vld [vmem:[#allocation4 + $0xc0] sm:$0xf]
      %v6279 = vld [vmem:[#allocation4 + $0xc4] sm:$0xf]
      %v6280 = vld [vmem:[#allocation4 + $0xc8] sm:$0x3]
      %v6281 = vld [vmem:[%s4261] sm:$0xf]
      %v6282 = vld [vmem:[%s4261 + $0x4] sm:$0xf]
      %v6283 = vld [vmem:[%s4261 + $0x8] sm:$0xf]
      %v6284 = vld [vmem:[%s4261 + $0xc] sm:$0xf]
      %v6285 = vld [vmem:[%s4261 + $0x10] sm:$0xf]
      %v6286 = vld [vmem:[%s4261 + $0x14] sm:$0xf]
      %v6287 = vld [vmem:[%s4261 + $0x18] sm:$0xf]
      %v6288 = vld [vmem:[%s4261 + $0x1c] sm:$0xf]
      %v6289 = vld [vmem:[%s4261 + $0x20] sm:$0xf]
      %v6290 = vld [vmem:[%s4261 + $0x24] sm:$0xf]
      %v6291 = vld [vmem:[%s4261 + $0x28] sm:$0xf]
      %v6292 = vld [vmem:[%s4261 + $0x2c] sm:$0xf]
      %v6293 = vld [vmem:[%s4261 + $0x30] sm:$0xf]
      %v6294 = vld [vmem:[%s4261 + $0x34] sm:$0xf]
      %v6295 = vld [vmem:[%s4261 + $0x38] sm:$0xf]
      %v6296 = vld [vmem:[%s4261 + $0x3c] sm:$0xf]
      %v6316 = vunpack.c.l.b16 %v6262
      %v6317 = vunpack.c.l.b16 %v6263
      %v6318 = vunpack.c.l.b16 %v6264
      %v6319 = vunpack.c.l.b16 %v6265
      %v6320 = vunpack.c.l.b16 %v6266
      %v6321 = vunpack.c.l.b16 %v6267
      %v6322 = vunpack.c.l.b16 %v6268
      %v6323 = vunpack.c.l.b16 %v6269
      %v6324 = vunpack.c.l.b16 %v6270
      %v6325 = vunpack.c.l.b16 %v6271
      %v6326 = vunpack.c.l.b16 %v6272
      %v6327 = vunpack.c.l.b16 %v6273
      %v6328 = vunpack.c.l.b16 %v6274
      %v6329 = vunpack.c.l.b16 %v6275
      %v6330 = vunpack.c.l.b16 %v6276
      %v6331 = vunpack.c.l.b16 %v6277
      %v6332 = vunpack.c.l.b16 %v6278
      %v6333 = vunpack.c.l.b16 %v6279
      %v6334 = vunpack.c.l.b16 %v6280
      %v6335 = vpack.c.b16 %v6317, %v6316
      %v6336 = vpack.c.b16 %v6319, %v6318
      %v6337 = vpack.c.b16 %v6321, %v6320
      %v6338 = vpack.c.b16 %v6323, %v6322
      %v6339 = vpack.c.b16 %v6325, %v6324
      %v6340 = vpack.c.b16 %v6327, %v6326
      %v6341 = vpack.c.b16 %v6329, %v6328
      %v6342 = vpack.c.b16 %v6331, %v6330
      %v6343 = vpack.c.b16 %v6333, %v6332
      %v6344 = vpack.c.b16 %v6334, %v6334
      %v6345 = vrot.slane %v6335, 2
      %v6346 = vrot.slane %v6336, 2
      %v6347 = vsel %vm2567, %v6345, %v6346
      %v6348 = vrot.slane %v6337, 2
      %v6349 = vsel %vm2567, %v6346, %v6348
      %v6350 = vrot.slane %v6338, 2
      %v6351 = vsel %vm2567, %v6348, %v6350
      %v6352 = vrot.slane %v6339, 2
      %v6353 = vsel %vm2567, %v6350, %v6352
      %v6354 = vrot.slane %v6340, 2
      %v6355 = vsel %vm2567, %v6352, %v6354
      %v6356 = vrot.slane %v6341, 2
      %v6357 = vsel %vm2567, %v6354, %v6356
      %v6358 = vrot.slane %v6342, 2
      %v6359 = vsel %vm2567, %v6356, %v6358
      %v6360 = vrot.slane %v6343, 2
      %v6361 = vsel %vm2567, %v6358, %v6360
      %v6362 = vrot.slane %v6344, 2
      %v6363 = vsel %vm2567, %v6360, %v6362
      %v6389 = vunpack.c.l.b16 %v6281
      %v6390 = vunpack.c.l.b16 %v6282
      %v6391 = vunpack.c.l.b16 %v6283
      %v6392 = vunpack.c.l.b16 %v6284
      %v6393 = vunpack.c.l.b16 %v6285
      %v6394 = vunpack.c.l.b16 %v6286
      %v6395 = vunpack.c.l.b16 %v6287
      %v6396 = vunpack.c.l.b16 %v6288
      %v6397 = vunpack.c.l.b16 %v6289
      %v6398 = vunpack.c.l.b16 %v6290
      %v6399 = vunpack.c.l.b16 %v6291
      %v6400 = vunpack.c.l.b16 %v6292
      %v6401 = vunpack.c.l.b16 %v6293
      %v6402 = vunpack.c.l.b16 %v6294
      %v6403 = vunpack.c.l.b16 %v6295
      %v6404 = vunpack.c.l.b16 %v6296
      %v6405 = vpack.c.b16 %v6390, %v6389
      %v6406 = vpack.c.b16 %v6392, %v6391
      %v6407 = vpack.c.b16 %v6394, %v6393
      %v6408 = vpack.c.b16 %v6396, %v6395
      %v6409 = vpack.c.b16 %v6398, %v6397
      %v6410 = vpack.c.b16 %v6400, %v6399
      %v6411 = vpack.c.b16 %v6402, %v6401
      %v6412 = vpack.c.b16 %v6404, %v6403
      %6421 = vmatpush.bf16.msra.mxu0 %v6412
      %6422 = vmatpush.bf16.msra.mxu0 %v6411
      %6423 = vmatpush.bf16.msra.mxu0 %v6410
      %6424 = vmatpush.bf16.msra.mxu0 %v6409
      %6425 = vmatpush.bf16.msra.mxu0 %v6408
      %6426 = vmatpush.bf16.msra.mxu0 %v6407
      %6427 = vmatpush.bf16.msra.mxu0 %v6406
      %6428 = vmatpush.bf16.msra.mxu0 %v6405
      %6429 = vmatmul.bf16.gmra.mxu0 %v6347
      %v6430 = vpop.f32.mrf.mxu0
      %v6431 = vadd.f32 0.0, %v6430
      %v6432 = vpop.f32.mrf.mxu0
      %v6433 = vadd.f32 0.0, %v6432
      %6434 = vmatmul.bf16.gmra.mxu0 %v6349
      %v6435 = vpop.f32.mrf.mxu0
      %v6436 = vadd.f32 0.0, %v6435
      %v6437 = vpop.f32.mrf.mxu0
      %v6438 = vadd.f32 0.0, %v6437
      %6439 = vmatmul.bf16.gmra.mxu0 %v6351
      %v6440 = vpop.f32.mrf.mxu0
      %v6441 = vadd.f32 0.0, %v6440
      %v6442 = vpop.f32.mrf.mxu0
      %v6443 = vadd.f32 0.0, %v6442
      %6444 = vmatmul.bf16.gmra.mxu0 %v6353
      %v6445 = vpop.f32.mrf.mxu0
      %v6446 = vadd.f32 0.0, %v6445
      %v6447 = vpop.f32.mrf.mxu0
      %v6448 = vadd.f32 0.0, %v6447
      %6449 = vmatmul.bf16.gmra.mxu0 %v6355
      %v6450 = vpop.f32.mrf.mxu0
      %v6451 = vadd.f32 0.0, %v6450
      %v6452 = vpop.f32.mrf.mxu0
      %v6453 = vadd.f32 0.0, %v6452
      %6454 = vmatmul.bf16.gmra.mxu0 %v6357
      %v6455 = vpop.f32.mrf.mxu0
      %v6456 = vadd.f32 0.0, %v6455
      %v6457 = vpop.f32.mrf.mxu0
      %v6458 = vadd.f32 0.0, %v6457
      %6459 = vmatmul.bf16.gmra.mxu0 %v6359
      %v6460 = vpop.f32.mrf.mxu0
      %v6461 = vadd.f32 0.0, %v6460
      %v6462 = vpop.f32.mrf.mxu0
      %v6463 = vadd.f32 0.0, %v6462
      %6464 = vmatmul.bf16.gmra.mxu0 %v6361
      %v6465 = vpop.f32.mrf.mxu0
      %v6466 = vadd.f32 0.0, %v6465
      %v6467 = vpop.f32.mrf.mxu0
      %v6468 = vadd.f32 0.0, %v6467
      %6469 = vmatmul.bf16.gmra.mxu0 %v6363
      %v6470 = vpop.f32.mrf.mxu0
      %v6471 = vadd.f32 0.0, %v6470
      %v6472 = vpop.f32.mrf.mxu0
      %v6473 = vadd.f32 0.0, %v6472
      %6474 = vdwg.mxu0
      %v6475 = vadd.f32 %v6244, %v6431
      %v6476 = vadd.f32 %v6245, %v6433
      %v6477 = vadd.f32 %v6246, %v6436
      %v6478 = vadd.f32 %v6247, %v6438
      %v6479 = vadd.f32 %v6248, %v6441
      %v6480 = vadd.f32 %v6249, %v6443
      %v6481 = vadd.f32 %v6250, %v6446
      %v6482 = vadd.f32 %v6251, %v6448
      %v6483 = vadd.f32 %v6252, %v6451
      %v6484 = vadd.f32 %v6253, %v6453
      %v6485 = vadd.f32 %v6254, %v6456
      %v6486 = vadd.f32 %v6255, %v6458
      %v6487 = vadd.f32 %v6256, %v6461
      %v6488 = vadd.f32 %v6257, %v6463
      %v6489 = vadd.f32 %v6258, %v6466
      %v6490 = vadd.f32 %v6259, %v6468
      %v6491 = vadd.f32 %v6260, %v6471
      %v6492 = vadd.f32 %v6261, %v6473
      %6493 = vst [vmem:[#allocation5 + $0x90] sm:$0xff] %v6475
      %6494 = vst [vmem:[#allocation5 + $0x98] sm:$0xff] %v6476
      %6495 = vst [vmem:[#allocation5 + $0xa0] sm:$0xff] %v6477
      %6496 = vst [vmem:[#allocation5 + $0xa8] sm:$0xff] %v6478
      %6497 = vst [vmem:[#allocation5 + $0xb0] sm:$0xff] %v6479
      %6498 = vst [vmem:[#allocation5 + $0xb8] sm:$0xff] %v6480
      %6499 = vst [vmem:[#allocation5 + $0xc0] sm:$0xff] %v6481
      %6500 = vst [vmem:[#allocation5 + $0xc8] sm:$0xff] %v6482
      %6501 = vst [vmem:[#allocation5 + $0xd0] sm:$0xff] %v6483
      %6502 = vst [vmem:[#allocation5 + $0xd8] sm:$0xff] %v6484
      %6503 = vst [vmem:[#allocation5 + $0xe0] sm:$0xff] %v6485
      %6504 = vst [vmem:[#allocation5 + $0xe8] sm:$0xff] %v6486
      %6505 = vst [vmem:[#allocation5 + $0xf0] sm:$0xff] %v6487
      %6506 = vst [vmem:[#allocation5 + $0xf8] sm:$0xff] %v6488
      %6507 = vst [vmem:[#allocation5 + $0x100] sm:$0xff] %v6489
      %6508 = vst [vmem:[#allocation5 + $0x108] sm:$0xff] %v6490
      %6509 = vst [vmem:[#allocation5 + $0x110] sm:$0xff] %v6491
      %6510 = vst [vmem:[#allocation5 + $0x118] sm:$0xff] %v6492
      %v6511 = vld [vmem:[#allocation5] ss:$2 sm:$0xff]
      %s6512 = scalar_lea.vmem [#allocation5], 16
      %v6513 = vld [vmem:[%s6512] ss:$2 sm:$0xff]
      %s6514 = scalar_lea.vmem [#allocation5], 32
      %v6515 = vld [vmem:[%s6514] ss:$2 sm:$0xff]
      %s6516 = scalar_lea.vmem [#allocation5], 48
      %v6517 = vld [vmem:[%s6516] ss:$2 sm:$0xff]
      %s6518 = scalar_lea.vmem [#allocation5], 64
      %v6519 = vld [vmem:[%s6518] ss:$2 sm:$0xff]
      %s6520 = scalar_lea.vmem [#allocation5], 80
      %v6521 = vld [vmem:[%s6520] ss:$2 sm:$0xff]
      %s6522 = scalar_lea.vmem [#allocation5], 96
      %v6523 = vld [vmem:[%s6522] ss:$2 sm:$0xff]
      %s6524 = scalar_lea.vmem [#allocation5], 112
      %v6525 = vld [vmem:[%s6524] ss:$2 sm:$0xff]
      %s6526 = scalar_lea.vmem [#allocation5], 128
      %v6527 = vld [vmem:[%s6526] ss:$2 sm:$0xff]
      %s6528 = scalar_lea.vmem [#allocation5], 144
      %v6529 = vld [vmem:[%s6528] ss:$2 sm:$0xff]
      %s6530 = scalar_lea.vmem [#allocation5], 160
      %v6531 = vld [vmem:[%s6530] ss:$2 sm:$0xff]
      %s6532 = scalar_lea.vmem [#allocation5], 176
      %v6533 = vld [vmem:[%s6532] ss:$2 sm:$0xff]
      %s6534 = scalar_lea.vmem [#allocation5], 192
      %v6535 = vld [vmem:[%s6534] ss:$2 sm:$0xff]
      %s6536 = scalar_lea.vmem [#allocation5], 208
      %v6537 = vld [vmem:[%s6536] ss:$2 sm:$0xff]
      %s6538 = scalar_lea.vmem [#allocation5], 224
      %v6539 = vld [vmem:[%s6538] ss:$2 sm:$0xff]
      %s6540 = scalar_lea.vmem [#allocation5], 240
      %v6541 = vld [vmem:[%s6540] ss:$2 sm:$0xff]
      %s6542 = scalar_lea.vmem [#allocation5], 1
      %v6543 = vld [vmem:[%s6542] ss:$2 sm:$0xff]
      %s6544 = scalar_lea.vmem [#allocation5], 17
      %v6545 = vld [vmem:[%s6544] ss:$2 sm:$0xff]
      %s6546 = scalar_lea.vmem [#allocation5], 33
      %v6547 = vld [vmem:[%s6546] ss:$2 sm:$0xff]
      %s6548 = scalar_lea.vmem [#allocation5], 49
      %v6549 = vld [vmem:[%s6548] ss:$2 sm:$0xff]
      %s6550 = scalar_lea.vmem [#allocation5], 65
      %v6551 = vld [vmem:[%s6550] ss:$2 sm:$0xff]
      %s6552 = scalar_lea.vmem [#allocation5], 81
      %v6553 = vld [vmem:[%s6552] ss:$2 sm:$0xff]
      %s6554 = scalar_lea.vmem [#allocation5], 97
      %v6555 = vld [vmem:[%s6554] ss:$2 sm:$0xff]
      %s6556 = scalar_lea.vmem [#allocation5], 113
      %v6557 = vld [vmem:[%s6556] ss:$2 sm:$0xff]
      %s6558 = scalar_lea.vmem [#allocation5], 129
      %v6559 = vld [vmem:[%s6558] ss:$2 sm:$0xff]
      %s6560 = scalar_lea.vmem [#allocation5], 145
      %v6561 = vld [vmem:[%s6560] ss:$2 sm:$0xff]
      %s6562 = scalar_lea.vmem [#allocation5], 161
      %v6563 = vld [vmem:[%s6562] ss:$2 sm:$0xff]
      %s6564 = scalar_lea.vmem [#allocation5], 177
      %v6565 = vld [vmem:[%s6564] ss:$2 sm:$0xff]
      %s6566 = scalar_lea.vmem [#allocation5], 193
      %v6567 = vld [vmem:[%s6566] ss:$2 sm:$0xff]
      %s6568 = scalar_lea.vmem [#allocation5], 209
      %v6569 = vld [vmem:[%s6568] ss:$2 sm:$0xff]
      %s6570 = scalar_lea.vmem [#allocation5], 225
      %v6571 = vld [vmem:[%s6570] ss:$2 sm:$0xff]
      %s6572 = scalar_lea.vmem [#allocation5], 241
      %v6573 = vld [vmem:[%s6572] ss:$2 sm:$0xff]
      %s6574 = scalar_lea.vmem [#allocation5], 28
      %v6575 = vld [vmem:[%s6574] ss:$2 sm:$0xff]
      %s6576 = scalar_lea.vmem [#allocation5], 44
      %v6577 = vld [vmem:[%s6576] ss:$2 sm:$0xff]
      %s6578 = scalar_lea.vmem [#allocation5], 60
      %v6579 = vld [vmem:[%s6578] ss:$2 sm:$0xff]
      %s6580 = scalar_lea.vmem [#allocation5], 76
      %v6581 = vld [vmem:[%s6580] ss:$2 sm:$0xff]
      %s6582 = scalar_lea.vmem [#allocation5], 92
      %v6583 = vld [vmem:[%s6582] ss:$2 sm:$0xff]
      %s6584 = scalar_lea.vmem [#allocation5], 108
      %v6585 = vld [vmem:[%s6584] ss:$2 sm:$0xff]
      %s6586 = scalar_lea.vmem [#allocation5], 124
      %v6587 = vld [vmem:[%s6586] ss:$2 sm:$0xff]
      %s6588 = scalar_lea.vmem [#allocation5], 140
      %v6589 = vld [vmem:[%s6588] ss:$2 sm:$0xff]
      %s6590 = scalar_lea.vmem [#allocation5], 156
      %v6591 = vld [vmem:[%s6590] ss:$2 sm:$0xff]
      %s6592 = scalar_lea.vmem [#allocation5], 172
      %v6593 = vld [vmem:[%s6592] ss:$2 sm:$0xff]
      %s6594 = scalar_lea.vmem [#allocation5], 188
      %v6595 = vld [vmem:[%s6594] ss:$2 sm:$0xff]
      %s6596 = scalar_lea.vmem [#allocation5], 204
      %v6597 = vld [vmem:[%s6596] ss:$2 sm:$0xff]
      %s6598 = scalar_lea.vmem [#allocation5], 220
      %v6599 = vld [vmem:[%s6598] ss:$2 sm:$0xff]
      %s6600 = scalar_lea.vmem [#allocation5], 236
      %v6601 = vld [vmem:[%s6600] ss:$2 sm:$0xff]
      %s6602 = scalar_lea.vmem [#allocation5], 252
      %v6603 = vld [vmem:[%s6602] ss:$2 sm:$0xff]
      %s6604 = scalar_lea.vmem [#allocation5], 268
      %v6605 = vld [vmem:[%s6604] ss:$2 sm:$0xff]
      %s6606 = scalar_lea.vmem [#allocation5], 29
      %v6607 = vld [vmem:[%s6606] ss:$2 sm:$0xff]
      %s6608 = scalar_lea.vmem [#allocation5], 45
      %v6609 = vld [vmem:[%s6608] ss:$2 sm:$0xff]
      %s6610 = scalar_lea.vmem [#allocation5], 61
      %v6611 = vld [vmem:[%s6610] ss:$2 sm:$0xff]
      %s6612 = scalar_lea.vmem [#allocation5], 77
      %v6613 = vld [vmem:[%s6612] ss:$2 sm:$0xff]
      %s6614 = scalar_lea.vmem [#allocation5], 93
      %v6615 = vld [vmem:[%s6614] ss:$2 sm:$0xff]
      %s6616 = scalar_lea.vmem [#allocation5], 109
      %v6617 = vld [vmem:[%s6616] ss:$2 sm:$0xff]
      %s6618 = scalar_lea.vmem [#allocation5], 125
      %v6619 = vld [vmem:[%s6618] ss:$2 sm:$0xff]
      %s6620 = scalar_lea.vmem [#allocation5], 141
      %v6621 = vld [vmem:[%s6620] ss:$2 sm:$0xff]
      %s6622 = scalar_lea.vmem [#allocation5], 157
      %v6623 = vld [vmem:[%s6622] ss:$2 sm:$0xff]
      %s6624 = scalar_lea.vmem [#allocation5], 173
      %v6625 = vld [vmem:[%s6624] ss:$2 sm:$0xff]
      %s6626 = scalar_lea.vmem [#allocation5], 189
      %v6627 = vld [vmem:[%s6626] ss:$2 sm:$0xff]
      %s6628 = scalar_lea.vmem [#allocation5], 205
      %v6629 = vld [vmem:[%s6628] ss:$2 sm:$0xff]
      %s6630 = scalar_lea.vmem [#allocation5], 221
      %v6631 = vld [vmem:[%s6630] ss:$2 sm:$0xff]
      %s6632 = scalar_lea.vmem [#allocation5], 237
      %v6633 = vld [vmem:[%s6632] ss:$2 sm:$0xff]
      %s6634 = scalar_lea.vmem [#allocation5], 253
      %v6635 = vld [vmem:[%s6634] ss:$2 sm:$0xff]
      %s6636 = scalar_lea.vmem [#allocation5], 269
      %v6637 = vld [vmem:[%s6636] ss:$2 sm:$0xff]
      %v6638 = vmax.f32 %v6511, %v6543
      %v6639 = vmax.f32 %v6513, %v6545
      %v6640 = vmax.f32 %v6515, %v6547
      %v6641 = vmax.f32 %v6517, %v6549
      %v6642 = vmax.f32 %v6519, %v6551
      %v6643 = vmax.f32 %v6521, %v6553
      %v6644 = vmax.f32 %v6523, %v6555
      %v6645 = vmax.f32 %v6525, %v6557
      %v6646 = vmax.f32 %v6527, %v6559
      %v6647 = vmax.f32 %v6529, %v6561
      %v6648 = vmax.f32 %v6531, %v6563
      %v6649 = vmax.f32 %v6533, %v6565
      %v6650 = vmax.f32 %v6535, %v6567
      %v6651 = vmax.f32 %v6537, %v6569
      %v6652 = vmax.f32 %v6539, %v6571
      %v6653 = vmax.f32 %v6541, %v6573
      %v6654 = vmax.f32 %v6575, %v6607
      %v6655 = vmax.f32 %v6577, %v6609
      %v6656 = vmax.f32 %v6579, %v6611
      %v6657 = vmax.f32 %v6581, %v6613
      %v6658 = vmax.f32 %v6583, %v6615
      %v6659 = vmax.f32 %v6585, %v6617
      %v6660 = vmax.f32 %v6587, %v6619
      %v6661 = vmax.f32 %v6589, %v6621
      %v6662 = vmax.f32 %v6591, %v6623
      %v6663 = vmax.f32 %v6593, %v6625
      %v6664 = vmax.f32 %v6595, %v6627
      %v6665 = vmax.f32 %v6597, %v6629
      %v6666 = vmax.f32 %v6599, %v6631
      %v6667 = vmax.f32 %v6601, %v6633
      %v6668 = vmax.f32 %v6603, %v6635
      %v6669 = vmax.f32 %v6605, %v6637
      %v6670 = vmax.f32 %v6638, %v6654
      %v6671 = vmax.f32 %v6639, %v6655
      %v6672 = vmax.f32 %v6640, %v6656
      %v6673 = vmax.f32 %v6641, %v6657
      %v6674 = vmax.f32 %v6642, %v6658
      %v6675 = vmax.f32 %v6643, %v6659
      %v6676 = vmax.f32 %v6644, %v6660
      %v6677 = vmax.f32 %v6645, %v6661
      %v6678 = vmax.f32 %v6646, %v6662
      %v6679 = vmax.f32 %v6647, %v6663
      %v6680 = vmax.f32 %v6648, %v6664
      %v6681 = vmax.f32 %v6649, %v6665
      %v6682 = vmax.f32 %v6650, %v6666
      %v6683 = vmax.f32 %v6651, %v6667
      %v6684 = vmax.f32 %v6652, %v6668
      %v6685 = vmax.f32 %v6653, %v6669
      %v6686 = vld [vmem:[%s4] sm:$0x1]
      %v6688 = vperm.slane %v6686, 0
      %v6690 = vadd.f32 %v6670, %v6688
      %v6691 = vadd.f32 %v6671, %v6688
      %v6692 = vadd.f32 %v6672, %v6688
      %v6693 = vadd.f32 %v6673, %v6688
      %v6694 = vadd.f32 %v6674, %v6688
      %v6695 = vadd.f32 %v6675, %v6688
      %v6696 = vadd.f32 %v6676, %v6688
      %v6697 = vadd.f32 %v6677, %v6688
      %v6698 = vadd.f32 %v6678, %v6688
      %v6699 = vadd.f32 %v6679, %v6688
      %v6700 = vadd.f32 %v6680, %v6688
      %v6701 = vadd.f32 %v6681, %v6688
      %v6702 = vadd.f32 %v6682, %v6688
      %v6703 = vadd.f32 %v6683, %v6688
      %v6704 = vadd.f32 %v6684, %v6688
      %v6705 = vadd.f32 %v6685, %v6688
      %v6706 = vmax.f32 %v6690, 0.0
      %v6707 = vmax.f32 %v6691, 0.0
      %v6708 = vmax.f32 %v6692, 0.0
      %v6709 = vmax.f32 %v6693, 0.0
      %v6710 = vmax.f32 %v6694, 0.0
      %v6711 = vmax.f32 %v6695, 0.0
      %v6712 = vmax.f32 %v6696, 0.0
      %v6713 = vmax.f32 %v6697, 0.0
      %v6714 = vmax.f32 %v6698, 0.0
      %v6715 = vmax.f32 %v6699, 0.0
      %v6716 = vmax.f32 %v6700, 0.0
      %v6717 = vmax.f32 %v6701, 0.0
      %v6718 = vmax.f32 %v6702, 0.0
      %v6719 = vmax.f32 %v6703, 0.0
      %v6720 = vmax.f32 %v6704, 0.0
      %v6721 = vmax.f32 %v6705, 0.0
      %v6722 = vpack.c.bf16 %v6706, %v6706
      %v6723 = vpack.c.bf16 %v6707, %v6707
      %v6724 = vpack.c.bf16 %v6708, %v6708
      %v6725 = vpack.c.bf16 %v6709, %v6709
      %v6726 = vpack.c.bf16 %v6710, %v6710
      %v6727 = vpack.c.bf16 %v6711, %v6711
      %v6728 = vpack.c.bf16 %v6712, %v6712
      %v6729 = vpack.c.bf16 %v6713, %v6713
      %v6730 = vpack.c.bf16 %v6714, %v6714
      %v6731 = vpack.c.bf16 %v6715, %v6715
      %v6732 = vpack.c.bf16 %v6716, %v6716
      %v6733 = vpack.c.bf16 %v6717, %v6717
      %v6734 = vpack.c.bf16 %v6718, %v6718
      %v6735 = vpack.c.bf16 %v6719, %v6719
      %v6736 = vpack.c.bf16 %v6720, %v6720
      %v6737 = vpack.c.bf16 %v6721, %v6721
      %6738 = vst [vmem:[#allocation6] sm:$0xf] %v6722
      %6739 = vst [vmem:[#allocation6 + $0x4] sm:$0xf] %v6723
      %6740 = vst [vmem:[#allocation6 + $0x8] sm:$0xf] %v6724
      %6741 = vst [vmem:[#allocation6 + $0xc] sm:$0xf] %v6725
      %6742 = vst [vmem:[#allocation6 + $0x10] sm:$0xf] %v6726
      %6743 = vst [vmem:[#allocation6 + $0x14] sm:$0xf] %v6727
      %6744 = vst [vmem:[#allocation6 + $0x18] sm:$0xf] %v6728
      %6745 = vst [vmem:[#allocation6 + $0x1c] sm:$0xf] %v6729
      %6746 = vst [vmem:[#allocation6 + $0x20] sm:$0xf] %v6730
      %6747 = vst [vmem:[#allocation6 + $0x24] sm:$0xf] %v6731
      %6748 = vst [vmem:[#allocation6 + $0x28] sm:$0xf] %v6732
      %6749 = vst [vmem:[#allocation6 + $0x2c] sm:$0xf] %v6733
      %6750 = vst [vmem:[#allocation6 + $0x30] sm:$0xf] %v6734
      %6751 = vst [vmem:[#allocation6 + $0x34] sm:$0xf] %v6735
      %6752 = vst [vmem:[#allocation6 + $0x38] sm:$0xf] %v6736
      %6753 = vst [vmem:[#allocation6 + $0x3c] sm:$0xf] %v6737
      %v6754 = vld [vmem:[#allocation6] sm:$0xf]
      %v6755 = vld [vmem:[%s5] sm:$0xf]
      %v6756 = vld [vmem:[%s5 + $0x4] sm:$0xf]
      %v6757 = vld [vmem:[%s5 + $0x8] sm:$0xf]
      %v6758 = vld [vmem:[%s5 + $0xc] sm:$0xf]
      %v6759 = vld [vmem:[%s5 + $0x10] sm:$0xf]
      %v6760 = vld [vmem:[%s5 + $0x14] sm:$0xf]
      %v6761 = vld [vmem:[%s5 + $0x18] sm:$0xf]
      %v6762 = vld [vmem:[%s5 + $0x1c] sm:$0xf]
      %v6763 = vld [vmem:[%s5 + $0x20] sm:$0xf]
      %v6764 = vld [vmem:[%s5 + $0x24] sm:$0xf]
      %v6765 = vld [vmem:[%s5 + $0x28] sm:$0xf]
      %v6766 = vld [vmem:[%s5 + $0x2c] sm:$0xf]
      %v6767 = vld [vmem:[%s5 + $0x30] sm:$0xf]
      %v6768 = vld [vmem:[%s5 + $0x34] sm:$0xf]
      %v6769 = vld [vmem:[%s5 + $0x38] sm:$0xf]
      %v6770 = vld [vmem:[%s5 + $0x3c] sm:$0xf]
      %v6771 = vld [vmem:[#allocation6 + $0x4] sm:$0x1]
      %s6772 = scalar_lea.vmem %s5, 64
      %v6773 = vld [vmem:[%s6772] sm:$0xf]
      %v6774 = vld [vmem:[%s6772 + $0x4] sm:$0xf]
      %v6775 = vld [vmem:[%s6772 + $0x8] sm:$0xf]
      %v6776 = vld [vmem:[%s6772 + $0xc] sm:$0xf]
      %v6777 = vld [vmem:[%s6772 + $0x10] sm:$0xf]
      %v6778 = vld [vmem:[%s6772 + $0x14] sm:$0xf]
      %v6779 = vld [vmem:[%s6772 + $0x18] sm:$0xf]
      %v6780 = vld [vmem:[%s6772 + $0x1c] sm:$0xf]
      %v6781 = vld [vmem:[%s6772 + $0x20] sm:$0xf]
      %v6782 = vld [vmem:[%s6772 + $0x24] sm:$0xf]
      %v6783 = vld [vmem:[%s6772 + $0x28] sm:$0xf]
      %v6784 = vld [vmem:[%s6772 + $0x2c] sm:$0xf]
      %v6785 = vld [vmem:[%s6772 + $0x30] sm:$0xf]
      %v6786 = vld [vmem:[%s6772 + $0x34] sm:$0xf]
      %v6787 = vld [vmem:[%s6772 + $0x38] sm:$0xf]
      %v6788 = vld [vmem:[%s6772 + $0x3c] sm:$0xf]
      %v6791 = vunpack.c.l.b16 %v6754
      %v6792 = vunpack.c.l.b16 %v6771
      %v6793 = vpack.c.b16 %v6792, %v6791
      %v6795 = vshrl.u32 %v6793, 16
      %v6797 = vshll.u32 %v6793, 16
      %v6799 = vrot.slane %v6797, 1
      %v6800 = vor.u32 %v6795, %v6799
      %v6818 = vunpack.c.l.b16 %v6773
      %v6819 = vunpack.c.l.b16 %v6774
      %v6820 = vunpack.c.l.b16 %v6775
      %v6821 = vunpack.c.l.b16 %v6776
      %v6822 = vunpack.c.l.b16 %v6777
      %v6823 = vunpack.c.l.b16 %v6778
      %v6824 = vunpack.c.l.b16 %v6779
      %v6825 = vunpack.c.l.b16 %v6780
      %v6826 = vunpack.c.l.b16 %v6781
      %v6827 = vunpack.c.l.b16 %v6782
      %v6828 = vunpack.c.l.b16 %v6783
      %v6829 = vunpack.c.l.b16 %v6784
      %v6830 = vunpack.c.l.b16 %v6785
      %v6831 = vunpack.c.l.b16 %v6786
      %v6832 = vunpack.c.l.b16 %v6787
      %v6833 = vunpack.c.l.b16 %v6788
      %v6834 = vpack.c.b16 %v6819, %v6818
      %v6835 = vpack.c.b16 %v6821, %v6820
      %v6836 = vpack.c.b16 %v6823, %v6822
      %v6837 = vpack.c.b16 %v6825, %v6824
      %v6838 = vpack.c.b16 %v6827, %v6826
      %v6839 = vpack.c.b16 %v6829, %v6828
      %v6840 = vpack.c.b16 %v6831, %v6830
      %v6841 = vpack.c.b16 %v6833, %v6832
      %6850 = vmatpush.bf16.msra.mxu0 %v6841
      %6851 = vmatpush.bf16.msra.mxu0 %v6840
      %6852 = vmatpush.bf16.msra.mxu0 %v6839
      %6853 = vmatpush.bf16.msra.mxu0 %v6838
      %6854 = vmatpush.bf16.msra.mxu0 %v6837
      %6855 = vmatpush.bf16.msra.mxu0 %v6836
      %6856 = vmatpush.bf16.msra.mxu0 %v6835
      %6857 = vmatpush.bf16.msra.mxu0 %v6834
      %6858 = vmatmul.bf16.gmra.mxu0 %v6800
      %v6859 = vpop.f32.mrf.mxu0
      %v6860 = vadd.f32 0.0, %v6859
      %v6861 = vpop.f32.mrf.mxu0
      %6862 = vdwg.mxu0
      %v6879 = vunpack.c.l.b16 %v6755
      %v6880 = vunpack.c.l.b16 %v6756
      %v6881 = vunpack.c.l.b16 %v6757
      %v6882 = vunpack.c.l.b16 %v6758
      %v6883 = vunpack.c.l.b16 %v6759
      %v6884 = vunpack.c.l.b16 %v6760
      %v6885 = vunpack.c.l.b16 %v6761
      %v6886 = vunpack.c.l.b16 %v6762
      %v6887 = vunpack.c.l.b16 %v6763
      %v6888 = vunpack.c.l.b16 %v6764
      %v6889 = vunpack.c.l.b16 %v6765
      %v6890 = vunpack.c.l.b16 %v6766
      %v6891 = vunpack.c.l.b16 %v6767
      %v6892 = vunpack.c.l.b16 %v6768
      %v6893 = vunpack.c.l.b16 %v6769
      %v6894 = vunpack.c.l.b16 %v6770
      %v6895 = vpack.c.b16 %v6880, %v6879
      %v6896 = vpack.c.b16 %v6882, %v6881
      %v6897 = vpack.c.b16 %v6884, %v6883
      %v6898 = vpack.c.b16 %v6886, %v6885
      %v6899 = vpack.c.b16 %v6888, %v6887
      %v6900 = vpack.c.b16 %v6890, %v6889
      %v6901 = vpack.c.b16 %v6892, %v6891
      %v6902 = vpack.c.b16 %v6894, %v6893
      %6911 = vmatpush.bf16.msra.mxu0 %v6902
      %6912 = vmatpush.bf16.msra.mxu0 %v6901
      %6913 = vmatpush.bf16.msra.mxu0 %v6900
      %6914 = vmatpush.bf16.msra.mxu0 %v6899
      %6915 = vmatpush.bf16.msra.mxu0 %v6898
      %6916 = vmatpush.bf16.msra.mxu0 %v6897
      %6917 = vmatpush.bf16.msra.mxu0 %v6896
      %6918 = vmatpush.bf16.msra.mxu0 %v6895
      %6919 = vmatmul.bf16.gmra.mxu0 %v6754
      %v6920 = vpop.f32.mrf.mxu0
      %v6921 = vadd.f32 %v6860, %v6920
      %v6922 = vpop.f32.mrf.mxu0
      %6923 = vdwg.mxu0
      %v6924 = vld [vmem:[#allocation6] sm:$0xe]
      %s6925 = scalar_lea.vmem %s5, 128
      %v6926 = vld [vmem:[%s6925] sm:$0xf]
      %v6927 = vld [vmem:[%s6925 + $0x4] sm:$0xf]
      %v6928 = vld [vmem:[%s6925 + $0x8] sm:$0xf]
      %v6929 = vld [vmem:[%s6925 + $0xc] sm:$0xf]
      %v6930 = vld [vmem:[%s6925 + $0x10] sm:$0xf]
      %v6931 = vld [vmem:[%s6925 + $0x14] sm:$0xf]
      %v6932 = vld [vmem:[%s6925 + $0x18] sm:$0xf]
      %v6933 = vld [vmem:[%s6925 + $0x1c] sm:$0xf]
      %v6934 = vld [vmem:[%s6925 + $0x20] sm:$0xf]
      %v6935 = vld [vmem:[%s6925 + $0x24] sm:$0xf]
      %v6936 = vld [vmem:[%s6925 + $0x28] sm:$0xf]
      %v6937 = vld [vmem:[%s6925 + $0x2c] sm:$0xf]
      %v6938 = vld [vmem:[%s6925 + $0x30] sm:$0xf]
      %v6939 = vld [vmem:[%s6925 + $0x34] sm:$0xf]
      %v6940 = vld [vmem:[%s6925 + $0x38] sm:$0xf]
      %v6941 = vld [vmem:[%s6925 + $0x3c] sm:$0xf]
      %v6943 = vunpack.c.l.b16 %v6924
      %v6944 = vpack.c.b16 %v6792, %v6943
      %v6945 = vrot.slane %v6944, 1
      %v6963 = vunpack.c.l.b16 %v6926
      %v6964 = vunpack.c.l.b16 %v6927
      %v6965 = vunpack.c.l.b16 %v6928
      %v6966 = vunpack.c.l.b16 %v6929
      %v6967 = vunpack.c.l.b16 %v6930
      %v6968 = vunpack.c.l.b16 %v6931
      %v6969 = vunpack.c.l.b16 %v6932
      %v6970 = vunpack.c.l.b16 %v6933
      %v6971 = vunpack.c.l.b16 %v6934
      %v6972 = vunpack.c.l.b16 %v6935
      %v6973 = vunpack.c.l.b16 %v6936
      %v6974 = vunpack.c.l.b16 %v6937
      %v6975 = vunpack.c.l.b16 %v6938
      %v6976 = vunpack.c.l.b16 %v6939
      %v6977 = vunpack.c.l.b16 %v6940
      %v6978 = vunpack.c.l.b16 %v6941
      %v6979 = vpack.c.b16 %v6964, %v6963
      %v6980 = vpack.c.b16 %v6966, %v6965
      %v6981 = vpack.c.b16 %v6968, %v6967
      %v6982 = vpack.c.b16 %v6970, %v6969
      %v6983 = vpack.c.b16 %v6972, %v6971
      %v6984 = vpack.c.b16 %v6974, %v6973
      %v6985 = vpack.c.b16 %v6976, %v6975
      %v6986 = vpack.c.b16 %v6978, %v6977
      %6995 = vmatpush.bf16.msra.mxu0 %v6986
      %6996 = vmatpush.bf16.msra.mxu0 %v6985
      %6997 = vmatpush.bf16.msra.mxu0 %v6984
      %6998 = vmatpush.bf16.msra.mxu0 %v6983
      %6999 = vmatpush.bf16.msra.mxu0 %v6982
      %7000 = vmatpush.bf16.msra.mxu0 %v6981
      %7001 = vmatpush.bf16.msra.mxu0 %v6980
      %7002 = vmatpush.bf16.msra.mxu0 %v6979
      %7003 = vmatmul.bf16.gmra.mxu0 %v6945
      %v7004 = vpop.f32.mrf.mxu0
      %v7005 = vadd.f32 0.0, %v7004
      %v7006 = vpop.f32.mrf.mxu0
      %7007 = vdwg.mxu0
      %v7008 = vadd.f32 %v6921, %v7005
      %v7009 = vld [vmem:[#allocation6 + $0x4] sm:$0x3]
      %s7010 = scalar_lea.vmem %s5, 192
      %v7011 = vld [vmem:[%s7010] sm:$0xf]
      %v7012 = vld [vmem:[%s7010 + $0x4] sm:$0xf]
      %v7013 = vld [vmem:[%s7010 + $0x8] sm:$0xf]
      %v7014 = vld [vmem:[%s7010 + $0xc] sm:$0xf]
      %v7015 = vld [vmem:[%s7010 + $0x10] sm:$0xf]
      %v7016 = vld [vmem:[%s7010 + $0x14] sm:$0xf]
      %v7017 = vld [vmem:[%s7010 + $0x18] sm:$0xf]
      %v7018 = vld [vmem:[%s7010 + $0x1c] sm:$0xf]
      %v7019 = vld [vmem:[%s7010 + $0x20] sm:$0xf]
      %v7020 = vld [vmem:[%s7010 + $0x24] sm:$0xf]
      %v7021 = vld [vmem:[%s7010 + $0x28] sm:$0xf]
      %v7022 = vld [vmem:[%s7010 + $0x2c] sm:$0xf]
      %v7023 = vld [vmem:[%s7010 + $0x30] sm:$0xf]
      %v7024 = vld [vmem:[%s7010 + $0x34] sm:$0xf]
      %v7025 = vld [vmem:[%s7010 + $0x38] sm:$0xf]
      %v7026 = vld [vmem:[%s7010 + $0x3c] sm:$0xf]
      %v7028 = vunpack.c.l.b16 %v7009
      %v7029 = vpack.c.b16 %v7028, %v6943
      %v7031 = vshrl.u32 %v7029, 16
      %v7033 = vrot.slane %v7031, 1
      %v7034 = vshll.u32 %v7029, 16
      %v7036 = vrot.slane %v7034, 2
      %v7037 = vor.u32 %v7033, %v7036
      %v7055 = vunpack.c.l.b16 %v7011
      %v7056 = vunpack.c.l.b16 %v7012
      %v7057 = vunpack.c.l.b16 %v7013
      %v7058 = vunpack.c.l.b16 %v7014
      %v7059 = vunpack.c.l.b16 %v7015
      %v7060 = vunpack.c.l.b16 %v7016
      %v7061 = vunpack.c.l.b16 %v7017
      %v7062 = vunpack.c.l.b16 %v7018
      %v7063 = vunpack.c.l.b16 %v7019
      %v7064 = vunpack.c.l.b16 %v7020
      %v7065 = vunpack.c.l.b16 %v7021
      %v7066 = vunpack.c.l.b16 %v7022
      %v7067 = vunpack.c.l.b16 %v7023
      %v7068 = vunpack.c.l.b16 %v7024
      %v7069 = vunpack.c.l.b16 %v7025
      %v7070 = vunpack.c.l.b16 %v7026
      %v7071 = vpack.c.b16 %v7056, %v7055
      %v7072 = vpack.c.b16 %v7058, %v7057
      %v7073 = vpack.c.b16 %v7060, %v7059
      %v7074 = vpack.c.b16 %v7062, %v7061
      %v7075 = vpack.c.b16 %v7064, %v7063
      %v7076 = vpack.c.b16 %v7066, %v7065
      %v7077 = vpack.c.b16 %v7068, %v7067
      %v7078 = vpack.c.b16 %v7070, %v7069
      %7087 = vmatpush.bf16.msra.mxu0 %v7078
      %7088 = vmatpush.bf16.msra.mxu0 %v7077
      %7089 = vmatpush.bf16.msra.mxu0 %v7076
      %7090 = vmatpush.bf16.msra.mxu0 %v7075
      %7091 = vmatpush.bf16.msra.mxu0 %v7074
      %7092 = vmatpush.bf16.msra.mxu0 %v7073
      %7093 = vmatpush.bf16.msra.mxu0 %v7072
      %7094 = vmatpush.bf16.msra.mxu0 %v7071
      %7095 = vmatmul.bf16.gmra.mxu0 %v7037
      %v7096 = vpop.f32.mrf.mxu0
      %v7097 = vadd.f32 0.0, %v7096
      %v7098 = vpop.f32.mrf.mxu0
      %7099 = vdwg.mxu0
      %v7100 = vadd.f32 %v7008, %v7097
      %v7101 = vld [vmem:[#allocation6] sm:$0xc]
      %s7102 = scalar_lea.vmem %s5, 256
      %v7103 = vld [vmem:[%s7102] sm:$0xf]
      %v7104 = vld [vmem:[%s7102 + $0x4] sm:$0xf]
      %v7105 = vld [vmem:[%s7102 + $0x8] sm:$0xf]
      %v7106 = vld [vmem:[%s7102 + $0xc] sm:$0xf]
      %v7107 = vld [vmem:[%s7102 + $0x10] sm:$0xf]
      %v7108 = vld [vmem:[%s7102 + $0x14] sm:$0xf]
      %v7109 = vld [vmem:[%s7102 + $0x18] sm:$0xf]
      %v7110 = vld [vmem:[%s7102 + $0x1c] sm:$0xf]
      %v7111 = vld [vmem:[%s7102 + $0x20] sm:$0xf]
      %v7112 = vld [vmem:[%s7102 + $0x24] sm:$0xf]
      %v7113 = vld [vmem:[%s7102 + $0x28] sm:$0xf]
      %v7114 = vld [vmem:[%s7102 + $0x2c] sm:$0xf]
      %v7115 = vld [vmem:[%s7102 + $0x30] sm:$0xf]
      %v7116 = vld [vmem:[%s7102 + $0x34] sm:$0xf]
      %v7117 = vld [vmem:[%s7102 + $0x38] sm:$0xf]
      %v7118 = vld [vmem:[%s7102 + $0x3c] sm:$0xf]
      %v7120 = vunpack.c.l.b16 %v7101
      %v7121 = vpack.c.b16 %v7028, %v7120
      %v7122 = vrot.slane %v7121, 2
      %v7140 = vunpack.c.l.b16 %v7103
      %v7141 = vunpack.c.l.b16 %v7104
      %v7142 = vunpack.c.l.b16 %v7105
      %v7143 = vunpack.c.l.b16 %v7106
      %v7144 = vunpack.c.l.b16 %v7107
      %v7145 = vunpack.c.l.b16 %v7108
      %v7146 = vunpack.c.l.b16 %v7109
      %v7147 = vunpack.c.l.b16 %v7110
      %v7148 = vunpack.c.l.b16 %v7111
      %v7149 = vunpack.c.l.b16 %v7112
      %v7150 = vunpack.c.l.b16 %v7113
      %v7151 = vunpack.c.l.b16 %v7114
      %v7152 = vunpack.c.l.b16 %v7115
      %v7153 = vunpack.c.l.b16 %v7116
      %v7154 = vunpack.c.l.b16 %v7117
      %v7155 = vunpack.c.l.b16 %v7118
      %v7156 = vpack.c.b16 %v7141, %v7140
      %v7157 = vpack.c.b16 %v7143, %v7142
      %v7158 = vpack.c.b16 %v7145, %v7144
      %v7159 = vpack.c.b16 %v7147, %v7146
      %v7160 = vpack.c.b16 %v7149, %v7148
      %v7161 = vpack.c.b16 %v7151, %v7150
      %v7162 = vpack.c.b16 %v7153, %v7152
      %v7163 = vpack.c.b16 %v7155, %v7154
      %7172 = vmatpush.bf16.msra.mxu0 %v7163
      %7173 = vmatpush.bf16.msra.mxu0 %v7162
      %7174 = vmatpush.bf16.msra.mxu0 %v7161
      %7175 = vmatpush.bf16.msra.mxu0 %v7160
      %7176 = vmatpush.bf16.msra.mxu0 %v7159
      %7177 = vmatpush.bf16.msra.mxu0 %v7158
      %7178 = vmatpush.bf16.msra.mxu0 %v7157
      %7179 = vmatpush.bf16.msra.mxu0 %v7156
      %7180 = vmatmul.bf16.gmra.mxu0 %v7122
      %v7181 = vpop.f32.mrf.mxu0
      %v7182 = vadd.f32 0.0, %v7181
      %v7183 = vpop.f32.mrf.mxu0
      %7184 = vdwg.mxu0
      %v7185 = vadd.f32 %v7100, %v7182
      %v7186 = vld [vmem:[#allocation6 + $0xc] sm:$0xc]
      %v7187 = vld [vmem:[#allocation6 + $0x10] sm:$0x3]
      %s7188 = scalar_lea.vmem %s5, 320
      %v7189 = vld [vmem:[%s7188] sm:$0xf]
      %v7190 = vld [vmem:[%s7188 + $0x4] sm:$0xf]
      %v7191 = vld [vmem:[%s7188 + $0x8] sm:$0xf]
      %v7192 = vld [vmem:[%s7188 + $0xc] sm:$0xf]
      %v7193 = vld [vmem:[%s7188 + $0x10] sm:$0xf]
      %v7194 = vld [vmem:[%s7188 + $0x14] sm:$0xf]
      %v7195 = vld [vmem:[%s7188 + $0x18] sm:$0xf]
      %v7196 = vld [vmem:[%s7188 + $0x1c] sm:$0xf]
      %v7197 = vld [vmem:[%s7188 + $0x20] sm:$0xf]
      %v7198 = vld [vmem:[%s7188 + $0x24] sm:$0xf]
      %v7199 = vld [vmem:[%s7188 + $0x28] sm:$0xf]
      %v7200 = vld [vmem:[%s7188 + $0x2c] sm:$0xf]
      %v7201 = vld [vmem:[%s7188 + $0x30] sm:$0xf]
      %v7202 = vld [vmem:[%s7188 + $0x34] sm:$0xf]
      %v7203 = vld [vmem:[%s7188 + $0x38] sm:$0xf]
      %v7204 = vld [vmem:[%s7188 + $0x3c] sm:$0xf]
      %v7207 = vunpack.c.l.b16 %v7186
      %v7208 = vunpack.c.l.b16 %v7187
      %v7209 = vpack.c.b16 %v7208, %v7207
      %v7210 = vrot.slane %v7209, 2
      %v7228 = vunpack.c.l.b16 %v7189
      %v7229 = vunpack.c.l.b16 %v7190
      %v7230 = vunpack.c.l.b16 %v7191
      %v7231 = vunpack.c.l.b16 %v7192
      %v7232 = vunpack.c.l.b16 %v7193
      %v7233 = vunpack.c.l.b16 %v7194
      %v7234 = vunpack.c.l.b16 %v7195
      %v7235 = vunpack.c.l.b16 %v7196
      %v7236 = vunpack.c.l.b16 %v7197
      %v7237 = vunpack.c.l.b16 %v7198
      %v7238 = vunpack.c.l.b16 %v7199
      %v7239 = vunpack.c.l.b16 %v7200
      %v7240 = vunpack.c.l.b16 %v7201
      %v7241 = vunpack.c.l.b16 %v7202
      %v7242 = vunpack.c.l.b16 %v7203
      %v7243 = vunpack.c.l.b16 %v7204
      %v7244 = vpack.c.b16 %v7229, %v7228
      %v7245 = vpack.c.b16 %v7231, %v7230
      %v7246 = vpack.c.b16 %v7233, %v7232
      %v7247 = vpack.c.b16 %v7235, %v7234
      %v7248 = vpack.c.b16 %v7237, %v7236
      %v7249 = vpack.c.b16 %v7239, %v7238
      %v7250 = vpack.c.b16 %v7241, %v7240
      %v7251 = vpack.c.b16 %v7243, %v7242
      %7260 = vmatpush.bf16.msra.mxu0 %v7251
      %7261 = vmatpush.bf16.msra.mxu0 %v7250
      %7262 = vmatpush.bf16.msra.mxu0 %v7249
      %7263 = vmatpush.bf16.msra.mxu0 %v7248
      %7264 = vmatpush.bf16.msra.mxu0 %v7247
      %7265 = vmatpush.bf16.msra.mxu0 %v7246
      %7266 = vmatpush.bf16.msra.mxu0 %v7245
      %7267 = vmatpush.bf16.msra.mxu0 %v7244
      %7268 = vmatmul.bf16.gmra.mxu0 %v7210
      %v7269 = vpop.f32.mrf.mxu0
      %v7270 = vadd.f32 0.0, %v7269
      %v7271 = vpop.f32.mrf.mxu0
      %7272 = vdwg.mxu0
      %v7273 = vadd.f32 %v7185, %v7270
      %v7274 = vld [vmem:[#allocation6 + $0x10] sm:$0x7]
      %s7275 = scalar_lea.vmem %s5, 384
      %v7276 = vld [vmem:[%s7275] sm:$0xf]
      %v7277 = vld [vmem:[%s7275 + $0x4] sm:$0xf]
      %v7278 = vld [vmem:[%s7275 + $0x8] sm:$0xf]
      %v7279 = vld [vmem:[%s7275 + $0xc] sm:$0xf]
      %v7280 = vld [vmem:[%s7275 + $0x10] sm:$0xf]
      %v7281 = vld [vmem:[%s7275 + $0x14] sm:$0xf]
      %v7282 = vld [vmem:[%s7275 + $0x18] sm:$0xf]
      %v7283 = vld [vmem:[%s7275 + $0x1c] sm:$0xf]
      %v7284 = vld [vmem:[%s7275 + $0x20] sm:$0xf]
      %v7285 = vld [vmem:[%s7275 + $0x24] sm:$0xf]
      %v7286 = vld [vmem:[%s7275 + $0x28] sm:$0xf]
      %v7287 = vld [vmem:[%s7275 + $0x2c] sm:$0xf]
      %v7288 = vld [vmem:[%s7275 + $0x30] sm:$0xf]
      %v7289 = vld [vmem:[%s7275 + $0x34] sm:$0xf]
      %v7290 = vld [vmem:[%s7275 + $0x38] sm:$0xf]
      %v7291 = vld [vmem:[%s7275 + $0x3c] sm:$0xf]
      %v7293 = vunpack.c.l.b16 %v7274
      %v7294 = vpack.c.b16 %v7293, %v7207
      %v7296 = vshrl.u32 %v7294, 16
      %v7298 = vrot.slane %v7296, 2
      %v7299 = vshll.u32 %v7294, 16
      %v7301 = vrot.slane %v7299, 3
      %v7302 = vor.u32 %v7298, %v7301
      %v7320 = vunpack.c.l.b16 %v7276
      %v7321 = vunpack.c.l.b16 %v7277
      %v7322 = vunpack.c.l.b16 %v7278
      %v7323 = vunpack.c.l.b16 %v7279
      %v7324 = vunpack.c.l.b16 %v7280
      %v7325 = vunpack.c.l.b16 %v7281
      %v7326 = vunpack.c.l.b16 %v7282
      %v7327 = vunpack.c.l.b16 %v7283
      %v7328 = vunpack.c.l.b16 %v7284
      %v7329 = vunpack.c.l.b16 %v7285
      %v7330 = vunpack.c.l.b16 %v7286
      %v7331 = vunpack.c.l.b16 %v7287
      %v7332 = vunpack.c.l.b16 %v7288
      %v7333 = vunpack.c.l.b16 %v7289
      %v7334 = vunpack.c.l.b16 %v7290
      %v7335 = vunpack.c.l.b16 %v7291
      %v7336 = vpack.c.b16 %v7321, %v7320
      %v7337 = vpack.c.b16 %v7323, %v7322
      %v7338 = vpack.c.b16 %v7325, %v7324
      %v7339 = vpack.c.b16 %v7327, %v7326
      %v7340 = vpack.c.b16 %v7329, %v7328
      %v7341 = vpack.c.b16 %v7331, %v7330
      %v7342 = vpack.c.b16 %v7333, %v7332
      %v7343 = vpack.c.b16 %v7335, %v7334
      %7352 = vmatpush.bf16.msra.mxu0 %v7343
      %7353 = vmatpush.bf16.msra.mxu0 %v7342
      %7354 = vmatpush.bf16.msra.mxu0 %v7341
      %7355 = vmatpush.bf16.msra.mxu0 %v7340
      %7356 = vmatpush.bf16.msra.mxu0 %v7339
      %7357 = vmatpush.bf16.msra.mxu0 %v7338
      %7358 = vmatpush.bf16.msra.mxu0 %v7337
      %7359 = vmatpush.bf16.msra.mxu0 %v7336
      %7360 = vmatmul.bf16.gmra.mxu0 %v7302
      %v7361 = vpop.f32.mrf.mxu0
      %v7362 = vadd.f32 0.0, %v7361
      %v7363 = vpop.f32.mrf.mxu0
      %7364 = vdwg.mxu0
      %v7365 = vadd.f32 %v7273, %v7362
      %v7366 = vld [vmem:[#allocation6 + $0xc] sm:$0x8]
      %s7367 = scalar_lea.vmem %s5, 448
      %v7368 = vld [vmem:[%s7367] sm:$0xf]
      %v7369 = vld [vmem:[%s7367 + $0x4] sm:$0xf]
      %v7370 = vld [vmem:[%s7367 + $0x8] sm:$0xf]
      %v7371 = vld [vmem:[%s7367 + $0xc] sm:$0xf]
      %v7372 = vld [vmem:[%s7367 + $0x10] sm:$0xf]
      %v7373 = vld [vmem:[%s7367 + $0x14] sm:$0xf]
      %v7374 = vld [vmem:[%s7367 + $0x18] sm:$0xf]
      %v7375 = vld [vmem:[%s7367 + $0x1c] sm:$0xf]
      %v7376 = vld [vmem:[%s7367 + $0x20] sm:$0xf]
      %v7377 = vld [vmem:[%s7367 + $0x24] sm:$0xf]
      %v7378 = vld [vmem:[%s7367 + $0x28] sm:$0xf]
      %v7379 = vld [vmem:[%s7367 + $0x2c] sm:$0xf]
      %v7380 = vld [vmem:[%s7367 + $0x30] sm:$0xf]
      %v7381 = vld [vmem:[%s7367 + $0x34] sm:$0xf]
      %v7382 = vld [vmem:[%s7367 + $0x38] sm:$0xf]
      %v7383 = vld [vmem:[%s7367 + $0x3c] sm:$0xf]
      %v7385 = vunpack.c.l.b16 %v7366
      %v7386 = vpack.c.b16 %v7293, %v7385
      %v7387 = vrot.slane %v7386, 3
      %v7405 = vunpack.c.l.b16 %v7368
      %v7406 = vunpack.c.l.b16 %v7369
      %v7407 = vunpack.c.l.b16 %v7370
      %v7408 = vunpack.c.l.b16 %v7371
      %v7409 = vunpack.c.l.b16 %v7372
      %v7410 = vunpack.c.l.b16 %v7373
      %v7411 = vunpack.c.l.b16 %v7374
      %v7412 = vunpack.c.l.b16 %v7375
      %v7413 = vunpack.c.l.b16 %v7376
      %v7414 = vunpack.c.l.b16 %v7377
      %v7415 = vunpack.c.l.b16 %v7378
      %v7416 = vunpack.c.l.b16 %v7379
      %v7417 = vunpack.c.l.b16 %v7380
      %v7418 = vunpack.c.l.b16 %v7381
      %v7419 = vunpack.c.l.b16 %v7382
      %v7420 = vunpack.c.l.b16 %v7383
      %v7421 = vpack.c.b16 %v7406, %v7405
      %v7422 = vpack.c.b16 %v7408, %v7407
      %v7423 = vpack.c.b16 %v7410, %v7409
      %v7424 = vpack.c.b16 %v7412, %v7411
      %v7425 = vpack.c.b16 %v7414, %v7413
      %v7426 = vpack.c.b16 %v7416, %v7415
      %v7427 = vpack.c.b16 %v7418, %v7417
      %v7428 = vpack.c.b16 %v7420, %v7419
      %7437 = vmatpush.bf16.msra.mxu0 %v7428
      %7438 = vmatpush.bf16.msra.mxu0 %v7427
      %7439 = vmatpush.bf16.msra.mxu0 %v7426
      %7440 = vmatpush.bf16.msra.mxu0 %v7425
      %7441 = vmatpush.bf16.msra.mxu0 %v7424
      %7442 = vmatpush.bf16.msra.mxu0 %v7423
      %7443 = vmatpush.bf16.msra.mxu0 %v7422
      %7444 = vmatpush.bf16.msra.mxu0 %v7421
      %7445 = vmatmul.bf16.gmra.mxu0 %v7387
      %v7446 = vpop.f32.mrf.mxu0
      %v7447 = vadd.f32 0.0, %v7446
      %v7448 = vpop.f32.mrf.mxu0
      %7449 = vdwg.mxu0
      %v7450 = vadd.f32 %v7365, %v7447
      %v7451 = vld [vmem:[#allocation6 + $0x10] sm:$0xf]
      %s7452 = scalar_lea.vmem %s5, 512
      %v7453 = vld [vmem:[%s7452] sm:$0xf]
      %v7454 = vld [vmem:[%s7452 + $0x4] sm:$0xf]
      %v7455 = vld [vmem:[%s7452 + $0x8] sm:$0xf]
      %v7456 = vld [vmem:[%s7452 + $0xc] sm:$0xf]
      %v7457 = vld [vmem:[%s7452 + $0x10] sm:$0xf]
      %v7458 = vld [vmem:[%s7452 + $0x14] sm:$0xf]
      %v7459 = vld [vmem:[%s7452 + $0x18] sm:$0xf]
      %v7460 = vld [vmem:[%s7452 + $0x1c] sm:$0xf]
      %v7461 = vld [vmem:[%s7452 + $0x20] sm:$0xf]
      %v7462 = vld [vmem:[%s7452 + $0x24] sm:$0xf]
      %v7463 = vld [vmem:[%s7452 + $0x28] sm:$0xf]
      %v7464 = vld [vmem:[%s7452 + $0x2c] sm:$0xf]
      %v7465 = vld [vmem:[%s7452 + $0x30] sm:$0xf]
      %v7466 = vld [vmem:[%s7452 + $0x34] sm:$0xf]
      %v7467 = vld [vmem:[%s7452 + $0x38] sm:$0xf]
      %v7468 = vld [vmem:[%s7452 + $0x3c] sm:$0xf]
      %v7470 = vunpack.c.l.b16 %v7451
      %v7471 = vpack.c.b16 %v7470, %v7385
      %v7473 = vshrl.u32 %v7471, 16
      %v7475 = vrot.slane %v7473, 3
      %v7476 = vshll.u32 %v7471, 16
      %v7478 = vrot.slane %v7476, 4
      %v7479 = vor.u32 %v7475, %v7478
      %v7497 = vunpack.c.l.b16 %v7453
      %v7498 = vunpack.c.l.b16 %v7454
      %v7499 = vunpack.c.l.b16 %v7455
      %v7500 = vunpack.c.l.b16 %v7456
      %v7501 = vunpack.c.l.b16 %v7457
      %v7502 = vunpack.c.l.b16 %v7458
      %v7503 = vunpack.c.l.b16 %v7459
      %v7504 = vunpack.c.l.b16 %v7460
      %v7505 = vunpack.c.l.b16 %v7461
      %v7506 = vunpack.c.l.b16 %v7462
      %v7507 = vunpack.c.l.b16 %v7463
      %v7508 = vunpack.c.l.b16 %v7464
      %v7509 = vunpack.c.l.b16 %v7465
      %v7510 = vunpack.c.l.b16 %v7466
      %v7511 = vunpack.c.l.b16 %v7467
      %v7512 = vunpack.c.l.b16 %v7468
      %v7513 = vpack.c.b16 %v7498, %v7497
      %v7514 = vpack.c.b16 %v7500, %v7499
      %v7515 = vpack.c.b16 %v7502, %v7501
      %v7516 = vpack.c.b16 %v7504, %v7503
      %v7517 = vpack.c.b16 %v7506, %v7505
      %v7518 = vpack.c.b16 %v7508, %v7507
      %v7519 = vpack.c.b16 %v7510, %v7509
      %v7520 = vpack.c.b16 %v7512, %v7511
      %7529 = vmatpush.bf16.msra.mxu0 %v7520
      %7530 = vmatpush.bf16.msra.mxu0 %v7519
      %7531 = vmatpush.bf16.msra.mxu0 %v7518
      %7532 = vmatpush.bf16.msra.mxu0 %v7517
      %7533 = vmatpush.bf16.msra.mxu0 %v7516
      %7534 = vmatpush.bf16.msra.mxu0 %v7515
      %7535 = vmatpush.bf16.msra.mxu0 %v7514
      %7536 = vmatpush.bf16.msra.mxu0 %v7513
      %7537 = vmatmul.bf16.gmra.mxu0 %v7479
      %v7538 = vpop.f32.mrf.mxu0
      %v7539 = vadd.f32 0.0, %v7538
      %v7540 = vpop.f32.mrf.mxu0
      %7541 = vdwg.mxu0
      %v7542 = vadd.f32 %v7450, %v7539
      %s7543 = scalar_lea.vmem %s5, 576
      %v7544 = vld [vmem:[%s7543] sm:$0xf]
      %v7545 = vld [vmem:[%s7543 + $0x4] sm:$0xf]
      %v7546 = vld [vmem:[%s7543 + $0x8] sm:$0xf]
      %v7547 = vld [vmem:[%s7543 + $0xc] sm:$0xf]
      %v7548 = vld [vmem:[%s7543 + $0x10] sm:$0xf]
      %v7549 = vld [vmem:[%s7543 + $0x14] sm:$0xf]
      %v7550 = vld [vmem:[%s7543 + $0x18] sm:$0xf]
      %v7551 = vld [vmem:[%s7543 + $0x1c] sm:$0xf]
      %v7552 = vld [vmem:[%s7543 + $0x20] sm:$0xf]
      %v7553 = vld [vmem:[%s7543 + $0x24] sm:$0xf]
      %v7554 = vld [vmem:[%s7543 + $0x28] sm:$0xf]
      %v7555 = vld [vmem:[%s7543 + $0x2c] sm:$0xf]
      %v7556 = vld [vmem:[%s7543 + $0x30] sm:$0xf]
      %v7557 = vld [vmem:[%s7543 + $0x34] sm:$0xf]
      %v7558 = vld [vmem:[%s7543 + $0x38] sm:$0xf]
      %v7559 = vld [vmem:[%s7543 + $0x3c] sm:$0xf]
      %v7576 = vunpack.c.l.b16 %v7544
      %v7577 = vunpack.c.l.b16 %v7545
      %v7578 = vunpack.c.l.b16 %v7546
      %v7579 = vunpack.c.l.b16 %v7547
      %v7580 = vunpack.c.l.b16 %v7548
      %v7581 = vunpack.c.l.b16 %v7549
      %v7582 = vunpack.c.l.b16 %v7550
      %v7583 = vunpack.c.l.b16 %v7551
      %v7584 = vunpack.c.l.b16 %v7552
      %v7585 = vunpack.c.l.b16 %v7553
      %v7586 = vunpack.c.l.b16 %v7554
      %v7587 = vunpack.c.l.b16 %v7555
      %v7588 = vunpack.c.l.b16 %v7556
      %v7589 = vunpack.c.l.b16 %v7557
      %v7590 = vunpack.c.l.b16 %v7558
      %v7591 = vunpack.c.l.b16 %v7559
      %v7592 = vpack.c.b16 %v7577, %v7576
      %v7593 = vpack.c.b16 %v7579, %v7578
      %v7594 = vpack.c.b16 %v7581, %v7580
      %v7595 = vpack.c.b16 %v7583, %v7582
      %v7596 = vpack.c.b16 %v7585, %v7584
      %v7597 = vpack.c.b16 %v7587, %v7586
      %v7598 = vpack.c.b16 %v7589, %v7588
      %v7599 = vpack.c.b16 %v7591, %v7590
      %7608 = vmatpush.bf16.msra.mxu0 %v7599
      %7609 = vmatpush.bf16.msra.mxu0 %v7598
      %7610 = vmatpush.bf16.msra.mxu0 %v7597
      %7611 = vmatpush.bf16.msra.mxu0 %v7596
      %7612 = vmatpush.bf16.msra.mxu0 %v7595
      %7613 = vmatpush.bf16.msra.mxu0 %v7594
      %7614 = vmatpush.bf16.msra.mxu0 %v7593
      %7615 = vmatpush.bf16.msra.mxu0 %v7592
      %7616 = vmatmul.bf16.gmra.mxu0 %v7451
      %v7617 = vpop.f32.mrf.mxu0
      %v7618 = vadd.f32 0.0, %v7617
      %v7619 = vpop.f32.mrf.mxu0
      %7620 = vdwg.mxu0
      %v7621 = vadd.f32 %v7542, %v7618
      %v7622 = vld [vmem:[#allocation6 + $0x1c] sm:$0xf]
      %s7623 = scalar_lea.vmem %s5, 640
      %v7624 = vld [vmem:[%s7623] sm:$0xf]
      %v7625 = vld [vmem:[%s7623 + $0x4] sm:$0xf]
      %v7626 = vld [vmem:[%s7623 + $0x8] sm:$0xf]
      %v7627 = vld [vmem:[%s7623 + $0xc] sm:$0xf]
      %v7628 = vld [vmem:[%s7623 + $0x10] sm:$0xf]
      %v7629 = vld [vmem:[%s7623 + $0x14] sm:$0xf]
      %v7630 = vld [vmem:[%s7623 + $0x18] sm:$0xf]
      %v7631 = vld [vmem:[%s7623 + $0x1c] sm:$0xf]
      %v7632 = vld [vmem:[%s7623 + $0x20] sm:$0xf]
      %v7633 = vld [vmem:[%s7623 + $0x24] sm:$0xf]
      %v7634 = vld [vmem:[%s7623 + $0x28] sm:$0xf]
      %v7635 = vld [vmem:[%s7623 + $0x2c] sm:$0xf]
      %v7636 = vld [vmem:[%s7623 + $0x30] sm:$0xf]
      %v7637 = vld [vmem:[%s7623 + $0x34] sm:$0xf]
      %v7638 = vld [vmem:[%s7623 + $0x38] sm:$0xf]
      %v7639 = vld [vmem:[%s7623 + $0x3c] sm:$0xf]
      %v7656 = vunpack.c.l.b16 %v7624
      %v7657 = vunpack.c.l.b16 %v7625
      %v7658 = vunpack.c.l.b16 %v7626
      %v7659 = vunpack.c.l.b16 %v7627
      %v7660 = vunpack.c.l.b16 %v7628
      %v7661 = vunpack.c.l.b16 %v7629
      %v7662 = vunpack.c.l.b16 %v7630
      %v7663 = vunpack.c.l.b16 %v7631
      %v7664 = vunpack.c.l.b16 %v7632
      %v7665 = vunpack.c.l.b16 %v7633
      %v7666 = vunpack.c.l.b16 %v7634
      %v7667 = vunpack.c.l.b16 %v7635
      %v7668 = vunpack.c.l.b16 %v7636
      %v7669 = vunpack.c.l.b16 %v7637
      %v7670 = vunpack.c.l.b16 %v7638
      %v7671 = vunpack.c.l.b16 %v7639
      %v7672 = vpack.c.b16 %v7657, %v7656
      %v7673 = vpack.c.b16 %v7659, %v7658
      %v7674 = vpack.c.b16 %v7661, %v7660
      %v7675 = vpack.c.b16 %v7663, %v7662
      %v7676 = vpack.c.b16 %v7665, %v7664
      %v7677 = vpack.c.b16 %v7667, %v7666
      %v7678 = vpack.c.b16 %v7669, %v7668
      %v7679 = vpack.c.b16 %v7671, %v7670
      %7688 = vmatpush.bf16.msra.mxu0 %v7679
      %7689 = vmatpush.bf16.msra.mxu0 %v7678
      %7690 = vmatpush.bf16.msra.mxu0 %v7677
      %7691 = vmatpush.bf16.msra.mxu0 %v7676
      %7692 = vmatpush.bf16.msra.mxu0 %v7675
      %7693 = vmatpush.bf16.msra.mxu0 %v7674
      %7694 = vmatpush.bf16.msra.mxu0 %v7673
      %7695 = vmatpush.bf16.msra.mxu0 %v7672
      %7696 = vmatmul.bf16.gmra.mxu0 %v7622
      %v7697 = vpop.f32.mrf.mxu0
      %v7698 = vadd.f32 0.0, %v7697
      %v7699 = vpop.f32.mrf.mxu0
      %7700 = vdwg.mxu0
      %v7701 = vadd.f32 %v7621, %v7698
      %v7702 = vld [vmem:[#allocation6 + $0x1c] sm:$0xf]
      %v7703 = vld [vmem:[#allocation6 + $0x20] sm:$0x1]
      %s7704 = scalar_lea.vmem %s5, 704
      %v7705 = vld [vmem:[%s7704] sm:$0xf]
      %v7706 = vld [vmem:[%s7704 + $0x4] sm:$0xf]
      %v7707 = vld [vmem:[%s7704 + $0x8] sm:$0xf]
      %v7708 = vld [vmem:[%s7704 + $0xc] sm:$0xf]
      %v7709 = vld [vmem:[%s7704 + $0x10] sm:$0xf]
      %v7710 = vld [vmem:[%s7704 + $0x14] sm:$0xf]
      %v7711 = vld [vmem:[%s7704 + $0x18] sm:$0xf]
      %v7712 = vld [vmem:[%s7704 + $0x1c] sm:$0xf]
      %v7713 = vld [vmem:[%s7704 + $0x20] sm:$0xf]
      %v7714 = vld [vmem:[%s7704 + $0x24] sm:$0xf]
      %v7715 = vld [vmem:[%s7704 + $0x28] sm:$0xf]
      %v7716 = vld [vmem:[%s7704 + $0x2c] sm:$0xf]
      %v7717 = vld [vmem:[%s7704 + $0x30] sm:$0xf]
      %v7718 = vld [vmem:[%s7704 + $0x34] sm:$0xf]
      %v7719 = vld [vmem:[%s7704 + $0x38] sm:$0xf]
      %v7720 = vld [vmem:[%s7704 + $0x3c] sm:$0xf]
      %v7723 = vunpack.c.l.b16 %v7702
      %v7724 = vunpack.c.l.b16 %v7703
      %v7725 = vpack.c.b16 %v7724, %v7723
      %v7727 = vshrl.u32 %v7725, 16
      %v7729 = vshll.u32 %v7725, 16
      %v7731 = vrot.slane %v7729, 1
      %v7732 = vor.u32 %v7727, %v7731
      %v7750 = vunpack.c.l.b16 %v7705
      %v7751 = vunpack.c.l.b16 %v7706
      %v7752 = vunpack.c.l.b16 %v7707
      %v7753 = vunpack.c.l.b16 %v7708
      %v7754 = vunpack.c.l.b16 %v7709
      %v7755 = vunpack.c.l.b16 %v7710
      %v7756 = vunpack.c.l.b16 %v7711
      %v7757 = vunpack.c.l.b16 %v7712
      %v7758 = vunpack.c.l.b16 %v7713
      %v7759 = vunpack.c.l.b16 %v7714
      %v7760 = vunpack.c.l.b16 %v7715
      %v7761 = vunpack.c.l.b16 %v7716
      %v7762 = vunpack.c.l.b16 %v7717
      %v7763 = vunpack.c.l.b16 %v7718
      %v7764 = vunpack.c.l.b16 %v7719
      %v7765 = vunpack.c.l.b16 %v7720
      %v7766 = vpack.c.b16 %v7751, %v7750
      %v7767 = vpack.c.b16 %v7753, %v7752
      %v7768 = vpack.c.b16 %v7755, %v7754
      %v7769 = vpack.c.b16 %v7757, %v7756
      %v7770 = vpack.c.b16 %v7759, %v7758
      %v7771 = vpack.c.b16 %v7761, %v7760
      %v7772 = vpack.c.b16 %v7763, %v7762
      %v7773 = vpack.c.b16 %v7765, %v7764
      %7782 = vmatpush.bf16.msra.mxu0 %v7773
      %7783 = vmatpush.bf16.msra.mxu0 %v7772
      %7784 = vmatpush.bf16.msra.mxu0 %v7771
      %7785 = vmatpush.bf16.msra.mxu0 %v7770
      %7786 = vmatpush.bf16.msra.mxu0 %v7769
      %7787 = vmatpush.bf16.msra.mxu0 %v7768
      %7788 = vmatpush.bf16.msra.mxu0 %v7767
      %7789 = vmatpush.bf16.msra.mxu0 %v7766
      %7790 = vmatmul.bf16.gmra.mxu0 %v7732
      %v7791 = vpop.f32.mrf.mxu0
      %v7792 = vadd.f32 0.0, %v7791
      %v7793 = vpop.f32.mrf.mxu0
      %7794 = vdwg.mxu0
      %v7795 = vadd.f32 %v7701, %v7792
      %v7796 = vld [vmem:[#allocation6 + $0x1c] sm:$0xe]
      %s7797 = scalar_lea.vmem %s5, 768
      %v7798 = vld [vmem:[%s7797] sm:$0xf]
      %v7799 = vld [vmem:[%s7797 + $0x4] sm:$0xf]
      %v7800 = vld [vmem:[%s7797 + $0x8] sm:$0xf]
      %v7801 = vld [vmem:[%s7797 + $0xc] sm:$0xf]
      %v7802 = vld [vmem:[%s7797 + $0x10] sm:$0xf]
      %v7803 = vld [vmem:[%s7797 + $0x14] sm:$0xf]
      %v7804 = vld [vmem:[%s7797 + $0x18] sm:$0xf]
      %v7805 = vld [vmem:[%s7797 + $0x1c] sm:$0xf]
      %v7806 = vld [vmem:[%s7797 + $0x20] sm:$0xf]
      %v7807 = vld [vmem:[%s7797 + $0x24] sm:$0xf]
      %v7808 = vld [vmem:[%s7797 + $0x28] sm:$0xf]
      %v7809 = vld [vmem:[%s7797 + $0x2c] sm:$0xf]
      %v7810 = vld [vmem:[%s7797 + $0x30] sm:$0xf]
      %v7811 = vld [vmem:[%s7797 + $0x34] sm:$0xf]
      %v7812 = vld [vmem:[%s7797 + $0x38] sm:$0xf]
      %v7813 = vld [vmem:[%s7797 + $0x3c] sm:$0xf]
      %v7815 = vunpack.c.l.b16 %v7796
      %v7816 = vpack.c.b16 %v7724, %v7815
      %v7817 = vrot.slane %v7816, 1
      %v7835 = vunpack.c.l.b16 %v7798
      %v7836 = vunpack.c.l.b16 %v7799
      %v7837 = vunpack.c.l.b16 %v7800
      %v7838 = vunpack.c.l.b16 %v7801
      %v7839 = vunpack.c.l.b16 %v7802
      %v7840 = vunpack.c.l.b16 %v7803
      %v7841 = vunpack.c.l.b16 %v7804
      %v7842 = vunpack.c.l.b16 %v7805
      %v7843 = vunpack.c.l.b16 %v7806
      %v7844 = vunpack.c.l.b16 %v7807
      %v7845 = vunpack.c.l.b16 %v7808
      %v7846 = vunpack.c.l.b16 %v7809
      %v7847 = vunpack.c.l.b16 %v7810
      %v7848 = vunpack.c.l.b16 %v7811
      %v7849 = vunpack.c.l.b16 %v7812
      %v7850 = vunpack.c.l.b16 %v7813
      %v7851 = vpack.c.b16 %v7836, %v7835
      %v7852 = vpack.c.b16 %v7838, %v7837
      %v7853 = vpack.c.b16 %v7840, %v7839
      %v7854 = vpack.c.b16 %v7842, %v7841
      %v7855 = vpack.c.b16 %v7844, %v7843
      %v7856 = vpack.c.b16 %v7846, %v7845
      %v7857 = vpack.c.b16 %v7848, %v7847
      %v7858 = vpack.c.b16 %v7850, %v7849
      %7867 = vmatpush.bf16.msra.mxu0 %v7858
      %7868 = vmatpush.bf16.msra.mxu0 %v7857
      %7869 = vmatpush.bf16.msra.mxu0 %v7856
      %7870 = vmatpush.bf16.msra.mxu0 %v7855
      %7871 = vmatpush.bf16.msra.mxu0 %v7854
      %7872 = vmatpush.bf16.msra.mxu0 %v7853
      %7873 = vmatpush.bf16.msra.mxu0 %v7852
      %7874 = vmatpush.bf16.msra.mxu0 %v7851
      %7875 = vmatmul.bf16.gmra.mxu0 %v7817
      %v7876 = vpop.f32.mrf.mxu0
      %v7877 = vadd.f32 0.0, %v7876
      %v7878 = vpop.f32.mrf.mxu0
      %7879 = vdwg.mxu0
      %v7880 = vadd.f32 %v7795, %v7877
      %v7881 = vld [vmem:[#allocation6 + $0x20] sm:$0x3]
      %s7882 = scalar_lea.vmem %s5, 832
      %v7883 = vld [vmem:[%s7882] sm:$0xf]
      %v7884 = vld [vmem:[%s7882 + $0x4] sm:$0xf]
      %v7885 = vld [vmem:[%s7882 + $0x8] sm:$0xf]
      %v7886 = vld [vmem:[%s7882 + $0xc] sm:$0xf]
      %v7887 = vld [vmem:[%s7882 + $0x10] sm:$0xf]
      %v7888 = vld [vmem:[%s7882 + $0x14] sm:$0xf]
      %v7889 = vld [vmem:[%s7882 + $0x18] sm:$0xf]
      %v7890 = vld [vmem:[%s7882 + $0x1c] sm:$0xf]
      %v7891 = vld [vmem:[%s7882 + $0x20] sm:$0xf]
      %v7892 = vld [vmem:[%s7882 + $0x24] sm:$0xf]
      %v7893 = vld [vmem:[%s7882 + $0x28] sm:$0xf]
      %v7894 = vld [vmem:[%s7882 + $0x2c] sm:$0xf]
      %v7895 = vld [vmem:[%s7882 + $0x30] sm:$0xf]
      %v7896 = vld [vmem:[%s7882 + $0x34] sm:$0xf]
      %v7897 = vld [vmem:[%s7882 + $0x38] sm:$0xf]
      %v7898 = vld [vmem:[%s7882 + $0x3c] sm:$0xf]
      %v7900 = vunpack.c.l.b16 %v7881
      %v7901 = vpack.c.b16 %v7900, %v7815
      %v7903 = vshrl.u32 %v7901, 16
      %v7905 = vrot.slane %v7903, 1
      %v7906 = vshll.u32 %v7901, 16
      %v7908 = vrot.slane %v7906, 2
      %v7909 = vor.u32 %v7905, %v7908
      %v7927 = vunpack.c.l.b16 %v7883
      %v7928 = vunpack.c.l.b16 %v7884
      %v7929 = vunpack.c.l.b16 %v7885
      %v7930 = vunpack.c.l.b16 %v7886
      %v7931 = vunpack.c.l.b16 %v7887
      %v7932 = vunpack.c.l.b16 %v7888
      %v7933 = vunpack.c.l.b16 %v7889
      %v7934 = vunpack.c.l.b16 %v7890
      %v7935 = vunpack.c.l.b16 %v7891
      %v7936 = vunpack.c.l.b16 %v7892
      %v7937 = vunpack.c.l.b16 %v7893
      %v7938 = vunpack.c.l.b16 %v7894
      %v7939 = vunpack.c.l.b16 %v7895
      %v7940 = vunpack.c.l.b16 %v7896
      %v7941 = vunpack.c.l.b16 %v7897
      %v7942 = vunpack.c.l.b16 %v7898
      %v7943 = vpack.c.b16 %v7928, %v7927
      %v7944 = vpack.c.b16 %v7930, %v7929
      %v7945 = vpack.c.b16 %v7932, %v7931
      %v7946 = vpack.c.b16 %v7934, %v7933
      %v7947 = vpack.c.b16 %v7936, %v7935
      %v7948 = vpack.c.b16 %v7938, %v7937
      %v7949 = vpack.c.b16 %v7940, %v7939
      %v7950 = vpack.c.b16 %v7942, %v7941
      %7959 = vmatpush.bf16.msra.mxu0 %v7950
      %7960 = vmatpush.bf16.msra.mxu0 %v7949
      %7961 = vmatpush.bf16.msra.mxu0 %v7948
      %7962 = vmatpush.bf16.msra.mxu0 %v7947
      %7963 = vmatpush.bf16.msra.mxu0 %v7946
      %7964 = vmatpush.bf16.msra.mxu0 %v7945
      %7965 = vmatpush.bf16.msra.mxu0 %v7944
      %7966 = vmatpush.bf16.msra.mxu0 %v7943
      %7967 = vmatmul.bf16.gmra.mxu0 %v7909
      %v7968 = vpop.f32.mrf.mxu0
      %v7969 = vadd.f32 0.0, %v7968
      %v7970 = vpop.f32.mrf.mxu0
      %7971 = vdwg.mxu0
      %v7972 = vadd.f32 %v7880, %v7969
      %v7973 = vld [vmem:[#allocation6 + $0x1c] sm:$0xc]
      %s7974 = scalar_lea.vmem %s5, 896
      %v7975 = vld [vmem:[%s7974] sm:$0xf]
      %v7976 = vld [vmem:[%s7974 + $0x4] sm:$0xf]
      %v7977 = vld [vmem:[%s7974 + $0x8] sm:$0xf]
      %v7978 = vld [vmem:[%s7974 + $0xc] sm:$0xf]
      %v7979 = vld [vmem:[%s7974 + $0x10] sm:$0xf]
      %v7980 = vld [vmem:[%s7974 + $0x14] sm:$0xf]
      %v7981 = vld [vmem:[%s7974 + $0x18] sm:$0xf]
      %v7982 = vld [vmem:[%s7974 + $0x1c] sm:$0xf]
      %v7983 = vld [vmem:[%s7974 + $0x20] sm:$0xf]
      %v7984 = vld [vmem:[%s7974 + $0x24] sm:$0xf]
      %v7985 = vld [vmem:[%s7974 + $0x28] sm:$0xf]
      %v7986 = vld [vmem:[%s7974 + $0x2c] sm:$0xf]
      %v7987 = vld [vmem:[%s7974 + $0x30] sm:$0xf]
      %v7988 = vld [vmem:[%s7974 + $0x34] sm:$0xf]
      %v7989 = vld [vmem:[%s7974 + $0x38] sm:$0xf]
      %v7990 = vld [vmem:[%s7974 + $0x3c] sm:$0xf]
      %v7992 = vunpack.c.l.b16 %v7973
      %v7993 = vpack.c.b16 %v7900, %v7992
      %v7994 = vrot.slane %v7993, 2
      %v8012 = vunpack.c.l.b16 %v7975
      %v8013 = vunpack.c.l.b16 %v7976
      %v8014 = vunpack.c.l.b16 %v7977
      %v8015 = vunpack.c.l.b16 %v7978
      %v8016 = vunpack.c.l.b16 %v7979
      %v8017 = vunpack.c.l.b16 %v7980
      %v8018 = vunpack.c.l.b16 %v7981
      %v8019 = vunpack.c.l.b16 %v7982
      %v8020 = vunpack.c.l.b16 %v7983
      %v8021 = vunpack.c.l.b16 %v7984
      %v8022 = vunpack.c.l.b16 %v7985
      %v8023 = vunpack.c.l.b16 %v7986
      %v8024 = vunpack.c.l.b16 %v7987
      %v8025 = vunpack.c.l.b16 %v7988
      %v8026 = vunpack.c.l.b16 %v7989
      %v8027 = vunpack.c.l.b16 %v7990
      %v8028 = vpack.c.b16 %v8013, %v8012
      %v8029 = vpack.c.b16 %v8015, %v8014
      %v8030 = vpack.c.b16 %v8017, %v8016
      %v8031 = vpack.c.b16 %v8019, %v8018
      %v8032 = vpack.c.b16 %v8021, %v8020
      %v8033 = vpack.c.b16 %v8023, %v8022
      %v8034 = vpack.c.b16 %v8025, %v8024
      %v8035 = vpack.c.b16 %v8027, %v8026
      %8044 = vmatpush.bf16.msra.mxu0 %v8035
      %8045 = vmatpush.bf16.msra.mxu0 %v8034
      %8046 = vmatpush.bf16.msra.mxu0 %v8033
      %8047 = vmatpush.bf16.msra.mxu0 %v8032
      %8048 = vmatpush.bf16.msra.mxu0 %v8031
      %8049 = vmatpush.bf16.msra.mxu0 %v8030
      %8050 = vmatpush.bf16.msra.mxu0 %v8029
      %8051 = vmatpush.bf16.msra.mxu0 %v8028
      %8052 = vmatmul.bf16.gmra.mxu0 %v7994
      %v8053 = vpop.f32.mrf.mxu0
      %v8054 = vadd.f32 0.0, %v8053
      %v8055 = vpop.f32.mrf.mxu0
      %8056 = vdwg.mxu0
      %v8057 = vadd.f32 %v7972, %v8054
      %v8058 = vld [vmem:[#allocation6 + $0x28] sm:$0xc]
      %v8059 = vld [vmem:[#allocation6 + $0x2c] sm:$0x3]
      %s8060 = scalar_lea.vmem %s5, 960
      %v8061 = vld [vmem:[%s8060] sm:$0xf]
      %v8062 = vld [vmem:[%s8060 + $0x4] sm:$0xf]
      %v8063 = vld [vmem:[%s8060 + $0x8] sm:$0xf]
      %v8064 = vld [vmem:[%s8060 + $0xc] sm:$0xf]
      %v8065 = vld [vmem:[%s8060 + $0x10] sm:$0xf]
      %v8066 = vld [vmem:[%s8060 + $0x14] sm:$0xf]
      %v8067 = vld [vmem:[%s8060 + $0x18] sm:$0xf]
      %v8068 = vld [vmem:[%s8060 + $0x1c] sm:$0xf]
      %v8069 = vld [vmem:[%s8060 + $0x20] sm:$0xf]
      %v8070 = vld [vmem:[%s8060 + $0x24] sm:$0xf]
      %v8071 = vld [vmem:[%s8060 + $0x28] sm:$0xf]
      %v8072 = vld [vmem:[%s8060 + $0x2c] sm:$0xf]
      %v8073 = vld [vmem:[%s8060 + $0x30] sm:$0xf]
      %v8074 = vld [vmem:[%s8060 + $0x34] sm:$0xf]
      %v8075 = vld [vmem:[%s8060 + $0x38] sm:$0xf]
      %v8076 = vld [vmem:[%s8060 + $0x3c] sm:$0xf]
      %v8079 = vunpack.c.l.b16 %v8058
      %v8080 = vunpack.c.l.b16 %v8059
      %v8081 = vpack.c.b16 %v8080, %v8079
      %v8082 = vrot.slane %v8081, 2
      %v8100 = vunpack.c.l.b16 %v8061
      %v8101 = vunpack.c.l.b16 %v8062
      %v8102 = vunpack.c.l.b16 %v8063
      %v8103 = vunpack.c.l.b16 %v8064
      %v8104 = vunpack.c.l.b16 %v8065
      %v8105 = vunpack.c.l.b16 %v8066
      %v8106 = vunpack.c.l.b16 %v8067
      %v8107 = vunpack.c.l.b16 %v8068
      %v8108 = vunpack.c.l.b16 %v8069
      %v8109 = vunpack.c.l.b16 %v8070
      %v8110 = vunpack.c.l.b16 %v8071
      %v8111 = vunpack.c.l.b16 %v8072
      %v8112 = vunpack.c.l.b16 %v8073
      %v8113 = vunpack.c.l.b16 %v8074
      %v8114 = vunpack.c.l.b16 %v8075
      %v8115 = vunpack.c.l.b16 %v8076
      %v8116 = vpack.c.b16 %v8101, %v8100
      %v8117 = vpack.c.b16 %v8103, %v8102
      %v8118 = vpack.c.b16 %v8105, %v8104
      %v8119 = vpack.c.b16 %v8107, %v8106
      %v8120 = vpack.c.b16 %v8109, %v8108
      %v8121 = vpack.c.b16 %v8111, %v8110
      %v8122 = vpack.c.b16 %v8113, %v8112
      %v8123 = vpack.c.b16 %v8115, %v8114
      %8132 = vmatpush.bf16.msra.mxu0 %v8123
      %8133 = vmatpush.bf16.msra.mxu0 %v8122
      %8134 = vmatpush.bf16.msra.mxu0 %v8121
      %8135 = vmatpush.bf16.msra.mxu0 %v8120
      %8136 = vmatpush.bf16.msra.mxu0 %v8119
      %8137 = vmatpush.bf16.msra.mxu0 %v8118
      %8138 = vmatpush.bf16.msra.mxu0 %v8117
      %8139 = vmatpush.bf16.msra.mxu0 %v8116
      %8140 = vmatmul.bf16.gmra.mxu0 %v8082
      %v8141 = vpop.f32.mrf.mxu0
      %v8142 = vadd.f32 0.0, %v8141
      %v8143 = vpop.f32.mrf.mxu0
      %8144 = vdwg.mxu0
      %v8145 = vadd.f32 %v8057, %v8142
      %v8146 = vld [vmem:[#allocation6 + $0x2c] sm:$0x7]
      %s8147 = scalar_lea.vmem %s5, 1024
      %v8148 = vld [vmem:[%s8147] sm:$0xf]
      %v8149 = vld [vmem:[%s8147 + $0x4] sm:$0xf]
      %v8150 = vld [vmem:[%s8147 + $0x8] sm:$0xf]
      %v8151 = vld [vmem:[%s8147 + $0xc] sm:$0xf]
      %v8152 = vld [vmem:[%s8147 + $0x10] sm:$0xf]
      %v8153 = vld [vmem:[%s8147 + $0x14] sm:$0xf]
      %v8154 = vld [vmem:[%s8147 + $0x18] sm:$0xf]
      %v8155 = vld [vmem:[%s8147 + $0x1c] sm:$0xf]
      %v8156 = vld [vmem:[%s8147 + $0x20] sm:$0xf]
      %v8157 = vld [vmem:[%s8147 + $0x24] sm:$0xf]
      %v8158 = vld [vmem:[%s8147 + $0x28] sm:$0xf]
      %v8159 = vld [vmem:[%s8147 + $0x2c] sm:$0xf]
      %v8160 = vld [vmem:[%s8147 + $0x30] sm:$0xf]
      %v8161 = vld [vmem:[%s8147 + $0x34] sm:$0xf]
      %v8162 = vld [vmem:[%s8147 + $0x38] sm:$0xf]
      %v8163 = vld [vmem:[%s8147 + $0x3c] sm:$0xf]
      %v8165 = vunpack.c.l.b16 %v8146
      %v8166 = vpack.c.b16 %v8165, %v8079
      %v8168 = vshrl.u32 %v8166, 16
      %v8170 = vrot.slane %v8168, 2
      %v8171 = vshll.u32 %v8166, 16
      %v8173 = vrot.slane %v8171, 3
      %v8174 = vor.u32 %v8170, %v8173
      %v8192 = vunpack.c.l.b16 %v8148
      %v8193 = vunpack.c.l.b16 %v8149
      %v8194 = vunpack.c.l.b16 %v8150
      %v8195 = vunpack.c.l.b16 %v8151
      %v8196 = vunpack.c.l.b16 %v8152
      %v8197 = vunpack.c.l.b16 %v8153
      %v8198 = vunpack.c.l.b16 %v8154
      %v8199 = vunpack.c.l.b16 %v8155
      %v8200 = vunpack.c.l.b16 %v8156
      %v8201 = vunpack.c.l.b16 %v8157
      %v8202 = vunpack.c.l.b16 %v8158
      %v8203 = vunpack.c.l.b16 %v8159
      %v8204 = vunpack.c.l.b16 %v8160
      %v8205 = vunpack.c.l.b16 %v8161
      %v8206 = vunpack.c.l.b16 %v8162
      %v8207 = vunpack.c.l.b16 %v8163
      %v8208 = vpack.c.b16 %v8193, %v8192
      %v8209 = vpack.c.b16 %v8195, %v8194
      %v8210 = vpack.c.b16 %v8197, %v8196
      %v8211 = vpack.c.b16 %v8199, %v8198
      %v8212 = vpack.c.b16 %v8201, %v8200
      %v8213 = vpack.c.b16 %v8203, %v8202
      %v8214 = vpack.c.b16 %v8205, %v8204
      %v8215 = vpack.c.b16 %v8207, %v8206
      %8224 = vmatpush.bf16.msra.mxu0 %v8215
      %8225 = vmatpush.bf16.msra.mxu0 %v8214
      %8226 = vmatpush.bf16.msra.mxu0 %v8213
      %8227 = vmatpush.bf16.msra.mxu0 %v8212
      %8228 = vmatpush.bf16.msra.mxu0 %v8211
      %8229 = vmatpush.bf16.msra.mxu0 %v8210
      %8230 = vmatpush.bf16.msra.mxu0 %v8209
      %8231 = vmatpush.bf16.msra.mxu0 %v8208
      %8232 = vmatmul.bf16.gmra.mxu0 %v8174
      %v8233 = vpop.f32.mrf.mxu0
      %v8234 = vadd.f32 0.0, %v8233
      %v8235 = vpop.f32.mrf.mxu0
      %8236 = vdwg.mxu0
      %v8237 = vadd.f32 %v8145, %v8234
      %v8238 = vld [vmem:[#allocation6 + $0x28] sm:$0x8]
      %s8239 = scalar_lea.vmem %s5, 1088
      %v8240 = vld [vmem:[%s8239] sm:$0xf]
      %v8241 = vld [vmem:[%s8239 + $0x4] sm:$0xf]
      %v8242 = vld [vmem:[%s8239 + $0x8] sm:$0xf]
      %v8243 = vld [vmem:[%s8239 + $0xc] sm:$0xf]
      %v8244 = vld [vmem:[%s8239 + $0x10] sm:$0xf]
      %v8245 = vld [vmem:[%s8239 + $0x14] sm:$0xf]
      %v8246 = vld [vmem:[%s8239 + $0x18] sm:$0xf]
      %v8247 = vld [vmem:[%s8239 + $0x1c] sm:$0xf]
      %v8248 = vld [vmem:[%s8239 + $0x20] sm:$0xf]
      %v8249 = vld [vmem:[%s8239 + $0x24] sm:$0xf]
      %v8250 = vld [vmem:[%s8239 + $0x28] sm:$0xf]
      %v8251 = vld [vmem:[%s8239 + $0x2c] sm:$0xf]
      %v8252 = vld [vmem:[%s8239 + $0x30] sm:$0xf]
      %v8253 = vld [vmem:[%s8239 + $0x34] sm:$0xf]
      %v8254 = vld [vmem:[%s8239 + $0x38] sm:$0xf]
      %v8255 = vld [vmem:[%s8239 + $0x3c] sm:$0xf]
      %v8257 = vunpack.c.l.b16 %v8238
      %v8258 = vpack.c.b16 %v8165, %v8257
      %v8259 = vrot.slane %v8258, 3
      %v8277 = vunpack.c.l.b16 %v8240
      %v8278 = vunpack.c.l.b16 %v8241
      %v8279 = vunpack.c.l.b16 %v8242
      %v8280 = vunpack.c.l.b16 %v8243
      %v8281 = vunpack.c.l.b16 %v8244
      %v8282 = vunpack.c.l.b16 %v8245
      %v8283 = vunpack.c.l.b16 %v8246
      %v8284 = vunpack.c.l.b16 %v8247
      %v8285 = vunpack.c.l.b16 %v8248
      %v8286 = vunpack.c.l.b16 %v8249
      %v8287 = vunpack.c.l.b16 %v8250
      %v8288 = vunpack.c.l.b16 %v8251
      %v8289 = vunpack.c.l.b16 %v8252
      %v8290 = vunpack.c.l.b16 %v8253
      %v8291 = vunpack.c.l.b16 %v8254
      %v8292 = vunpack.c.l.b16 %v8255
      %v8293 = vpack.c.b16 %v8278, %v8277
      %v8294 = vpack.c.b16 %v8280, %v8279
      %v8295 = vpack.c.b16 %v8282, %v8281
      %v8296 = vpack.c.b16 %v8284, %v8283
      %v8297 = vpack.c.b16 %v8286, %v8285
      %v8298 = vpack.c.b16 %v8288, %v8287
      %v8299 = vpack.c.b16 %v8290, %v8289
      %v8300 = vpack.c.b16 %v8292, %v8291
      %8309 = vmatpush.bf16.msra.mxu0 %v8300
      %8310 = vmatpush.bf16.msra.mxu0 %v8299
      %8311 = vmatpush.bf16.msra.mxu0 %v8298
      %8312 = vmatpush.bf16.msra.mxu0 %v8297
      %8313 = vmatpush.bf16.msra.mxu0 %v8296
      %8314 = vmatpush.bf16.msra.mxu0 %v8295
      %8315 = vmatpush.bf16.msra.mxu0 %v8294
      %8316 = vmatpush.bf16.msra.mxu0 %v8293
      %8317 = vmatmul.bf16.gmra.mxu0 %v8259
      %v8318 = vpop.f32.mrf.mxu0
      %v8319 = vadd.f32 0.0, %v8318
      %v8320 = vpop.f32.mrf.mxu0
      %8321 = vdwg.mxu0
      %v8322 = vadd.f32 %v8237, %v8319
      %v8323 = vld [vmem:[#allocation6 + $0x2c] sm:$0xf]
      %s8324 = scalar_lea.vmem %s5, 1152
      %v8325 = vld [vmem:[%s8324] sm:$0xf]
      %v8326 = vld [vmem:[%s8324 + $0x4] sm:$0xf]
      %v8327 = vld [vmem:[%s8324 + $0x8] sm:$0xf]
      %v8328 = vld [vmem:[%s8324 + $0xc] sm:$0xf]
      %v8329 = vld [vmem:[%s8324 + $0x10] sm:$0xf]
      %v8330 = vld [vmem:[%s8324 + $0x14] sm:$0xf]
      %v8331 = vld [vmem:[%s8324 + $0x18] sm:$0xf]
      %v8332 = vld [vmem:[%s8324 + $0x1c] sm:$0xf]
      %v8333 = vld [vmem:[%s8324 + $0x20] sm:$0xf]
      %v8334 = vld [vmem:[%s8324 + $0x24] sm:$0xf]
      %v8335 = vld [vmem:[%s8324 + $0x28] sm:$0xf]
      %v8336 = vld [vmem:[%s8324 + $0x2c] sm:$0xf]
      %v8337 = vld [vmem:[%s8324 + $0x30] sm:$0xf]
      %v8338 = vld [vmem:[%s8324 + $0x34] sm:$0xf]
      %v8339 = vld [vmem:[%s8324 + $0x38] sm:$0xf]
      %v8340 = vld [vmem:[%s8324 + $0x3c] sm:$0xf]
      %v8342 = vunpack.c.l.b16 %v8323
      %v8343 = vpack.c.b16 %v8342, %v8257
      %v8345 = vshrl.u32 %v8343, 16
      %v8347 = vrot.slane %v8345, 3
      %v8348 = vshll.u32 %v8343, 16
      %v8350 = vrot.slane %v8348, 4
      %v8351 = vor.u32 %v8347, %v8350
      %v8369 = vunpack.c.l.b16 %v8325
      %v8370 = vunpack.c.l.b16 %v8326
      %v8371 = vunpack.c.l.b16 %v8327
      %v8372 = vunpack.c.l.b16 %v8328
      %v8373 = vunpack.c.l.b16 %v8329
      %v8374 = vunpack.c.l.b16 %v8330
      %v8375 = vunpack.c.l.b16 %v8331
      %v8376 = vunpack.c.l.b16 %v8332
      %v8377 = vunpack.c.l.b16 %v8333
      %v8378 = vunpack.c.l.b16 %v8334
      %v8379 = vunpack.c.l.b16 %v8335
      %v8380 = vunpack.c.l.b16 %v8336
      %v8381 = vunpack.c.l.b16 %v8337
      %v8382 = vunpack.c.l.b16 %v8338
      %v8383 = vunpack.c.l.b16 %v8339
      %v8384 = vunpack.c.l.b16 %v8340
      %v8385 = vpack.c.b16 %v8370, %v8369
      %v8386 = vpack.c.b16 %v8372, %v8371
      %v8387 = vpack.c.b16 %v8374, %v8373
      %v8388 = vpack.c.b16 %v8376, %v8375
      %v8389 = vpack.c.b16 %v8378, %v8377
      %v8390 = vpack.c.b16 %v8380, %v8379
      %v8391 = vpack.c.b16 %v8382, %v8381
      %v8392 = vpack.c.b16 %v8384, %v8383
      %8401 = vmatpush.bf16.msra.mxu0 %v8392
      %8402 = vmatpush.bf16.msra.mxu0 %v8391
      %8403 = vmatpush.bf16.msra.mxu0 %v8390
      %8404 = vmatpush.bf16.msra.mxu0 %v8389
      %8405 = vmatpush.bf16.msra.mxu0 %v8388
      %8406 = vmatpush.bf16.msra.mxu0 %v8387
      %8407 = vmatpush.bf16.msra.mxu0 %v8386
      %8408 = vmatpush.bf16.msra.mxu0 %v8385
      %8409 = vmatmul.bf16.gmra.mxu0 %v8351
      %v8410 = vpop.f32.mrf.mxu0
      %v8411 = vadd.f32 0.0, %v8410
      %v8412 = vpop.f32.mrf.mxu0
      %8413 = vdwg.mxu0
      %v8414 = vadd.f32 %v8322, %v8411
      %s8415 = scalar_lea.vmem %s5, 1216
      %v8416 = vld [vmem:[%s8415] sm:$0xf]
      %v8417 = vld [vmem:[%s8415 + $0x4] sm:$0xf]
      %v8418 = vld [vmem:[%s8415 + $0x8] sm:$0xf]
      %v8419 = vld [vmem:[%s8415 + $0xc] sm:$0xf]
      %v8420 = vld [vmem:[%s8415 + $0x10] sm:$0xf]
      %v8421 = vld [vmem:[%s8415 + $0x14] sm:$0xf]
      %v8422 = vld [vmem:[%s8415 + $0x18] sm:$0xf]
      %v8423 = vld [vmem:[%s8415 + $0x1c] sm:$0xf]
      %v8424 = vld [vmem:[%s8415 + $0x20] sm:$0xf]
      %v8425 = vld [vmem:[%s8415 + $0x24] sm:$0xf]
      %v8426 = vld [vmem:[%s8415 + $0x28] sm:$0xf]
      %v8427 = vld [vmem:[%s8415 + $0x2c] sm:$0xf]
      %v8428 = vld [vmem:[%s8415 + $0x30] sm:$0xf]
      %v8429 = vld [vmem:[%s8415 + $0x34] sm:$0xf]
      %v8430 = vld [vmem:[%s8415 + $0x38] sm:$0xf]
      %v8431 = vld [vmem:[%s8415 + $0x3c] sm:$0xf]
      %v8448 = vunpack.c.l.b16 %v8416
      %v8449 = vunpack.c.l.b16 %v8417
      %v8450 = vunpack.c.l.b16 %v8418
      %v8451 = vunpack.c.l.b16 %v8419
      %v8452 = vunpack.c.l.b16 %v8420
      %v8453 = vunpack.c.l.b16 %v8421
      %v8454 = vunpack.c.l.b16 %v8422
      %v8455 = vunpack.c.l.b16 %v8423
      %v8456 = vunpack.c.l.b16 %v8424
      %v8457 = vunpack.c.l.b16 %v8425
      %v8458 = vunpack.c.l.b16 %v8426
      %v8459 = vunpack.c.l.b16 %v8427
      %v8460 = vunpack.c.l.b16 %v8428
      %v8461 = vunpack.c.l.b16 %v8429
      %v8462 = vunpack.c.l.b16 %v8430
      %v8463 = vunpack.c.l.b16 %v8431
      %v8464 = vpack.c.b16 %v8449, %v8448
      %v8465 = vpack.c.b16 %v8451, %v8450
      %v8466 = vpack.c.b16 %v8453, %v8452
      %v8467 = vpack.c.b16 %v8455, %v8454
      %v8468 = vpack.c.b16 %v8457, %v8456
      %v8469 = vpack.c.b16 %v8459, %v8458
      %v8470 = vpack.c.b16 %v8461, %v8460
      %v8471 = vpack.c.b16 %v8463, %v8462
      %8480 = vmatpush.bf16.msra.mxu0 %v8471
      %8481 = vmatpush.bf16.msra.mxu0 %v8470
      %8482 = vmatpush.bf16.msra.mxu0 %v8469
      %8483 = vmatpush.bf16.msra.mxu0 %v8468
      %8484 = vmatpush.bf16.msra.mxu0 %v8467
      %8485 = vmatpush.bf16.msra.mxu0 %v8466
      %8486 = vmatpush.bf16.msra.mxu0 %v8465
      %8487 = vmatpush.bf16.msra.mxu0 %v8464
      %8488 = vmatmul.bf16.gmra.mxu0 %v8323
      %v8489 = vpop.f32.mrf.mxu0
      %v8490 = vadd.f32 0.0, %v8489
      %v8491 = vpop.f32.mrf.mxu0
      %8492 = vdwg.mxu0
      %v8493 = vadd.f32 %v8414, %v8490
      %v8494 = vld [vmem:[#allocation6 + $0x38] sm:$0xf]
      %s8495 = scalar_lea.vmem %s5, 1280
      %v8496 = vld [vmem:[%s8495] sm:$0xf]
      %v8497 = vld [vmem:[%s8495 + $0x4] sm:$0xf]
      %v8498 = vld [vmem:[%s8495 + $0x8] sm:$0xf]
      %v8499 = vld [vmem:[%s8495 + $0xc] sm:$0xf]
      %v8500 = vld [vmem:[%s8495 + $0x10] sm:$0xf]
      %v8501 = vld [vmem:[%s8495 + $0x14] sm:$0xf]
      %v8502 = vld [vmem:[%s8495 + $0x18] sm:$0xf]
      %v8503 = vld [vmem:[%s8495 + $0x1c] sm:$0xf]
      %v8504 = vld [vmem:[%s8495 + $0x20] sm:$0xf]
      %v8505 = vld [vmem:[%s8495 + $0x24] sm:$0xf]
      %v8506 = vld [vmem:[%s8495 + $0x28] sm:$0xf]
      %v8507 = vld [vmem:[%s8495 + $0x2c] sm:$0xf]
      %v8508 = vld [vmem:[%s8495 + $0x30] sm:$0xf]
      %v8509 = vld [vmem:[%s8495 + $0x34] sm:$0xf]
      %v8510 = vld [vmem:[%s8495 + $0x38] sm:$0xf]
      %v8511 = vld [vmem:[%s8495 + $0x3c] sm:$0xf]
      %v8528 = vunpack.c.l.b16 %v8496
      %v8529 = vunpack.c.l.b16 %v8497
      %v8530 = vunpack.c.l.b16 %v8498
      %v8531 = vunpack.c.l.b16 %v8499
      %v8532 = vunpack.c.l.b16 %v8500
      %v8533 = vunpack.c.l.b16 %v8501
      %v8534 = vunpack.c.l.b16 %v8502
      %v8535 = vunpack.c.l.b16 %v8503
      %v8536 = vunpack.c.l.b16 %v8504
      %v8537 = vunpack.c.l.b16 %v8505
      %v8538 = vunpack.c.l.b16 %v8506
      %v8539 = vunpack.c.l.b16 %v8507
      %v8540 = vunpack.c.l.b16 %v8508
      %v8541 = vunpack.c.l.b16 %v8509
      %v8542 = vunpack.c.l.b16 %v8510
      %v8543 = vunpack.c.l.b16 %v8511
      %v8544 = vpack.c.b16 %v8529, %v8528
      %v8545 = vpack.c.b16 %v8531, %v8530
      %v8546 = vpack.c.b16 %v8533, %v8532
      %v8547 = vpack.c.b16 %v8535, %v8534
      %v8548 = vpack.c.b16 %v8537, %v8536
      %v8549 = vpack.c.b16 %v8539, %v8538
      %v8550 = vpack.c.b16 %v8541, %v8540
      %v8551 = vpack.c.b16 %v8543, %v8542
      %8560 = vmatpush.bf16.msra.mxu0 %v8551
      %8561 = vmatpush.bf16.msra.mxu0 %v8550
      %8562 = vmatpush.bf16.msra.mxu0 %v8549
      %8563 = vmatpush.bf16.msra.mxu0 %v8548
      %8564 = vmatpush.bf16.msra.mxu0 %v8547
      %8565 = vmatpush.bf16.msra.mxu0 %v8546
      %8566 = vmatpush.bf16.msra.mxu0 %v8545
      %8567 = vmatpush.bf16.msra.mxu0 %v8544
      %8568 = vmatmul.bf16.gmra.mxu0 %v8494
      %v8569 = vpop.f32.mrf.mxu0
      %v8570 = vadd.f32 0.0, %v8569
      %v8571 = vpop.f32.mrf.mxu0
      %8572 = vdwg.mxu0
      %v8573 = vadd.f32 %v8493, %v8570
      %v8574 = vld [vmem:[#allocation6 + $0x38] sm:$0xf]
      %v8575 = vld [vmem:[#allocation6 + $0x3c] sm:$0x1]
      %s8576 = scalar_lea.vmem %s5, 1344
      %v8577 = vld [vmem:[%s8576] sm:$0xf]
      %v8578 = vld [vmem:[%s8576 + $0x4] sm:$0xf]
      %v8579 = vld [vmem:[%s8576 + $0x8] sm:$0xf]
      %v8580 = vld [vmem:[%s8576 + $0xc] sm:$0xf]
      %v8581 = vld [vmem:[%s8576 + $0x10] sm:$0xf]
      %v8582 = vld [vmem:[%s8576 + $0x14] sm:$0xf]
      %v8583 = vld [vmem:[%s8576 + $0x18] sm:$0xf]
      %v8584 = vld [vmem:[%s8576 + $0x1c] sm:$0xf]
      %v8585 = vld [vmem:[%s8576 + $0x20] sm:$0xf]
      %v8586 = vld [vmem:[%s8576 + $0x24] sm:$0xf]
      %v8587 = vld [vmem:[%s8576 + $0x28] sm:$0xf]
      %v8588 = vld [vmem:[%s8576 + $0x2c] sm:$0xf]
      %v8589 = vld [vmem:[%s8576 + $0x30] sm:$0xf]
      %v8590 = vld [vmem:[%s8576 + $0x34] sm:$0xf]
      %v8591 = vld [vmem:[%s8576 + $0x38] sm:$0xf]
      %v8592 = vld [vmem:[%s8576 + $0x3c] sm:$0xf]
      %v8595 = vunpack.c.l.b16 %v8574
      %v8596 = vunpack.c.l.b16 %v8575
      %v8597 = vpack.c.b16 %v8596, %v8595
      %v8599 = vshrl.u32 %v8597, 16
      %v8601 = vshll.u32 %v8597, 16
      %v8603 = vrot.slane %v8601, 1
      %v8604 = vor.u32 %v8599, %v8603
      %v8622 = vunpack.c.l.b16 %v8577
      %v8623 = vunpack.c.l.b16 %v8578
      %v8624 = vunpack.c.l.b16 %v8579
      %v8625 = vunpack.c.l.b16 %v8580
      %v8626 = vunpack.c.l.b16 %v8581
      %v8627 = vunpack.c.l.b16 %v8582
      %v8628 = vunpack.c.l.b16 %v8583
      %v8629 = vunpack.c.l.b16 %v8584
      %v8630 = vunpack.c.l.b16 %v8585
      %v8631 = vunpack.c.l.b16 %v8586
      %v8632 = vunpack.c.l.b16 %v8587
      %v8633 = vunpack.c.l.b16 %v8588
      %v8634 = vunpack.c.l.b16 %v8589
      %v8635 = vunpack.c.l.b16 %v8590
      %v8636 = vunpack.c.l.b16 %v8591
      %v8637 = vunpack.c.l.b16 %v8592
      %v8638 = vpack.c.b16 %v8623, %v8622
      %v8639 = vpack.c.b16 %v8625, %v8624
      %v8640 = vpack.c.b16 %v8627, %v8626
      %v8641 = vpack.c.b16 %v8629, %v8628
      %v8642 = vpack.c.b16 %v8631, %v8630
      %v8643 = vpack.c.b16 %v8633, %v8632
      %v8644 = vpack.c.b16 %v8635, %v8634
      %v8645 = vpack.c.b16 %v8637, %v8636
      %8654 = vmatpush.bf16.msra.mxu0 %v8645
      %8655 = vmatpush.bf16.msra.mxu0 %v8644
      %8656 = vmatpush.bf16.msra.mxu0 %v8643
      %8657 = vmatpush.bf16.msra.mxu0 %v8642
      %8658 = vmatpush.bf16.msra.mxu0 %v8641
      %8659 = vmatpush.bf16.msra.mxu0 %v8640
      %8660 = vmatpush.bf16.msra.mxu0 %v8639
      %8661 = vmatpush.bf16.msra.mxu0 %v8638
      %8662 = vmatmul.bf16.gmra.mxu0 %v8604
      %v8663 = vpop.f32.mrf.mxu0
      %v8664 = vadd.f32 0.0, %v8663
      %v8665 = vpop.f32.mrf.mxu0
      %8666 = vdwg.mxu0
      %v8667 = vadd.f32 %v8573, %v8664
      %v8668 = vld [vmem:[#allocation6 + $0x38] sm:$0xe]
      %s8669 = scalar_lea.vmem %s5, 1408
      %v8670 = vld [vmem:[%s8669] sm:$0xf]
      %v8671 = vld [vmem:[%s8669 + $0x4] sm:$0xf]
      %v8672 = vld [vmem:[%s8669 + $0x8] sm:$0xf]
      %v8673 = vld [vmem:[%s8669 + $0xc] sm:$0xf]
      %v8674 = vld [vmem:[%s8669 + $0x10] sm:$0xf]
      %v8675 = vld [vmem:[%s8669 + $0x14] sm:$0xf]
      %v8676 = vld [vmem:[%s8669 + $0x18] sm:$0xf]
      %v8677 = vld [vmem:[%s8669 + $0x1c] sm:$0xf]
      %v8678 = vld [vmem:[%s8669 + $0x20] sm:$0xf]
      %v8679 = vld [vmem:[%s8669 + $0x24] sm:$0xf]
      %v8680 = vld [vmem:[%s8669 + $0x28] sm:$0xf]
      %v8681 = vld [vmem:[%s8669 + $0x2c] sm:$0xf]
      %v8682 = vld [vmem:[%s8669 + $0x30] sm:$0xf]
      %v8683 = vld [vmem:[%s8669 + $0x34] sm:$0xf]
      %v8684 = vld [vmem:[%s8669 + $0x38] sm:$0xf]
      %v8685 = vld [vmem:[%s8669 + $0x3c] sm:$0xf]
      %v8687 = vunpack.c.l.b16 %v8668
      %v8688 = vpack.c.b16 %v8596, %v8687
      %v8689 = vrot.slane %v8688, 1
      %v8707 = vunpack.c.l.b16 %v8670
      %v8708 = vunpack.c.l.b16 %v8671
      %v8709 = vunpack.c.l.b16 %v8672
      %v8710 = vunpack.c.l.b16 %v8673
      %v8711 = vunpack.c.l.b16 %v8674
      %v8712 = vunpack.c.l.b16 %v8675
      %v8713 = vunpack.c.l.b16 %v8676
      %v8714 = vunpack.c.l.b16 %v8677
      %v8715 = vunpack.c.l.b16 %v8678
      %v8716 = vunpack.c.l.b16 %v8679
      %v8717 = vunpack.c.l.b16 %v8680
      %v8718 = vunpack.c.l.b16 %v8681
      %v8719 = vunpack.c.l.b16 %v8682
      %v8720 = vunpack.c.l.b16 %v8683
      %v8721 = vunpack.c.l.b16 %v8684
      %v8722 = vunpack.c.l.b16 %v8685
      %v8723 = vpack.c.b16 %v8708, %v8707
      %v8724 = vpack.c.b16 %v8710, %v8709
      %v8725 = vpack.c.b16 %v8712, %v8711
      %v8726 = vpack.c.b16 %v8714, %v8713
      %v8727 = vpack.c.b16 %v8716, %v8715
      %v8728 = vpack.c.b16 %v8718, %v8717
      %v8729 = vpack.c.b16 %v8720, %v8719
      %v8730 = vpack.c.b16 %v8722, %v8721
      %8739 = vmatpush.bf16.msra.mxu0 %v8730
      %8740 = vmatpush.bf16.msra.mxu0 %v8729
      %8741 = vmatpush.bf16.msra.mxu0 %v8728
      %8742 = vmatpush.bf16.msra.mxu0 %v8727
      %8743 = vmatpush.bf16.msra.mxu0 %v8726
      %8744 = vmatpush.bf16.msra.mxu0 %v8725
      %8745 = vmatpush.bf16.msra.mxu0 %v8724
      %8746 = vmatpush.bf16.msra.mxu0 %v8723
      %8747 = vmatmul.bf16.gmra.mxu0 %v8689
      %v8748 = vpop.f32.mrf.mxu0
      %v8749 = vadd.f32 0.0, %v8748
      %v8750 = vpop.f32.mrf.mxu0
      %8751 = vdwg.mxu0
      %v8752 = vadd.f32 %v8667, %v8749
      %v8753 = vld [vmem:[#allocation6 + $0x3c] sm:$0x3]
      %s8754 = scalar_lea.vmem %s5, 1472
      %v8755 = vld [vmem:[%s8754] sm:$0xf]
      %v8756 = vld [vmem:[%s8754 + $0x4] sm:$0xf]
      %v8757 = vld [vmem:[%s8754 + $0x8] sm:$0xf]
      %v8758 = vld [vmem:[%s8754 + $0xc] sm:$0xf]
      %v8759 = vld [vmem:[%s8754 + $0x10] sm:$0xf]
      %v8760 = vld [vmem:[%s8754 + $0x14] sm:$0xf]
      %v8761 = vld [vmem:[%s8754 + $0x18] sm:$0xf]
      %v8762 = vld [vmem:[%s8754 + $0x1c] sm:$0xf]
      %v8763 = vld [vmem:[%s8754 + $0x20] sm:$0xf]
      %v8764 = vld [vmem:[%s8754 + $0x24] sm:$0xf]
      %v8765 = vld [vmem:[%s8754 + $0x28] sm:$0xf]
      %v8766 = vld [vmem:[%s8754 + $0x2c] sm:$0xf]
      %v8767 = vld [vmem:[%s8754 + $0x30] sm:$0xf]
      %v8768 = vld [vmem:[%s8754 + $0x34] sm:$0xf]
      %v8769 = vld [vmem:[%s8754 + $0x38] sm:$0xf]
      %v8770 = vld [vmem:[%s8754 + $0x3c] sm:$0xf]
      %v8772 = vunpack.c.l.b16 %v8753
      %v8773 = vpack.c.b16 %v8772, %v8687
      %v8775 = vshrl.u32 %v8773, 16
      %v8777 = vrot.slane %v8775, 1
      %v8778 = vshll.u32 %v8773, 16
      %v8780 = vrot.slane %v8778, 2
      %v8781 = vor.u32 %v8777, %v8780
      %v8799 = vunpack.c.l.b16 %v8755
      %v8800 = vunpack.c.l.b16 %v8756
      %v8801 = vunpack.c.l.b16 %v8757
      %v8802 = vunpack.c.l.b16 %v8758
      %v8803 = vunpack.c.l.b16 %v8759
      %v8804 = vunpack.c.l.b16 %v8760
      %v8805 = vunpack.c.l.b16 %v8761
      %v8806 = vunpack.c.l.b16 %v8762
      %v8807 = vunpack.c.l.b16 %v8763
      %v8808 = vunpack.c.l.b16 %v8764
      %v8809 = vunpack.c.l.b16 %v8765
      %v8810 = vunpack.c.l.b16 %v8766
      %v8811 = vunpack.c.l.b16 %v8767
      %v8812 = vunpack.c.l.b16 %v8768
      %v8813 = vunpack.c.l.b16 %v8769
      %v8814 = vunpack.c.l.b16 %v8770
      %v8815 = vpack.c.b16 %v8800, %v8799
      %v8816 = vpack.c.b16 %v8802, %v8801
      %v8817 = vpack.c.b16 %v8804, %v8803
      %v8818 = vpack.c.b16 %v8806, %v8805
      %v8819 = vpack.c.b16 %v8808, %v8807
      %v8820 = vpack.c.b16 %v8810, %v8809
      %v8821 = vpack.c.b16 %v8812, %v8811
      %v8822 = vpack.c.b16 %v8814, %v8813
      %8831 = vmatpush.bf16.msra.mxu0 %v8822
      %8832 = vmatpush.bf16.msra.mxu0 %v8821
      %8833 = vmatpush.bf16.msra.mxu0 %v8820
      %8834 = vmatpush.bf16.msra.mxu0 %v8819
      %8835 = vmatpush.bf16.msra.mxu0 %v8818
      %8836 = vmatpush.bf16.msra.mxu0 %v8817
      %8837 = vmatpush.bf16.msra.mxu0 %v8816
      %8838 = vmatpush.bf16.msra.mxu0 %v8815
      %8839 = vmatmul.bf16.gmra.mxu0 %v8781
      %v8840 = vpop.f32.mrf.mxu0
      %v8841 = vadd.f32 0.0, %v8840
      %v8842 = vpop.f32.mrf.mxu0
      %8843 = vdwg.mxu0
      %v8844 = vadd.f32 %v8752, %v8841
      %v8845 = vld [vmem:[#allocation6 + $0x38] sm:$0xc]
      %s8846 = scalar_lea.vmem %s5, 1536
      %v8847 = vld [vmem:[%s8846] sm:$0xf]
      %v8848 = vld [vmem:[%s8846 + $0x4] sm:$0xf]
      %v8849 = vld [vmem:[%s8846 + $0x8] sm:$0xf]
      %v8850 = vld [vmem:[%s8846 + $0xc] sm:$0xf]
      %v8851 = vld [vmem:[%s8846 + $0x10] sm:$0xf]
      %v8852 = vld [vmem:[%s8846 + $0x14] sm:$0xf]
      %v8853 = vld [vmem:[%s8846 + $0x18] sm:$0xf]
      %v8854 = vld [vmem:[%s8846 + $0x1c] sm:$0xf]
      %v8855 = vld [vmem:[%s8846 + $0x20] sm:$0xf]
      %v8856 = vld [vmem:[%s8846 + $0x24] sm:$0xf]
      %v8857 = vld [vmem:[%s8846 + $0x28] sm:$0xf]
      %v8858 = vld [vmem:[%s8846 + $0x2c] sm:$0xf]
      %v8859 = vld [vmem:[%s8846 + $0x30] sm:$0xf]
      %v8860 = vld [vmem:[%s8846 + $0x34] sm:$0xf]
      %v8861 = vld [vmem:[%s8846 + $0x38] sm:$0xf]
      %v8862 = vld [vmem:[%s8846 + $0x3c] sm:$0xf]
      %v8864 = vunpack.c.l.b16 %v8845
      %v8865 = vpack.c.b16 %v8772, %v8864
      %v8866 = vrot.slane %v8865, 2
      %v8884 = vunpack.c.l.b16 %v8847
      %v8885 = vunpack.c.l.b16 %v8848
      %v8886 = vunpack.c.l.b16 %v8849
      %v8887 = vunpack.c.l.b16 %v8850
      %v8888 = vunpack.c.l.b16 %v8851
      %v8889 = vunpack.c.l.b16 %v8852
      %v8890 = vunpack.c.l.b16 %v8853
      %v8891 = vunpack.c.l.b16 %v8854
      %v8892 = vunpack.c.l.b16 %v8855
      %v8893 = vunpack.c.l.b16 %v8856
      %v8894 = vunpack.c.l.b16 %v8857
      %v8895 = vunpack.c.l.b16 %v8858
      %v8896 = vunpack.c.l.b16 %v8859
      %v8897 = vunpack.c.l.b16 %v8860
      %v8898 = vunpack.c.l.b16 %v8861
      %v8899 = vunpack.c.l.b16 %v8862
      %v8900 = vpack.c.b16 %v8885, %v8884
      %v8901 = vpack.c.b16 %v8887, %v8886
      %v8902 = vpack.c.b16 %v8889, %v8888
      %v8903 = vpack.c.b16 %v8891, %v8890
      %v8904 = vpack.c.b16 %v8893, %v8892
      %v8905 = vpack.c.b16 %v8895, %v8894
      %v8906 = vpack.c.b16 %v8897, %v8896
      %v8907 = vpack.c.b16 %v8899, %v8898
      %8916 = vmatpush.bf16.msra.mxu0 %v8907
      %8917 = vmatpush.bf16.msra.mxu0 %v8906
      %8918 = vmatpush.bf16.msra.mxu0 %v8905
      %8919 = vmatpush.bf16.msra.mxu0 %v8904
      %8920 = vmatpush.bf16.msra.mxu0 %v8903
      %8921 = vmatpush.bf16.msra.mxu0 %v8902
      %8922 = vmatpush.bf16.msra.mxu0 %v8901
      %8923 = vmatpush.bf16.msra.mxu0 %v8900
      %8924 = vmatmul.bf16.gmra.mxu0 %v8866
      %v8925 = vpop.f32.mrf.mxu0
      %v8926 = vadd.f32 0.0, %v8925
      %v8927 = vpop.f32.mrf.mxu0
      %8928 = vdwg.mxu0
      %v8929 = vadd.f32 %v8844, %v8926
      %v8930 = vld [vmem:[%s6] sm:$0x1]
      %v8932 = vperm.slane %v8930, 0
      %v8934 = vadd.f32 %v8929, %v8932
      %v8935 = vmax.f32 %v8934, 0.0
      %v8936 = vpack.c.bf16 %v8935, %v8935
      %v8937 = vld [vmem:[%s7] sm:$0xf]
      %v8938 = vld [vmem:[%s7 + $0x4] sm:$0xf]
      %v8939 = vld [vmem:[%s7 + $0x8] sm:$0xf]
      %v8940 = vld [vmem:[%s7 + $0xc] sm:$0xf]
      %v8941 = vld [vmem:[%s7 + $0x10] sm:$0xf]
      %v8942 = vld [vmem:[%s7 + $0x14] sm:$0xf]
      %v8943 = vld [vmem:[%s7 + $0x18] sm:$0xf]
      %v8944 = vld [vmem:[%s7 + $0x1c] sm:$0xf]
      %v8945 = vld [vmem:[%s7 + $0x20] sm:$0xf]
      %v8946 = vld [vmem:[%s7 + $0x24] sm:$0xf]
      %v8947 = vld [vmem:[%s7 + $0x28] sm:$0xf]
      %v8948 = vld [vmem:[%s7 + $0x2c] sm:$0xf]
      %v8949 = vld [vmem:[%s7 + $0x30] sm:$0xf]
      %v8950 = vld [vmem:[%s7 + $0x34] sm:$0xf]
      %v8951 = vld [vmem:[%s7 + $0x38] sm:$0xf]
      %v8952 = vld [vmem:[%s7 + $0x3c] sm:$0xf]
      %v8953 = vld [vmem:[%s8] sm:$0x1]
      %v8955 = vperm.slane %v8953, 0
      %v8973 = vunpack.c.l.b16 %v8937
      %v8974 = vunpack.c.l.b16 %v8938
      %v8975 = vunpack.c.l.b16 %v8939
      %v8976 = vunpack.c.l.b16 %v8940
      %v8977 = vunpack.c.l.b16 %v8941
      %v8978 = vunpack.c.l.b16 %v8942
      %v8979 = vunpack.c.l.b16 %v8943
      %v8980 = vunpack.c.l.b16 %v8944
      %v8981 = vunpack.c.l.b16 %v8945
      %v8982 = vunpack.c.l.b16 %v8946
      %v8983 = vunpack.c.l.b16 %v8947
      %v8984 = vunpack.c.l.b16 %v8948
      %v8985 = vunpack.c.l.b16 %v8949
      %v8986 = vunpack.c.l.b16 %v8950
      %v8987 = vunpack.c.l.b16 %v8951
      %v8988 = vunpack.c.l.b16 %v8952
      %v8989 = vpack.c.b16 %v8974, %v8973
      %v8990 = vpack.c.b16 %v8976, %v8975
      %v8991 = vpack.c.b16 %v8978, %v8977
      %v8992 = vpack.c.b16 %v8980, %v8979
      %v8993 = vpack.c.b16 %v8982, %v8981
      %v8994 = vpack.c.b16 %v8984, %v8983
      %v8995 = vpack.c.b16 %v8986, %v8985
      %v8996 = vpack.c.b16 %v8988, %v8987
      %9005 = vmatpush.bf16.msra.mxu0 %v8996
      %9006 = vmatpush.bf16.msra.mxu0 %v8995
      %9007 = vmatpush.bf16.msra.mxu0 %v8994
      %9008 = vmatpush.bf16.msra.mxu0 %v8993
      %9009 = vmatpush.bf16.msra.mxu0 %v8992
      %9010 = vmatpush.bf16.msra.mxu0 %v8991
      %9011 = vmatpush.bf16.msra.mxu0 %v8990
      %9012 = vmatpush.bf16.msra.mxu0 %v8989
      %9013 = vmatmul.bf16.gmra.mxu0 %v8936
      %v9014 = vpop.f32.mrf.mxu0
      %v9015 = vadd.f32 %v8955, %v9014
      %v9016 = vpop.f32.mrf.mxu0
      %9017 = vdwg.mxu0
      %v9018 = vmax.f32 %v9015, 0.0
      %v9019 = vpack.c.bf16 %v9018, %v9018
      %v9020 = vld [vmem:[%s9] sm:$0xf]
      %v9021 = vld [vmem:[%s9 + $0x4] sm:$0xf]
      %v9022 = vld [vmem:[%s9 + $0x8] sm:$0xf]
      %v9023 = vld [vmem:[%s9 + $0xc] sm:$0xf]
      %v9024 = vld [vmem:[%s9 + $0x10] sm:$0xf]
      %v9025 = vld [vmem:[%s9 + $0x14] sm:$0xf]
      %v9026 = vld [vmem:[%s9 + $0x18] sm:$0xf]
      %v9027 = vld [vmem:[%s9 + $0x1c] sm:$0xf]
      %v9028 = vld [vmem:[%s9 + $0x20] sm:$0xf]
      %v9029 = vld [vmem:[%s9 + $0x24] sm:$0xf]
      %v9030 = vld [vmem:[%s9 + $0x28] sm:$0xf]
      %v9031 = vld [vmem:[%s9 + $0x2c] sm:$0xf]
      %v9032 = vld [vmem:[%s9 + $0x30] sm:$0xf]
      %v9033 = vld [vmem:[%s9 + $0x34] sm:$0xf]
      %v9034 = vld [vmem:[%s9 + $0x38] sm:$0xf]
      %v9035 = vld [vmem:[%s9 + $0x3c] sm:$0xf]
      %v9036 = vld [vmem:[%s10] sm:$0x1]
      %v9038 = vperm.slane %v9036, 0
      %v9056 = vunpack.c.l.b16 %v9020
      %v9057 = vunpack.c.l.b16 %v9021
      %v9058 = vunpack.c.l.b16 %v9022
      %v9059 = vunpack.c.l.b16 %v9023
      %v9060 = vunpack.c.l.b16 %v9024
      %v9061 = vunpack.c.l.b16 %v9025
      %v9062 = vunpack.c.l.b16 %v9026
      %v9063 = vunpack.c.l.b16 %v9027
      %v9064 = vunpack.c.l.b16 %v9028
      %v9065 = vunpack.c.l.b16 %v9029
      %v9066 = vunpack.c.l.b16 %v9030
      %v9067 = vunpack.c.l.b16 %v9031
      %v9068 = vunpack.c.l.b16 %v9032
      %v9069 = vunpack.c.l.b16 %v9033
      %v9070 = vunpack.c.l.b16 %v9034
      %v9071 = vunpack.c.l.b16 %v9035
      %v9072 = vpack.c.b16 %v9057, %v9056
      %v9073 = vpack.c.b16 %v9059, %v9058
      %v9074 = vpack.c.b16 %v9061, %v9060
      %v9075 = vpack.c.b16 %v9063, %v9062
      %v9076 = vpack.c.b16 %v9065, %v9064
      %v9077 = vpack.c.b16 %v9067, %v9066
      %v9078 = vpack.c.b16 %v9069, %v9068
      %v9079 = vpack.c.b16 %v9071, %v9070
      %9088 = vmatpush.bf16.msra.mxu0 %v9079
      %9089 = vmatpush.bf16.msra.mxu0 %v9078
      %9090 = vmatpush.bf16.msra.mxu0 %v9077
      %9091 = vmatpush.bf16.msra.mxu0 %v9076
      %9092 = vmatpush.bf16.msra.mxu0 %v9075
      %9093 = vmatpush.bf16.msra.mxu0 %v9074
      %9094 = vmatpush.bf16.msra.mxu0 %v9073
      %9095 = vmatpush.bf16.msra.mxu0 %v9072
      %9096 = vmatmul.bf16.gmra.mxu0 %v9019
      %v9097 = vpop.f32.mrf.mxu0
      %v9098 = vadd.f32 %v9038, %v9097
      %v9099 = vpop.f32.mrf.mxu0
      %9100 = vdwg.mxu0
      %9101 = vst [vmem:[%s384] sm:$0xff] %v9098
      %p9102 = scmp.lt.s32.totalorder %s22, 1
      %s9103 = scalar_select %p9102, %s22, 1
      %s9104 = smul.addr %s9103, 8
      %s9105 = scalar_lea.vmem %s11, %s9104
      // Predicated region
      $region65: #{convnet_forward.1} parent=63 // pred_check
        %p9106 = pneg %p276
      $region66: #{convnet_forward.1} parent=63 // pred_check_branch
        %9108 = sbr.rel (%p9106) target = $region68
      $region67: #{convnet_forward.1} parent=63 // pred_region
        _
      $region68: #{convnet_forward.1} parent=63 // pred_fallthru
        _
    $region64: #{convnet_forward.1} parent=5 // pred_fallthru
      _
    %p9109 = scmp.le.s32.totalorder 2, %s17
    // Predicated region
    $region69: #{convnet_forward.1} parent=5 // pred_check
      %p9110 = pneg %p9109
    $region70: #{convnet_forward.1} parent=5 // pred_check_branch
      %9112 = sbr.rel (%p9110) target = $region72
    $region71: #{convnet_forward.1} parent=5 // pred_region
      %s9113 = ssub.s32 %s17, 2
      // Predicated region
      $region73: #{convnet_forward.1} parent=71 // pred_check
        %p9114 = pneg %p282
      $region74: #{convnet_forward.1} parent=71 // pred_check_branch
        %9116 = sbr.rel (%p9114) target = $region76
      $region75: #{convnet_forward.1} parent=71 // pred_region
        %p9117 = scmp.lt.s32.totalorder %s23, 1
        %s9118 = scalar_select %p9117, %s23, 1
        %s9119 = smul.addr %s9118, 8
        %s9120 = scalar_lea.vmem %s11, %s9119
      $region76: #{convnet_forward.1} parent=71 // pred_fallthru
        _
    $region72: #{convnet_forward.1} parent=5 // pred_fallthru
      _
  $region6: #{convnet_forward.1} parent=0 // loop_footer
    %s21 = sadd.s32 1, %s17
  $region7: #{convnet_forward.1} parent=0 // loop_footer_branch
    %16 = sbr.rel target = $region3
  $region8: #{convnet_forward.1} parent=0 // loop_exit
    _

</llo_original>
